<compile_context>
chip_gen: v7x
topology: tpu7x:2x2x1
jax: 0.10.0
libtpu: 0.0.40
codegen_flags: <defaults>
</compile_context>

<pallas_src>
import math
from functools import partial

import jax
import jax.numpy as jnp
from jax.experimental import pallas as pl
from jax.experimental.pallas import tpu as pltpu


# ----------------------------------------------------------------------------
# Pallas kernel: out^T = act( W @ patches^T + shift (+ residual) )
#   a_ref     : (1, K, TM)   bf16   patches^T tile (lane axis = spatial M)
#   w_ref     : (1, C, K)    bf16   weights with BN scale folded in
#   shift_ref : (1, C, 1)    f32    folded bias / BN shift
#   alpha_ref : (1, C, 1)    f32    (only when act == "prelu")
#   res_ref   : (1, C, TM)   bf16   (only when the conv has a residual add)
#   o_ref     : (1, C, TM)   bf16 or f32
# ----------------------------------------------------------------------------
def _convmm_kernel(a_ref, w_ref, shift_ref, *rest, act, has_alpha, has_res):
    idx = 0
    alpha_ref = None
    res_ref = None
    if has_alpha:
        alpha_ref = rest[idx]; idx += 1
    if has_res:
        res_ref = rest[idx]; idx += 1
    o_ref = rest[idx]

    y = jnp.dot(w_ref[0], a_ref[0], preferred_element_type=jnp.float32)
    y = y + shift_ref[0]
    if has_res:
        y = y + res_ref[0].astype(jnp.float32)
    if act == "relu":
        y = jnp.maximum(y, 0.0)
    elif act == "prelu":
        y = jnp.where(y >= 0.0, y, alpha_ref[0] * y)
    o_ref[0] = y.astype(o_ref.dtype)


def _round_up(v, m):
    return ((v + m - 1) // m) * m


_MAX_A_TILE_BYTES = 4 * 1024 * 1024   # full-M tiles for everything in this config


def _conv_mm(At, Wt, shift, alpha, res, act, out_dtype):
    """At:(G,K,M) bf16, Wt:(G,C,K) bf16, shift:(G,C,1) f32,
    alpha:(G,C,1) f32 | None, res:(G,C,M) bf16 | None  ->  (G,C,M) out_dtype."""
    G, K, M = At.shape
    C = Wt.shape[1]

    # Full-spatial tiles (per-step overhead dominates at these sizes, VMEM is
    # nowhere near a constraint).  Fallback tiling only for much larger inputs.
    if K * M * 2 <= _MAX_A_TILE_BYTES:
        TM, M_pad = M, M
    else:
        TM = max(128, (_MAX_A_TILE_BYTES // (K * 2)) // 128 * 128)
        M_pad = _round_up(M, TM)
        if M_pad != M:
            At = jnp.pad(At, ((0, 0), (0, 0), (0, M_pad - M)))
            if res is not None:
                res = jnp.pad(res, ((0, 0), (0, 0), (0, M_pad - M)))

    n_m = M_pad // TM
    if n_m == 1:
        grid = (G,)
        gm = lambda g: (g, 0, 0)      # broadcast over M
        gm_m = lambda g: (g, 0, 0)    # single full-M tile
    else:
        grid = (G, n_m)
        gm = lambda g, m: (g, 0, 0)
        gm_m = lambda g, m: (g, 0, m)

    in_specs = [
        pl.BlockSpec((1, K, TM), gm_m),
        pl.BlockSpec((1, C, K), gm),
        pl.BlockSpec((1, C, 1), gm),
    ]
    args = [At, Wt, shift]
    if alpha is not None:
        in_specs.append(pl.BlockSpec((1, C, 1), gm))
        args.append(alpha)
    if res is not None:
        in_specs.append(pl.BlockSpec((1, C, TM), gm_m))
        args.append(res)

    kern = partial(_convmm_kernel, act=act,
                   has_alpha=alpha is not None, has_res=res is not None)
    out = pl.pallas_call(
        kern,
        out_shape=jax.ShapeDtypeStruct((G, C, M_pad), out_dtype),
        grid=grid,
        in_specs=in_specs,
        out_specs=pl.BlockSpec((1, C, TM), gm_m),
        compiler_params=pltpu.CompilerParams(
            dimension_semantics=("parallel",) * len(grid),
            vmem_limit_bytes=32 * 1024 * 1024),
    )(*args)
    if M_pad != M:
        out = out[:, :, :M]
    return out


# ----------------------------------------------------------------------------
# Conv glue: padding + transposed im2col (plain JAX), compute in Pallas kernel
# ----------------------------------------------------------------------------
def _im2colT(x_cf, kh, kw, stride, dilation, padding, padding_mode):
    """x_cf: (C, N, H, W).  Returns patches^T (kh*kw*C, N*Ho*Wo), Ho, Wo."""
    C, N, H, W = x_cf.shape
    if padding > 0:
        mode = "reflect" if padding_mode == "reflect" else "constant"
        x_cf = jnp.pad(x_cf, ((0, 0), (0, 0), (padding, padding),
                              (padding, padding)), mode=mode)
    Hp, Wp = H + 2 * padding, W + 2 * padding
    Ho = (Hp - dilation * (kh - 1) - 1) // stride + 1
    Wo = (Wp - dilation * (kw - 1) - 1) // stride + 1
    rows = []
    for i in range(kh):
        for j in range(kw):
            h0, w0 = i * dilation, j * dilation
            sl = x_cf[:, :, h0:h0 + (Ho - 1) * stride + 1:stride,
                            w0:w0 + (Wo - 1) * stride + 1:stride]
            rows.append(sl.reshape(C, N * Ho * Wo))
    # Row order (tap-major, channel-minor) matches w.reshape(kh*kw*cin, cout).
    return jnp.concatenate(rows, axis=0), Ho, Wo


def _fold_scale_shift(cout, bias, bn):
    """Eval-mode BN folding: scale goes into the weights, shift into the add."""
    if bn is not None:
        gamma, beta, mean, var, eps = bn
        sc = gamma * jax.lax.rsqrt(var + eps)
        sh = beta - mean * sc
        if bias is not None:
            sh = sh + bias * sc
    else:
        sc = jnp.ones((cout,), jnp.float32)
        sh = bias if bias is not None else jnp.zeros((cout,), jnp.float32)
    return sc, sh


def fused_conv_group(items, act="none", out_dtype=jnp.bfloat16):
    """Run several same-geometry convs as ONE pallas_call (leading grid axis G).

    Each item: dict(x=(Cin,N,H,W), w=(kh,kw,Cin,Cout)[, bias, bn, stride,
    dilation, padding, padding_mode, alpha, residual]).
    Returns a list of (Cout_i, N, Ho, Wo) arrays (channel-first, out_dtype).
    """
    has_alpha = "alpha" in items[0]
    has_res = "residual" in items[0]
    couts, At_l, Wt_l, sh_l, al_l, res_l = [], [], [], [], [], []
    geom = None
    for it in items:
        x, w = it["x"], it["w"]
        kh, kw, cin, cout = w.shape
        stride = it.get("stride", 1)
        dilation = it.get("dilation", 1)
        padding = it.get("padding", 0)
        pmode = it.get("padding_mode", "zeros")
        if x.dtype != jnp.bfloat16:       # activations are already bf16 inside
            x = x.astype(jnp.bfloat16)
        At, Ho, Wo = _im2colT(x, kh, kw, stride, dilation, padding, pmode)
        N = x.shape[1]
        if geom is None:
            geom = (At.shape[0], At.shape[1], N, Ho, Wo)
        assert geom == (At.shape[0], At.shape[1], N, Ho, Wo)
        sc, sh = _fold_scale_shift(cout, it.get("bias"), it.get("bn"))
        Wt = w.reshape(kh * kw * cin, cout).T * sc[:, None]   # (cout, K), f32
        couts.append(cout)
        At_l.append(At)
        Wt_l.append(Wt)
        sh_l.append(sh)
        al_l.append(it.get("alpha"))
        res_l.append(it.get("residual"))

    K, M, N, Ho, Wo = geom
    cmax = max(couts)
    K_pad = _round_up(K, 16)          # aligned bf16 sublane layout for patches

    def pad_c(a, c):                  # zero-pad the channel axis to cmax
        if c == cmax:
            return a
        return jnp.pad(a, ((0, cmax - c),) + ((0, 0),) * (a.ndim - 1))

    At_g = jnp.stack([jnp.pad(a, ((0, K_pad - K), (0, 0))) if K_pad != K else a
                      for a in At_l]).astype(jnp.bfloat16)
    Wt_g = jnp.stack([
        pad_c(jnp.pad(wm, ((0, 0), (0, K_pad - K))) if K_pad != K else wm, c)
        for wm, c in zip(Wt_l, couts)]).astype(jnp.bfloat16)
    sh_g = jnp.stack([pad_c(s.reshape(c, 1), c)
                      for s, c in zip(sh_l, couts)]).astype(jnp.float32)
    al_g = None
    if has_alpha:
        al_g = jnp.stack([
            pad_c(jnp.broadcast_to(
                jnp.asarray(a, jnp.float32).reshape(-1, 1), (c, 1)), c)
            for a, c in zip(al_l, couts)]).astype(jnp.float32)
    res_g = None
    if has_res:
        res_g = jnp.stack([pad_c(r.reshape(c, M), c).astype(jnp.bfloat16)
                           for r, c in zip(res_l, couts)])

    out = _conv_mm(At_g, Wt_g, sh_g, al_g, res_g, act, out_dtype)  # (G,cmax,M)
    return [out[i, :c].reshape(c, N, Ho, Wo) for i, c in enumerate(couts)]


def fused_conv(x_cf, w, *, stride=1, dilation=1, padding=0,
               padding_mode="zeros", bias=None, bn=None, act="none",
               residual=None, alpha=None, out_dtype=jnp.bfloat16):
    """x_cf: (Cin, N, H, W); w: (KH, KW, Cin, Cout). Returns (Cout, N, Ho, Wo)."""
    item = dict(x=x_cf, w=w, stride=stride, dilation=dilation, padding=padding,
                padding_mode=padding_mode)
    if bias is not None:
        item["bias"] = bias
    if bn is not None:
        item["bn"] = bn
    if alpha is not None:
        item["alpha"] = alpha
    if residual is not None:
        item["residual"] = residual
    return fused_conv_group([item], act=act, out_dtype=out_dtype)[0]


# ----------------------------------------------------------------------------
# Deterministic parameter construction (mirrors UVDocnet.__init__ shapes)
# ----------------------------------------------------------------------------
class _Init:
    def __init__(self, seed=0):
        self._key = jax.random.PRNGKey(seed)

    def _next(self):
        self._key, k = jax.random.split(self._key)
        return k

    def conv(self, kh, kw, cin, cout, gain=0.2):
        # xavier_normal_(gain=0.2), stored in HWIO layout.
        fan_in = cin * kh * kw
        fan_out = cout * kh * kw
        std = gain * math.sqrt(2.0 / (fan_in + fan_out))
        return std * jax.random.normal(self._next(), (kh, kw, cin, cout),
                                       jnp.float32)


def _bn(c):
    # (gamma, beta, running_mean, running_var, eps) -- eval-mode stats
    return (jnp.ones((c,), jnp.float32), jnp.zeros((c,), jnp.float32),
            jnp.zeros((c,), jnp.float32), jnp.ones((c,), jnp.float32), 1e-5)


def _zeros(c):
    return jnp.zeros((c,), jnp.float32)


def init_uvdocnet_params(num_filter=4, kernel_size=5, seed=0):
    ini = _Init(seed)
    nf, ks = num_filter, kernel_size
    map_num = [1, 2, 4, 8, 16]
    c0 = nf * map_num[0]
    cb = nf * map_num[2]
    P = {"ks": ks}

    # resnet_head: two (conv k5 s2, no bias) + BN + ReLU
    P["head"] = [dict(w=ini.conv(ks, ks, 3, c0), bn=_bn(c0)),
                 dict(w=ini.conv(ks, ks, c0, c0), bn=_bn(c0))]

    # resnet_down (ResnetStraight with strides [1, 2, 2], block_nums [3, 4, 6])
    def make_block(cin, cout, stride, is_top, has_down):
        p = dict(w1=ini.conv(ks, ks, cin, cout), b1=_zeros(cout), bn1=_bn(cout),
                 w2=ini.conv(ks, ks, cout, cout), b2=_zeros(cout), bn2=_bn(cout),
                 stride=stride, is_top=is_top)
        if has_down:
            p["dw"] = ini.conv(ks, ks, cin, cout)
            p["db"] = _zeros(cout)
            p["dbn"] = _bn(cout)
        return p

    strides = [1, 2, 2]
    block_nums = [3, 4, 6]
    chans = [nf * map_num[0], nf * map_num[1], nf * map_num[2]]
    layers = []
    in_ch = c0
    for li in range(3):
        out_ch, s = chans[li], strides[li]
        has_down = (s != 1) or (in_ch != out_ch)
        blocks = [make_block(in_ch, out_ch, s, True, has_down)]
        in_ch = out_ch
        for _ in range(1, block_nums[li]):
            blocks.append(make_block(out_ch, out_ch, 1, False, False))
        layers.append(blocks)
    P["resnet"] = layers

    # bridges: dilated 3x3 conv (no bias) + BN + ReLU chains
    def bridge(dils):
        return [dict(w=ini.conv(3, 3, cb, cb), bn=_bn(cb), dilation=d)
                for d in dils]

    P["bridges"] = [bridge([1]), bridge([2]), bridge([5]),
                    bridge([8, 3, 2]), bridge([12, 7, 4]), bridge([18, 12, 6])]
    P["bridge_concat"] = dict(w=ini.conv(1, 1, cb * 6, cb), bn=_bn(cb))

    # output heads (reflect padding)
    def out_head(nout):
        return dict(w1=ini.conv(ks, ks, cb, c0), bn1=_bn(c0), prelu=0.25,
                    w2=ini.conv(ks, ks, c0, nout), b2=_zeros(nout))

    P["out2d"] = out_head(2)
    P["out3d"] = out_head(3)
    return P


# ----------------------------------------------------------------------------
# Forward pass (matches UVDocnet.forward); activations are channel-first bf16
# ----------------------------------------------------------------------------
def uvdocnet_forward(params, x_nchw):
    ks = params["ks"]
    pad = ks // 2
    x = jnp.transpose(x_nchw, (1, 0, 2, 3))               # -> (C, N, H, W)

    # resnet_head
    for hp in params["head"]:
        x = fused_conv(x, hp["w"], stride=2, padding=pad, bn=hp["bn"],
                       act="relu")

    # resnet_down
    for blocks in params["resnet"]:
        for bp in blocks:
            if bp["stride"] != 1 or bp["is_top"]:
                d, p = 1, pad
            else:
                d, p = 3, 3 * pad
            if "dw" in bp:
                # Fuse downsample conv with conv1 (shared input / geometry):
                # Cout concatenation + per-channel alpha (0 -> ReLU, 1 -> id).
                cout = bp["w1"].shape[3]
                wcat = jnp.concatenate([bp["w1"], bp["dw"]], axis=3)
                bcat = jnp.concatenate([bp["b1"], bp["db"]])
                bncat = tuple(jnp.concatenate([bp["bn1"][i], bp["dbn"][i]])
                              for i in range(4)) + (bp["bn1"][4],)
                alpha = jnp.concatenate([jnp.zeros((cout,), jnp.float32),
                                         jnp.ones((cout,), jnp.float32)])
                fused = fused_conv(x, wcat, stride=bp["stride"], dilation=d,
                                   padding=p, bias=bcat, bn=bncat,
                                   act="prelu", alpha=alpha)
                out1, residual = fused[:cout], fused[cout:]
            else:
                residual = x
                out1 = fused_conv(x, bp["w1"], stride=bp["stride"], dilation=d,
                                  padding=p, bias=bp["b1"], bn=bp["bn1"],
                                  act="relu")
            x = fused_conv(out1, bp["w2"], stride=1, dilation=d, padding=p,
                           bias=bp["b2"], bn=bp["bn2"], act="relu",
                           residual=residual)
    down = x

    # six dilated bridge chains, stage-batched (6 + 3 + 3 convs -> 3 calls)
    br = params["bridges"]
    items = [dict(x=down, w=br[b][0]["w"], bn=br[b][0]["bn"],
                  dilation=br[b][0]["dilation"], padding=br[b][0]["dilation"])
             for b in range(6)]
    s1 = fused_conv_group(items, act="relu")
    bouts = s1[:3]
    cur = s1[3:]
    for stage in (1, 2):
        items = [dict(x=cur[k], w=br[b][stage]["w"], bn=br[b][stage]["bn"],
                      dilation=br[b][stage]["dilation"],
                      padding=br[b][stage]["dilation"])
                 for k, b in enumerate((3, 4, 5))]
        cur = fused_conv_group(items, act="relu")
    bouts = bouts + cur
    cat = jnp.concatenate(bouts, axis=0)          # channel concat (NCHW dim=1)

    bc = params["bridge_concat"]
    bridge = fused_conv(cat, bc["w"], padding=0, bn=bc["bn"], act="relu")

    # output heads: both first convs fused into one call via Cout concatenation
    h2, h3 = params["out2d"], params["out3d"]
    c0 = h2["w1"].shape[3]
    w1 = jnp.concatenate([h2["w1"], h3["w1"]], axis=3)
    bn1 = tuple(jnp.concatenate([h2["bn1"][i], h3["bn1"][i]]) for i in range(4))
    bn1 = bn1 + (h2["bn1"][4],)
    alpha = jnp.concatenate([jnp.full((c0,), h2["prelu"], jnp.float32),
                             jnp.full((c0,), h3["prelu"], jnp.float32)])
    h = fused_conv(bridge, w1, padding=pad, padding_mode="reflect",
                   bn=bn1, act="prelu", alpha=alpha)
    h2d, h3d = h[:c0], h[c0:]

    # final convs of both heads batched into one call (f32 outputs)
    items = [dict(x=h2d, w=h2["w2"], bias=h2["b2"], padding=pad,
                  padding_mode="reflect"),
             dict(x=h3d, w=h3["w2"], bias=h3["b2"], padding=pad,
                  padding_mode="reflect")]
    o2, o3 = fused_conv_group(items, act="none", out_dtype=jnp.float32)
    out2d = jnp.transpose(o2, (1, 0, 2, 3))       # (C,N,H,W) -> NCHW
    out3d = jnp.transpose(o3, (1, 0, 2, 3))
    return out2d, out3d


# ----------------------------------------------------------------------------
if __name__ == "__main__":
    key = jax.random.PRNGKey(0)
    # Small input consistent with the module: N=2, C=3, H=W=64, num_filter=4.
    # (H=W=64 is the smallest comfortable size: the net downsamples 16x and the
    #  output heads reflect-pad by 2, which needs the 4x4 feature map.)
    x = jax.random.normal(key, (2, 3, 64, 64), jnp.float32)

    params = init_uvdocnet_params(num_filter=4, kernel_size=5, seed=0)
    fwd = jax.jit(partial(uvdocnet_forward, params))
    out2d, out3d = fwd(x)
    jax.block_until_ready((out2d, out3d))

    assert out2d.shape == (2, 2, 4, 4), out2d.shape
    assert out3d.shape == (2, 3, 4, 4), out3d.shape
    assert out2d.dtype == jnp.float32 and out3d.dtype == jnp.float32
    assert bool(jnp.all(jnp.isfinite(out2d))) and bool(jnp.all(jnp.isfinite(out3d)))
    print("KERNEL_OK")
</pallas_src>

<mosaic_0001>
module attributes {stable_mosaic.version = 11 : i64} {
  func.func @_convmm_kernel(%arg0: i32, %arg1: memref<1x80x2048xbf16, #tpu.memory_space<vmem>>, %arg2: memref<1x4x80xbf16, #tpu.memory_space<vmem>>, %arg3: memref<1x4x1xf32, #tpu.memory_space<vmem>>, %arg4: memref<1x4x2048xbf16, #tpu.memory_space<vmem>>) attributes {dimension_semantics = [#tpu.dimension_semantics<parallel>], iteration_bounds = array<i64: 1>, scalar_prefetch = 0 : i64, scratch_operands = 0 : i64, tpu.core_type = #tpu.core_type<tc>, window_params = [{transform_indices = @transform_0, window_bounds = array<i64: 1, 80, 2048>}, {transform_indices = @transform_1, window_bounds = array<i64: 1, 4, 80>}, {transform_indices = @transform_2, window_bounds = array<i64: 1, 4, 1>}, {transform_indices = @transform_3, window_bounds = array<i64: 1, 4, 2048>}]} {
    %c0 = arith.constant 0 : index
    %c0_0 = arith.constant 0 : index
    %c0_1 = arith.constant 0 : index
    %0 = vector.load %arg2[%c0, %c0_0, %c0_1] : memref<1x4x80xbf16, #tpu.memory_space<vmem>>, vector<1x4x80xbf16>
    %1 = vector.shape_cast %0 : vector<1x4x80xbf16> to vector<4x80xbf16>
    %c0_2 = arith.constant 0 : index
    %c0_3 = arith.constant 0 : index
    %c0_4 = arith.constant 0 : index
    %2 = vector.load %arg1[%c0_2, %c0_3, %c0_4] : memref<1x80x2048xbf16, #tpu.memory_space<vmem>>, vector<1x80x2048xbf16>
    %3 = vector.shape_cast %2 : vector<1x80x2048xbf16> to vector<80x2048xbf16>
    %cst = arith.constant dense<0.000000e+00> : vector<4x2048xf32>
    %4 = tpu.matmul %1, %3, %cst {dimension_numbers = #tpu.dot_dimension_numbers<[1], [0], [0], [1], [0, 0, 1, 1], [], []>} : vector<4x80xbf16>, vector<80x2048xbf16>, vector<4x2048xf32> -> vector<4x2048xf32>
    %c0_5 = arith.constant 0 : index
    %c0_6 = arith.constant 0 : index
    %c0_7 = arith.constant 0 : index
    %5 = vector.load %arg3[%c0_5, %c0_6, %c0_7] : memref<1x4x1xf32, #tpu.memory_space<vmem>>, vector<1x4x1xf32>
    %6 = vector.shape_cast %5 : vector<1x4x1xf32> to vector<4x1xf32>
    %7 = vector.broadcast %6 : vector<4x1xf32> to vector<4x2048xf32>
    %8 = arith.addf %4, %7 : vector<4x2048xf32>
    %cst_8 = arith.constant 0.000000e+00 : f32
    %9 = vector.broadcast %cst_8 : f32 to vector<4x2048xf32>
    %10 = arith.maximumf %8, %9 : vector<4x2048xf32>
    %11 = arith.truncf %10 : vector<4x2048xf32> to vector<4x2048xbf16>
    %c0_9 = arith.constant 0 : index
    %c0_10 = arith.constant 0 : index
    %c0_11 = arith.constant 0 : index
    %12 = vector.load %arg4[%c0_9, %c0_10, %c0_11] : memref<1x4x2048xbf16, #tpu.memory_space<vmem>>, vector<1x4x2048xbf16>
    %13 = vector.shape_cast %12 : vector<1x4x2048xbf16> to vector<4x2048xbf16>
    %14 = vector.shape_cast %11 : vector<4x2048xbf16> to vector<1x4x2048xbf16>
    tpu.vector_store %arg4[%c0_9, %c0_10, %c0_11], %14 {strides = array<i32>} : memref<1x4x2048xbf16, #tpu.memory_space<vmem>>, vector<1x4x2048xbf16>,
    return
  }
  func.func @transform_0(%arg0: i32) -> (i32, i32, i32) {
    %c0_i32 = arith.constant 0 : i32
    %c0_i32_0 = arith.constant 0 : i32
    %c0_i32_1 = arith.constant 0 : i32
    return %arg0, %c0_i32, %c0_i32_0 : i32, i32, i32
  }
  func.func @transform_1(%arg0: i32) -> (i32, i32, i32) {
    %c0_i32 = arith.constant 0 : i32
    %c0_i32_0 = arith.constant 0 : i32
    %c0_i32_1 = arith.constant 0 : i32
    return %arg0, %c0_i32, %c0_i32_0 : i32, i32, i32
  }
  func.func @transform_2(%arg0: i32) -> (i32, i32, i32) {
    %c0_i32 = arith.constant 0 : i32
    %c0_i32_0 = arith.constant 0 : i32
    %c0_i32_1 = arith.constant 0 : i32
    return %arg0, %c0_i32, %c0_i32_0 : i32, i32, i32
  }
  func.func @transform_3(%arg0: i32) -> (i32, i32, i32) {
    %c0_i32 = arith.constant 0 : i32
    %c0_i32_0 = arith.constant 0 : i32
    %c0_i32_1 = arith.constant 0 : i32
    return %arg0, %c0_i32, %c0_i32_0 : i32, i32, i32
  }
}

module attributes {stable_mosaic.version = 11 : i64} {
  func.func @_convmm_kernel(%arg0: i32, %arg1: memref<1x112x512xbf16, #tpu.memory_space<vmem>>, %arg2: memref<1x4x112xbf16, #tpu.memory_space<vmem>>, %arg3: memref<1x4x1xf32, #tpu.memory_space<vmem>>, %arg4: memref<1x4x512xbf16, #tpu.memory_space<vmem>>) attributes {dimension_semantics = [#tpu.dimension_semantics<parallel>], iteration_bounds = array<i64: 1>, scalar_prefetch = 0 : i64, scratch_operands = 0 : i64, tpu.core_type = #tpu.core_type<tc>, window_params = [{transform_indices = @transform_0, window_bounds = array<i64: 1, 112, 512>}, {transform_indices = @transform_1, window_bounds = array<i64: 1, 4, 112>}, {transform_indices = @transform_2, window_bounds = array<i64: 1, 4, 1>}, {transform_indices = @transform_3, window_bounds = array<i64: 1, 4, 512>}]} {
    %c0 = arith.constant 0 : index
    %c0_0 = arith.constant 0 : index
    %c0_1 = arith.constant 0 : index
    %0 = vector.load %arg2[%c0, %c0_0, %c0_1] : memref<1x4x112xbf16, #tpu.memory_space<vmem>>, vector<1x4x112xbf16>
    %1 = vector.shape_cast %0 : vector<1x4x112xbf16> to vector<4x112xbf16>
    %c0_2 = arith.constant 0 : index
    %c0_3 = arith.constant 0 : index
    %c0_4 = arith.constant 0 : index
    %2 = vector.load %arg1[%c0_2, %c0_3, %c0_4] : memref<1x112x512xbf16, #tpu.memory_space<vmem>>, vector<1x112x512xbf16>
    %3 = vector.shape_cast %2 : vector<1x112x512xbf16> to vector<112x512xbf16>
    %cst = arith.constant dense<0.000000e+00> : vector<4x512xf32>
    %4 = tpu.matmul %1, %3, %cst {dimension_numbers = #tpu.dot_dimension_numbers<[1], [0], [0], [1], [0, 0, 1, 1], [], []>} : vector<4x112xbf16>, vector<112x512xbf16>, vector<4x512xf32> -> vector<4x512xf32>
    %c0_5 = arith.constant 0 : index
    %c0_6 = arith.constant 0 : index
    %c0_7 = arith.constant 0 : index
    %5 = vector.load %arg3[%c0_5, %c0_6, %c0_7] : memref<1x4x1xf32, #tpu.memory_space<vmem>>, vector<1x4x1xf32>
    %6 = vector.shape_cast %5 : vector<1x4x1xf32> to vector<4x1xf32>
    %7 = vector.broadcast %6 : vector<4x1xf32> to vector<4x512xf32>
    %8 = arith.addf %4, %7 : vector<4x512xf32>
    %cst_8 = arith.constant 0.000000e+00 : f32
    %9 = vector.broadcast %cst_8 : f32 to vector<4x512xf32>
    %10 = arith.maximumf %8, %9 : vector<4x512xf32>
    %11 = arith.truncf %10 : vector<4x512xf32> to vector<4x512xbf16>
    %c0_9 = arith.constant 0 : index
    %c0_10 = arith.constant 0 : index
    %c0_11 = arith.constant 0 : index
    %12 = vector.load %arg4[%c0_9, %c0_10, %c0_11] : memref<1x4x512xbf16, #tpu.memory_space<vmem>>, vector<1x4x512xbf16>
    %13 = vector.shape_cast %12 : vector<1x4x512xbf16> to vector<4x512xbf16>
    %14 = vector.shape_cast %11 : vector<4x512xbf16> to vector<1x4x512xbf16>
    tpu.vector_store %arg4[%c0_9, %c0_10, %c0_11], %14 {strides = array<i32>} : memref<1x4x512xbf16, #tpu.memory_space<vmem>>, vector<1x4x512xbf16>,
    return
  }
  func.func @transform_0(%arg0: i32) -> (i32, i32, i32) {
    %c0_i32 = arith.constant 0 : i32
    %c0_i32_0 = arith.constant 0 : i32
    %c0_i32_1 = arith.constant 0 : i32
    return %arg0, %c0_i32, %c0_i32_0 : i32, i32, i32
  }
  func.func @transform_1(%arg0: i32) -> (i32, i32, i32) {
    %c0_i32 = arith.constant 0 : i32
    %c0_i32_0 = arith.constant 0 : i32
    %c0_i32_1 = arith.constant 0 : i32
    return %arg0, %c0_i32, %c0_i32_0 : i32, i32, i32
  }
  func.func @transform_2(%arg0: i32) -> (i32, i32, i32) {
    %c0_i32 = arith.constant 0 : i32
    %c0_i32_0 = arith.constant 0 : i32
    %c0_i32_1 = arith.constant 0 : i32
    return %arg0, %c0_i32, %c0_i32_0 : i32, i32, i32
  }
  func.func @transform_3(%arg0: i32) -> (i32, i32, i32) {
    %c0_i32 = arith.constant 0 : i32
    %c0_i32_0 = arith.constant 0 : i32
    %c0_i32_1 = arith.constant 0 : i32
    return %arg0, %c0_i32, %c0_i32_0 : i32, i32, i32
  }
}

module attributes {stable_mosaic.version = 11 : i64} {
  func.func @_convmm_kernel(%arg0: i32, %arg1: memref<1x112x512xbf16, #tpu.memory_space<vmem>>, %arg2: memref<1x4x112xbf16, #tpu.memory_space<vmem>>, %arg3: memref<1x4x1xf32, #tpu.memory_space<vmem>>, %arg4: memref<1x4x512xbf16, #tpu.memory_space<vmem>>, %arg5: memref<1x4x512xbf16, #tpu.memory_space<vmem>>) attributes {dimension_semantics = [#tpu.dimension_semantics<parallel>], iteration_bounds = array<i64: 1>, scalar_prefetch = 0 : i64, scratch_operands = 0 : i64, tpu.core_type = #tpu.core_type<tc>, window_params = [{transform_indices = @transform_0, window_bounds = array<i64: 1, 112, 512>}, {transform_indices = @transform_1, window_bounds = array<i64: 1, 4, 112>}, {transform_indices = @transform_2, window_bounds = array<i64: 1, 4, 1>}, {transform_indices = @transform_3, window_bounds = array<i64: 1, 4, 512>}, {transform_indices = @transform_4, window_bounds = array<i64: 1, 4, 512>}]} {
    %c0 = arith.constant 0 : index
    %c0_0 = arith.constant 0 : index
    %c0_1 = arith.constant 0 : index
    %0 = vector.load %arg2[%c0, %c0_0, %c0_1] : memref<1x4x112xbf16, #tpu.memory_space<vmem>>, vector<1x4x112xbf16>
    %1 = vector.shape_cast %0 : vector<1x4x112xbf16> to vector<4x112xbf16>
    %c0_2 = arith.constant 0 : index
    %c0_3 = arith.constant 0 : index
    %c0_4 = arith.constant 0 : index
    %2 = vector.load %arg1[%c0_2, %c0_3, %c0_4] : memref<1x112x512xbf16, #tpu.memory_space<vmem>>, vector<1x112x512xbf16>
    %3 = vector.shape_cast %2 : vector<1x112x512xbf16> to vector<112x512xbf16>
    %cst = arith.constant dense<0.000000e+00> : vector<4x512xf32>
    %4 = tpu.matmul %1, %3, %cst {dimension_numbers = #tpu.dot_dimension_numbers<[1], [0], [0], [1], [0, 0, 1, 1], [], []>} : vector<4x112xbf16>, vector<112x512xbf16>, vector<4x512xf32> -> vector<4x512xf32>
    %c0_5 = arith.constant 0 : index
    %c0_6 = arith.constant 0 : index
    %c0_7 = arith.constant 0 : index
    %5 = vector.load %arg3[%c0_5, %c0_6, %c0_7] : memref<1x4x1xf32, #tpu.memory_space<vmem>>, vector<1x4x1xf32>
    %6 = vector.shape_cast %5 : vector<1x4x1xf32> to vector<4x1xf32>
    %7 = vector.broadcast %6 : vector<4x1xf32> to vector<4x512xf32>
    %8 = arith.addf %4, %7 : vector<4x512xf32>
    %c0_8 = arith.constant 0 : index
    %c0_9 = arith.constant 0 : index
    %c0_10 = arith.constant 0 : index
    %9 = vector.load %arg4[%c0_8, %c0_9, %c0_10] : memref<1x4x512xbf16, #tpu.memory_space<vmem>>, vector<1x4x512xbf16>
    %10 = vector.shape_cast %9 : vector<1x4x512xbf16> to vector<4x512xbf16>
    %11 = arith.extf %10 : vector<4x512xbf16> to vector<4x512xf32>
    %12 = arith.addf %8, %11 : vector<4x512xf32>
    %cst_11 = arith.constant 0.000000e+00 : f32
    %13 = vector.broadcast %cst_11 : f32 to vector<4x512xf32>
    %14 = arith.maximumf %12, %13 : vector<4x512xf32>
    %15 = arith.truncf %14 : vector<4x512xf32> to vector<4x512xbf16>
    %c0_12 = arith.constant 0 : index
    %c0_13 = arith.constant 0 : index
    %c0_14 = arith.constant 0 : index
    %16 = vector.load %arg5[%c0_12, %c0_13, %c0_14] : memref<1x4x512xbf16, #tpu.memory_space<vmem>>, vector<1x4x512xbf16>
    %17 = vector.shape_cast %16 : vector<1x4x512xbf16> to vector<4x512xbf16>
    %18 = vector.shape_cast %15 : vector<4x512xbf16> to vector<1x4x512xbf16>
    tpu.vector_store %arg5[%c0_12, %c0_13, %c0_14], %18 {strides = array<i32>} : memref<1x4x512xbf16, #tpu.memory_space<vmem>>, vector<1x4x512xbf16>,
    return
  }
  func.func @transform_0(%arg0: i32) -> (i32, i32, i32) {
    %c0_i32 = arith.constant 0 : i32
    %c0_i32_0 = arith.constant 0 : i32
    %c0_i32_1 = arith.constant 0 : i32
    return %arg0, %c0_i32, %c0_i32_0 : i32, i32, i32
  }
  func.func @transform_1(%arg0: i32) -> (i32, i32, i32) {
    %c0_i32 = arith.constant 0 : i32
    %c0_i32_0 = arith.constant 0 : i32
    %c0_i32_1 = arith.constant 0 : i32
    return %arg0, %c0_i32, %c0_i32_0 : i32, i32, i32
  }
  func.func @transform_2(%arg0: i32) -> (i32, i32, i32) {
    %c0_i32 = arith.constant 0 : i32
    %c0_i32_0 = arith.constant 0 : i32
    %c0_i32_1 = arith.constant 0 : i32
    return %arg0, %c0_i32, %c0_i32_0 : i32, i32, i32
  }
  func.func @transform_3(%arg0: i32) -> (i32, i32, i32) {
    %c0_i32 = arith.constant 0 : i32
    %c0_i32_0 = arith.constant 0 : i32
    %c0_i32_1 = arith.constant 0 : i32
    return %arg0, %c0_i32, %c0_i32_0 : i32, i32, i32
  }
  func.func @transform_4(%arg0: i32) -> (i32, i32, i32) {
    %c0_i32 = arith.constant 0 : i32
    %c0_i32_0 = arith.constant 0 : i32
    %c0_i32_1 = arith.constant 0 : i32
    return %arg0, %c0_i32, %c0_i32_0 : i32, i32, i32
  }
}

module attributes {stable_mosaic.version = 11 : i64} {
  func.func @_convmm_kernel(%arg0: i32, %arg1: memref<1x112x128xbf16, #tpu.memory_space<vmem>>, %arg2: memref<1x16x112xbf16, #tpu.memory_space<vmem>>, %arg3: memref<1x16x1xf32, #tpu.memory_space<vmem>>, %arg4: memref<1x16x1xf32, #tpu.memory_space<vmem>>, %arg5: memref<1x16x128xbf16, #tpu.memory_space<vmem>>) attributes {dimension_semantics = [#tpu.dimension_semantics<parallel>], iteration_bounds = array<i64: 1>, scalar_prefetch = 0 : i64, scratch_operands = 0 : i64, tpu.core_type = #tpu.core_type<tc>, window_params = [{transform_indices = @transform_0, window_bounds = array<i64: 1, 112, 128>}, {transform_indices = @transform_1, window_bounds = array<i64: 1, 16, 112>}, {transform_indices = @transform_2, window_bounds = array<i64: 1, 16, 1>}, {transform_indices = @transform_3, window_bounds = array<i64: 1, 16, 1>}, {transform_indices = @transform_4, window_bounds = array<i64: 1, 16, 128>}]} {
    %c0 = arith.constant 0 : index
    %c0_0 = arith.constant 0 : index
    %c0_1 = arith.constant 0 : index
    %0 = vector.load %arg2[%c0, %c0_0, %c0_1] : memref<1x16x112xbf16, #tpu.memory_space<vmem>>, vector<1x16x112xbf16>
    %1 = vector.shape_cast %0 : vector<1x16x112xbf16> to vector<16x112xbf16>
    %c0_2 = arith.constant 0 : index
    %c0_3 = arith.constant 0 : index
    %c0_4 = arith.constant 0 : index
    %2 = vector.load %arg1[%c0_2, %c0_3, %c0_4] : memref<1x112x128xbf16, #tpu.memory_space<vmem>>, vector<1x112x128xbf16>
    %3 = vector.shape_cast %2 : vector<1x112x128xbf16> to vector<112x128xbf16>
    %cst = arith.constant dense<0.000000e+00> : vector<16x128xf32>
    %4 = tpu.matmul %1, %3, %cst {dimension_numbers = #tpu.dot_dimension_numbers<[1], [0], [0], [1], [0, 0, 1, 1], [], []>} : vector<16x112xbf16>, vector<112x128xbf16>, vector<16x128xf32> -> vector<16x128xf32>
    %c0_5 = arith.constant 0 : index
    %c0_6 = arith.constant 0 : index
    %c0_7 = arith.constant 0 : index
    %5 = vector.load %arg3[%c0_5, %c0_6, %c0_7] : memref<1x16x1xf32, #tpu.memory_space<vmem>>, vector<1x16x1xf32>
    %6 = vector.shape_cast %5 : vector<1x16x1xf32> to vector<16x1xf32>
    %7 = vector.broadcast %6 : vector<16x1xf32> to vector<16x128xf32>
    %8 = arith.addf %4, %7 : vector<16x128xf32>
    %cst_8 = arith.constant 0.000000e+00 : f32
    %9 = vector.broadcast %cst_8 : f32 to vector<16x128xf32>
    %10 = arith.cmpf oge, %8, %9 : vector<16x128xf32>
    %c0_9 = arith.constant 0 : index
    %c0_10 = arith.constant 0 : index
    %c0_11 = arith.constant 0 : index
    %11 = vector.load %arg4[%c0_9, %c0_10, %c0_11] : memref<1x16x1xf32, #tpu.memory_space<vmem>>, vector<1x16x1xf32>
    %12 = vector.shape_cast %11 : vector<1x16x1xf32> to vector<16x1xf32>
    %13 = vector.broadcast %12 : vector<16x1xf32> to vector<16x128xf32>
    %14 = arith.mulf %13, %8 : vector<16x128xf32>
    %15 = arith.select %10, %8, %14 : vector<16x128xi1>, vector<16x128xf32>
    %16 = arith.truncf %15 : vector<16x128xf32> to vector<16x128xbf16>
    %c0_12 = arith.constant 0 : index
    %c0_13 = arith.constant 0 : index
    %c0_14 = arith.constant 0 : index
    %17 = vector.load %arg5[%c0_12, %c0_13, %c0_14] : memref<1x16x128xbf16, #tpu.memory_space<vmem>>, vector<1x16x128xbf16>
    %18 = vector.shape_cast %17 : vector<1x16x128xbf16> to vector<16x128xbf16>
    %19 = vector.shape_cast %16 : vector<16x128xbf16> to vector<1x16x128xbf16>
    tpu.vector_store %arg5[%c0_12, %c0_13, %c0_14], %19 {strides = array<i32>} : memref<1x16x128xbf16, #tpu.memory_space<vmem>>, vector<1x16x128xbf16>,
    return
  }
  func.func @transform_0(%arg0: i32) -> (i32, i32, i32) {
    %c0_i32 = arith.constant 0 : i32
    %c0_i32_0 = arith.constant 0 : i32
    %c0_i32_1 = arith.constant 0 : i32
    return %arg0, %c0_i32, %c0_i32_0 : i32, i32, i32
  }
  func.func @transform_1(%arg0: i32) -> (i32, i32, i32) {
    %c0_i32 = arith.constant 0 : i32
    %c0_i32_0 = arith.constant 0 : i32
    %c0_i32_1 = arith.constant 0 : i32
    return %arg0, %c0_i32, %c0_i32_0 : i32, i32, i32
  }
  func.func @transform_2(%arg0: i32) -> (i32, i32, i32) {
    %c0_i32 = arith.constant 0 : i32
    %c0_i32_0 = arith.constant 0 : i32
    %c0_i32_1 = arith.constant 0 : i32
    return %arg0, %c0_i32, %c0_i32_0 : i32, i32, i32
  }
  func.func @transform_3(%arg0: i32) -> (i32, i32, i32) {
    %c0_i32 = arith.constant 0 : i32
    %c0_i32_0 = arith.constant 0 : i32
    %c0_i32_1 = arith.constant 0 : i32
    return %arg0, %c0_i32, %c0_i32_0 : i32, i32, i32
  }
  func.func @transform_4(%arg0: i32) -> (i32, i32, i32) {
    %c0_i32 = arith.constant 0 : i32
    %c0_i32_0 = arith.constant 0 : i32
    %c0_i32_1 = arith.constant 0 : i32
    return %arg0, %c0_i32, %c0_i32_0 : i32, i32, i32
  }
}

module attributes {stable_mosaic.version = 11 : i64} {
  func.func @_convmm_kernel(%arg0: i32, %arg1: memref<1x208x128xbf16, #tpu.memory_space<vmem>>, %arg2: memref<1x8x208xbf16, #tpu.memory_space<vmem>>, %arg3: memref<1x8x1xf32, #tpu.memory_space<vmem>>, %arg4: memref<1x8x128xbf16, #tpu.memory_space<vmem>>, %arg5: memref<1x8x128xbf16, #tpu.memory_space<vmem>>) attributes {dimension_semantics = [#tpu.dimension_semantics<parallel>], iteration_bounds = array<i64: 1>, scalar_prefetch = 0 : i64, scratch_operands = 0 : i64, tpu.core_type = #tpu.core_type<tc>, window_params = [{transform_indices = @transform_0, window_bounds = array<i64: 1, 208, 128>}, {transform_indices = @transform_1, window_bounds = array<i64: 1, 8, 208>}, {transform_indices = @transform_2, window_bounds = array<i64: 1, 8, 1>}, {transform_indices = @transform_3, window_bounds = array<i64: 1, 8, 128>}, {transform_indices = @transform_4, window_bounds = array<i64: 1, 8, 128>}]} {
    %c0 = arith.constant 0 : index
    %c0_0 = arith.constant 0 : index
    %c0_1 = arith.constant 0 : index
    %0 = vector.load %arg2[%c0, %c0_0, %c0_1] : memref<1x8x208xbf16, #tpu.memory_space<vmem>>, vector<1x8x208xbf16>
    %1 = vector.shape_cast %0 : vector<1x8x208xbf16> to vector<8x208xbf16>
    %c0_2 = arith.constant 0 : index
    %c0_3 = arith.constant 0 : index
    %c0_4 = arith.constant 0 : index
    %2 = vector.load %arg1[%c0_2, %c0_3, %c0_4] : memref<1x208x128xbf16, #tpu.memory_space<vmem>>, vector<1x208x128xbf16>
    %3 = vector.shape_cast %2 : vector<1x208x128xbf16> to vector<208x128xbf16>
    %cst = arith.constant dense<0.000000e+00> : vector<8x128xf32>
    %4 = tpu.matmul %1, %3, %cst {dimension_numbers = #tpu.dot_dimension_numbers<[1], [0], [0], [1], [0, 0, 1, 1], [], []>} : vector<8x208xbf16>, vector<208x128xbf16>, vector<8x128xf32> -> vector<8x128xf32>
    %c0_5 = arith.constant 0 : index
    %c0_6 = arith.constant 0 : index
    %c0_7 = arith.constant 0 : index
    %5 = vector.load %arg3[%c0_5, %c0_6, %c0_7] : memref<1x8x1xf32, #tpu.memory_space<vmem>>, vector<1x8x1xf32>
    %6 = vector.shape_cast %5 : vector<1x8x1xf32> to vector<8x1xf32>
    %7 = vector.broadcast %6 : vector<8x1xf32> to vector<8x128xf32>
    %8 = arith.addf %4, %7 : vector<8x128xf32>
    %c0_8 = arith.constant 0 : index
    %c0_9 = arith.constant 0 : index
    %c0_10 = arith.constant 0 : index
    %9 = vector.load %arg4[%c0_8, %c0_9, %c0_10] : memref<1x8x128xbf16, #tpu.memory_space<vmem>>, vector<1x8x128xbf16>
    %10 = vector.shape_cast %9 : vector<1x8x128xbf16> to vector<8x128xbf16>
    %11 = arith.extf %10 : vector<8x128xbf16> to vector<8x128xf32>
    %12 = arith.addf %8, %11 : vector<8x128xf32>
    %cst_11 = arith.constant 0.000000e+00 : f32
    %13 = vector.broadcast %cst_11 : f32 to vector<8x128xf32>
    %14 = arith.maximumf %12, %13 : vector<8x128xf32>
    %15 = arith.truncf %14 : vector<8x128xf32> to vector<8x128xbf16>
    %c0_12 = arith.constant 0 : index
    %c0_13 = arith.constant 0 : index
    %c0_14 = arith.constant 0 : index
    %16 = vector.load %arg5[%c0_12, %c0_13, %c0_14] : memref<1x8x128xbf16, #tpu.memory_space<vmem>>, vector<1x8x128xbf16>
    %17 = vector.shape_cast %16 : vector<1x8x128xbf16> to vector<8x128xbf16>
    %18 = vector.shape_cast %15 : vector<8x128xbf16> to vector<1x8x128xbf16>
    tpu.vector_store %arg5[%c0_12, %c0_13, %c0_14], %18 {strides = array<i32>} : memref<1x8x128xbf16, #tpu.memory_space<vmem>>, vector<1x8x128xbf16>,
    return
  }
  func.func @transform_0(%arg0: i32) -> (i32, i32, i32) {
    %c0_i32 = arith.constant 0 : i32
    %c0_i32_0 = arith.constant 0 : i32
    %c0_i32_1 = arith.constant 0 : i32
    return %arg0, %c0_i32, %c0_i32_0 : i32, i32, i32
  }
  func.func @transform_1(%arg0: i32) -> (i32, i32, i32) {
    %c0_i32 = arith.constant 0 : i32
    %c0_i32_0 = arith.constant 0 : i32
    %c0_i32_1 = arith.constant 0 : i32
    return %arg0, %c0_i32, %c0_i32_0 : i32, i32, i32
  }
  func.func @transform_2(%arg0: i32) -> (i32, i32, i32) {
    %c0_i32 = arith.constant 0 : i32
    %c0_i32_0 = arith.constant 0 : i32
    %c0_i32_1 = arith.constant 0 : i32
    return %arg0, %c0_i32, %c0_i32_0 : i32, i32, i32
  }
  func.func @transform_3(%arg0: i32) -> (i32, i32, i32) {
    %c0_i32 = arith.constant 0 : i32
    %c0_i32_0 = arith.constant 0 : i32
    %c0_i32_1 = arith.constant 0 : i32
    return %arg0, %c0_i32, %c0_i32_0 : i32, i32, i32
  }
  func.func @transform_4(%arg0: i32) -> (i32, i32, i32) {
    %c0_i32 = arith.constant 0 : i32
    %c0_i32_0 = arith.constant 0 : i32
    %c0_i32_1 = arith.constant 0 : i32
    return %arg0, %c0_i32, %c0_i32_0 : i32, i32, i32
  }
}

module attributes {stable_mosaic.version = 11 : i64} {
  func.func @_convmm_kernel(%arg0: i32, %arg1: memref<1x208x128xbf16, #tpu.memory_space<vmem>>, %arg2: memref<1x8x208xbf16, #tpu.memory_space<vmem>>, %arg3: memref<1x8x1xf32, #tpu.memory_space<vmem>>, %arg4: memref<1x8x128xbf16, #tpu.memory_space<vmem>>) attributes {dimension_semantics = [#tpu.dimension_semantics<parallel>], iteration_bounds = array<i64: 1>, scalar_prefetch = 0 : i64, scratch_operands = 0 : i64, tpu.core_type = #tpu.core_type<tc>, window_params = [{transform_indices = @transform_0, window_bounds = array<i64: 1, 208, 128>}, {transform_indices = @transform_1, window_bounds = array<i64: 1, 8, 208>}, {transform_indices = @transform_2, window_bounds = array<i64: 1, 8, 1>}, {transform_indices = @transform_3, window_bounds = array<i64: 1, 8, 128>}]} {
    %c0 = arith.constant 0 : index
    %c0_0 = arith.constant 0 : index
    %c0_1 = arith.constant 0 : index
    %0 = vector.load %arg2[%c0, %c0_0, %c0_1] : memref<1x8x208xbf16, #tpu.memory_space<vmem>>, vector<1x8x208xbf16>
    %1 = vector.shape_cast %0 : vector<1x8x208xbf16> to vector<8x208xbf16>
    %c0_2 = arith.constant 0 : index
    %c0_3 = arith.constant 0 : index
    %c0_4 = arith.constant 0 : index
    %2 = vector.load %arg1[%c0_2, %c0_3, %c0_4] : memref<1x208x128xbf16, #tpu.memory_space<vmem>>, vector<1x208x128xbf16>
    %3 = vector.shape_cast %2 : vector<1x208x128xbf16> to vector<208x128xbf16>
    %cst = arith.constant dense<0.000000e+00> : vector<8x128xf32>
    %4 = tpu.matmul %1, %3, %cst {dimension_numbers = #tpu.dot_dimension_numbers<[1], [0], [0], [1], [0, 0, 1, 1], [], []>} : vector<8x208xbf16>, vector<208x128xbf16>, vector<8x128xf32> -> vector<8x128xf32>
    %c0_5 = arith.constant 0 : index
    %c0_6 = arith.constant 0 : index
    %c0_7 = arith.constant 0 : index
    %5 = vector.load %arg3[%c0_5, %c0_6, %c0_7] : memref<1x8x1xf32, #tpu.memory_space<vmem>>, vector<1x8x1xf32>
    %6 = vector.shape_cast %5 : vector<1x8x1xf32> to vector<8x1xf32>
    %7 = vector.broadcast %6 : vector<8x1xf32> to vector<8x128xf32>
    %8 = arith.addf %4, %7 : vector<8x128xf32>
    %cst_8 = arith.constant 0.000000e+00 : f32
    %9 = vector.broadcast %cst_8 : f32 to vector<8x128xf32>
    %10 = arith.maximumf %8, %9 : vector<8x128xf32>
    %11 = arith.truncf %10 : vector<8x128xf32> to vector<8x128xbf16>
    %c0_9 = arith.constant 0 : index
    %c0_10 = arith.constant 0 : index
    %c0_11 = arith.constant 0 : index
    %12 = vector.load %arg4[%c0_9, %c0_10, %c0_11] : memref<1x8x128xbf16, #tpu.memory_space<vmem>>, vector<1x8x128xbf16>
    %13 = vector.shape_cast %12 : vector<1x8x128xbf16> to vector<8x128xbf16>
    %14 = vector.shape_cast %11 : vector<8x128xbf16> to vector<1x8x128xbf16>
    tpu.vector_store %arg4[%c0_9, %c0_10, %c0_11], %14 {strides = array<i32>} : memref<1x8x128xbf16, #tpu.memory_space<vmem>>, vector<1x8x128xbf16>,
    return
  }
  func.func @transform_0(%arg0: i32) -> (i32, i32, i32) {
    %c0_i32 = arith.constant 0 : i32
    %c0_i32_0 = arith.constant 0 : i32
    %c0_i32_1 = arith.constant 0 : i32
    return %arg0, %c0_i32, %c0_i32_0 : i32, i32, i32
  }
  func.func @transform_1(%arg0: i32) -> (i32, i32, i32) {
    %c0_i32 = arith.constant 0 : i32
    %c0_i32_0 = arith.constant 0 : i32
    %c0_i32_1 = arith.constant 0 : i32
    return %arg0, %c0_i32, %c0_i32_0 : i32, i32, i32
  }
  func.func @transform_2(%arg0: i32) -> (i32, i32, i32) {
    %c0_i32 = arith.constant 0 : i32
    %c0_i32_0 = arith.constant 0 : i32
    %c0_i32_1 = arith.constant 0 : i32
    return %arg0, %c0_i32, %c0_i32_0 : i32, i32, i32
  }
  func.func @transform_3(%arg0: i32) -> (i32, i32, i32) {
    %c0_i32 = arith.constant 0 : i32
    %c0_i32_0 = arith.constant 0 : i32
    %c0_i32_1 = arith.constant 0 : i32
    return %arg0, %c0_i32, %c0_i32_0 : i32, i32, i32
  }
}

module attributes {stable_mosaic.version = 11 : i64} {
  func.func @_convmm_kernel(%arg0: i32, %arg1: memref<1x208x32xbf16, #tpu.memory_space<vmem>>, %arg2: memref<1x32x208xbf16, #tpu.memory_space<vmem>>, %arg3: memref<1x32x1xf32, #tpu.memory_space<vmem>>, %arg4: memref<1x32x1xf32, #tpu.memory_space<vmem>>, %arg5: memref<1x32x32xbf16, #tpu.memory_space<vmem>>) attributes {dimension_semantics = [#tpu.dimension_semantics<parallel>], iteration_bounds = array<i64: 1>, scalar_prefetch = 0 : i64, scratch_operands = 0 : i64, tpu.core_type = #tpu.core_type<tc>, window_params = [{transform_indices = @transform_0, window_bounds = array<i64: 1, 208, 32>}, {transform_indices = @transform_1, window_bounds = array<i64: 1, 32, 208>}, {transform_indices = @transform_2, window_bounds = array<i64: 1, 32, 1>}, {transform_indices = @transform_3, window_bounds = array<i64: 1, 32, 1>}, {transform_indices = @transform_4, window_bounds = array<i64: 1, 32, 32>}]} {
    %c0 = arith.constant 0 : index
    %c0_0 = arith.constant 0 : index
    %c0_1 = arith.constant 0 : index
    %0 = vector.load %arg2[%c0, %c0_0, %c0_1] : memref<1x32x208xbf16, #tpu.memory_space<vmem>>, vector<1x32x208xbf16>
    %1 = vector.shape_cast %0 : vector<1x32x208xbf16> to vector<32x208xbf16>
    %c0_2 = arith.constant 0 : index
    %c0_3 = arith.constant 0 : index
    %c0_4 = arith.constant 0 : index
    %2 = vector.load %arg1[%c0_2, %c0_3, %c0_4] : memref<1x208x32xbf16, #tpu.memory_space<vmem>>, vector<1x208x32xbf16>
    %3 = vector.shape_cast %2 : vector<1x208x32xbf16> to vector<208x32xbf16>
    %cst = arith.constant dense<0.000000e+00> : vector<32x32xf32>
    %4 = tpu.matmul %1, %3, %cst {dimension_numbers = #tpu.dot_dimension_numbers<[1], [0], [0], [1], [0, 0, 1, 1], [], []>} : vector<32x208xbf16>, vector<208x32xbf16>, vector<32x32xf32> -> vector<32x32xf32>
    %c0_5 = arith.constant 0 : index
    %c0_6 = arith.constant 0 : index
    %c0_7 = arith.constant 0 : index
    %5 = vector.load %arg3[%c0_5, %c0_6, %c0_7] : memref<1x32x1xf32, #tpu.memory_space<vmem>>, vector<1x32x1xf32>
    %6 = vector.shape_cast %5 : vector<1x32x1xf32> to vector<32x1xf32>
    %7 = vector.broadcast %6 : vector<32x1xf32> to vector<32x32xf32>
    %8 = arith.addf %4, %7 : vector<32x32xf32>
    %cst_8 = arith.constant 0.000000e+00 : f32
    %9 = vector.broadcast %cst_8 : f32 to vector<32x32xf32>
    %10 = arith.cmpf oge, %8, %9 : vector<32x32xf32>
    %c0_9 = arith.constant 0 : index
    %c0_10 = arith.constant 0 : index
    %c0_11 = arith.constant 0 : index
    %11 = vector.load %arg4[%c0_9, %c0_10, %c0_11] : memref<1x32x1xf32, #tpu.memory_space<vmem>>, vector<1x32x1xf32>
    %12 = vector.shape_cast %11 : vector<1x32x1xf32> to vector<32x1xf32>
    %13 = vector.broadcast %12 : vector<32x1xf32> to vector<32x32xf32>
    %14 = arith.mulf %13, %8 : vector<32x32xf32>
    %15 = arith.select %10, %8, %14 : vector<32x32xi1>, vector<32x32xf32>
    %16 = arith.truncf %15 : vector<32x32xf32> to vector<32x32xbf16>
    %c0_12 = arith.constant 0 : index
    %c0_13 = arith.constant 0 : index
    %c0_14 = arith.constant 0 : index
    %17 = vector.load %arg5[%c0_12, %c0_13, %c0_14] : memref<1x32x32xbf16, #tpu.memory_space<vmem>>, vector<1x32x32xbf16>
    %18 = vector.shape_cast %17 : vector<1x32x32xbf16> to vector<32x32xbf16>
    %19 = vector.shape_cast %16 : vector<32x32xbf16> to vector<1x32x32xbf16>
    tpu.vector_store %arg5[%c0_12, %c0_13, %c0_14], %19 {strides = array<i32>} : memref<1x32x32xbf16, #tpu.memory_space<vmem>>, vector<1x32x32xbf16>,
    return
  }
  func.func @transform_0(%arg0: i32) -> (i32, i32, i32) {
    %c0_i32 = arith.constant 0 : i32
    %c0_i32_0 = arith.constant 0 : i32
    %c0_i32_1 = arith.constant 0 : i32
    return %arg0, %c0_i32, %c0_i32_0 : i32, i32, i32
  }
  func.func @transform_1(%arg0: i32) -> (i32, i32, i32) {
    %c0_i32 = arith.constant 0 : i32
    %c0_i32_0 = arith.constant 0 : i32
    %c0_i32_1 = arith.constant 0 : i32
    return %arg0, %c0_i32, %c0_i32_0 : i32, i32, i32
  }
  func.func @transform_2(%arg0: i32) -> (i32, i32, i32) {
    %c0_i32 = arith.constant 0 : i32
    %c0_i32_0 = arith.constant 0 : i32
    %c0_i32_1 = arith.constant 0 : i32
    return %arg0, %c0_i32, %c0_i32_0 : i32, i32, i32
  }
  func.func @transform_3(%arg0: i32) -> (i32, i32, i32) {
    %c0_i32 = arith.constant 0 : i32
    %c0_i32_0 = arith.constant 0 : i32
    %c0_i32_1 = arith.constant 0 : i32
    return %arg0, %c0_i32, %c0_i32_0 : i32, i32, i32
  }
  func.func @transform_4(%arg0: i32) -> (i32, i32, i32) {
    %c0_i32 = arith.constant 0 : i32
    %c0_i32_0 = arith.constant 0 : i32
    %c0_i32_1 = arith.constant 0 : i32
    return %arg0, %c0_i32, %c0_i32_0 : i32, i32, i32
  }
}

module attributes {stable_mosaic.version = 11 : i64} {
  func.func @_convmm_kernel(%arg0: i32, %arg1: memref<1x400x32xbf16, #tpu.memory_space<vmem>>, %arg2: memref<1x16x400xbf16, #tpu.memory_space<vmem>>, %arg3: memref<1x16x1xf32, #tpu.memory_space<vmem>>, %arg4: memref<1x16x32xbf16, #tpu.memory_space<vmem>>, %arg5: memref<1x16x32xbf16, #tpu.memory_space<vmem>>) attributes {dimension_semantics = [#tpu.dimension_semantics<parallel>], iteration_bounds = array<i64: 1>, scalar_prefetch = 0 : i64, scratch_operands = 0 : i64, tpu.core_type = #tpu.core_type<tc>, window_params = [{transform_indices = @transform_0, window_bounds = array<i64: 1, 400, 32>}, {transform_indices = @transform_1, window_bounds = array<i64: 1, 16, 400>}, {transform_indices = @transform_2, window_bounds = array<i64: 1, 16, 1>}, {transform_indices = @transform_3, window_bounds = array<i64: 1, 16, 32>}, {transform_indices = @transform_4, window_bounds = array<i64: 1, 16, 32>}]} {
    %c0 = arith.constant 0 : index
    %c0_0 = arith.constant 0 : index
    %c0_1 = arith.constant 0 : index
    %0 = vector.load %arg2[%c0, %c0_0, %c0_1] : memref<1x16x400xbf16, #tpu.memory_space<vmem>>, vector<1x16x400xbf16>
    %1 = vector.shape_cast %0 : vector<1x16x400xbf16> to vector<16x400xbf16>
    %c0_2 = arith.constant 0 : index
    %c0_3 = arith.constant 0 : index
    %c0_4 = arith.constant 0 : index
    %2 = vector.load %arg1[%c0_2, %c0_3, %c0_4] : memref<1x400x32xbf16, #tpu.memory_space<vmem>>, vector<1x400x32xbf16>
    %3 = vector.shape_cast %2 : vector<1x400x32xbf16> to vector<400x32xbf16>
    %cst = arith.constant dense<0.000000e+00> : vector<16x32xf32>
    %4 = tpu.matmul %1, %3, %cst {dimension_numbers = #tpu.dot_dimension_numbers<[1], [0], [0], [1], [0, 0, 1, 1], [], []>} : vector<16x400xbf16>, vector<400x32xbf16>, vector<16x32xf32> -> vector<16x32xf32>
    %c0_5 = arith.constant 0 : index
    %c0_6 = arith.constant 0 : index
    %c0_7 = arith.constant 0 : index
    %5 = vector.load %arg3[%c0_5, %c0_6, %c0_7] : memref<1x16x1xf32, #tpu.memory_space<vmem>>, vector<1x16x1xf32>
    %6 = vector.shape_cast %5 : vector<1x16x1xf32> to vector<16x1xf32>
    %7 = vector.broadcast %6 : vector<16x1xf32> to vector<16x32xf32>
    %8 = arith.addf %4, %7 : vector<16x32xf32>
    %c0_8 = arith.constant 0 : index
    %c0_9 = arith.constant 0 : index
    %c0_10 = arith.constant 0 : index
    %9 = vector.load %arg4[%c0_8, %c0_9, %c0_10] : memref<1x16x32xbf16, #tpu.memory_space<vmem>>, vector<1x16x32xbf16>
    %10 = vector.shape_cast %9 : vector<1x16x32xbf16> to vector<16x32xbf16>
    %11 = arith.extf %10 : vector<16x32xbf16> to vector<16x32xf32>
    %12 = arith.addf %8, %11 : vector<16x32xf32>
    %cst_11 = arith.constant 0.000000e+00 : f32
    %13 = vector.broadcast %cst_11 : f32 to vector<16x32xf32>
    %14 = arith.maximumf %12, %13 : vector<16x32xf32>
    %15 = arith.truncf %14 : vector<16x32xf32> to vector<16x32xbf16>
    %c0_12 = arith.constant 0 : index
    %c0_13 = arith.constant 0 : index
    %c0_14 = arith.constant 0 : index
    %16 = vector.load %arg5[%c0_12, %c0_13, %c0_14] : memref<1x16x32xbf16, #tpu.memory_space<vmem>>, vector<1x16x32xbf16>
    %17 = vector.shape_cast %16 : vector<1x16x32xbf16> to vector<16x32xbf16>
    %18 = vector.shape_cast %15 : vector<16x32xbf16> to vector<1x16x32xbf16>
    tpu.vector_store %arg5[%c0_12, %c0_13, %c0_14], %18 {strides = array<i32>} : memref<1x16x32xbf16, #tpu.memory_space<vmem>>, vector<1x16x32xbf16>,
    return
  }
  func.func @transform_0(%arg0: i32) -> (i32, i32, i32) {
    %c0_i32 = arith.constant 0 : i32
    %c0_i32_0 = arith.constant 0 : i32
    %c0_i32_1 = arith.constant 0 : i32
    return %arg0, %c0_i32, %c0_i32_0 : i32, i32, i32
  }
  func.func @transform_1(%arg0: i32) -> (i32, i32, i32) {
    %c0_i32 = arith.constant 0 : i32
    %c0_i32_0 = arith.constant 0 : i32
    %c0_i32_1 = arith.constant 0 : i32
    return %arg0, %c0_i32, %c0_i32_0 : i32, i32, i32
  }
  func.func @transform_2(%arg0: i32) -> (i32, i32, i32) {
    %c0_i32 = arith.constant 0 : i32
    %c0_i32_0 = arith.constant 0 : i32
    %c0_i32_1 = arith.constant 0 : i32
    return %arg0, %c0_i32, %c0_i32_0 : i32, i32, i32
  }
  func.func @transform_3(%arg0: i32) -> (i32, i32, i32) {
    %c0_i32 = arith.constant 0 : i32
    %c0_i32_0 = arith.constant 0 : i32
    %c0_i32_1 = arith.constant 0 : i32
    return %arg0, %c0_i32, %c0_i32_0 : i32, i32, i32
  }
  func.func @transform_4(%arg0: i32) -> (i32, i32, i32) {
    %c0_i32 = arith.constant 0 : i32
    %c0_i32_0 = arith.constant 0 : i32
    %c0_i32_1 = arith.constant 0 : i32
    return %arg0, %c0_i32, %c0_i32_0 : i32, i32, i32
  }
}

module attributes {stable_mosaic.version = 11 : i64} {
  func.func @_convmm_kernel(%arg0: i32, %arg1: memref<1x400x32xbf16, #tpu.memory_space<vmem>>, %arg2: memref<1x16x400xbf16, #tpu.memory_space<vmem>>, %arg3: memref<1x16x1xf32, #tpu.memory_space<vmem>>, %arg4: memref<1x16x32xbf16, #tpu.memory_space<vmem>>) attributes {dimension_semantics = [#tpu.dimension_semantics<parallel>], iteration_bounds = array<i64: 1>, scalar_prefetch = 0 : i64, scratch_operands = 0 : i64, tpu.core_type = #tpu.core_type<tc>, window_params = [{transform_indices = @transform_0, window_bounds = array<i64: 1, 400, 32>}, {transform_indices = @transform_1, window_bounds = array<i64: 1, 16, 400>}, {transform_indices = @transform_2, window_bounds = array<i64: 1, 16, 1>}, {transform_indices = @transform_3, window_bounds = array<i64: 1, 16, 32>}]} {
    %c0 = arith.constant 0 : index
    %c0_0 = arith.constant 0 : index
    %c0_1 = arith.constant 0 : index
    %0 = vector.load %arg2[%c0, %c0_0, %c0_1] : memref<1x16x400xbf16, #tpu.memory_space<vmem>>, vector<1x16x400xbf16>
    %1 = vector.shape_cast %0 : vector<1x16x400xbf16> to vector<16x400xbf16>
    %c0_2 = arith.constant 0 : index
    %c0_3 = arith.constant 0 : index
    %c0_4 = arith.constant 0 : index
    %2 = vector.load %arg1[%c0_2, %c0_3, %c0_4] : memref<1x400x32xbf16, #tpu.memory_space<vmem>>, vector<1x400x32xbf16>
    %3 = vector.shape_cast %2 : vector<1x400x32xbf16> to vector<400x32xbf16>
    %cst = arith.constant dense<0.000000e+00> : vector<16x32xf32>
    %4 = tpu.matmul %1, %3, %cst {dimension_numbers = #tpu.dot_dimension_numbers<[1], [0], [0], [1], [0, 0, 1, 1], [], []>} : vector<16x400xbf16>, vector<400x32xbf16>, vector<16x32xf32> -> vector<16x32xf32>
    %c0_5 = arith.constant 0 : index
    %c0_6 = arith.constant 0 : index
    %c0_7 = arith.constant 0 : index
    %5 = vector.load %arg3[%c0_5, %c0_6, %c0_7] : memref<1x16x1xf32, #tpu.memory_space<vmem>>, vector<1x16x1xf32>
    %6 = vector.shape_cast %5 : vector<1x16x1xf32> to vector<16x1xf32>
    %7 = vector.broadcast %6 : vector<16x1xf32> to vector<16x32xf32>
    %8 = arith.addf %4, %7 : vector<16x32xf32>
    %cst_8 = arith.constant 0.000000e+00 : f32
    %9 = vector.broadcast %cst_8 : f32 to vector<16x32xf32>
    %10 = arith.maximumf %8, %9 : vector<16x32xf32>
    %11 = arith.truncf %10 : vector<16x32xf32> to vector<16x32xbf16>
    %c0_9 = arith.constant 0 : index
    %c0_10 = arith.constant 0 : index
    %c0_11 = arith.constant 0 : index
    %12 = vector.load %arg4[%c0_9, %c0_10, %c0_11] : memref<1x16x32xbf16, #tpu.memory_space<vmem>>, vector<1x16x32xbf16>
    %13 = vector.shape_cast %12 : vector<1x16x32xbf16> to vector<16x32xbf16>
    %14 = vector.shape_cast %11 : vector<16x32xbf16> to vector<1x16x32xbf16>
    tpu.vector_store %arg4[%c0_9, %c0_10, %c0_11], %14 {strides = array<i32>} : memref<1x16x32xbf16, #tpu.memory_space<vmem>>, vector<1x16x32xbf16>,
    return
  }
  func.func @transform_0(%arg0: i32) -> (i32, i32, i32) {
    %c0_i32 = arith.constant 0 : i32
    %c0_i32_0 = arith.constant 0 : i32
    %c0_i32_1 = arith.constant 0 : i32
    return %arg0, %c0_i32, %c0_i32_0 : i32, i32, i32
  }
  func.func @transform_1(%arg0: i32) -> (i32, i32, i32) {
    %c0_i32 = arith.constant 0 : i32
    %c0_i32_0 = arith.constant 0 : i32
    %c0_i32_1 = arith.constant 0 : i32
    return %arg0, %c0_i32, %c0_i32_0 : i32, i32, i32
  }
  func.func @transform_2(%arg0: i32) -> (i32, i32, i32) {
    %c0_i32 = arith.constant 0 : i32
    %c0_i32_0 = arith.constant 0 : i32
    %c0_i32_1 = arith.constant 0 : i32
    return %arg0, %c0_i32, %c0_i32_0 : i32, i32, i32
  }
  func.func @transform_3(%arg0: i32) -> (i32, i32, i32) {
    %c0_i32 = arith.constant 0 : i32
    %c0_i32_0 = arith.constant 0 : i32
    %c0_i32_1 = arith.constant 0 : i32
    return %arg0, %c0_i32, %c0_i32_0 : i32, i32, i32
  }
}

module attributes {stable_mosaic.version = 11 : i64} {
  func.func @_convmm_kernel(%arg0: i32, %arg1: memref<1x144x32xbf16, #tpu.memory_space<vmem>>, %arg2: memref<1x16x144xbf16, #tpu.memory_space<vmem>>, %arg3: memref<1x16x1xf32, #tpu.memory_space<vmem>>, %arg4: memref<1x16x32xbf16, #tpu.memory_space<vmem>>) attributes {dimension_semantics = [#tpu.dimension_semantics<parallel>], iteration_bounds = array<i64: 6>, scalar_prefetch = 0 : i64, scratch_operands = 0 : i64, tpu.core_type = #tpu.core_type<tc>, window_params = [{transform_indices = @transform_0, window_bounds = array<i64: 1, 144, 32>}, {transform_indices = @transform_1, window_bounds = array<i64: 1, 16, 144>}, {transform_indices = @transform_2, window_bounds = array<i64: 1, 16, 1>}, {transform_indices = @transform_3, window_bounds = array<i64: 1, 16, 32>}]} {
    %c0 = arith.constant 0 : index
    %c0_0 = arith.constant 0 : index
    %c0_1 = arith.constant 0 : index
    %0 = vector.load %arg2[%c0, %c0_0, %c0_1] : memref<1x16x144xbf16, #tpu.memory_space<vmem>>, vector<1x16x144xbf16>
    %1 = vector.shape_cast %0 : vector<1x16x144xbf16> to vector<16x144xbf16>
    %c0_2 = arith.constant 0 : index
    %c0_3 = arith.constant 0 : index
    %c0_4 = arith.constant 0 : index
    %2 = vector.load %arg1[%c0_2, %c0_3, %c0_4] : memref<1x144x32xbf16, #tpu.memory_space<vmem>>, vector<1x144x32xbf16>
    %3 = vector.shape_cast %2 : vector<1x144x32xbf16> to vector<144x32xbf16>
    %cst = arith.constant dense<0.000000e+00> : vector<16x32xf32>
    %4 = tpu.matmul %1, %3, %cst {dimension_numbers = #tpu.dot_dimension_numbers<[1], [0], [0], [1], [0, 0, 1, 1], [], []>} : vector<16x144xbf16>, vector<144x32xbf16>, vector<16x32xf32> -> vector<16x32xf32>
    %c0_5 = arith.constant 0 : index
    %c0_6 = arith.constant 0 : index
    %c0_7 = arith.constant 0 : index
    %5 = vector.load %arg3[%c0_5, %c0_6, %c0_7] : memref<1x16x1xf32, #tpu.memory_space<vmem>>, vector<1x16x1xf32>
    %6 = vector.shape_cast %5 : vector<1x16x1xf32> to vector<16x1xf32>
    %7 = vector.broadcast %6 : vector<16x1xf32> to vector<16x32xf32>
    %8 = arith.addf %4, %7 : vector<16x32xf32>
    %cst_8 = arith.constant 0.000000e+00 : f32
    %9 = vector.broadcast %cst_8 : f32 to vector<16x32xf32>
    %10 = arith.maximumf %8, %9 : vector<16x32xf32>
    %11 = arith.truncf %10 : vector<16x32xf32> to vector<16x32xbf16>
    %c0_9 = arith.constant 0 : index
    %c0_10 = arith.constant 0 : index
    %c0_11 = arith.constant 0 : index
    %12 = vector.load %arg4[%c0_9, %c0_10, %c0_11] : memref<1x16x32xbf16, #tpu.memory_space<vmem>>, vector<1x16x32xbf16>
    %13 = vector.shape_cast %12 : vector<1x16x32xbf16> to vector<16x32xbf16>
    %14 = vector.shape_cast %11 : vector<16x32xbf16> to vector<1x16x32xbf16>
    tpu.vector_store %arg4[%c0_9, %c0_10, %c0_11], %14 {strides = array<i32>} : memref<1x16x32xbf16, #tpu.memory_space<vmem>>, vector<1x16x32xbf16>,
    return
  }
  func.func @transform_0(%arg0: i32) -> (i32, i32, i32) {
    %c0_i32 = arith.constant 0 : i32
    %c0_i32_0 = arith.constant 0 : i32
    %c0_i32_1 = arith.constant 0 : i32
    return %arg0, %c0_i32, %c0_i32_0 : i32, i32, i32
  }
  func.func @transform_1(%arg0: i32) -> (i32, i32, i32) {
    %c0_i32 = arith.constant 0 : i32
    %c0_i32_0 = arith.constant 0 : i32
    %c0_i32_1 = arith.constant 0 : i32
    return %arg0, %c0_i32, %c0_i32_0 : i32, i32, i32
  }
  func.func @transform_2(%arg0: i32) -> (i32, i32, i32) {
    %c0_i32 = arith.constant 0 : i32
    %c0_i32_0 = arith.constant 0 : i32
    %c0_i32_1 = arith.constant 0 : i32
    return %arg0, %c0_i32, %c0_i32_0 : i32, i32, i32
  }
  func.func @transform_3(%arg0: i32) -> (i32, i32, i32) {
    %c0_i32 = arith.constant 0 : i32
    %c0_i32_0 = arith.constant 0 : i32
    %c0_i32_1 = arith.constant 0 : i32
    return %arg0, %c0_i32, %c0_i32_0 : i32, i32, i32
  }
}

module attributes {stable_mosaic.version = 11 : i64} {
  func.func @_convmm_kernel(%arg0: i32, %arg1: memref<1x144x32xbf16, #tpu.memory_space<vmem>>, %arg2: memref<1x16x144xbf16, #tpu.memory_space<vmem>>, %arg3: memref<1x16x1xf32, #tpu.memory_space<vmem>>, %arg4: memref<1x16x32xbf16, #tpu.memory_space<vmem>>) attributes {dimension_semantics = [#tpu.dimension_semantics<parallel>], iteration_bounds = array<i64: 3>, scalar_prefetch = 0 : i64, scratch_operands = 0 : i64, tpu.core_type = #tpu.core_type<tc>, window_params = [{transform_indices = @transform_0, window_bounds = array<i64: 1, 144, 32>}, {transform_indices = @transform_1, window_bounds = array<i64: 1, 16, 144>}, {transform_indices = @transform_2, window_bounds = array<i64: 1, 16, 1>}, {transform_indices = @transform_3, window_bounds = array<i64: 1, 16, 32>}]} {
    %c0 = arith.constant 0 : index
    %c0_0 = arith.constant 0 : index
    %c0_1 = arith.constant 0 : index
    %0 = vector.load %arg2[%c0, %c0_0, %c0_1] : memref<1x16x144xbf16, #tpu.memory_space<vmem>>, vector<1x16x144xbf16>
    %1 = vector.shape_cast %0 : vector<1x16x144xbf16> to vector<16x144xbf16>
    %c0_2 = arith.constant 0 : index
    %c0_3 = arith.constant 0 : index
    %c0_4 = arith.constant 0 : index
    %2 = vector.load %arg1[%c0_2, %c0_3, %c0_4] : memref<1x144x32xbf16, #tpu.memory_space<vmem>>, vector<1x144x32xbf16>
    %3 = vector.shape_cast %2 : vector<1x144x32xbf16> to vector<144x32xbf16>
    %cst = arith.constant dense<0.000000e+00> : vector<16x32xf32>
    %4 = tpu.matmul %1, %3, %cst {dimension_numbers = #tpu.dot_dimension_numbers<[1], [0], [0], [1], [0, 0, 1, 1], [], []>} : vector<16x144xbf16>, vector<144x32xbf16>, vector<16x32xf32> -> vector<16x32xf32>
    %c0_5 = arith.constant 0 : index
    %c0_6 = arith.constant 0 : index
    %c0_7 = arith.constant 0 : index
    %5 = vector.load %arg3[%c0_5, %c0_6, %c0_7] : memref<1x16x1xf32, #tpu.memory_space<vmem>>, vector<1x16x1xf32>
    %6 = vector.shape_cast %5 : vector<1x16x1xf32> to vector<16x1xf32>
    %7 = vector.broadcast %6 : vector<16x1xf32> to vector<16x32xf32>
    %8 = arith.addf %4, %7 : vector<16x32xf32>
    %cst_8 = arith.constant 0.000000e+00 : f32
    %9 = vector.broadcast %cst_8 : f32 to vector<16x32xf32>
    %10 = arith.maximumf %8, %9 : vector<16x32xf32>
    %11 = arith.truncf %10 : vector<16x32xf32> to vector<16x32xbf16>
    %c0_9 = arith.constant 0 : index
    %c0_10 = arith.constant 0 : index
    %c0_11 = arith.constant 0 : index
    %12 = vector.load %arg4[%c0_9, %c0_10, %c0_11] : memref<1x16x32xbf16, #tpu.memory_space<vmem>>, vector<1x16x32xbf16>
    %13 = vector.shape_cast %12 : vector<1x16x32xbf16> to vector<16x32xbf16>
    %14 = vector.shape_cast %11 : vector<16x32xbf16> to vector<1x16x32xbf16>
    tpu.vector_store %arg4[%c0_9, %c0_10, %c0_11], %14 {strides = array<i32>} : memref<1x16x32xbf16, #tpu.memory_space<vmem>>, vector<1x16x32xbf16>,
    return
  }
  func.func @transform_0(%arg0: i32) -> (i32, i32, i32) {
    %c0_i32 = arith.constant 0 : i32
    %c0_i32_0 = arith.constant 0 : i32
    %c0_i32_1 = arith.constant 0 : i32
    return %arg0, %c0_i32, %c0_i32_0 : i32, i32, i32
  }
  func.func @transform_1(%arg0: i32) -> (i32, i32, i32) {
    %c0_i32 = arith.constant 0 : i32
    %c0_i32_0 = arith.constant 0 : i32
    %c0_i32_1 = arith.constant 0 : i32
    return %arg0, %c0_i32, %c0_i32_0 : i32, i32, i32
  }
  func.func @transform_2(%arg0: i32) -> (i32, i32, i32) {
    %c0_i32 = arith.constant 0 : i32
    %c0_i32_0 = arith.constant 0 : i32
    %c0_i32_1 = arith.constant 0 : i32
    return %arg0, %c0_i32, %c0_i32_0 : i32, i32, i32
  }
  func.func @transform_3(%arg0: i32) -> (i32, i32, i32) {
    %c0_i32 = arith.constant 0 : i32
    %c0_i32_0 = arith.constant 0 : i32
    %c0_i32_1 = arith.constant 0 : i32
    return %arg0, %c0_i32, %c0_i32_0 : i32, i32, i32
  }
}

module attributes {stable_mosaic.version = 11 : i64} {
  func.func @_convmm_kernel(%arg0: i32, %arg1: memref<1x96x32xbf16, #tpu.memory_space<vmem>>, %arg2: memref<1x16x96xbf16, #tpu.memory_space<vmem>>, %arg3: memref<1x16x1xf32, #tpu.memory_space<vmem>>, %arg4: memref<1x16x32xbf16, #tpu.memory_space<vmem>>) attributes {dimension_semantics = [#tpu.dimension_semantics<parallel>], iteration_bounds = array<i64: 1>, scalar_prefetch = 0 : i64, scratch_operands = 0 : i64, tpu.core_type = #tpu.core_type<tc>, window_params = [{transform_indices = @transform_0, window_bounds = array<i64: 1, 96, 32>}, {transform_indices = @transform_1, window_bounds = array<i64: 1, 16, 96>}, {transform_indices = @transform_2, window_bounds = array<i64: 1, 16, 1>}, {transform_indices = @transform_3, window_bounds = array<i64: 1, 16, 32>}]} {
    %c0 = arith.constant 0 : index
    %c0_0 = arith.constant 0 : index
    %c0_1 = arith.constant 0 : index
    %0 = vector.load %arg2[%c0, %c0_0, %c0_1] : memref<1x16x96xbf16, #tpu.memory_space<vmem>>, vector<1x16x96xbf16>
    %1 = vector.shape_cast %0 : vector<1x16x96xbf16> to vector<16x96xbf16>
    %c0_2 = arith.constant 0 : index
    %c0_3 = arith.constant 0 : index
    %c0_4 = arith.constant 0 : index
    %2 = vector.load %arg1[%c0_2, %c0_3, %c0_4] : memref<1x96x32xbf16, #tpu.memory_space<vmem>>, vector<1x96x32xbf16>
    %3 = vector.shape_cast %2 : vector<1x96x32xbf16> to vector<96x32xbf16>
    %cst = arith.constant dense<0.000000e+00> : vector<16x32xf32>
    %4 = tpu.matmul %1, %3, %cst {dimension_numbers = #tpu.dot_dimension_numbers<[1], [0], [0], [1], [0, 0, 1, 1], [], []>} : vector<16x96xbf16>, vector<96x32xbf16>, vector<16x32xf32> -> vector<16x32xf32>
    %c0_5 = arith.constant 0 : index
    %c0_6 = arith.constant 0 : index
    %c0_7 = arith.constant 0 : index
    %5 = vector.load %arg3[%c0_5, %c0_6, %c0_7] : memref<1x16x1xf32, #tpu.memory_space<vmem>>, vector<1x16x1xf32>
    %6 = vector.shape_cast %5 : vector<1x16x1xf32> to vector<16x1xf32>
    %7 = vector.broadcast %6 : vector<16x1xf32> to vector<16x32xf32>
    %8 = arith.addf %4, %7 : vector<16x32xf32>
    %cst_8 = arith.constant 0.000000e+00 : f32
    %9 = vector.broadcast %cst_8 : f32 to vector<16x32xf32>
    %10 = arith.maximumf %8, %9 : vector<16x32xf32>
    %11 = arith.truncf %10 : vector<16x32xf32> to vector<16x32xbf16>
    %c0_9 = arith.constant 0 : index
    %c0_10 = arith.constant 0 : index
    %c0_11 = arith.constant 0 : index
    %12 = vector.load %arg4[%c0_9, %c0_10, %c0_11] : memref<1x16x32xbf16, #tpu.memory_space<vmem>>, vector<1x16x32xbf16>
    %13 = vector.shape_cast %12 : vector<1x16x32xbf16> to vector<16x32xbf16>
    %14 = vector.shape_cast %11 : vector<16x32xbf16> to vector<1x16x32xbf16>
    tpu.vector_store %arg4[%c0_9, %c0_10, %c0_11], %14 {strides = array<i32>} : memref<1x16x32xbf16, #tpu.memory_space<vmem>>, vector<1x16x32xbf16>,
    return
  }
  func.func @transform_0(%arg0: i32) -> (i32, i32, i32) {
    %c0_i32 = arith.constant 0 : i32
    %c0_i32_0 = arith.constant 0 : i32
    %c0_i32_1 = arith.constant 0 : i32
    return %arg0, %c0_i32, %c0_i32_0 : i32, i32, i32
  }
  func.func @transform_1(%arg0: i32) -> (i32, i32, i32) {
    %c0_i32 = arith.constant 0 : i32
    %c0_i32_0 = arith.constant 0 : i32
    %c0_i32_1 = arith.constant 0 : i32
    return %arg0, %c0_i32, %c0_i32_0 : i32, i32, i32
  }
  func.func @transform_2(%arg0: i32) -> (i32, i32, i32) {
    %c0_i32 = arith.constant 0 : i32
    %c0_i32_0 = arith.constant 0 : i32
    %c0_i32_1 = arith.constant 0 : i32
    return %arg0, %c0_i32, %c0_i32_0 : i32, i32, i32
  }
  func.func @transform_3(%arg0: i32) -> (i32, i32, i32) {
    %c0_i32 = arith.constant 0 : i32
    %c0_i32_0 = arith.constant 0 : i32
    %c0_i32_1 = arith.constant 0 : i32
    return %arg0, %c0_i32, %c0_i32_0 : i32, i32, i32
  }
}

module attributes {stable_mosaic.version = 11 : i64} {
  func.func @_convmm_kernel(%arg0: i32, %arg1: memref<1x400x32xbf16, #tpu.memory_space<vmem>>, %arg2: memref<1x8x400xbf16, #tpu.memory_space<vmem>>, %arg3: memref<1x8x1xf32, #tpu.memory_space<vmem>>, %arg4: memref<1x8x1xf32, #tpu.memory_space<vmem>>, %arg5: memref<1x8x32xbf16, #tpu.memory_space<vmem>>) attributes {dimension_semantics = [#tpu.dimension_semantics<parallel>], iteration_bounds = array<i64: 1>, scalar_prefetch = 0 : i64, scratch_operands = 0 : i64, tpu.core_type = #tpu.core_type<tc>, window_params = [{transform_indices = @transform_0, window_bounds = array<i64: 1, 400, 32>}, {transform_indices = @transform_1, window_bounds = array<i64: 1, 8, 400>}, {transform_indices = @transform_2, window_bounds = array<i64: 1, 8, 1>}, {transform_indices = @transform_3, window_bounds = array<i64: 1, 8, 1>}, {transform_indices = @transform_4, window_bounds = array<i64: 1, 8, 32>}]} {
    %c0 = arith.constant 0 : index
    %c0_0 = arith.constant 0 : index
    %c0_1 = arith.constant 0 : index
    %0 = vector.load %arg2[%c0, %c0_0, %c0_1] : memref<1x8x400xbf16, #tpu.memory_space<vmem>>, vector<1x8x400xbf16>
    %1 = vector.shape_cast %0 : vector<1x8x400xbf16> to vector<8x400xbf16>
    %c0_2 = arith.constant 0 : index
    %c0_3 = arith.constant 0 : index
    %c0_4 = arith.constant 0 : index
    %2 = vector.load %arg1[%c0_2, %c0_3, %c0_4] : memref<1x400x32xbf16, #tpu.memory_space<vmem>>, vector<1x400x32xbf16>
    %3 = vector.shape_cast %2 : vector<1x400x32xbf16> to vector<400x32xbf16>
    %cst = arith.constant dense<0.000000e+00> : vector<8x32xf32>
    %4 = tpu.matmul %1, %3, %cst {dimension_numbers = #tpu.dot_dimension_numbers<[1], [0], [0], [1], [0, 0, 1, 1], [], []>} : vector<8x400xbf16>, vector<400x32xbf16>, vector<8x32xf32> -> vector<8x32xf32>
    %c0_5 = arith.constant 0 : index
    %c0_6 = arith.constant 0 : index
    %c0_7 = arith.constant 0 : index
    %5 = vector.load %arg3[%c0_5, %c0_6, %c0_7] : memref<1x8x1xf32, #tpu.memory_space<vmem>>, vector<1x8x1xf32>
    %6 = vector.shape_cast %5 : vector<1x8x1xf32> to vector<8x1xf32>
    %7 = vector.broadcast %6 : vector<8x1xf32> to vector<8x32xf32>
    %8 = arith.addf %4, %7 : vector<8x32xf32>
    %cst_8 = arith.constant 0.000000e+00 : f32
    %9 = vector.broadcast %cst_8 : f32 to vector<8x32xf32>
    %10 = arith.cmpf oge, %8, %9 : vector<8x32xf32>
    %c0_9 = arith.constant 0 : index
    %c0_10 = arith.constant 0 : index
    %c0_11 = arith.constant 0 : index
    %11 = vector.load %arg4[%c0_9, %c0_10, %c0_11] : memref<1x8x1xf32, #tpu.memory_space<vmem>>, vector<1x8x1xf32>
    %12 = vector.shape_cast %11 : vector<1x8x1xf32> to vector<8x1xf32>
    %13 = vector.broadcast %12 : vector<8x1xf32> to vector<8x32xf32>
    %14 = arith.mulf %13, %8 : vector<8x32xf32>
    %15 = arith.select %10, %8, %14 : vector<8x32xi1>, vector<8x32xf32>
    %16 = arith.truncf %15 : vector<8x32xf32> to vector<8x32xbf16>
    %c0_12 = arith.constant 0 : index
    %c0_13 = arith.constant 0 : index
    %c0_14 = arith.constant 0 : index
    %17 = vector.load %arg5[%c0_12, %c0_13, %c0_14] : memref<1x8x32xbf16, #tpu.memory_space<vmem>>, vector<1x8x32xbf16>
    %18 = vector.shape_cast %17 : vector<1x8x32xbf16> to vector<8x32xbf16>
    %19 = vector.shape_cast %16 : vector<8x32xbf16> to vector<1x8x32xbf16>
    tpu.vector_store %arg5[%c0_12, %c0_13, %c0_14], %19 {strides = array<i32>} : memref<1x8x32xbf16, #tpu.memory_space<vmem>>, vector<1x8x32xbf16>,
    return
  }
  func.func @transform_0(%arg0: i32) -> (i32, i32, i32) {
    %c0_i32 = arith.constant 0 : i32
    %c0_i32_0 = arith.constant 0 : i32
    %c0_i32_1 = arith.constant 0 : i32
    return %arg0, %c0_i32, %c0_i32_0 : i32, i32, i32
  }
  func.func @transform_1(%arg0: i32) -> (i32, i32, i32) {
    %c0_i32 = arith.constant 0 : i32
    %c0_i32_0 = arith.constant 0 : i32
    %c0_i32_1 = arith.constant 0 : i32
    return %arg0, %c0_i32, %c0_i32_0 : i32, i32, i32
  }
  func.func @transform_2(%arg0: i32) -> (i32, i32, i32) {
    %c0_i32 = arith.constant 0 : i32
    %c0_i32_0 = arith.constant 0 : i32
    %c0_i32_1 = arith.constant 0 : i32
    return %arg0, %c0_i32, %c0_i32_0 : i32, i32, i32
  }
  func.func @transform_3(%arg0: i32) -> (i32, i32, i32) {
    %c0_i32 = arith.constant 0 : i32
    %c0_i32_0 = arith.constant 0 : i32
    %c0_i32_1 = arith.constant 0 : i32
    return %arg0, %c0_i32, %c0_i32_0 : i32, i32, i32
  }
  func.func @transform_4(%arg0: i32) -> (i32, i32, i32) {
    %c0_i32 = arith.constant 0 : i32
    %c0_i32_0 = arith.constant 0 : i32
    %c0_i32_1 = arith.constant 0 : i32
    return %arg0, %c0_i32, %c0_i32_0 : i32, i32, i32
  }
}

module attributes {stable_mosaic.version = 11 : i64} {
  func.func @_convmm_kernel(%arg0: i32, %arg1: memref<1x112x32xbf16, #tpu.memory_space<vmem>>, %arg2: memref<1x3x112xbf16, #tpu.memory_space<vmem>>, %arg3: memref<1x3x1xf32, #tpu.memory_space<vmem>>, %arg4: memref<1x3x32xf32, #tpu.memory_space<vmem>>) attributes {dimension_semantics = [#tpu.dimension_semantics<parallel>], iteration_bounds = array<i64: 2>, scalar_prefetch = 0 : i64, scratch_operands = 0 : i64, tpu.core_type = #tpu.core_type<tc>, window_params = [{transform_indices = @transform_0, window_bounds = array<i64: 1, 112, 32>}, {transform_indices = @transform_1, window_bounds = array<i64: 1, 3, 112>}, {transform_indices = @transform_2, window_bounds = array<i64: 1, 3, 1>}, {transform_indices = @transform_3, window_bounds = array<i64: 1, 3, 32>}]} {
    %c0 = arith.constant 0 : index
    %c0_0 = arith.constant 0 : index
    %c0_1 = arith.constant 0 : index
    %0 = vector.load %arg2[%c0, %c0_0, %c0_1] : memref<1x3x112xbf16, #tpu.memory_space<vmem>>, vector<1x3x112xbf16>
    %1 = vector.shape_cast %0 : vector<1x3x112xbf16> to vector<3x112xbf16>
    %c0_2 = arith.constant 0 : index
    %c0_3 = arith.constant 0 : index
    %c0_4 = arith.constant 0 : index
    %2 = vector.load %arg1[%c0_2, %c0_3, %c0_4] : memref<1x112x32xbf16, #tpu.memory_space<vmem>>, vector<1x112x32xbf16>
    %3 = vector.shape_cast %2 : vector<1x112x32xbf16> to vector<112x32xbf16>
    %cst = arith.constant dense<0.000000e+00> : vector<3x32xf32>
    %4 = tpu.matmul %1, %3, %cst {dimension_numbers = #tpu.dot_dimension_numbers<[1], [0], [0], [1], [0, 0, 1, 1], [], []>} : vector<3x112xbf16>, vector<112x32xbf16>, vector<3x32xf32> -> vector<3x32xf32>
    %c0_5 = arith.constant 0 : index
    %c0_6 = arith.constant 0 : index
    %c0_7 = arith.constant 0 : index
    %5 = vector.load %arg3[%c0_5, %c0_6, %c0_7] : memref<1x3x1xf32, #tpu.memory_space<vmem>>, vector<1x3x1xf32>
    %6 = vector.shape_cast %5 : vector<1x3x1xf32> to vector<3x1xf32>
    %7 = vector.broadcast %6 : vector<3x1xf32> to vector<3x32xf32>
    %8 = arith.addf %4, %7 : vector<3x32xf32>
    %c0_8 = arith.constant 0 : index
    %c0_9 = arith.constant 0 : index
    %c0_10 = arith.constant 0 : index
    %9 = vector.load %arg4[%c0_8, %c0_9, %c0_10] : memref<1x3x32xf32, #tpu.memory_space<vmem>>, vector<1x3x32xf32>
    %10 = vector.shape_cast %9 : vector<1x3x32xf32> to vector<3x32xf32>
    %11 = vector.shape_cast %8 : vector<3x32xf32> to vector<1x3x32xf32>
    tpu.vector_store %arg4[%c0_8, %c0_9, %c0_10], %11 {strides = array<i32>} : memref<1x3x32xf32, #tpu.memory_space<vmem>>, vector<1x3x32xf32>,
    return
  }
  func.func @transform_0(%arg0: i32) -> (i32, i32, i32) {
    %c0_i32 = arith.constant 0 : i32
    %c0_i32_0 = arith.constant 0 : i32
    %c0_i32_1 = arith.constant 0 : i32
    return %arg0, %c0_i32, %c0_i32_0 : i32, i32, i32
  }
  func.func @transform_1(%arg0: i32) -> (i32, i32, i32) {
    %c0_i32 = arith.constant 0 : i32
    %c0_i32_0 = arith.constant 0 : i32
    %c0_i32_1 = arith.constant 0 : i32
    return %arg0, %c0_i32, %c0_i32_0 : i32, i32, i32
  }
  func.func @transform_2(%arg0: i32) -> (i32, i32, i32) {
    %c0_i32 = arith.constant 0 : i32
    %c0_i32_0 = arith.constant 0 : i32
    %c0_i32_1 = arith.constant 0 : i32
    return %arg0, %c0_i32, %c0_i32_0 : i32, i32, i32
  }
  func.func @transform_3(%arg0: i32) -> (i32, i32, i32) {
    %c0_i32 = arith.constant 0 : i32
    %c0_i32_0 = arith.constant 0 : i32
    %c0_i32_1 = arith.constant 0 : i32
    return %arg0, %c0_i32, %c0_i32_0 : i32, i32, i32
  }
}

</mosaic_0001>

<llo_original>
// kernel: squeeze.44
$region0: #{squeeze.44}
  %s0 = inlined_call_operand.vmem [shape: bf16[1,4,2048], index: 0, kind: input, shape index: {}]
  %s1 = inlined_call_operand.vmem [shape: bf16[4,2,32,32], index: 1, kind: output, shape index: {}]
  $region1: #{squeeze.44} parent=0
    #allocation0 [shape = 'u8[131072]{0}', space=vmem, size = 0x20000, scoped, tag = 'scoped mem for output reshape']
    #allocation1 [shape = 'u8[65536]{0}', space=vmem, size = 0x10000, scoped, tag = 'scoped mem for input reshape']
    %s3 = smul.u32 2, 2
    %s4 = sshllo.u32 0, %s3
    %s5 = smul.addr 2, 15
    %s6 = scalar_lea.vmem %s0, %s5
    %s7 = sshrl.u32 %s4, 1
    %s8 = sor.u32 %s4, %s7
    %s9 = sand.u32 %s8, 85
    %s10 = sshrl.u32 %s9, 1
    %s11 = sor.u32 %s9, %s10
    %s12 = sand.u32 51, %s11
    %s13 = sshrl.u32 %s12, 2
    %s14 = sor.u32 %s12, %s13
    %s15 = sand.u32 15, %s14
    %v16 = vld [vmem:[%s6] sm:%s15]
    %v17 = vunpack.c.l.bf16 %v16
    %v18 = vunpack.c.h.bf16 %v16
    %s19 = scalar_lea.vmem [#allocation1], 120
    %20 = vst [vmem:[%s19] sm:%s4] %v17
    %s21 = smul.addr 2, 14
    %s22 = scalar_lea.vmem %s0, %s21
    %s23 = sshrl.u32 %s4, 1
    %s24 = sor.u32 %s4, %s23
    %s25 = sand.u32 %s24, 85
    %s26 = sshrl.u32 %s25, 1
    %s27 = sor.u32 %s25, %s26
    %s28 = sand.u32 51, %s27
    %s29 = sshrl.u32 %s28, 2
    %s30 = sor.u32 %s28, %s29
    %s31 = sand.u32 15, %s30
    %v32 = vld [vmem:[%s22] sm:%s31]
    %v33 = vunpack.c.l.bf16 %v32
    %v34 = vunpack.c.h.bf16 %v32
    %s35 = scalar_lea.vmem [#allocation1], 112
    %36 = vst [vmem:[%s35] sm:%s4] %v33
    %s37 = smul.addr 2, 13
    %s38 = scalar_lea.vmem %s0, %s37
    %s39 = sshrl.u32 %s4, 1
    %s40 = sor.u32 %s4, %s39
    %s41 = sand.u32 %s40, 85
    %s42 = sshrl.u32 %s41, 1
    %s43 = sor.u32 %s41, %s42
    %s44 = sand.u32 51, %s43
    %s45 = sshrl.u32 %s44, 2
    %s46 = sor.u32 %s44, %s45
    %s47 = sand.u32 15, %s46
    %v48 = vld [vmem:[%s38] sm:%s47]
    %v49 = vunpack.c.l.bf16 %v48
    %v50 = vunpack.c.h.bf16 %v48
    %s51 = scalar_lea.vmem [#allocation1], 104
    %52 = vst [vmem:[%s51] sm:%s4] %v49
    %s53 = smul.addr 2, 12
    %s54 = scalar_lea.vmem %s0, %s53
    %s55 = sshrl.u32 %s4, 1
    %s56 = sor.u32 %s4, %s55
    %s57 = sand.u32 %s56, 85
    %s58 = sshrl.u32 %s57, 1
    %s59 = sor.u32 %s57, %s58
    %s60 = sand.u32 51, %s59
    %s61 = sshrl.u32 %s60, 2
    %s62 = sor.u32 %s60, %s61
    %s63 = sand.u32 15, %s62
    %v64 = vld [vmem:[%s54] sm:%s63]
    %v65 = vunpack.c.l.bf16 %v64
    %v66 = vunpack.c.h.bf16 %v64
    %s67 = scalar_lea.vmem [#allocation1], 96
    %68 = vst [vmem:[%s67] sm:%s4] %v65
    %s69 = smul.addr 2, 11
    %s70 = scalar_lea.vmem %s0, %s69
    %s71 = sshrl.u32 %s4, 1
    %s72 = sor.u32 %s4, %s71
    %s73 = sand.u32 %s72, 85
    %s74 = sshrl.u32 %s73, 1
    %s75 = sor.u32 %s73, %s74
    %s76 = sand.u32 51, %s75
    %s77 = sshrl.u32 %s76, 2
    %s78 = sor.u32 %s76, %s77
    %s79 = sand.u32 15, %s78
    %v80 = vld [vmem:[%s70] sm:%s79]
    %v81 = vunpack.c.l.bf16 %v80
    %v82 = vunpack.c.h.bf16 %v80
    %s83 = scalar_lea.vmem [#allocation1], 88
    %84 = vst [vmem:[%s83] sm:%s4] %v81
    %s85 = smul.addr 2, 10
    %s86 = scalar_lea.vmem %s0, %s85
    %s87 = sshrl.u32 %s4, 1
    %s88 = sor.u32 %s4, %s87
    %s89 = sand.u32 %s88, 85
    %s90 = sshrl.u32 %s89, 1
    %s91 = sor.u32 %s89, %s90
    %s92 = sand.u32 51, %s91
    %s93 = sshrl.u32 %s92, 2
    %s94 = sor.u32 %s92, %s93
    %s95 = sand.u32 15, %s94
    %v96 = vld [vmem:[%s86] sm:%s95]
    %v97 = vunpack.c.l.bf16 %v96
    %v98 = vunpack.c.h.bf16 %v96
    %s99 = scalar_lea.vmem [#allocation1], 80
    %100 = vst [vmem:[%s99] sm:%s4] %v97
    %s101 = smul.addr 2, 9
    %s102 = scalar_lea.vmem %s0, %s101
    %s103 = sshrl.u32 %s4, 1
    %s104 = sor.u32 %s4, %s103
    %s105 = sand.u32 %s104, 85
    %s106 = sshrl.u32 %s105, 1
    %s107 = sor.u32 %s105, %s106
    %s108 = sand.u32 51, %s107
    %s109 = sshrl.u32 %s108, 2
    %s110 = sor.u32 %s108, %s109
    %s111 = sand.u32 15, %s110
    %v112 = vld [vmem:[%s102] sm:%s111]
    %v113 = vunpack.c.l.bf16 %v112
    %v114 = vunpack.c.h.bf16 %v112
    %s115 = scalar_lea.vmem [#allocation1], 72
    %116 = vst [vmem:[%s115] sm:%s4] %v113
    %s117 = smul.addr 2, 8
    %s118 = scalar_lea.vmem %s0, %s117
    %s119 = sshrl.u32 %s4, 1
    %s120 = sor.u32 %s4, %s119
    %s121 = sand.u32 %s120, 85
    %s122 = sshrl.u32 %s121, 1
    %s123 = sor.u32 %s121, %s122
    %s124 = sand.u32 51, %s123
    %s125 = sshrl.u32 %s124, 2
    %s126 = sor.u32 %s124, %s125
    %s127 = sand.u32 15, %s126
    %v128 = vld [vmem:[%s118] sm:%s127]
    %v129 = vunpack.c.l.bf16 %v128
    %v130 = vunpack.c.h.bf16 %v128
    %s131 = scalar_lea.vmem [#allocation1], 64
    %132 = vst [vmem:[%s131] sm:%s4] %v129
    %s133 = smul.addr 2, 7
    %s134 = scalar_lea.vmem %s0, %s133
    %s135 = sshrl.u32 %s4, 1
    %s136 = sor.u32 %s4, %s135
    %s137 = sand.u32 %s136, 85
    %s138 = sshrl.u32 %s137, 1
    %s139 = sor.u32 %s137, %s138
    %s140 = sand.u32 51, %s139
    %s141 = sshrl.u32 %s140, 2
    %s142 = sor.u32 %s140, %s141
    %s143 = sand.u32 15, %s142
    %v144 = vld [vmem:[%s134] sm:%s143]
    %v145 = vunpack.c.l.bf16 %v144
    %v146 = vunpack.c.h.bf16 %v144
    %s147 = scalar_lea.vmem [#allocation1], 56
    %148 = vst [vmem:[%s147] sm:%s4] %v145
    %s149 = smul.addr 2, 6
    %s150 = scalar_lea.vmem %s0, %s149
    %s151 = sshrl.u32 %s4, 1
    %s152 = sor.u32 %s4, %s151
    %s153 = sand.u32 %s152, 85
    %s154 = sshrl.u32 %s153, 1
    %s155 = sor.u32 %s153, %s154
    %s156 = sand.u32 51, %s155
    %s157 = sshrl.u32 %s156, 2
    %s158 = sor.u32 %s156, %s157
    %s159 = sand.u32 15, %s158
    %v160 = vld [vmem:[%s150] sm:%s159]
    %v161 = vunpack.c.l.bf16 %v160
    %v162 = vunpack.c.h.bf16 %v160
    %s163 = scalar_lea.vmem [#allocation1], 48
    %164 = vst [vmem:[%s163] sm:%s4] %v161
    %s165 = smul.addr 2, 5
    %s166 = scalar_lea.vmem %s0, %s165
    %s167 = sshrl.u32 %s4, 1
    %s168 = sor.u32 %s4, %s167
    %s169 = sand.u32 %s168, 85
    %s170 = sshrl.u32 %s169, 1
    %s171 = sor.u32 %s169, %s170
    %s172 = sand.u32 51, %s171
    %s173 = sshrl.u32 %s172, 2
    %s174 = sor.u32 %s172, %s173
    %s175 = sand.u32 15, %s174
    %v176 = vld [vmem:[%s166] sm:%s175]
    %v177 = vunpack.c.l.bf16 %v176
    %v178 = vunpack.c.h.bf16 %v176
    %s179 = scalar_lea.vmem [#allocation1], 40
    %180 = vst [vmem:[%s179] sm:%s4] %v177
    %s181 = smul.addr 2, 4
    %s182 = scalar_lea.vmem %s0, %s181
    %s183 = sshrl.u32 %s4, 1
    %s184 = sor.u32 %s4, %s183
    %s185 = sand.u32 %s184, 85
    %s186 = sshrl.u32 %s185, 1
    %s187 = sor.u32 %s185, %s186
    %s188 = sand.u32 51, %s187
    %s189 = sshrl.u32 %s188, 2
    %s190 = sor.u32 %s188, %s189
    %s191 = sand.u32 15, %s190
    %v192 = vld [vmem:[%s182] sm:%s191]
    %v193 = vunpack.c.l.bf16 %v192
    %v194 = vunpack.c.h.bf16 %v192
    %s195 = scalar_lea.vmem [#allocation1], 32
    %196 = vst [vmem:[%s195] sm:%s4] %v193
    %s197 = smul.addr 2, 3
    %s198 = scalar_lea.vmem %s0, %s197
    %s199 = sshrl.u32 %s4, 1
    %s200 = sor.u32 %s4, %s199
    %s201 = sand.u32 %s200, 85
    %s202 = sshrl.u32 %s201, 1
    %s203 = sor.u32 %s201, %s202
    %s204 = sand.u32 51, %s203
    %s205 = sshrl.u32 %s204, 2
    %s206 = sor.u32 %s204, %s205
    %s207 = sand.u32 15, %s206
    %v208 = vld [vmem:[%s198] sm:%s207]
    %v209 = vunpack.c.l.bf16 %v208
    %v210 = vunpack.c.h.bf16 %v208
    %s211 = scalar_lea.vmem [#allocation1], 24
    %212 = vst [vmem:[%s211] sm:%s4] %v209
    %s213 = smul.addr 2, 2
    %s214 = scalar_lea.vmem %s0, %s213
    %s215 = sshrl.u32 %s4, 1
    %s216 = sor.u32 %s4, %s215
    %s217 = sand.u32 %s216, 85
    %s218 = sshrl.u32 %s217, 1
    %s219 = sor.u32 %s217, %s218
    %s220 = sand.u32 51, %s219
    %s221 = sshrl.u32 %s220, 2
    %s222 = sor.u32 %s220, %s221
    %s223 = sand.u32 15, %s222
    %v224 = vld [vmem:[%s214] sm:%s223]
    %v225 = vunpack.c.l.bf16 %v224
    %v226 = vunpack.c.h.bf16 %v224
    %s227 = scalar_lea.vmem [#allocation1], 16
    %228 = vst [vmem:[%s227] sm:%s4] %v225
    %s229 = scalar_lea.vmem %s0, 2
    %s230 = sshrl.u32 %s4, 1
    %s231 = sor.u32 %s4, %s230
    %s232 = sand.u32 %s231, 85
    %s233 = sshrl.u32 %s232, 1
    %s234 = sor.u32 %s232, %s233
    %s235 = sand.u32 51, %s234
    %s236 = sshrl.u32 %s235, 2
    %s237 = sor.u32 %s235, %s236
    %s238 = sand.u32 15, %s237
    %v239 = vld [vmem:[%s229] sm:%s238]
    %v240 = vunpack.c.l.bf16 %v239
    %v241 = vunpack.c.h.bf16 %v239
    %s242 = scalar_lea.vmem [#allocation1], 8
    %243 = vst [vmem:[%s242] sm:%s4] %v240
    %s244 = sshrl.u32 %s4, 1
    %s245 = sor.u32 %s4, %s244
    %s246 = sand.u32 %s245, 85
    %s247 = sshrl.u32 %s246, 1
    %s248 = sor.u32 %s246, %s247
    %s249 = sand.u32 51, %s248
    %s250 = sshrl.u32 %s249, 2
    %s251 = sor.u32 %s249, %s250
    %s252 = sand.u32 15, %s251
    %v253 = vld [vmem:[%s0] sm:%s252]
    %v254 = vunpack.c.l.bf16 %v253
    %v255 = vunpack.c.h.bf16 %v253
    %256 = vst [vmem:[#allocation1] sm:%s4] %v254
    %v257 = vld [vmem:[#allocation1] sm:$0xf]
    %vm258 = vcmask 261120
    %259 = vst.msk [vmem:[#allocation0] sm:$0x1] %vm258, %v257
    %s260 = scalar_lea.vmem [#allocation0], 63
    %261 = vst.msk [vmem:[%s260] sm:$0x2] %vm258, %v257
    %s262 = scalar_lea.vmem [#allocation0], 126
    %263 = vst.msk [vmem:[%s262] sm:$0x4] %vm258, %v257
    %s264 = scalar_lea.vmem [#allocation0], 189
    %265 = vst.msk [vmem:[%s264] sm:$0x8] %vm258, %v257
    %s266 = scalar_lea.vmem [#allocation1], 8
    %v267 = vld [vmem:[%s266] sm:$0xf]
    %vm268 = vcmask 261120
    %s269 = scalar_lea.vmem [#allocation0], 4
    %270 = vst.msk [vmem:[%s269] sm:$0x1] %vm268, %v267
    %s271 = scalar_lea.vmem [#allocation0], 67
    %272 = vst.msk [vmem:[%s271] sm:$0x2] %vm268, %v267
    %s273 = scalar_lea.vmem [#allocation0], 130
    %274 = vst.msk [vmem:[%s273] sm:$0x4] %vm268, %v267
    %s275 = scalar_lea.vmem [#allocation0], 193
    %276 = vst.msk [vmem:[%s275] sm:$0x8] %vm268, %v267
    %s277 = scalar_lea.vmem [#allocation1], 16
    %v278 = vld [vmem:[%s277] sm:$0xf]
    %vm279 = vcmask 261120
    %s280 = scalar_lea.vmem [#allocation0], 8
    %281 = vst.msk [vmem:[%s280] sm:$0x1] %vm279, %v278
    %s282 = scalar_lea.vmem [#allocation0], 71
    %283 = vst.msk [vmem:[%s282] sm:$0x2] %vm279, %v278
    %s284 = scalar_lea.vmem [#allocation0], 134
    %285 = vst.msk [vmem:[%s284] sm:$0x4] %vm279, %v278
    %s286 = scalar_lea.vmem [#allocation0], 197
    %287 = vst.msk [vmem:[%s286] sm:$0x8] %vm279, %v278
    %s288 = scalar_lea.vmem [#allocation1], 24
    %v289 = vld [vmem:[%s288] sm:$0xf]
    %vm290 = vcmask 261120
    %s291 = scalar_lea.vmem [#allocation0], 12
    %292 = vst.msk [vmem:[%s291] sm:$0x1] %vm290, %v289
    %s293 = scalar_lea.vmem [#allocation0], 75
    %294 = vst.msk [vmem:[%s293] sm:$0x2] %vm290, %v289
    %s295 = scalar_lea.vmem [#allocation0], 138
    %296 = vst.msk [vmem:[%s295] sm:$0x4] %vm290, %v289
    %s297 = scalar_lea.vmem [#allocation0], 201
    %298 = vst.msk [vmem:[%s297] sm:$0x8] %vm290, %v289
    %s299 = scalar_lea.vmem [#allocation1], 32
    %v300 = vld [vmem:[%s299] sm:$0xf]
    %vm301 = vcmask 261120
    %s302 = scalar_lea.vmem [#allocation0], 16
    %303 = vst.msk [vmem:[%s302] sm:$0x1] %vm301, %v300
    %s304 = scalar_lea.vmem [#allocation0], 79
    %305 = vst.msk [vmem:[%s304] sm:$0x2] %vm301, %v300
    %s306 = scalar_lea.vmem [#allocation0], 142
    %307 = vst.msk [vmem:[%s306] sm:$0x4] %vm301, %v300
    %s308 = scalar_lea.vmem [#allocation0], 205
    %309 = vst.msk [vmem:[%s308] sm:$0x8] %vm301, %v300
    %s310 = scalar_lea.vmem [#allocation1], 40
    %v311 = vld [vmem:[%s310] sm:$0xf]
    %vm312 = vcmask 261120
    %s313 = scalar_lea.vmem [#allocation0], 20
    %314 = vst.msk [vmem:[%s313] sm:$0x1] %vm312, %v311
    %s315 = scalar_lea.vmem [#allocation0], 83
    %316 = vst.msk [vmem:[%s315] sm:$0x2] %vm312, %v311
    %s317 = scalar_lea.vmem [#allocation0], 146
    %318 = vst.msk [vmem:[%s317] sm:$0x4] %vm312, %v311
    %s319 = scalar_lea.vmem [#allocation0], 209
    %320 = vst.msk [vmem:[%s319] sm:$0x8] %vm312, %v311
    %s321 = scalar_lea.vmem [#allocation1], 48
    %v322 = vld [vmem:[%s321] sm:$0xf]
    %vm323 = vcmask 261120
    %s324 = scalar_lea.vmem [#allocation0], 24
    %325 = vst.msk [vmem:[%s324] sm:$0x1] %vm323, %v322
    %s326 = scalar_lea.vmem [#allocation0], 87
    %327 = vst.msk [vmem:[%s326] sm:$0x2] %vm323, %v322
    %s328 = scalar_lea.vmem [#allocation0], 150
    %329 = vst.msk [vmem:[%s328] sm:$0x4] %vm323, %v322
    %s330 = scalar_lea.vmem [#allocation0], 213
    %331 = vst.msk [vmem:[%s330] sm:$0x8] %vm323, %v322
    %s332 = scalar_lea.vmem [#allocation1], 56
    %v333 = vld [vmem:[%s332] sm:$0xf]
    %vm334 = vcmask 261120
    %s335 = scalar_lea.vmem [#allocation0], 28
    %336 = vst.msk [vmem:[%s335] sm:$0x1] %vm334, %v333
    %s337 = scalar_lea.vmem [#allocation0], 91
    %338 = vst.msk [vmem:[%s337] sm:$0x2] %vm334, %v333
    %s339 = scalar_lea.vmem [#allocation0], 154
    %340 = vst.msk [vmem:[%s339] sm:$0x4] %vm334, %v333
    %s341 = scalar_lea.vmem [#allocation0], 217
    %342 = vst.msk [vmem:[%s341] sm:$0x8] %vm334, %v333
    %s343 = scalar_lea.vmem [#allocation1], 64
    %v344 = vld [vmem:[%s343] sm:$0xf]
    %vm345 = vcmask 261120
    %s346 = scalar_lea.vmem [#allocation0], 32
    %347 = vst.msk [vmem:[%s346] sm:$0x1] %vm345, %v344
    %s348 = scalar_lea.vmem [#allocation0], 95
    %349 = vst.msk [vmem:[%s348] sm:$0x2] %vm345, %v344
    %s350 = scalar_lea.vmem [#allocation0], 158
    %351 = vst.msk [vmem:[%s350] sm:$0x4] %vm345, %v344
    %s352 = scalar_lea.vmem [#allocation0], 221
    %353 = vst.msk [vmem:[%s352] sm:$0x8] %vm345, %v344
    %s354 = scalar_lea.vmem [#allocation1], 72
    %v355 = vld [vmem:[%s354] sm:$0xf]
    %vm356 = vcmask 261120
    %s357 = scalar_lea.vmem [#allocation0], 36
    %358 = vst.msk [vmem:[%s357] sm:$0x1] %vm356, %v355
    %s359 = scalar_lea.vmem [#allocation0], 99
    %360 = vst.msk [vmem:[%s359] sm:$0x2] %vm356, %v355
    %s361 = scalar_lea.vmem [#allocation0], 162
    %362 = vst.msk [vmem:[%s361] sm:$0x4] %vm356, %v355
    %s363 = scalar_lea.vmem [#allocation0], 225
    %364 = vst.msk [vmem:[%s363] sm:$0x8] %vm356, %v355
    %s365 = scalar_lea.vmem [#allocation1], 80
    %v366 = vld [vmem:[%s365] sm:$0xf]
    %vm367 = vcmask 261120
    %s368 = scalar_lea.vmem [#allocation0], 40
    %369 = vst.msk [vmem:[%s368] sm:$0x1] %vm367, %v366
    %s370 = scalar_lea.vmem [#allocation0], 103
    %371 = vst.msk [vmem:[%s370] sm:$0x2] %vm367, %v366
    %s372 = scalar_lea.vmem [#allocation0], 166
    %373 = vst.msk [vmem:[%s372] sm:$0x4] %vm367, %v366
    %s374 = scalar_lea.vmem [#allocation0], 229
    %375 = vst.msk [vmem:[%s374] sm:$0x8] %vm367, %v366
    %s376 = scalar_lea.vmem [#allocation1], 88
    %v377 = vld [vmem:[%s376] sm:$0xf]
    %vm378 = vcmask 261120
    %s379 = scalar_lea.vmem [#allocation0], 44
    %380 = vst.msk [vmem:[%s379] sm:$0x1] %vm378, %v377
    %s381 = scalar_lea.vmem [#allocation0], 107
    %382 = vst.msk [vmem:[%s381] sm:$0x2] %vm378, %v377
    %s383 = scalar_lea.vmem [#allocation0], 170
    %384 = vst.msk [vmem:[%s383] sm:$0x4] %vm378, %v377
    %s385 = scalar_lea.vmem [#allocation0], 233
    %386 = vst.msk [vmem:[%s385] sm:$0x8] %vm378, %v377
    %s387 = scalar_lea.vmem [#allocation1], 96
    %v388 = vld [vmem:[%s387] sm:$0xf]
    %vm389 = vcmask 261120
    %s390 = scalar_lea.vmem [#allocation0], 48
    %391 = vst.msk [vmem:[%s390] sm:$0x1] %vm389, %v388
    %s392 = scalar_lea.vmem [#allocation0], 111
    %393 = vst.msk [vmem:[%s392] sm:$0x2] %vm389, %v388
    %s394 = scalar_lea.vmem [#allocation0], 174
    %395 = vst.msk [vmem:[%s394] sm:$0x4] %vm389, %v388
    %s396 = scalar_lea.vmem [#allocation0], 237
    %397 = vst.msk [vmem:[%s396] sm:$0x8] %vm389, %v388
    %s398 = scalar_lea.vmem [#allocation1], 104
    %v399 = vld [vmem:[%s398] sm:$0xf]
    %vm400 = vcmask 261120
    %s401 = scalar_lea.vmem [#allocation0], 52
    %402 = vst.msk [vmem:[%s401] sm:$0x1] %vm400, %v399
    %s403 = scalar_lea.vmem [#allocation0], 115
    %404 = vst.msk [vmem:[%s403] sm:$0x2] %vm400, %v399
    %s405 = scalar_lea.vmem [#allocation0], 178
    %406 = vst.msk [vmem:[%s405] sm:$0x4] %vm400, %v399
    %s407 = scalar_lea.vmem [#allocation0], 241
    %408 = vst.msk [vmem:[%s407] sm:$0x8] %vm400, %v399
    %s409 = scalar_lea.vmem [#allocation1], 112
    %v410 = vld [vmem:[%s409] sm:$0xf]
    %vm411 = vcmask 261120
    %s412 = scalar_lea.vmem [#allocation0], 56
    %413 = vst.msk [vmem:[%s412] sm:$0x1] %vm411, %v410
    %s414 = scalar_lea.vmem [#allocation0], 119
    %415 = vst.msk [vmem:[%s414] sm:$0x2] %vm411, %v410
    %s416 = scalar_lea.vmem [#allocation0], 182
    %417 = vst.msk [vmem:[%s416] sm:$0x4] %vm411, %v410
    %s418 = scalar_lea.vmem [#allocation0], 245
    %419 = vst.msk [vmem:[%s418] sm:$0x8] %vm411, %v410
    %s420 = scalar_lea.vmem [#allocation1], 120
    %v421 = vld [vmem:[%s420] sm:$0xf]
    %vm422 = vcmask 261120
    %s423 = scalar_lea.vmem [#allocation0], 60
    %424 = vst.msk [vmem:[%s423] sm:$0x1] %vm422, %v421
    %s425 = scalar_lea.vmem [#allocation0], 123
    %426 = vst.msk [vmem:[%s425] sm:$0x2] %vm422, %v421
    %s427 = scalar_lea.vmem [#allocation0], 186
    %428 = vst.msk [vmem:[%s427] sm:$0x4] %vm422, %v421
    %s429 = scalar_lea.vmem [#allocation0], 249
    %430 = vst.msk [vmem:[%s429] sm:$0x8] %vm422, %v421
    %v431 = vld [vmem:[#allocation1] ss:$8 sm:$0xf]
    %v432 = vld [vmem:[#allocation1] ss:$8 sm:$0xf0]
    %vm433 = vcmask 1047556
    %v434 = vsel %vm433, %v432, %v431
    %435 = vrot.lane.b32.xlu0 %v434, 96
    %v436 = vpop.permute.xlu0 %435
    %vm437 = vcmask 261120
    %s438 = scalar_lea.vmem [#allocation0], 1
    %439 = vst.msk [vmem:[%s438] ss:$4 sm:$0xff] %vm437, %v436
    %s440 = scalar_lea.vmem [#allocation1], 1
    %v441 = vld [vmem:[%s440] ss:$8 sm:$0xf]
    %s442 = scalar_lea.vmem [#allocation1], 1
    %v443 = vld [vmem:[%s442] ss:$8 sm:$0xf0]
    %vm444 = vcmask 1047556
    %v445 = vsel %vm444, %v443, %v441
    %446 = vrot.lane.b32.xlu0 %v445, 96
    %v447 = vpop.permute.xlu0 %446
    %vm448 = vcmask 261120
    %s449 = scalar_lea.vmem [#allocation0], 65
    %450 = vst.msk [vmem:[%s449] ss:$4 sm:$0xff] %vm448, %v447
    %s451 = scalar_lea.vmem [#allocation1], 2
    %v452 = vld [vmem:[%s451] ss:$8 sm:$0xf]
    %s453 = scalar_lea.vmem [#allocation1], 2
    %v454 = vld [vmem:[%s453] ss:$8 sm:$0xf0]
    %vm455 = vcmask 1047556
    %v456 = vsel %vm455, %v454, %v452
    %457 = vrot.lane.b32.xlu0 %v456, 96
    %v458 = vpop.permute.xlu0 %457
    %vm459 = vcmask 261120
    %s460 = scalar_lea.vmem [#allocation0], 129
    %461 = vst.msk [vmem:[%s460] ss:$4 sm:$0xff] %vm459, %v458
    %s462 = scalar_lea.vmem [#allocation1], 3
    %v463 = vld [vmem:[%s462] ss:$8 sm:$0xf]
    %s464 = scalar_lea.vmem [#allocation1], 3
    %v465 = vld [vmem:[%s464] ss:$8 sm:$0xf0]
    %vm466 = vcmask 1047556
    %v467 = vsel %vm466, %v465, %v463
    %468 = vrot.lane.b32.xlu0 %v467, 96
    %v469 = vpop.permute.xlu0 %468
    %vm470 = vcmask 261120
    %s471 = scalar_lea.vmem [#allocation0], 193
    %472 = vst.msk [vmem:[%s471] ss:$4 sm:$0xff] %vm470, %v469
    %s473 = scalar_lea.vmem [#allocation1], 64
    %v474 = vld [vmem:[%s473] ss:$8 sm:$0xf]
    %s475 = scalar_lea.vmem [#allocation1], 64
    %v476 = vld [vmem:[%s475] ss:$8 sm:$0xf0]
    %vm477 = vcmask 1047556
    %v478 = vsel %vm477, %v476, %v474
    %479 = vrot.lane.b32.xlu0 %v478, 96
    %v480 = vpop.permute.xlu0 %479
    %vm481 = vcmask 261120
    %s482 = scalar_lea.vmem [#allocation0], 33
    %483 = vst.msk [vmem:[%s482] ss:$4 sm:$0xff] %vm481, %v480
    %s484 = scalar_lea.vmem [#allocation1], 65
    %v485 = vld [vmem:[%s484] ss:$8 sm:$0xf]
    %s486 = scalar_lea.vmem [#allocation1], 65
    %v487 = vld [vmem:[%s486] ss:$8 sm:$0xf0]
    %vm488 = vcmask 1047556
    %v489 = vsel %vm488, %v487, %v485
    %490 = vrot.lane.b32.xlu0 %v489, 96
    %v491 = vpop.permute.xlu0 %490
    %vm492 = vcmask 261120
    %s493 = scalar_lea.vmem [#allocation0], 97
    %494 = vst.msk [vmem:[%s493] ss:$4 sm:$0xff] %vm492, %v491
    %s495 = scalar_lea.vmem [#allocation1], 66
    %v496 = vld [vmem:[%s495] ss:$8 sm:$0xf]
    %s497 = scalar_lea.vmem [#allocation1], 66
    %v498 = vld [vmem:[%s497] ss:$8 sm:$0xf0]
    %vm499 = vcmask 1047556
    %v500 = vsel %vm499, %v498, %v496
    %501 = vrot.lane.b32.xlu0 %v500, 96
    %v502 = vpop.permute.xlu0 %501
    %vm503 = vcmask 261120
    %s504 = scalar_lea.vmem [#allocation0], 161
    %505 = vst.msk [vmem:[%s504] ss:$4 sm:$0xff] %vm503, %v502
    %s506 = scalar_lea.vmem [#allocation1], 67
    %v507 = vld [vmem:[%s506] ss:$8 sm:$0xf]
    %s508 = scalar_lea.vmem [#allocation1], 67
    %v509 = vld [vmem:[%s508] ss:$8 sm:$0xf0]
    %vm510 = vcmask 1047556
    %v511 = vsel %vm510, %v509, %v507
    %512 = vrot.lane.b32.xlu0 %v511, 96
    %v513 = vpop.permute.xlu0 %512
    %vm514 = vcmask 261120
    %s515 = scalar_lea.vmem [#allocation0], 225
    %516 = vst.msk [vmem:[%s515] ss:$4 sm:$0xff] %vm514, %v513
    %v517 = vld [vmem:[#allocation1] ss:$8 sm:$0xf]
    %v518 = vld [vmem:[#allocation1] ss:$8 sm:$0xf0]
    %vm519 = vcmask 1047556
    %v520 = vsel %vm519, %v518, %v517
    %521 = vrot.lane.b32.xlu0 %v520, 64
    %v522 = vpop.permute.xlu0 %521
    %vm523 = vcmask 261120
    %s524 = scalar_lea.vmem [#allocation0], 2
    %525 = vst.msk [vmem:[%s524] ss:$4 sm:$0xff] %vm523, %v522
    %s526 = scalar_lea.vmem [#allocation1], 1
    %v527 = vld [vmem:[%s526] ss:$8 sm:$0xf]
    %s528 = scalar_lea.vmem [#allocation1], 1
    %v529 = vld [vmem:[%s528] ss:$8 sm:$0xf0]
    %vm530 = vcmask 1047556
    %v531 = vsel %vm530, %v529, %v527
    %532 = vrot.lane.b32.xlu0 %v531, 64
    %v533 = vpop.permute.xlu0 %532
    %vm534 = vcmask 261120
    %s535 = scalar_lea.vmem [#allocation0], 66
    %536 = vst.msk [vmem:[%s535] ss:$4 sm:$0xff] %vm534, %v533
    %s537 = scalar_lea.vmem [#allocation1], 2
    %v538 = vld [vmem:[%s537] ss:$8 sm:$0xf]
    %s539 = scalar_lea.vmem [#allocation1], 2
    %v540 = vld [vmem:[%s539] ss:$8 sm:$0xf0]
    %vm541 = vcmask 1047556
    %v542 = vsel %vm541, %v540, %v538
    %543 = vrot.lane.b32.xlu0 %v542, 64
    %v544 = vpop.permute.xlu0 %543
    %vm545 = vcmask 261120
    %s546 = scalar_lea.vmem [#allocation0], 130
    %547 = vst.msk [vmem:[%s546] ss:$4 sm:$0xff] %vm545, %v544
    %s548 = scalar_lea.vmem [#allocation1], 3
    %v549 = vld [vmem:[%s548] ss:$8 sm:$0xf]
    %s550 = scalar_lea.vmem [#allocation1], 3
    %v551 = vld [vmem:[%s550] ss:$8 sm:$0xf0]
    %vm552 = vcmask 1047556
    %v553 = vsel %vm552, %v551, %v549
    %554 = vrot.lane.b32.xlu0 %v553, 64
    %v555 = vpop.permute.xlu0 %554
    %vm556 = vcmask 261120
    %s557 = scalar_lea.vmem [#allocation0], 194
    %558 = vst.msk [vmem:[%s557] ss:$4 sm:$0xff] %vm556, %v555
    %s559 = scalar_lea.vmem [#allocation1], 64
    %v560 = vld [vmem:[%s559] ss:$8 sm:$0xf]
    %s561 = scalar_lea.vmem [#allocation1], 64
    %v562 = vld [vmem:[%s561] ss:$8 sm:$0xf0]
    %vm563 = vcmask 1047556
    %v564 = vsel %vm563, %v562, %v560
    %565 = vrot.lane.b32.xlu0 %v564, 64
    %v566 = vpop.permute.xlu0 %565
    %vm567 = vcmask 261120
    %s568 = scalar_lea.vmem [#allocation0], 34
    %569 = vst.msk [vmem:[%s568] ss:$4 sm:$0xff] %vm567, %v566
    %s570 = scalar_lea.vmem [#allocation1], 65
    %v571 = vld [vmem:[%s570] ss:$8 sm:$0xf]
    %s572 = scalar_lea.vmem [#allocation1], 65
    %v573 = vld [vmem:[%s572] ss:$8 sm:$0xf0]
    %vm574 = vcmask 1047556
    %v575 = vsel %vm574, %v573, %v571
    %576 = vrot.lane.b32.xlu0 %v575, 64
    %v577 = vpop.permute.xlu0 %576
    %vm578 = vcmask 261120
    %s579 = scalar_lea.vmem [#allocation0], 98
    %580 = vst.msk [vmem:[%s579] ss:$4 sm:$0xff] %vm578, %v577
    %s581 = scalar_lea.vmem [#allocation1], 66
    %v582 = vld [vmem:[%s581] ss:$8 sm:$0xf]
    %s583 = scalar_lea.vmem [#allocation1], 66
    %v584 = vld [vmem:[%s583] ss:$8 sm:$0xf0]
    %vm585 = vcmask 1047556
    %v586 = vsel %vm585, %v584, %v582
    %587 = vrot.lane.b32.xlu0 %v586, 64
    %v588 = vpop.permute.xlu0 %587
    %vm589 = vcmask 261120
    %s590 = scalar_lea.vmem [#allocation0], 162
    %591 = vst.msk [vmem:[%s590] ss:$4 sm:$0xff] %vm589, %v588
    %s592 = scalar_lea.vmem [#allocation1], 67
    %v593 = vld [vmem:[%s592] ss:$8 sm:$0xf]
    %s594 = scalar_lea.vmem [#allocation1], 67
    %v595 = vld [vmem:[%s594] ss:$8 sm:$0xf0]
    %vm596 = vcmask 1047556
    %v597 = vsel %vm596, %v595, %v593
    %598 = vrot.lane.b32.xlu0 %v597, 64
    %v599 = vpop.permute.xlu0 %598
    %vm600 = vcmask 261120
    %s601 = scalar_lea.vmem [#allocation0], 226
    %602 = vst.msk [vmem:[%s601] ss:$4 sm:$0xff] %vm600, %v599
    %v603 = vld [vmem:[#allocation1] ss:$8 sm:$0xf]
    %v604 = vld [vmem:[#allocation1] ss:$8 sm:$0xf0]
    %vm605 = vcmask 1047556
    %v606 = vsel %vm605, %v604, %v603
    %607 = vrot.lane.b32.xlu0 %v606, 32
    %v608 = vpop.permute.xlu0 %607
    %vm609 = vcmask 261120
    %s610 = scalar_lea.vmem [#allocation0], 3
    %611 = vst.msk [vmem:[%s610] ss:$4 sm:$0xff] %vm609, %v608
    %s612 = scalar_lea.vmem [#allocation1], 1
    %v613 = vld [vmem:[%s612] ss:$8 sm:$0xf]
    %s614 = scalar_lea.vmem [#allocation1], 1
    %v615 = vld [vmem:[%s614] ss:$8 sm:$0xf0]
    %vm616 = vcmask 1047556
    %v617 = vsel %vm616, %v615, %v613
    %618 = vrot.lane.b32.xlu0 %v617, 32
    %v619 = vpop.permute.xlu0 %618
    %vm620 = vcmask 261120
    %s621 = scalar_lea.vmem [#allocation0], 67
    %622 = vst.msk [vmem:[%s621] ss:$4 sm:$0xff] %vm620, %v619
    %s623 = scalar_lea.vmem [#allocation1], 2
    %v624 = vld [vmem:[%s623] ss:$8 sm:$0xf]
    %s625 = scalar_lea.vmem [#allocation1], 2
    %v626 = vld [vmem:[%s625] ss:$8 sm:$0xf0]
    %vm627 = vcmask 1047556
    %v628 = vsel %vm627, %v626, %v624
    %629 = vrot.lane.b32.xlu0 %v628, 32
    %v630 = vpop.permute.xlu0 %629
    %vm631 = vcmask 261120
    %s632 = scalar_lea.vmem [#allocation0], 131
    %633 = vst.msk [vmem:[%s632] ss:$4 sm:$0xff] %vm631, %v630
    %s634 = scalar_lea.vmem [#allocation1], 3
    %v635 = vld [vmem:[%s634] ss:$8 sm:$0xf]
    %s636 = scalar_lea.vmem [#allocation1], 3
    %v637 = vld [vmem:[%s636] ss:$8 sm:$0xf0]
    %vm638 = vcmask 1047556
    %v639 = vsel %vm638, %v637, %v635
    %640 = vrot.lane.b32.xlu0 %v639, 32
    %v641 = vpop.permute.xlu0 %640
    %vm642 = vcmask 261120
    %s643 = scalar_lea.vmem [#allocation0], 195
    %644 = vst.msk [vmem:[%s643] ss:$4 sm:$0xff] %vm642, %v641
    %s645 = scalar_lea.vmem [#allocation1], 64
    %v646 = vld [vmem:[%s645] ss:$8 sm:$0xf]
    %s647 = scalar_lea.vmem [#allocation1], 64
    %v648 = vld [vmem:[%s647] ss:$8 sm:$0xf0]
    %vm649 = vcmask 1047556
    %v650 = vsel %vm649, %v648, %v646
    %651 = vrot.lane.b32.xlu0 %v650, 32
    %v652 = vpop.permute.xlu0 %651
    %vm653 = vcmask 261120
    %s654 = scalar_lea.vmem [#allocation0], 35
    %655 = vst.msk [vmem:[%s654] ss:$4 sm:$0xff] %vm653, %v652
    %s656 = scalar_lea.vmem [#allocation1], 65
    %v657 = vld [vmem:[%s656] ss:$8 sm:$0xf]
    %s658 = scalar_lea.vmem [#allocation1], 65
    %v659 = vld [vmem:[%s658] ss:$8 sm:$0xf0]
    %vm660 = vcmask 1047556
    %v661 = vsel %vm660, %v659, %v657
    %662 = vrot.lane.b32.xlu0 %v661, 32
    %v663 = vpop.permute.xlu0 %662
    %vm664 = vcmask 261120
    %s665 = scalar_lea.vmem [#allocation0], 99
    %666 = vst.msk [vmem:[%s665] ss:$4 sm:$0xff] %vm664, %v663
    %s667 = scalar_lea.vmem [#allocation1], 66
    %v668 = vld [vmem:[%s667] ss:$8 sm:$0xf]
    %s669 = scalar_lea.vmem [#allocation1], 66
    %v670 = vld [vmem:[%s669] ss:$8 sm:$0xf0]
    %vm671 = vcmask 1047556
    %v672 = vsel %vm671, %v670, %v668
    %673 = vrot.lane.b32.xlu0 %v672, 32
    %v674 = vpop.permute.xlu0 %673
    %vm675 = vcmask 261120
    %s676 = scalar_lea.vmem [#allocation0], 163
    %677 = vst.msk [vmem:[%s676] ss:$4 sm:$0xff] %vm675, %v674
    %s678 = scalar_lea.vmem [#allocation1], 67
    %v679 = vld [vmem:[%s678] ss:$8 sm:$0xf]
    %s680 = scalar_lea.vmem [#allocation1], 67
    %v681 = vld [vmem:[%s680] ss:$8 sm:$0xf0]
    %vm682 = vcmask 1047556
    %v683 = vsel %vm682, %v681, %v679
    %684 = vrot.lane.b32.xlu0 %v683, 32
    %v685 = vpop.permute.xlu0 %684
    %vm686 = vcmask 261120
    %s687 = scalar_lea.vmem [#allocation0], 227
    %688 = vst.msk [vmem:[%s687] ss:$4 sm:$0xff] %vm686, %v685
    %s690 = smul.u32 4, 2
    %s691 = sshllo.u32 0, %s690
    %s692 = sshrl.u32 %s690, 1
    %v693 = vld [vmem:[#allocation0] sm:%s691]
    %v694 = vpack.c.bf16 0.0, %v693
    %s695 = sshllo.u32 0, %s692
    %696 = vst [vmem:[%s1] sm:%s695] %v694
    %s697 = scalar_lea.vmem [#allocation0], 8
    %v698 = vld [vmem:[%s697] sm:%s691]
    %v699 = vpack.c.bf16 0.0, %v698
    %s700 = sshllo.u32 0, %s692
    %s701 = scalar_lea.vmem %s1, 4
    %702 = vst [vmem:[%s701] sm:%s700] %v699
    %s703 = scalar_lea.vmem [#allocation0], 16
    %v704 = vld [vmem:[%s703] sm:%s691]
    %v705 = vpack.c.bf16 0.0, %v704
    %s706 = sshllo.u32 0, %s692
    %s707 = smul.addr 4, 2
    %s708 = scalar_lea.vmem %s1, %s707
    %709 = vst [vmem:[%s708] sm:%s706] %v705
    %s710 = scalar_lea.vmem [#allocation0], 24
    %v711 = vld [vmem:[%s710] sm:%s691]
    %v712 = vpack.c.bf16 0.0, %v711
    %s713 = sshllo.u32 0, %s692
    %s714 = smul.addr 4, 3
    %s715 = scalar_lea.vmem %s1, %s714
    %716 = vst [vmem:[%s715] sm:%s713] %v712
    %s717 = scalar_lea.vmem [#allocation0], 32
    %v718 = vld [vmem:[%s717] sm:%s691]
    %v719 = vpack.c.bf16 0.0, %v718
    %s720 = sshllo.u32 0, %s692
    %s721 = smul.addr 4, 4
    %s722 = scalar_lea.vmem %s1, %s721
    %723 = vst [vmem:[%s722] sm:%s720] %v719
    %s724 = scalar_lea.vmem [#allocation0], 40
    %v725 = vld [vmem:[%s724] sm:%s691]
    %v726 = vpack.c.bf16 0.0, %v725
    %s727 = sshllo.u32 0, %s692
    %s728 = smul.addr 4, 5
    %s729 = scalar_lea.vmem %s1, %s728
    %730 = vst [vmem:[%s729] sm:%s727] %v726
    %s731 = scalar_lea.vmem [#allocation0], 48
    %v732 = vld [vmem:[%s731] sm:%s691]
    %v733 = vpack.c.bf16 0.0, %v732
    %s734 = sshllo.u32 0, %s692
    %s735 = smul.addr 4, 6
    %s736 = scalar_lea.vmem %s1, %s735
    %737 = vst [vmem:[%s736] sm:%s734] %v733
    %s738 = scalar_lea.vmem [#allocation0], 56
    %v739 = vld [vmem:[%s738] sm:%s691]
    %v740 = vpack.c.bf16 0.0, %v739
    %s741 = sshllo.u32 0, %s692
    %s742 = smul.addr 4, 7
    %s743 = scalar_lea.vmem %s1, %s742
    %744 = vst [vmem:[%s743] sm:%s741] %v740
    %s745 = scalar_lea.vmem [#allocation0], 64
    %v746 = vld [vmem:[%s745] sm:%s691]
    %v747 = vpack.c.bf16 0.0, %v746
    %s748 = sshllo.u32 0, %s692
    %s749 = smul.addr 4, 8
    %s750 = scalar_lea.vmem %s1, %s749
    %751 = vst [vmem:[%s750] sm:%s748] %v747
    %s752 = scalar_lea.vmem [#allocation0], 72
    %v753 = vld [vmem:[%s752] sm:%s691]
    %v754 = vpack.c.bf16 0.0, %v753
    %s755 = sshllo.u32 0, %s692
    %s756 = smul.addr 4, 9
    %s757 = scalar_lea.vmem %s1, %s756
    %758 = vst [vmem:[%s757] sm:%s755] %v754
    %s759 = scalar_lea.vmem [#allocation0], 80
    %v760 = vld [vmem:[%s759] sm:%s691]
    %v761 = vpack.c.bf16 0.0, %v760
    %s762 = sshllo.u32 0, %s692
    %s763 = smul.addr 4, 10
    %s764 = scalar_lea.vmem %s1, %s763
    %765 = vst [vmem:[%s764] sm:%s762] %v761
    %s766 = scalar_lea.vmem [#allocation0], 88
    %v767 = vld [vmem:[%s766] sm:%s691]
    %v768 = vpack.c.bf16 0.0, %v767
    %s769 = sshllo.u32 0, %s692
    %s770 = smul.addr 4, 11
    %s771 = scalar_lea.vmem %s1, %s770
    %772 = vst [vmem:[%s771] sm:%s769] %v768
    %s773 = scalar_lea.vmem [#allocation0], 96
    %v774 = vld [vmem:[%s773] sm:%s691]
    %v775 = vpack.c.bf16 0.0, %v774
    %s776 = sshllo.u32 0, %s692
    %s777 = smul.addr 4, 12
    %s778 = scalar_lea.vmem %s1, %s777
    %779 = vst [vmem:[%s778] sm:%s776] %v775
    %s780 = scalar_lea.vmem [#allocation0], 104
    %v781 = vld [vmem:[%s780] sm:%s691]
    %v782 = vpack.c.bf16 0.0, %v781
    %s783 = sshllo.u32 0, %s692
    %s784 = smul.addr 4, 13
    %s785 = scalar_lea.vmem %s1, %s784
    %786 = vst [vmem:[%s785] sm:%s783] %v782
    %s787 = scalar_lea.vmem [#allocation0], 112
    %v788 = vld [vmem:[%s787] sm:%s691]
    %v789 = vpack.c.bf16 0.0, %v788
    %s790 = sshllo.u32 0, %s692
    %s791 = smul.addr 4, 14
    %s792 = scalar_lea.vmem %s1, %s791
    %793 = vst [vmem:[%s792] sm:%s790] %v789
    %s794 = scalar_lea.vmem [#allocation0], 120
    %v795 = vld [vmem:[%s794] sm:%s691]
    %v796 = vpack.c.bf16 0.0, %v795
    %s797 = sshllo.u32 0, %s692
    %s798 = smul.addr 4, 15
    %s799 = scalar_lea.vmem %s1, %s798
    %800 = vst [vmem:[%s799] sm:%s797] %v796
    %s801 = scalar_lea.vmem [#allocation0], 128
    %v802 = vld [vmem:[%s801] sm:%s691]
    %v803 = vpack.c.bf16 0.0, %v802
    %s804 = sshllo.u32 0, %s692
    %s805 = smul.addr 4, 16
    %s806 = scalar_lea.vmem %s1, %s805
    %807 = vst [vmem:[%s806] sm:%s804] %v803
    %s808 = scalar_lea.vmem [#allocation0], 136
    %v809 = vld [vmem:[%s808] sm:%s691]
    %v810 = vpack.c.bf16 0.0, %v809
    %s811 = sshllo.u32 0, %s692
    %s812 = smul.addr 4, 17
    %s813 = scalar_lea.vmem %s1, %s812
    %814 = vst [vmem:[%s813] sm:%s811] %v810
    %s815 = scalar_lea.vmem [#allocation0], 144
    %v816 = vld [vmem:[%s815] sm:%s691]
    %v817 = vpack.c.bf16 0.0, %v816
    %s818 = sshllo.u32 0, %s692
    %s819 = smul.addr 4, 18
    %s820 = scalar_lea.vmem %s1, %s819
    %821 = vst [vmem:[%s820] sm:%s818] %v817
    %s822 = scalar_lea.vmem [#allocation0], 152
    %v823 = vld [vmem:[%s822] sm:%s691]
    %v824 = vpack.c.bf16 0.0, %v823
    %s825 = sshllo.u32 0, %s692
    %s826 = smul.addr 4, 19
    %s827 = scalar_lea.vmem %s1, %s826
    %828 = vst [vmem:[%s827] sm:%s825] %v824
    %s829 = scalar_lea.vmem [#allocation0], 160
    %v830 = vld [vmem:[%s829] sm:%s691]
    %v831 = vpack.c.bf16 0.0, %v830
    %s832 = sshllo.u32 0, %s692
    %s833 = smul.addr 4, 20
    %s834 = scalar_lea.vmem %s1, %s833
    %835 = vst [vmem:[%s834] sm:%s832] %v831
    %s836 = scalar_lea.vmem [#allocation0], 168
    %v837 = vld [vmem:[%s836] sm:%s691]
    %v838 = vpack.c.bf16 0.0, %v837
    %s839 = sshllo.u32 0, %s692
    %s840 = smul.addr 4, 21
    %s841 = scalar_lea.vmem %s1, %s840
    %842 = vst [vmem:[%s841] sm:%s839] %v838
    %s843 = scalar_lea.vmem [#allocation0], 176
    %v844 = vld [vmem:[%s843] sm:%s691]
    %v845 = vpack.c.bf16 0.0, %v844
    %s846 = sshllo.u32 0, %s692
    %s847 = smul.addr 4, 22
    %s848 = scalar_lea.vmem %s1, %s847
    %849 = vst [vmem:[%s848] sm:%s846] %v845
    %s850 = scalar_lea.vmem [#allocation0], 184
    %v851 = vld [vmem:[%s850] sm:%s691]
    %v852 = vpack.c.bf16 0.0, %v851
    %s853 = sshllo.u32 0, %s692
    %s854 = smul.addr 4, 23
    %s855 = scalar_lea.vmem %s1, %s854
    %856 = vst [vmem:[%s855] sm:%s853] %v852
    %s857 = scalar_lea.vmem [#allocation0], 192
    %v858 = vld [vmem:[%s857] sm:%s691]
    %v859 = vpack.c.bf16 0.0, %v858
    %s860 = sshllo.u32 0, %s692
    %s861 = smul.addr 4, 24
    %s862 = scalar_lea.vmem %s1, %s861
    %863 = vst [vmem:[%s862] sm:%s860] %v859
    %s864 = scalar_lea.vmem [#allocation0], 200
    %v865 = vld [vmem:[%s864] sm:%s691]
    %v866 = vpack.c.bf16 0.0, %v865
    %s867 = sshllo.u32 0, %s692
    %s868 = smul.addr 4, 25
    %s869 = scalar_lea.vmem %s1, %s868
    %870 = vst [vmem:[%s869] sm:%s867] %v866
    %s871 = scalar_lea.vmem [#allocation0], 208
    %v872 = vld [vmem:[%s871] sm:%s691]
    %v873 = vpack.c.bf16 0.0, %v872
    %s874 = sshllo.u32 0, %s692
    %s875 = smul.addr 4, 26
    %s876 = scalar_lea.vmem %s1, %s875
    %877 = vst [vmem:[%s876] sm:%s874] %v873
    %s878 = scalar_lea.vmem [#allocation0], 216
    %v879 = vld [vmem:[%s878] sm:%s691]
    %v880 = vpack.c.bf16 0.0, %v879
    %s881 = sshllo.u32 0, %s692
    %s882 = smul.addr 4, 27
    %s883 = scalar_lea.vmem %s1, %s882
    %884 = vst [vmem:[%s883] sm:%s881] %v880
    %s885 = scalar_lea.vmem [#allocation0], 224
    %v886 = vld [vmem:[%s885] sm:%s691]
    %v887 = vpack.c.bf16 0.0, %v886
    %s888 = sshllo.u32 0, %s692
    %s889 = smul.addr 4, 28
    %s890 = scalar_lea.vmem %s1, %s889
    %891 = vst [vmem:[%s890] sm:%s888] %v887
    %s892 = scalar_lea.vmem [#allocation0], 232
    %v893 = vld [vmem:[%s892] sm:%s691]
    %v894 = vpack.c.bf16 0.0, %v893
    %s895 = sshllo.u32 0, %s692
    %s896 = smul.addr 4, 29
    %s897 = scalar_lea.vmem %s1, %s896
    %898 = vst [vmem:[%s897] sm:%s895] %v894
    %s899 = scalar_lea.vmem [#allocation0], 240
    %v900 = vld [vmem:[%s899] sm:%s691]
    %v901 = vpack.c.bf16 0.0, %v900
    %s902 = sshllo.u32 0, %s692
    %s903 = smul.addr 4, 30
    %s904 = scalar_lea.vmem %s1, %s903
    %905 = vst [vmem:[%s904] sm:%s902] %v901
    %s906 = scalar_lea.vmem [#allocation0], 248
    %v907 = vld [vmem:[%s906] sm:%s691]
    %v908 = vpack.c.bf16 0.0, %v907
    %s909 = sshllo.u32 0, %s692
    %s910 = smul.addr 4, 31
    %s911 = scalar_lea.vmem %s1, %s910
    %912 = vst [vmem:[%s911] sm:%s909] %v908

// kernel: uvdocnet_forward.34
$region0: #{uvdocnet_forward.34}
  #allocation0 [shape = 'u32[]', space=smem, size = 0x4, offset = 0x4, fixed_abs, tag = 'smem constant byte address 0x4 - core index']
  #allocation1 [shape = 'u32[144,128]{1,0:T(1,128)}', space=vmem, size = 0x12000, scoped, tag = 'internal scratch']
  %s0 = inlined_call_operand.vmem [shape: bf16[1,80,2048], index: 0, kind: input, shape index: {}]
  %s1 = inlined_call_operand.vmem [shape: bf16[1,4,80], index: 1, kind: input, shape index: {}]
  %s2 = inlined_call_operand.vmem [shape: f32[1,4,1], index: 2, kind: input, shape index: {}]
  %s3 = inlined_call_operand.vmem [shape: bf16[1,4,2048], index: 3, kind: output, shape index: {}]
  %s4 = sld [smem:[#allocation0]]
  $region22: #{uvdocnet_forward.34} parent=0
    _
  %s6 = ssub.s32 1, %s4
  %s7 = scalar_select 0, %s6, %s4
  // Predicated region
  $region2: #{uvdocnet_forward.34} parent=0 // pred_check
    _
  $region3: #{uvdocnet_forward.34} parent=0 // pred_check_branch
    %9 = sbr.rel (0) target = $region5
  $region4: #{uvdocnet_forward.34} parent=0 // pred_region
    _
  $region5: #{uvdocnet_forward.34} parent=0 // pred_fallthru
    _
  // Predicated region
  $region6: #{uvdocnet_forward.34} parent=0 // pred_check
    _
  $region7: #{uvdocnet_forward.34} parent=0 // pred_check_branch
    %11 = sbr.rel (0) target = $region9
  $region8: #{uvdocnet_forward.34} parent=0 // pred_region
    _
  $region9: #{uvdocnet_forward.34} parent=0 // pred_fallthru
    _
  // Predicated region
  $region10: #{uvdocnet_forward.34} parent=0 // pred_check
    _
  $region11: #{uvdocnet_forward.34} parent=0 // pred_check_branch
    %13 = sbr.rel (0) target = $region13
  $region12: #{uvdocnet_forward.34} parent=0 // pred_region
    _
  $region13: #{uvdocnet_forward.34} parent=0 // pred_fallthru
    _
  %v15 = vld [vmem:[%s1] sm:$0x3]
  %v16 = vld [vmem:[%s0] sm:$0xff]
  %v17 = vld [vmem:[%s0 + $0x8] sm:$0xff]
  %v18 = vld [vmem:[%s0 + $0x10] sm:$0xff]
  %v19 = vld [vmem:[%s0 + $0x18] sm:$0xff]
  %v20 = vld [vmem:[%s0 + $0x20] sm:$0xff]
  %v21 = vld [vmem:[%s0 + $0x28] sm:$0xff]
  %v22 = vld [vmem:[%s0 + $0x30] sm:$0xff]
  %v23 = vld [vmem:[%s0 + $0x38] sm:$0xff]
  %v24 = vld [vmem:[%s0 + $0x40] sm:$0xff]
  %v25 = vld [vmem:[%s0 + $0x48] sm:$0xff]
  %v26 = vld [vmem:[%s0 + $0x50] sm:$0xff]
  %v27 = vld [vmem:[%s0 + $0x58] sm:$0xff]
  %v28 = vld [vmem:[%s0 + $0x60] sm:$0xff]
  %v29 = vld [vmem:[%s0 + $0x68] sm:$0xff]
  %v30 = vld [vmem:[%s0 + $0x70] sm:$0xff]
  %v31 = vld [vmem:[%s0 + $0x78] sm:$0xff]
  %v32 = vld [vmem:[%s0 + $0x80] sm:$0xff]
  %v33 = vld [vmem:[%s0 + $0x88] sm:$0xff]
  %v34 = vld [vmem:[%s0 + $0x90] sm:$0xff]
  %v35 = vld [vmem:[%s0 + $0x98] sm:$0xff]
  %v36 = vld [vmem:[%s0 + $0xa0] sm:$0xff]
  %v37 = vld [vmem:[%s0 + $0xa8] sm:$0xff]
  %v38 = vld [vmem:[%s0 + $0xb0] sm:$0xff]
  %v39 = vld [vmem:[%s0 + $0xb8] sm:$0xff]
  %v40 = vld [vmem:[%s0 + $0xc0] sm:$0xff]
  %v41 = vld [vmem:[%s0 + $0xc8] sm:$0xff]
  %v42 = vld [vmem:[%s0 + $0xd0] sm:$0xff]
  %v43 = vld [vmem:[%s0 + $0xd8] sm:$0xff]
  %v44 = vld [vmem:[%s0 + $0xe0] sm:$0xff]
  %v45 = vld [vmem:[%s0 + $0xe8] sm:$0xff]
  %v46 = vld [vmem:[%s0 + $0xf0] sm:$0xff]
  %v47 = vld [vmem:[%s0 + $0xf8] sm:$0xff]
  %v48 = vld [vmem:[%s0 + $0x100] sm:$0xff]
  %v49 = vld [vmem:[%s0 + $0x108] sm:$0xff]
  %v50 = vld [vmem:[%s0 + $0x110] sm:$0xff]
  %v51 = vld [vmem:[%s0 + $0x118] sm:$0xff]
  %v52 = vld [vmem:[%s0 + $0x120] sm:$0xff]
  %v53 = vld [vmem:[%s0 + $0x128] sm:$0xff]
  %v54 = vld [vmem:[%s0 + $0x130] sm:$0xff]
  %v55 = vld [vmem:[%s0 + $0x138] sm:$0xff]
  %v56 = vld [vmem:[%s0 + $0x140] sm:$0xff]
  %v57 = vld [vmem:[%s0 + $0x148] sm:$0xff]
  %v58 = vld [vmem:[%s0 + $0x150] sm:$0xff]
  %v59 = vld [vmem:[%s0 + $0x158] sm:$0xff]
  %v60 = vld [vmem:[%s0 + $0x160] sm:$0xff]
  %v61 = vld [vmem:[%s0 + $0x168] sm:$0xff]
  %v62 = vld [vmem:[%s0 + $0x170] sm:$0xff]
  %v63 = vld [vmem:[%s0 + $0x178] sm:$0xff]
  %v64 = vld [vmem:[%s0 + $0x180] sm:$0xff]
  %v65 = vld [vmem:[%s0 + $0x188] sm:$0xff]
  %v66 = vld [vmem:[%s0 + $0x190] sm:$0xff]
  %v67 = vld [vmem:[%s0 + $0x198] sm:$0xff]
  %v68 = vld [vmem:[%s0 + $0x1a0] sm:$0xff]
  %v69 = vld [vmem:[%s0 + $0x1a8] sm:$0xff]
  %v70 = vld [vmem:[%s0 + $0x1b0] sm:$0xff]
  %v71 = vld [vmem:[%s0 + $0x1b8] sm:$0xff]
  %v72 = vld [vmem:[%s0 + $0x1c0] sm:$0xff]
  %v73 = vld [vmem:[%s0 + $0x1c8] sm:$0xff]
  %v74 = vld [vmem:[%s0 + $0x1d0] sm:$0xff]
  %v75 = vld [vmem:[%s0 + $0x1d8] sm:$0xff]
  %v76 = vld [vmem:[%s0 + $0x1e0] sm:$0xff]
  %v77 = vld [vmem:[%s0 + $0x1e8] sm:$0xff]
  %v78 = vld [vmem:[%s0 + $0x1f0] sm:$0xff]
  %v79 = vld [vmem:[%s0 + $0x1f8] sm:$0xff]
  %v80 = vld [vmem:[%s0 + $0x200] sm:$0xff]
  %v81 = vld [vmem:[%s0 + $0x208] sm:$0xff]
  %v82 = vld [vmem:[%s0 + $0x210] sm:$0xff]
  %v83 = vld [vmem:[%s0 + $0x218] sm:$0xff]
  %v84 = vld [vmem:[%s0 + $0x220] sm:$0xff]
  %v85 = vld [vmem:[%s0 + $0x228] sm:$0xff]
  %v86 = vld [vmem:[%s0 + $0x230] sm:$0xff]
  %v87 = vld [vmem:[%s0 + $0x238] sm:$0xff]
  %v88 = vld [vmem:[%s0 + $0x240] sm:$0xff]
  %v89 = vld [vmem:[%s0 + $0x248] sm:$0xff]
  %v90 = vld [vmem:[%s0 + $0x250] sm:$0xff]
  %v91 = vld [vmem:[%s0 + $0x258] sm:$0xff]
  %v92 = vld [vmem:[%s0 + $0x260] sm:$0xff]
  %v93 = vld [vmem:[%s0 + $0x268] sm:$0xff]
  %v94 = vld [vmem:[%s0 + $0x270] sm:$0xff]
  %v95 = vld [vmem:[%s0 + $0x278] sm:$0xff]
  %v96 = vld [vmem:[%s2] sm:$0xf]
  %98 = vset.pattern.permute.xlu0 0
  %99 = vperm.xlu0 %98, %v96
  %v100 = vpop.permute.xlu0 %99
  %v182 = vunpack.c.l.b16 %v16
  %v183 = vunpack.c.h.b16 %v16
  %v184 = vunpack.c.l.b16 %v17
  %v185 = vunpack.c.h.b16 %v17
  %v186 = vunpack.c.l.b16 %v18
  %v187 = vunpack.c.h.b16 %v18
  %v188 = vunpack.c.l.b16 %v19
  %v189 = vunpack.c.h.b16 %v19
  %v190 = vunpack.c.l.b16 %v20
  %v191 = vunpack.c.h.b16 %v20
  %v192 = vunpack.c.l.b16 %v21
  %v193 = vunpack.c.h.b16 %v21
  %v194 = vunpack.c.l.b16 %v22
  %v195 = vunpack.c.h.b16 %v22
  %v196 = vunpack.c.l.b16 %v23
  %v197 = vunpack.c.h.b16 %v23
  %v198 = vunpack.c.l.b16 %v24
  %v199 = vunpack.c.h.b16 %v24
  %v200 = vunpack.c.l.b16 %v25
  %v201 = vunpack.c.h.b16 %v25
  %v202 = vunpack.c.l.b16 %v26
  %v203 = vunpack.c.h.b16 %v26
  %v204 = vunpack.c.l.b16 %v27
  %v205 = vunpack.c.h.b16 %v27
  %v206 = vunpack.c.l.b16 %v28
  %v207 = vunpack.c.h.b16 %v28
  %v208 = vunpack.c.l.b16 %v29
  %v209 = vunpack.c.h.b16 %v29
  %v210 = vunpack.c.l.b16 %v30
  %v211 = vunpack.c.h.b16 %v30
  %v212 = vunpack.c.l.b16 %v31
  %v213 = vunpack.c.h.b16 %v31
  %v214 = vunpack.c.l.b16 %v32
  %v215 = vunpack.c.h.b16 %v32
  %v216 = vunpack.c.l.b16 %v33
  %v217 = vunpack.c.h.b16 %v33
  %v218 = vunpack.c.l.b16 %v34
  %v219 = vunpack.c.h.b16 %v34
  %v220 = vunpack.c.l.b16 %v35
  %v221 = vunpack.c.h.b16 %v35
  %v222 = vunpack.c.l.b16 %v36
  %v223 = vunpack.c.h.b16 %v36
  %v224 = vunpack.c.l.b16 %v37
  %v225 = vunpack.c.h.b16 %v37
  %v226 = vunpack.c.l.b16 %v38
  %v227 = vunpack.c.h.b16 %v38
  %v228 = vunpack.c.l.b16 %v39
  %v229 = vunpack.c.h.b16 %v39
  %v230 = vunpack.c.l.b16 %v40
  %v231 = vunpack.c.h.b16 %v40
  %v232 = vunpack.c.l.b16 %v41
  %v233 = vunpack.c.h.b16 %v41
  %v234 = vunpack.c.l.b16 %v42
  %v235 = vunpack.c.h.b16 %v42
  %v236 = vunpack.c.l.b16 %v43
  %v237 = vunpack.c.h.b16 %v43
  %v238 = vunpack.c.l.b16 %v44
  %v239 = vunpack.c.h.b16 %v44
  %v240 = vunpack.c.l.b16 %v45
  %v241 = vunpack.c.h.b16 %v45
  %v242 = vunpack.c.l.b16 %v46
  %v243 = vunpack.c.h.b16 %v46
  %v244 = vunpack.c.l.b16 %v47
  %v245 = vunpack.c.h.b16 %v47
  %v246 = vunpack.c.l.b16 %v48
  %v247 = vunpack.c.h.b16 %v48
  %v248 = vunpack.c.l.b16 %v49
  %v249 = vunpack.c.h.b16 %v49
  %v250 = vunpack.c.l.b16 %v50
  %v251 = vunpack.c.h.b16 %v50
  %v252 = vunpack.c.l.b16 %v51
  %v253 = vunpack.c.h.b16 %v51
  %v254 = vunpack.c.l.b16 %v52
  %v255 = vunpack.c.h.b16 %v52
  %v256 = vunpack.c.l.b16 %v53
  %v257 = vunpack.c.h.b16 %v53
  %v258 = vunpack.c.l.b16 %v54
  %v259 = vunpack.c.h.b16 %v54
  %v260 = vunpack.c.l.b16 %v55
  %v261 = vunpack.c.h.b16 %v55
  %v262 = vunpack.c.l.b16 %v56
  %v263 = vunpack.c.h.b16 %v56
  %v264 = vunpack.c.l.b16 %v57
  %v265 = vunpack.c.h.b16 %v57
  %v266 = vunpack.c.l.b16 %v58
  %v267 = vunpack.c.h.b16 %v58
  %v268 = vunpack.c.l.b16 %v59
  %v269 = vunpack.c.h.b16 %v59
  %v270 = vunpack.c.l.b16 %v60
  %v271 = vunpack.c.h.b16 %v60
  %v272 = vunpack.c.l.b16 %v61
  %v273 = vunpack.c.h.b16 %v61
  %v274 = vunpack.c.l.b16 %v62
  %v275 = vunpack.c.h.b16 %v62
  %v276 = vunpack.c.l.b16 %v63
  %v277 = vunpack.c.h.b16 %v63
  %v278 = vunpack.c.l.b16 %v64
  %v279 = vunpack.c.h.b16 %v64
  %v280 = vunpack.c.l.b16 %v65
  %v281 = vunpack.c.h.b16 %v65
  %v282 = vunpack.c.l.b16 %v66
  %v283 = vunpack.c.h.b16 %v66
  %v284 = vunpack.c.l.b16 %v67
  %v285 = vunpack.c.h.b16 %v67
  %v286 = vunpack.c.l.b16 %v68
  %v287 = vunpack.c.h.b16 %v68
  %v288 = vunpack.c.l.b16 %v69
  %v289 = vunpack.c.h.b16 %v69
  %v290 = vunpack.c.l.b16 %v70
  %v291 = vunpack.c.h.b16 %v70
  %v292 = vunpack.c.l.b16 %v71
  %v293 = vunpack.c.h.b16 %v71
  %v294 = vunpack.c.l.b16 %v72
  %v295 = vunpack.c.h.b16 %v72
  %v296 = vunpack.c.l.b16 %v73
  %v297 = vunpack.c.h.b16 %v73
  %v298 = vunpack.c.l.b16 %v74
  %v299 = vunpack.c.h.b16 %v74
  %v300 = vunpack.c.l.b16 %v75
  %v301 = vunpack.c.h.b16 %v75
  %v302 = vunpack.c.l.b16 %v76
  %v303 = vunpack.c.h.b16 %v76
  %v304 = vunpack.c.l.b16 %v77
  %v305 = vunpack.c.h.b16 %v77
  %v306 = vunpack.c.l.b16 %v78
  %v307 = vunpack.c.h.b16 %v78
  %v308 = vunpack.c.l.b16 %v79
  %v309 = vunpack.c.h.b16 %v79
  %v310 = vunpack.c.l.b16 %v80
  %v311 = vunpack.c.h.b16 %v80
  %v312 = vunpack.c.l.b16 %v81
  %v313 = vunpack.c.h.b16 %v81
  %v314 = vunpack.c.l.b16 %v82
  %v315 = vunpack.c.h.b16 %v82
  %v316 = vunpack.c.l.b16 %v83
  %v317 = vunpack.c.h.b16 %v83
  %v318 = vunpack.c.l.b16 %v84
  %v319 = vunpack.c.h.b16 %v84
  %v320 = vunpack.c.l.b16 %v85
  %v321 = vunpack.c.h.b16 %v85
  %v322 = vunpack.c.l.b16 %v86
  %v323 = vunpack.c.h.b16 %v86
  %v324 = vunpack.c.l.b16 %v87
  %v325 = vunpack.c.h.b16 %v87
  %v326 = vunpack.c.l.b16 %v88
  %v327 = vunpack.c.h.b16 %v88
  %v328 = vunpack.c.l.b16 %v89
  %v329 = vunpack.c.h.b16 %v89
  %v330 = vunpack.c.l.b16 %v90
  %v331 = vunpack.c.h.b16 %v90
  %v332 = vunpack.c.l.b16 %v91
  %v333 = vunpack.c.h.b16 %v91
  %v334 = vunpack.c.l.b16 %v92
  %v335 = vunpack.c.h.b16 %v92
  %v336 = vunpack.c.l.b16 %v93
  %v337 = vunpack.c.h.b16 %v93
  %v338 = vunpack.c.l.b16 %v94
  %v339 = vunpack.c.h.b16 %v94
  %v340 = vunpack.c.l.b16 %v95
  %v341 = vunpack.c.h.b16 %v95
  %v342 = vpack.c.b16 %v198, %v182
  %v343 = vpack.c.b16 %v199, %v183
  %v344 = vpack.c.b16 %v200, %v184
  %v345 = vpack.c.b16 %v201, %v185
  %v346 = vpack.c.b16 %v202, %v186
  %v347 = vpack.c.b16 %v203, %v187
  %v348 = vpack.c.b16 %v204, %v188
  %v349 = vpack.c.b16 %v205, %v189
  %v350 = vpack.c.b16 %v206, %v190
  %v351 = vpack.c.b16 %v207, %v191
  %v352 = vpack.c.b16 %v208, %v192
  %v353 = vpack.c.b16 %v209, %v193
  %v354 = vpack.c.b16 %v210, %v194
  %v355 = vpack.c.b16 %v211, %v195
  %v356 = vpack.c.b16 %v212, %v196
  %v357 = vpack.c.b16 %v213, %v197
  %v358 = vpack.c.b16 %v230, %v214
  %v359 = vpack.c.b16 %v231, %v215
  %v360 = vpack.c.b16 %v232, %v216
  %v361 = vpack.c.b16 %v233, %v217
  %v362 = vpack.c.b16 %v234, %v218
  %v363 = vpack.c.b16 %v235, %v219
  %v364 = vpack.c.b16 %v236, %v220
  %v365 = vpack.c.b16 %v237, %v221
  %v366 = vpack.c.b16 %v238, %v222
  %v367 = vpack.c.b16 %v239, %v223
  %v368 = vpack.c.b16 %v240, %v224
  %v369 = vpack.c.b16 %v241, %v225
  %v370 = vpack.c.b16 %v242, %v226
  %v371 = vpack.c.b16 %v243, %v227
  %v372 = vpack.c.b16 %v244, %v228
  %v373 = vpack.c.b16 %v245, %v229
  %v374 = vpack.c.b16 %v262, %v246
  %v375 = vpack.c.b16 %v263, %v247
  %v376 = vpack.c.b16 %v264, %v248
  %v377 = vpack.c.b16 %v265, %v249
  %v378 = vpack.c.b16 %v266, %v250
  %v379 = vpack.c.b16 %v267, %v251
  %v380 = vpack.c.b16 %v268, %v252
  %v381 = vpack.c.b16 %v269, %v253
  %v382 = vpack.c.b16 %v270, %v254
  %v383 = vpack.c.b16 %v271, %v255
  %v384 = vpack.c.b16 %v272, %v256
  %v385 = vpack.c.b16 %v273, %v257
  %v386 = vpack.c.b16 %v274, %v258
  %v387 = vpack.c.b16 %v275, %v259
  %v388 = vpack.c.b16 %v276, %v260
  %v389 = vpack.c.b16 %v277, %v261
  %v390 = vpack.c.b16 %v294, %v278
  %v391 = vpack.c.b16 %v295, %v279
  %v392 = vpack.c.b16 %v296, %v280
  %v393 = vpack.c.b16 %v297, %v281
  %v394 = vpack.c.b16 %v298, %v282
  %v395 = vpack.c.b16 %v299, %v283
  %v396 = vpack.c.b16 %v300, %v284
  %v397 = vpack.c.b16 %v301, %v285
  %v398 = vpack.c.b16 %v302, %v286
  %v399 = vpack.c.b16 %v303, %v287
  %v400 = vpack.c.b16 %v304, %v288
  %v401 = vpack.c.b16 %v305, %v289
  %v402 = vpack.c.b16 %v306, %v290
  %v403 = vpack.c.b16 %v307, %v291
  %v404 = vpack.c.b16 %v308, %v292
  %v405 = vpack.c.b16 %v309, %v293
  %v406 = vpack.c.b16 %v326, %v310
  %v407 = vpack.c.b16 %v327, %v311
  %v408 = vpack.c.b16 %v328, %v312
  %v409 = vpack.c.b16 %v329, %v313
  %v410 = vpack.c.b16 %v330, %v314
  %v411 = vpack.c.b16 %v331, %v315
  %v412 = vpack.c.b16 %v332, %v316
  %v413 = vpack.c.b16 %v333, %v317
  %v414 = vpack.c.b16 %v334, %v318
  %v415 = vpack.c.b16 %v335, %v319
  %v416 = vpack.c.b16 %v336, %v320
  %v417 = vpack.c.b16 %v337, %v321
  %v418 = vpack.c.b16 %v338, %v322
  %v419 = vpack.c.b16 %v339, %v323
  %v420 = vpack.c.b16 %v340, %v324
  %v421 = vpack.c.b16 %v341, %v325
  %vm502 = vcmask 654336
  %v504 = vsel %vm502, %v15, 0
  %506 = vmatprep.subr.bf16.mxu0 %v343
  %507 = vmatpush1.bf16.msra.mxu0 %v342
  %508 = vmatprep.subr.bf16.mxu0 %v359
  %509 = vmatpush1.bf16.msra.mxu0 %v358
  %510 = vmatprep.subr.bf16.mxu0 %v375
  %511 = vmatpush1.bf16.msra.mxu0 %v374
  %512 = vmatprep.subr.bf16.mxu0 %v391
  %513 = vmatpush1.bf16.msra.mxu0 %v390
  %514 = vmatprep.subr.bf16.mxu0 %v407
  %515 = vmatpush1.bf16.msra.mxu0 %v406
  %516 = vmatprep.subr.bf16.mxu0 0
  %517 = vmatpush1.bf16.msra.mxu0 0
  %518 = vmatprep.subr.bf16.mxu0 0
  %519 = vmatpush1.bf16.msra.mxu0 0
  %520 = vmatprep.subr.bf16.mxu0 0
  %521 = vmatpush1.bf16.msra.mxu0 0
  %522 = vmatprep.subr.bf16.mxu0 0
  %523 = vmatpush1.bf16.msra.mxu0 0
  %524 = vmatprep.subr.bf16.mxu0 0
  %525 = vmatpush1.bf16.msra.mxu0 0
  %526 = vmatprep.subr.bf16.mxu0 0
  %527 = vmatpush1.bf16.msra.mxu0 0
  %528 = vmatprep.subr.bf16.mxu0 0
  %529 = vmatpush1.bf16.msra.mxu0 0
  %530 = vmatprep.subr.bf16.mxu0 0
  %531 = vmatpush1.bf16.msra.mxu0 0
  %532 = vmatprep.subr.bf16.mxu0 0
  %533 = vmatpush1.bf16.msra.mxu0 0
  %534 = vmatprep.subr.bf16.mxu0 0
  %535 = vmatpush1.bf16.msra.mxu0 0
  %536 = vmatprep.subr.bf16.mxu0 0
  %537 = vmatpush1.bf16.msra.mxu0 0
  %538 = vmatprep.mubr.bf16.mxu0 0
  %539 = vmatmul.mubr.bf16.gmra.mrb[0].mxu0 %v504
  %v540 = vpop.f32.mrb[0].mxu0
  %v541 = vadd.f32 %v100, %v540
  %v542 = vpop.f32.mrb[0].mxu0
  %v543 = vadd.f32 %v100, %v542
  %v544 = vpop.f32.mrb[0].mxu0
  %v545 = vpop.f32.mrb[0].mxu0
  %546 = vdwg.mxu0
  %547 = vmatprep.subr.bf16.mxu0 %v345
  %548 = vmatpush1.bf16.msra.mxu0 %v344
  %549 = vmatprep.subr.bf16.mxu0 %v361
  %550 = vmatpush1.bf16.msra.mxu0 %v360
  %551 = vmatprep.subr.bf16.mxu0 %v377
  %552 = vmatpush1.bf16.msra.mxu0 %v376
  %553 = vmatprep.subr.bf16.mxu0 %v393
  %554 = vmatpush1.bf16.msra.mxu0 %v392
  %555 = vmatprep.subr.bf16.mxu0 %v409
  %556 = vmatpush1.bf16.msra.mxu0 %v408
  %557 = vmatprep.subr.bf16.mxu0 0
  %558 = vmatpush1.bf16.msra.mxu0 0
  %559 = vmatprep.subr.bf16.mxu0 0
  %560 = vmatpush1.bf16.msra.mxu0 0
  %561 = vmatprep.subr.bf16.mxu0 0
  %562 = vmatpush1.bf16.msra.mxu0 0
  %563 = vmatprep.subr.bf16.mxu0 0
  %564 = vmatpush1.bf16.msra.mxu0 0
  %565 = vmatprep.subr.bf16.mxu0 0
  %566 = vmatpush1.bf16.msra.mxu0 0
  %567 = vmatprep.subr.bf16.mxu0 0
  %568 = vmatpush1.bf16.msra.mxu0 0
  %569 = vmatprep.subr.bf16.mxu0 0
  %570 = vmatpush1.bf16.msra.mxu0 0
  %571 = vmatprep.subr.bf16.mxu0 0
  %572 = vmatpush1.bf16.msra.mxu0 0
  %573 = vmatprep.subr.bf16.mxu0 0
  %574 = vmatpush1.bf16.msra.mxu0 0
  %575 = vmatprep.subr.bf16.mxu0 0
  %576 = vmatpush1.bf16.msra.mxu0 0
  %577 = vmatprep.subr.bf16.mxu0 0
  %578 = vmatpush1.bf16.msra.mxu0 0
  %579 = vmatprep.mubr.bf16.mxu0 0
  %580 = vmatmul.mubr.bf16.gmra.mrb[0].mxu0 %v504
  %v581 = vpop.f32.mrb[0].mxu0
  %v582 = vadd.f32 %v100, %v581
  %v583 = vpop.f32.mrb[0].mxu0
  %v584 = vadd.f32 %v100, %v583
  %v585 = vpop.f32.mrb[0].mxu0
  %v586 = vpop.f32.mrb[0].mxu0
  %587 = vdwg.mxu0
  %588 = vmatprep.subr.bf16.mxu0 %v347
  %589 = vmatpush1.bf16.msra.mxu0 %v346
  %590 = vmatprep.subr.bf16.mxu0 %v363
  %591 = vmatpush1.bf16.msra.mxu0 %v362
  %592 = vmatprep.subr.bf16.mxu0 %v379
  %593 = vmatpush1.bf16.msra.mxu0 %v378
  %594 = vmatprep.subr.bf16.mxu0 %v395
  %595 = vmatpush1.bf16.msra.mxu0 %v394
  %596 = vmatprep.subr.bf16.mxu0 %v411
  %597 = vmatpush1.bf16.msra.mxu0 %v410
  %598 = vmatprep.subr.bf16.mxu0 0
  %599 = vmatpush1.bf16.msra.mxu0 0
  %600 = vmatprep.subr.bf16.mxu0 0
  %601 = vmatpush1.bf16.msra.mxu0 0
  %602 = vmatprep.subr.bf16.mxu0 0
  %603 = vmatpush1.bf16.msra.mxu0 0
  %604 = vmatprep.subr.bf16.mxu0 0
  %605 = vmatpush1.bf16.msra.mxu0 0
  %606 = vmatprep.subr.bf16.mxu0 0
  %607 = vmatpush1.bf16.msra.mxu0 0
  %608 = vmatprep.subr.bf16.mxu0 0
  %609 = vmatpush1.bf16.msra.mxu0 0
  %610 = vmatprep.subr.bf16.mxu0 0
  %611 = vmatpush1.bf16.msra.mxu0 0
  %612 = vmatprep.subr.bf16.mxu0 0
  %613 = vmatpush1.bf16.msra.mxu0 0
  %614 = vmatprep.subr.bf16.mxu0 0
  %615 = vmatpush1.bf16.msra.mxu0 0
  %616 = vmatprep.subr.bf16.mxu0 0
  %617 = vmatpush1.bf16.msra.mxu0 0
  %618 = vmatprep.subr.bf16.mxu0 0
  %619 = vmatpush1.bf16.msra.mxu0 0
  %620 = vmatprep.mubr.bf16.mxu0 0
  %621 = vmatmul.mubr.bf16.gmra.mrb[0].mxu0 %v504
  %v622 = vpop.f32.mrb[0].mxu0
  %v623 = vadd.f32 %v100, %v622
  %v624 = vpop.f32.mrb[0].mxu0
  %v625 = vadd.f32 %v100, %v624
  %v626 = vpop.f32.mrb[0].mxu0
  %v627 = vpop.f32.mrb[0].mxu0
  %628 = vdwg.mxu0
  %629 = vmatprep.subr.bf16.mxu0 %v349
  %630 = vmatpush1.bf16.msra.mxu0 %v348
  %631 = vmatprep.subr.bf16.mxu0 %v365
  %632 = vmatpush1.bf16.msra.mxu0 %v364
  %633 = vmatprep.subr.bf16.mxu0 %v381
  %634 = vmatpush1.bf16.msra.mxu0 %v380
  %635 = vmatprep.subr.bf16.mxu0 %v397
  %636 = vmatpush1.bf16.msra.mxu0 %v396
  %637 = vmatprep.subr.bf16.mxu0 %v413
  %638 = vmatpush1.bf16.msra.mxu0 %v412
  %639 = vmatprep.subr.bf16.mxu0 0
  %640 = vmatpush1.bf16.msra.mxu0 0
  %641 = vmatprep.subr.bf16.mxu0 0
  %642 = vmatpush1.bf16.msra.mxu0 0
  %643 = vmatprep.subr.bf16.mxu0 0
  %644 = vmatpush1.bf16.msra.mxu0 0
  %645 = vmatprep.subr.bf16.mxu0 0
  %646 = vmatpush1.bf16.msra.mxu0 0
  %647 = vmatprep.subr.bf16.mxu0 0
  %648 = vmatpush1.bf16.msra.mxu0 0
  %649 = vmatprep.subr.bf16.mxu0 0
  %650 = vmatpush1.bf16.msra.mxu0 0
  %651 = vmatprep.subr.bf16.mxu0 0
  %652 = vmatpush1.bf16.msra.mxu0 0
  %653 = vmatprep.subr.bf16.mxu0 0
  %654 = vmatpush1.bf16.msra.mxu0 0
  %655 = vmatprep.subr.bf16.mxu0 0
  %656 = vmatpush1.bf16.msra.mxu0 0
  %657 = vmatprep.subr.bf16.mxu0 0
  %658 = vmatpush1.bf16.msra.mxu0 0
  %659 = vmatprep.subr.bf16.mxu0 0
  %660 = vmatpush1.bf16.msra.mxu0 0
  %661 = vmatprep.mubr.bf16.mxu0 0
  %662 = vmatmul.mubr.bf16.gmra.mrb[0].mxu0 %v504
  %v663 = vpop.f32.mrb[0].mxu0
  %v664 = vadd.f32 %v100, %v663
  %v665 = vpop.f32.mrb[0].mxu0
  %v666 = vadd.f32 %v100, %v665
  %v667 = vpop.f32.mrb[0].mxu0
  %v668 = vpop.f32.mrb[0].mxu0
  %669 = vdwg.mxu0
  %670 = vmatprep.subr.bf16.mxu0 %v351
  %671 = vmatpush1.bf16.msra.mxu0 %v350
  %672 = vmatprep.subr.bf16.mxu0 %v367
  %673 = vmatpush1.bf16.msra.mxu0 %v366
  %674 = vmatprep.subr.bf16.mxu0 %v383
  %675 = vmatpush1.bf16.msra.mxu0 %v382
  %676 = vmatprep.subr.bf16.mxu0 %v399
  %677 = vmatpush1.bf16.msra.mxu0 %v398
  %678 = vmatprep.subr.bf16.mxu0 %v415
  %679 = vmatpush1.bf16.msra.mxu0 %v414
  %680 = vmatprep.subr.bf16.mxu0 0
  %681 = vmatpush1.bf16.msra.mxu0 0
  %682 = vmatprep.subr.bf16.mxu0 0
  %683 = vmatpush1.bf16.msra.mxu0 0
  %684 = vmatprep.subr.bf16.mxu0 0
  %685 = vmatpush1.bf16.msra.mxu0 0
  %686 = vmatprep.subr.bf16.mxu0 0
  %687 = vmatpush1.bf16.msra.mxu0 0
  %688 = vmatprep.subr.bf16.mxu0 0
  %689 = vmatpush1.bf16.msra.mxu0 0
  %690 = vmatprep.subr.bf16.mxu0 0
  %691 = vmatpush1.bf16.msra.mxu0 0
  %692 = vmatprep.subr.bf16.mxu0 0
  %693 = vmatpush1.bf16.msra.mxu0 0
  %694 = vmatprep.subr.bf16.mxu0 0
  %695 = vmatpush1.bf16.msra.mxu0 0
  %696 = vmatprep.subr.bf16.mxu0 0
  %697 = vmatpush1.bf16.msra.mxu0 0
  %698 = vmatprep.subr.bf16.mxu0 0
  %699 = vmatpush1.bf16.msra.mxu0 0
  %700 = vmatprep.subr.bf16.mxu0 0
  %701 = vmatpush1.bf16.msra.mxu0 0
  %702 = vmatprep.mubr.bf16.mxu0 0
  %703 = vmatmul.mubr.bf16.gmra.mrb[0].mxu0 %v504
  %v704 = vpop.f32.mrb[0].mxu0
  %v705 = vadd.f32 %v100, %v704
  %v706 = vpop.f32.mrb[0].mxu0
  %v707 = vadd.f32 %v100, %v706
  %v708 = vpop.f32.mrb[0].mxu0
  %v709 = vpop.f32.mrb[0].mxu0
  %710 = vdwg.mxu0
  %711 = vmatprep.subr.bf16.mxu0 %v353
  %712 = vmatpush1.bf16.msra.mxu0 %v352
  %713 = vmatprep.subr.bf16.mxu0 %v369
  %714 = vmatpush1.bf16.msra.mxu0 %v368
  %715 = vmatprep.subr.bf16.mxu0 %v385
  %716 = vmatpush1.bf16.msra.mxu0 %v384
  %717 = vmatprep.subr.bf16.mxu0 %v401
  %718 = vmatpush1.bf16.msra.mxu0 %v400
  %719 = vmatprep.subr.bf16.mxu0 %v417
  %720 = vmatpush1.bf16.msra.mxu0 %v416
  %721 = vmatprep.subr.bf16.mxu0 0
  %722 = vmatpush1.bf16.msra.mxu0 0
  %723 = vmatprep.subr.bf16.mxu0 0
  %724 = vmatpush1.bf16.msra.mxu0 0
  %725 = vmatprep.subr.bf16.mxu0 0
  %726 = vmatpush1.bf16.msra.mxu0 0
  %727 = vmatprep.subr.bf16.mxu0 0
  %728 = vmatpush1.bf16.msra.mxu0 0
  %729 = vmatprep.subr.bf16.mxu0 0
  %730 = vmatpush1.bf16.msra.mxu0 0
  %731 = vmatprep.subr.bf16.mxu0 0
  %732 = vmatpush1.bf16.msra.mxu0 0
  %733 = vmatprep.subr.bf16.mxu0 0
  %734 = vmatpush1.bf16.msra.mxu0 0
  %735 = vmatprep.subr.bf16.mxu0 0
  %736 = vmatpush1.bf16.msra.mxu0 0
  %737 = vmatprep.subr.bf16.mxu0 0
  %738 = vmatpush1.bf16.msra.mxu0 0
  %739 = vmatprep.subr.bf16.mxu0 0
  %740 = vmatpush1.bf16.msra.mxu0 0
  %741 = vmatprep.subr.bf16.mxu0 0
  %742 = vmatpush1.bf16.msra.mxu0 0
  %743 = vmatprep.mubr.bf16.mxu0 0
  %744 = vmatmul.mubr.bf16.gmra.mrb[0].mxu0 %v504
  %v745 = vpop.f32.mrb[0].mxu0
  %v746 = vadd.f32 %v100, %v745
  %v747 = vpop.f32.mrb[0].mxu0
  %v748 = vadd.f32 %v100, %v747
  %v749 = vpop.f32.mrb[0].mxu0
  %v750 = vpop.f32.mrb[0].mxu0
  %751 = vdwg.mxu0
  %752 = vmatprep.subr.bf16.mxu0 %v355
  %753 = vmatpush1.bf16.msra.mxu0 %v354
  %754 = vmatprep.subr.bf16.mxu0 %v371
  %755 = vmatpush1.bf16.msra.mxu0 %v370
  %756 = vmatprep.subr.bf16.mxu0 %v387
  %757 = vmatpush1.bf16.msra.mxu0 %v386
  %758 = vmatprep.subr.bf16.mxu0 %v403
  %759 = vmatpush1.bf16.msra.mxu0 %v402
  %760 = vmatprep.subr.bf16.mxu0 %v419
  %761 = vmatpush1.bf16.msra.mxu0 %v418
  %762 = vmatprep.subr.bf16.mxu0 0
  %763 = vmatpush1.bf16.msra.mxu0 0
  %764 = vmatprep.subr.bf16.mxu0 0
  %765 = vmatpush1.bf16.msra.mxu0 0
  %766 = vmatprep.subr.bf16.mxu0 0
  %767 = vmatpush1.bf16.msra.mxu0 0
  %768 = vmatprep.subr.bf16.mxu0 0
  %769 = vmatpush1.bf16.msra.mxu0 0
  %770 = vmatprep.subr.bf16.mxu0 0
  %771 = vmatpush1.bf16.msra.mxu0 0
  %772 = vmatprep.subr.bf16.mxu0 0
  %773 = vmatpush1.bf16.msra.mxu0 0
  %774 = vmatprep.subr.bf16.mxu0 0
  %775 = vmatpush1.bf16.msra.mxu0 0
  %776 = vmatprep.subr.bf16.mxu0 0
  %777 = vmatpush1.bf16.msra.mxu0 0
  %778 = vmatprep.subr.bf16.mxu0 0
  %779 = vmatpush1.bf16.msra.mxu0 0
  %780 = vmatprep.subr.bf16.mxu0 0
  %781 = vmatpush1.bf16.msra.mxu0 0
  %782 = vmatprep.subr.bf16.mxu0 0
  %783 = vmatpush1.bf16.msra.mxu0 0
  %784 = vmatprep.mubr.bf16.mxu0 0
  %785 = vmatmul.mubr.bf16.gmra.mrb[0].mxu0 %v504
  %v786 = vpop.f32.mrb[0].mxu0
  %v787 = vadd.f32 %v100, %v786
  %v788 = vpop.f32.mrb[0].mxu0
  %v789 = vadd.f32 %v100, %v788
  %v790 = vpop.f32.mrb[0].mxu0
  %v791 = vpop.f32.mrb[0].mxu0
  %792 = vdwg.mxu0
  %793 = vmatprep.subr.bf16.mxu0 %v357
  %794 = vmatpush1.bf16.msra.mxu0 %v356
  %795 = vmatprep.subr.bf16.mxu0 %v373
  %796 = vmatpush1.bf16.msra.mxu0 %v372
  %797 = vmatprep.subr.bf16.mxu0 %v389
  %798 = vmatpush1.bf16.msra.mxu0 %v388
  %799 = vmatprep.subr.bf16.mxu0 %v405
  %800 = vmatpush1.bf16.msra.mxu0 %v404
  %801 = vmatprep.subr.bf16.mxu0 %v421
  %802 = vmatpush1.bf16.msra.mxu0 %v420
  %803 = vmatprep.subr.bf16.mxu0 0
  %804 = vmatpush1.bf16.msra.mxu0 0
  %805 = vmatprep.subr.bf16.mxu0 0
  %806 = vmatpush1.bf16.msra.mxu0 0
  %807 = vmatprep.subr.bf16.mxu0 0
  %808 = vmatpush1.bf16.msra.mxu0 0
  %809 = vmatprep.subr.bf16.mxu0 0
  %810 = vmatpush1.bf16.msra.mxu0 0
  %811 = vmatprep.subr.bf16.mxu0 0
  %812 = vmatpush1.bf16.msra.mxu0 0
  %813 = vmatprep.subr.bf16.mxu0 0
  %814 = vmatpush1.bf16.msra.mxu0 0
  %815 = vmatprep.subr.bf16.mxu0 0
  %816 = vmatpush1.bf16.msra.mxu0 0
  %817 = vmatprep.subr.bf16.mxu0 0
  %818 = vmatpush1.bf16.msra.mxu0 0
  %819 = vmatprep.subr.bf16.mxu0 0
  %820 = vmatpush1.bf16.msra.mxu0 0
  %821 = vmatprep.subr.bf16.mxu0 0
  %822 = vmatpush1.bf16.msra.mxu0 0
  %823 = vmatprep.subr.bf16.mxu0 0
  %824 = vmatpush1.bf16.msra.mxu0 0
  %825 = vmatprep.mubr.bf16.mxu0 0
  %826 = vmatmul.mubr.bf16.gmra.mrb[0].mxu0 %v504
  %v827 = vpop.f32.mrb[0].mxu0
  %v828 = vadd.f32 %v100, %v827
  %v829 = vpop.f32.mrb[0].mxu0
  %v830 = vadd.f32 %v100, %v829
  %v831 = vpop.f32.mrb[0].mxu0
  %v832 = vpop.f32.mrb[0].mxu0
  %833 = vdwg.mxu0
  %v834 = vmax.f32 %v541, 0.0
  %v835 = vmax.f32 %v543, 0.0
  %v836 = vmax.f32 %v582, 0.0
  %v837 = vmax.f32 %v584, 0.0
  %v838 = vmax.f32 %v623, 0.0
  %v839 = vmax.f32 %v625, 0.0
  %v840 = vmax.f32 %v664, 0.0
  %v841 = vmax.f32 %v666, 0.0
  %v842 = vmax.f32 %v705, 0.0
  %v843 = vmax.f32 %v707, 0.0
  %v844 = vmax.f32 %v746, 0.0
  %v845 = vmax.f32 %v748, 0.0
  %v846 = vmax.f32 %v787, 0.0
  %v847 = vmax.f32 %v789, 0.0
  %v848 = vmax.f32 %v828, 0.0
  %v849 = vmax.f32 %v830, 0.0
  %v850 = vpack.c.bf16 %v834, %v834
  %v851 = vpack.c.bf16 %v835, %v835
  %v852 = vpack.c.bf16 %v836, %v836
  %v853 = vpack.c.bf16 %v837, %v837
  %v854 = vpack.c.bf16 %v838, %v838
  %v855 = vpack.c.bf16 %v839, %v839
  %v856 = vpack.c.bf16 %v840, %v840
  %v857 = vpack.c.bf16 %v841, %v841
  %v858 = vpack.c.bf16 %v842, %v842
  %v859 = vpack.c.bf16 %v843, %v843
  %v860 = vpack.c.bf16 %v844, %v844
  %v861 = vpack.c.bf16 %v845, %v845
  %v862 = vpack.c.bf16 %v846, %v846
  %v863 = vpack.c.bf16 %v847, %v847
  %v864 = vpack.c.bf16 %v848, %v848
  %v865 = vpack.c.bf16 %v849, %v849
  %v882 = vcombine.low %v850, %v851
  %v883 = vcombine.low %v852, %v853
  %v885 = vunpack.c.l.s4 1983009808
  %v886 = vunpack.c.0.s8 %v885
  %v887 = vlaneseq
  %v888 = vshrl.u32 %v887, 7
  %v889 = vsub.s32 %v886, %v888
  %v890 = vrot.slane %v882, %v889
  %v892 = vunpack.c.l.s4 1983009808
  %v893 = vunpack.c.0.s8 %v892
  %v894 = vlaneseq
  %v895 = vshrl.u32 %v894, 7
  %v896 = vsub.s32 %v893, %v895
  %v897 = vrot.slane %v883, %v896
  %v898 = vcombine.low %v890, %v897
  %v899 = vcombine.low %v854, %v855
  %v900 = vcombine.low %v856, %v857
  %v902 = vunpack.c.l.s4 1983009808
  %v903 = vunpack.c.0.s8 %v902
  %v904 = vlaneseq
  %v905 = vshrl.u32 %v904, 7
  %v906 = vsub.s32 %v903, %v905
  %v907 = vrot.slane %v899, %v906
  %v909 = vunpack.c.l.s4 1983009808
  %v910 = vunpack.c.0.s8 %v909
  %v911 = vlaneseq
  %v912 = vshrl.u32 %v911, 7
  %v913 = vsub.s32 %v910, %v912
  %v914 = vrot.slane %v900, %v913
  %v915 = vcombine.low %v907, %v914
  %v916 = vcombine.low %v858, %v859
  %v917 = vcombine.low %v860, %v861
  %v919 = vunpack.c.l.s4 1983009808
  %v920 = vunpack.c.0.s8 %v919
  %v921 = vlaneseq
  %v922 = vshrl.u32 %v921, 7
  %v923 = vsub.s32 %v920, %v922
  %v924 = vrot.slane %v916, %v923
  %v926 = vunpack.c.l.s4 1983009808
  %v927 = vunpack.c.0.s8 %v926
  %v928 = vlaneseq
  %v929 = vshrl.u32 %v928, 7
  %v930 = vsub.s32 %v927, %v929
  %v931 = vrot.slane %v917, %v930
  %v932 = vcombine.low %v924, %v931
  %v933 = vcombine.low %v862, %v863
  %v934 = vcombine.low %v864, %v865
  %v936 = vunpack.c.l.s4 1983009808
  %v937 = vunpack.c.0.s8 %v936
  %v938 = vlaneseq
  %v939 = vshrl.u32 %v938, 7
  %v940 = vsub.s32 %v937, %v939
  %v941 = vrot.slane %v933, %v940
  %v943 = vunpack.c.l.s4 1983009808
  %v944 = vunpack.c.0.s8 %v943
  %v945 = vlaneseq
  %v946 = vshrl.u32 %v945, 7
  %v947 = vsub.s32 %v944, %v946
  %v948 = vrot.slane %v934, %v947
  %v949 = vcombine.low %v941, %v948
  %954 = vst [vmem:[%s3] sm:$0xff] %v898
  %955 = vst [vmem:[%s3 + $0x8] sm:$0xff] %v915
  %956 = vst [vmem:[%s3 + $0x10] sm:$0xff] %v932
  %957 = vst [vmem:[%s3 + $0x18] sm:$0xff] %v949
  // Predicated region
  $region14: #{uvdocnet_forward.34} parent=0 // pred_check
    _
  $region15: #{uvdocnet_forward.34} parent=0 // pred_check_branch
    %959 = sbr.rel (0) target = $region17
  $region16: #{uvdocnet_forward.34} parent=0 // pred_region
    _
  $region17: #{uvdocnet_forward.34} parent=0 // pred_fallthru
    _
  // Predicated region
  $region18: #{uvdocnet_forward.34} parent=0 // pred_check
    _
  $region19: #{uvdocnet_forward.34} parent=0 // pred_check_branch
    %961 = sbr.rel (0) target = $region21
  $region20: #{uvdocnet_forward.34} parent=0 // pred_region
    _
  $region21: #{uvdocnet_forward.34} parent=0 // pred_fallthru
    _

// kernel: squeeze.45
$region0: #{squeeze.45}
  %s0 = inlined_call_operand.vmem [shape: bf16[1,4,512], index: 0, kind: input, shape index: {}]
  %s1 = inlined_call_operand.vmem [shape: bf16[4,2,16,16], index: 1, kind: output, shape index: {}]
  $region1: #{squeeze.45} parent=0
    #allocation0 [shape = 'u8[65536]{0}', space=vmem, size = 0x10000, scoped, tag = 'scoped mem for output reshape']
    #allocation1 [shape = 'u8[16384]{0}', space=vmem, size = 0x4000, scoped, tag = 'scoped mem for input reshape']
    %s3 = smul.u32 2, 2
    %s4 = sshllo.u32 0, %s3
    %s5 = smul.addr 2, 3
    %s6 = scalar_lea.vmem %s0, %s5
    %s7 = sshrl.u32 %s4, 1
    %s8 = sor.u32 %s4, %s7
    %s9 = sand.u32 %s8, 85
    %s10 = sshrl.u32 %s9, 1
    %s11 = sor.u32 %s9, %s10
    %s12 = sand.u32 51, %s11
    %s13 = sshrl.u32 %s12, 2
    %s14 = sor.u32 %s12, %s13
    %s15 = sand.u32 15, %s14
    %v16 = vld [vmem:[%s6] sm:%s15]
    %v17 = vunpack.c.l.bf16 %v16
    %v18 = vunpack.c.h.bf16 %v16
    %s19 = scalar_lea.vmem [#allocation1], 24
    %20 = vst [vmem:[%s19] sm:%s4] %v17
    %s21 = smul.addr 2, 2
    %s22 = scalar_lea.vmem %s0, %s21
    %s23 = sshrl.u32 %s4, 1
    %s24 = sor.u32 %s4, %s23
    %s25 = sand.u32 %s24, 85
    %s26 = sshrl.u32 %s25, 1
    %s27 = sor.u32 %s25, %s26
    %s28 = sand.u32 51, %s27
    %s29 = sshrl.u32 %s28, 2
    %s30 = sor.u32 %s28, %s29
    %s31 = sand.u32 15, %s30
    %v32 = vld [vmem:[%s22] sm:%s31]
    %v33 = vunpack.c.l.bf16 %v32
    %v34 = vunpack.c.h.bf16 %v32
    %s35 = scalar_lea.vmem [#allocation1], 16
    %36 = vst [vmem:[%s35] sm:%s4] %v33
    %s37 = scalar_lea.vmem %s0, 2
    %s38 = sshrl.u32 %s4, 1
    %s39 = sor.u32 %s4, %s38
    %s40 = sand.u32 %s39, 85
    %s41 = sshrl.u32 %s40, 1
    %s42 = sor.u32 %s40, %s41
    %s43 = sand.u32 51, %s42
    %s44 = sshrl.u32 %s43, 2
    %s45 = sor.u32 %s43, %s44
    %s46 = sand.u32 15, %s45
    %v47 = vld [vmem:[%s37] sm:%s46]
    %v48 = vunpack.c.l.bf16 %v47
    %v49 = vunpack.c.h.bf16 %v47
    %s50 = scalar_lea.vmem [#allocation1], 8
    %51 = vst [vmem:[%s50] sm:%s4] %v48
    %s52 = sshrl.u32 %s4, 1
    %s53 = sor.u32 %s4, %s52
    %s54 = sand.u32 %s53, 85
    %s55 = sshrl.u32 %s54, 1
    %s56 = sor.u32 %s54, %s55
    %s57 = sand.u32 51, %s56
    %s58 = sshrl.u32 %s57, 2
    %s59 = sor.u32 %s57, %s58
    %s60 = sand.u32 15, %s59
    %v61 = vld [vmem:[%s0] sm:%s60]
    %v62 = vunpack.c.l.bf16 %v61
    %v63 = vunpack.c.h.bf16 %v61
    %64 = vst [vmem:[#allocation1] sm:%s4] %v62
    %v65 = vld [vmem:[#allocation1] sm:$0xf]
    %vm66 = vcmask 130048
    %67 = vst.msk [vmem:[#allocation0] sm:$0x1] %vm66, %v65
    %s68 = scalar_lea.vmem [#allocation0], 31
    %69 = vst.msk [vmem:[%s68] sm:$0x2] %vm66, %v65
    %s70 = scalar_lea.vmem [#allocation0], 62
    %71 = vst.msk [vmem:[%s70] sm:$0x4] %vm66, %v65
    %s72 = scalar_lea.vmem [#allocation0], 93
    %73 = vst.msk [vmem:[%s72] sm:$0x8] %vm66, %v65
    %s74 = scalar_lea.vmem [#allocation1], 8
    %v75 = vld [vmem:[%s74] sm:$0xf]
    %vm76 = vcmask 130048
    %s77 = scalar_lea.vmem [#allocation0], 8
    %78 = vst.msk [vmem:[%s77] sm:$0x1] %vm76, %v75
    %s79 = scalar_lea.vmem [#allocation0], 39
    %80 = vst.msk [vmem:[%s79] sm:$0x2] %vm76, %v75
    %s81 = scalar_lea.vmem [#allocation0], 70
    %82 = vst.msk [vmem:[%s81] sm:$0x4] %vm76, %v75
    %s83 = scalar_lea.vmem [#allocation0], 101
    %84 = vst.msk [vmem:[%s83] sm:$0x8] %vm76, %v75
    %s85 = scalar_lea.vmem [#allocation1], 16
    %v86 = vld [vmem:[%s85] sm:$0xf]
    %vm87 = vcmask 130048
    %s88 = scalar_lea.vmem [#allocation0], 16
    %89 = vst.msk [vmem:[%s88] sm:$0x1] %vm87, %v86
    %s90 = scalar_lea.vmem [#allocation0], 47
    %91 = vst.msk [vmem:[%s90] sm:$0x2] %vm87, %v86
    %s92 = scalar_lea.vmem [#allocation0], 78
    %93 = vst.msk [vmem:[%s92] sm:$0x4] %vm87, %v86
    %s94 = scalar_lea.vmem [#allocation0], 109
    %95 = vst.msk [vmem:[%s94] sm:$0x8] %vm87, %v86
    %s96 = scalar_lea.vmem [#allocation1], 24
    %v97 = vld [vmem:[%s96] sm:$0xf]
    %vm98 = vcmask 130048
    %s99 = scalar_lea.vmem [#allocation0], 24
    %100 = vst.msk [vmem:[%s99] sm:$0x1] %vm98, %v97
    %s101 = scalar_lea.vmem [#allocation0], 55
    %102 = vst.msk [vmem:[%s101] sm:$0x2] %vm98, %v97
    %s103 = scalar_lea.vmem [#allocation0], 86
    %104 = vst.msk [vmem:[%s103] sm:$0x4] %vm98, %v97
    %s105 = scalar_lea.vmem [#allocation0], 117
    %106 = vst.msk [vmem:[%s105] sm:$0x8] %vm98, %v97
    %v107 = vld [vmem:[#allocation1] ss:$8 sm:$0xf]
    %s108 = scalar_lea.vmem [#allocation1], 4294967265
    %v109 = vld [vmem:[%s108] ss:$8 sm:$0xf0]
    %vm110 = vcmask 1047556
    %v111 = vsel %vm110, %v109, %v107
    %112 = vrot.lane.b32.xlu0 %v111, 112
    %v113 = vpop.permute.xlu0 %112
    %vm114 = vcmask 130048
    %s115 = scalar_lea.vmem [#allocation0], 1
    %116 = vst.msk [vmem:[%s115] ss:$8 sm:$0xf] %vm114, %v113
    %s117 = scalar_lea.vmem [#allocation0], 1
    %118 = vst.msk [vmem:[%s117] ss:$8 sm:$0xf0] %vm114, %v113
    %s119 = scalar_lea.vmem [#allocation1], 2
    %v120 = vld [vmem:[%s119] ss:$8 sm:$0xf]
    %s121 = scalar_lea.vmem [#allocation1], 4294967267
    %v122 = vld [vmem:[%s121] ss:$8 sm:$0xf0]
    %vm123 = vcmask 1047556
    %v124 = vsel %vm123, %v122, %v120
    %125 = vrot.lane.b32.xlu0 %v124, 112
    %v126 = vpop.permute.xlu0 %125
    %vm127 = vcmask 130048
    %s128 = scalar_lea.vmem [#allocation0], 65
    %129 = vst.msk [vmem:[%s128] ss:$8 sm:$0xf] %vm127, %v126
    %s130 = scalar_lea.vmem [#allocation0], 65
    %131 = vst.msk [vmem:[%s130] ss:$8 sm:$0xf0] %vm127, %v126
    %v132 = vld [vmem:[#allocation1] ss:$8 sm:$0xf]
    %s133 = scalar_lea.vmem [#allocation1], 4294967265
    %v134 = vld [vmem:[%s133] ss:$8 sm:$0xf0]
    %vm135 = vcmask 1047556
    %v136 = vsel %vm135, %v134, %v132
    %137 = vrot.lane.b32.xlu0 %v136, 96
    %v138 = vpop.permute.xlu0 %137
    %vm139 = vcmask 130048
    %s140 = scalar_lea.vmem [#allocation0], 2
    %141 = vst.msk [vmem:[%s140] ss:$8 sm:$0xf] %vm139, %v138
    %s142 = scalar_lea.vmem [#allocation0], 2
    %143 = vst.msk [vmem:[%s142] ss:$8 sm:$0xf0] %vm139, %v138
    %s144 = scalar_lea.vmem [#allocation1], 2
    %v145 = vld [vmem:[%s144] ss:$8 sm:$0xf]
    %s146 = scalar_lea.vmem [#allocation1], 4294967267
    %v147 = vld [vmem:[%s146] ss:$8 sm:$0xf0]
    %vm148 = vcmask 1047556
    %v149 = vsel %vm148, %v147, %v145
    %150 = vrot.lane.b32.xlu0 %v149, 96
    %v151 = vpop.permute.xlu0 %150
    %vm152 = vcmask 130048
    %s153 = scalar_lea.vmem [#allocation0], 66
    %154 = vst.msk [vmem:[%s153] ss:$8 sm:$0xf] %vm152, %v151
    %s155 = scalar_lea.vmem [#allocation0], 66
    %156 = vst.msk [vmem:[%s155] ss:$8 sm:$0xf0] %vm152, %v151
    %v157 = vld [vmem:[#allocation1] ss:$8 sm:$0xf]
    %s158 = scalar_lea.vmem [#allocation1], 4294967265
    %v159 = vld [vmem:[%s158] ss:$8 sm:$0xf0]
    %vm160 = vcmask 1047556
    %v161 = vsel %vm160, %v159, %v157
    %162 = vrot.lane.b32.xlu0 %v161, 80
    %v163 = vpop.permute.xlu0 %162
    %vm164 = vcmask 130048
    %s165 = scalar_lea.vmem [#allocation0], 3
    %166 = vst.msk [vmem:[%s165] ss:$8 sm:$0xf] %vm164, %v163
    %s167 = scalar_lea.vmem [#allocation0], 3
    %168 = vst.msk [vmem:[%s167] ss:$8 sm:$0xf0] %vm164, %v163
    %s169 = scalar_lea.vmem [#allocation1], 2
    %v170 = vld [vmem:[%s169] ss:$8 sm:$0xf]
    %s171 = scalar_lea.vmem [#allocation1], 4294967267
    %v172 = vld [vmem:[%s171] ss:$8 sm:$0xf0]
    %vm173 = vcmask 1047556
    %v174 = vsel %vm173, %v172, %v170
    %175 = vrot.lane.b32.xlu0 %v174, 80
    %v176 = vpop.permute.xlu0 %175
    %vm177 = vcmask 130048
    %s178 = scalar_lea.vmem [#allocation0], 67
    %179 = vst.msk [vmem:[%s178] ss:$8 sm:$0xf] %vm177, %v176
    %s180 = scalar_lea.vmem [#allocation0], 67
    %181 = vst.msk [vmem:[%s180] ss:$8 sm:$0xf0] %vm177, %v176
    %v182 = vld [vmem:[#allocation1] ss:$8 sm:$0xf]
    %s183 = scalar_lea.vmem [#allocation1], 4294967265
    %v184 = vld [vmem:[%s183] ss:$8 sm:$0xf0]
    %vm185 = vcmask 1047556
    %v186 = vsel %vm185, %v184, %v182
    %187 = vrot.lane.b32.xlu0 %v186, 64
    %v188 = vpop.permute.xlu0 %187
    %vm189 = vcmask 130048
    %s190 = scalar_lea.vmem [#allocation0], 4
    %191 = vst.msk [vmem:[%s190] ss:$8 sm:$0xf] %vm189, %v188
    %s192 = scalar_lea.vmem [#allocation0], 4
    %193 = vst.msk [vmem:[%s192] ss:$8 sm:$0xf0] %vm189, %v188
    %s194 = scalar_lea.vmem [#allocation1], 2
    %v195 = vld [vmem:[%s194] ss:$8 sm:$0xf]
    %s196 = scalar_lea.vmem [#allocation1], 4294967267
    %v197 = vld [vmem:[%s196] ss:$8 sm:$0xf0]
    %vm198 = vcmask 1047556
    %v199 = vsel %vm198, %v197, %v195
    %200 = vrot.lane.b32.xlu0 %v199, 64
    %v201 = vpop.permute.xlu0 %200
    %vm202 = vcmask 130048
    %s203 = scalar_lea.vmem [#allocation0], 68
    %204 = vst.msk [vmem:[%s203] ss:$8 sm:$0xf] %vm202, %v201
    %s205 = scalar_lea.vmem [#allocation0], 68
    %206 = vst.msk [vmem:[%s205] ss:$8 sm:$0xf0] %vm202, %v201
    %v207 = vld [vmem:[#allocation1] ss:$8 sm:$0xf]
    %s208 = scalar_lea.vmem [#allocation1], 4294967265
    %v209 = vld [vmem:[%s208] ss:$8 sm:$0xf0]
    %vm210 = vcmask 1047556
    %v211 = vsel %vm210, %v209, %v207
    %212 = vrot.lane.b32.xlu0 %v211, 48
    %v213 = vpop.permute.xlu0 %212
    %vm214 = vcmask 130048
    %s215 = scalar_lea.vmem [#allocation0], 5
    %216 = vst.msk [vmem:[%s215] ss:$8 sm:$0xf] %vm214, %v213
    %s217 = scalar_lea.vmem [#allocation0], 5
    %218 = vst.msk [vmem:[%s217] ss:$8 sm:$0xf0] %vm214, %v213
    %s219 = scalar_lea.vmem [#allocation1], 2
    %v220 = vld [vmem:[%s219] ss:$8 sm:$0xf]
    %s221 = scalar_lea.vmem [#allocation1], 4294967267
    %v222 = vld [vmem:[%s221] ss:$8 sm:$0xf0]
    %vm223 = vcmask 1047556
    %v224 = vsel %vm223, %v222, %v220
    %225 = vrot.lane.b32.xlu0 %v224, 48
    %v226 = vpop.permute.xlu0 %225
    %vm227 = vcmask 130048
    %s228 = scalar_lea.vmem [#allocation0], 69
    %229 = vst.msk [vmem:[%s228] ss:$8 sm:$0xf] %vm227, %v226
    %s230 = scalar_lea.vmem [#allocation0], 69
    %231 = vst.msk [vmem:[%s230] ss:$8 sm:$0xf0] %vm227, %v226
    %v232 = vld [vmem:[#allocation1] ss:$8 sm:$0xf]
    %s233 = scalar_lea.vmem [#allocation1], 4294967265
    %v234 = vld [vmem:[%s233] ss:$8 sm:$0xf0]
    %vm235 = vcmask 1047556
    %v236 = vsel %vm235, %v234, %v232
    %237 = vrot.lane.b32.xlu0 %v236, 32
    %v238 = vpop.permute.xlu0 %237
    %vm239 = vcmask 130048
    %s240 = scalar_lea.vmem [#allocation0], 6
    %241 = vst.msk [vmem:[%s240] ss:$8 sm:$0xf] %vm239, %v238
    %s242 = scalar_lea.vmem [#allocation0], 6
    %243 = vst.msk [vmem:[%s242] ss:$8 sm:$0xf0] %vm239, %v238
    %s244 = scalar_lea.vmem [#allocation1], 2
    %v245 = vld [vmem:[%s244] ss:$8 sm:$0xf]
    %s246 = scalar_lea.vmem [#allocation1], 4294967267
    %v247 = vld [vmem:[%s246] ss:$8 sm:$0xf0]
    %vm248 = vcmask 1047556
    %v249 = vsel %vm248, %v247, %v245
    %250 = vrot.lane.b32.xlu0 %v249, 32
    %v251 = vpop.permute.xlu0 %250
    %vm252 = vcmask 130048
    %s253 = scalar_lea.vmem [#allocation0], 70
    %254 = vst.msk [vmem:[%s253] ss:$8 sm:$0xf] %vm252, %v251
    %s255 = scalar_lea.vmem [#allocation0], 70
    %256 = vst.msk [vmem:[%s255] ss:$8 sm:$0xf0] %vm252, %v251
    %v257 = vld [vmem:[#allocation1] ss:$8 sm:$0xf]
    %s258 = scalar_lea.vmem [#allocation1], 4294967265
    %v259 = vld [vmem:[%s258] ss:$8 sm:$0xf0]
    %vm260 = vcmask 1047556
    %v261 = vsel %vm260, %v259, %v257
    %262 = vrot.lane.b32.xlu0 %v261, 16
    %v263 = vpop.permute.xlu0 %262
    %vm264 = vcmask 130048
    %s265 = scalar_lea.vmem [#allocation0], 7
    %266 = vst.msk [vmem:[%s265] ss:$8 sm:$0xf] %vm264, %v263
    %s267 = scalar_lea.vmem [#allocation0], 7
    %268 = vst.msk [vmem:[%s267] ss:$8 sm:$0xf0] %vm264, %v263
    %s269 = scalar_lea.vmem [#allocation1], 2
    %v270 = vld [vmem:[%s269] ss:$8 sm:$0xf]
    %s271 = scalar_lea.vmem [#allocation1], 4294967267
    %v272 = vld [vmem:[%s271] ss:$8 sm:$0xf0]
    %vm273 = vcmask 1047556
    %v274 = vsel %vm273, %v272, %v270
    %275 = vrot.lane.b32.xlu0 %v274, 16
    %v276 = vpop.permute.xlu0 %275
    %vm277 = vcmask 130048
    %s278 = scalar_lea.vmem [#allocation0], 71
    %279 = vst.msk [vmem:[%s278] ss:$8 sm:$0xf] %vm277, %v276
    %s280 = scalar_lea.vmem [#allocation0], 71
    %281 = vst.msk [vmem:[%s280] ss:$8 sm:$0xf0] %vm277, %v276
    %s283 = smul.u32 4, 2
    %s284 = sshllo.u32 0, %s283
    %s285 = sshrl.u32 %s283, 1
    %v286 = vld [vmem:[#allocation0] sm:%s284]
    %v287 = vpack.c.bf16 0.0, %v286
    %s288 = sshllo.u32 0, %s285
    %289 = vst [vmem:[%s1] sm:%s288] %v287
    %s290 = scalar_lea.vmem [#allocation0], 8
    %v291 = vld [vmem:[%s290] sm:%s284]
    %v292 = vpack.c.bf16 0.0, %v291
    %s293 = sshllo.u32 0, %s285
    %s294 = scalar_lea.vmem %s1, 4
    %295 = vst [vmem:[%s294] sm:%s293] %v292
    %s296 = scalar_lea.vmem [#allocation0], 16
    %v297 = vld [vmem:[%s296] sm:%s284]
    %v298 = vpack.c.bf16 0.0, %v297
    %s299 = sshllo.u32 0, %s285
    %s300 = smul.addr 4, 2
    %s301 = scalar_lea.vmem %s1, %s300
    %302 = vst [vmem:[%s301] sm:%s299] %v298
    %s303 = scalar_lea.vmem [#allocation0], 24
    %v304 = vld [vmem:[%s303] sm:%s284]
    %v305 = vpack.c.bf16 0.0, %v304
    %s306 = sshllo.u32 0, %s285
    %s307 = smul.addr 4, 3
    %s308 = scalar_lea.vmem %s1, %s307
    %309 = vst [vmem:[%s308] sm:%s306] %v305
    %s310 = scalar_lea.vmem [#allocation0], 32
    %v311 = vld [vmem:[%s310] sm:%s284]
    %v312 = vpack.c.bf16 0.0, %v311
    %s313 = sshllo.u32 0, %s285
    %s314 = smul.addr 4, 4
    %s315 = scalar_lea.vmem %s1, %s314
    %316 = vst [vmem:[%s315] sm:%s313] %v312
    %s317 = scalar_lea.vmem [#allocation0], 40
    %v318 = vld [vmem:[%s317] sm:%s284]
    %v319 = vpack.c.bf16 0.0, %v318
    %s320 = sshllo.u32 0, %s285
    %s321 = smul.addr 4, 5
    %s322 = scalar_lea.vmem %s1, %s321
    %323 = vst [vmem:[%s322] sm:%s320] %v319
    %s324 = scalar_lea.vmem [#allocation0], 48
    %v325 = vld [vmem:[%s324] sm:%s284]
    %v326 = vpack.c.bf16 0.0, %v325
    %s327 = sshllo.u32 0, %s285
    %s328 = smul.addr 4, 6
    %s329 = scalar_lea.vmem %s1, %s328
    %330 = vst [vmem:[%s329] sm:%s327] %v326
    %s331 = scalar_lea.vmem [#allocation0], 56
    %v332 = vld [vmem:[%s331] sm:%s284]
    %v333 = vpack.c.bf16 0.0, %v332
    %s334 = sshllo.u32 0, %s285
    %s335 = smul.addr 4, 7
    %s336 = scalar_lea.vmem %s1, %s335
    %337 = vst [vmem:[%s336] sm:%s334] %v333
    %s338 = scalar_lea.vmem [#allocation0], 64
    %v339 = vld [vmem:[%s338] sm:%s284]
    %v340 = vpack.c.bf16 0.0, %v339
    %s341 = sshllo.u32 0, %s285
    %s342 = smul.addr 4, 8
    %s343 = scalar_lea.vmem %s1, %s342
    %344 = vst [vmem:[%s343] sm:%s341] %v340
    %s345 = scalar_lea.vmem [#allocation0], 72
    %v346 = vld [vmem:[%s345] sm:%s284]
    %v347 = vpack.c.bf16 0.0, %v346
    %s348 = sshllo.u32 0, %s285
    %s349 = smul.addr 4, 9
    %s350 = scalar_lea.vmem %s1, %s349
    %351 = vst [vmem:[%s350] sm:%s348] %v347
    %s352 = scalar_lea.vmem [#allocation0], 80
    %v353 = vld [vmem:[%s352] sm:%s284]
    %v354 = vpack.c.bf16 0.0, %v353
    %s355 = sshllo.u32 0, %s285
    %s356 = smul.addr 4, 10
    %s357 = scalar_lea.vmem %s1, %s356
    %358 = vst [vmem:[%s357] sm:%s355] %v354
    %s359 = scalar_lea.vmem [#allocation0], 88
    %v360 = vld [vmem:[%s359] sm:%s284]
    %v361 = vpack.c.bf16 0.0, %v360
    %s362 = sshllo.u32 0, %s285
    %s363 = smul.addr 4, 11
    %s364 = scalar_lea.vmem %s1, %s363
    %365 = vst [vmem:[%s364] sm:%s362] %v361
    %s366 = scalar_lea.vmem [#allocation0], 96
    %v367 = vld [vmem:[%s366] sm:%s284]
    %v368 = vpack.c.bf16 0.0, %v367
    %s369 = sshllo.u32 0, %s285
    %s370 = smul.addr 4, 12
    %s371 = scalar_lea.vmem %s1, %s370
    %372 = vst [vmem:[%s371] sm:%s369] %v368
    %s373 = scalar_lea.vmem [#allocation0], 104
    %v374 = vld [vmem:[%s373] sm:%s284]
    %v375 = vpack.c.bf16 0.0, %v374
    %s376 = sshllo.u32 0, %s285
    %s377 = smul.addr 4, 13
    %s378 = scalar_lea.vmem %s1, %s377
    %379 = vst [vmem:[%s378] sm:%s376] %v375
    %s380 = scalar_lea.vmem [#allocation0], 112
    %v381 = vld [vmem:[%s380] sm:%s284]
    %v382 = vpack.c.bf16 0.0, %v381
    %s383 = sshllo.u32 0, %s285
    %s384 = smul.addr 4, 14
    %s385 = scalar_lea.vmem %s1, %s384
    %386 = vst [vmem:[%s385] sm:%s383] %v382
    %s387 = scalar_lea.vmem [#allocation0], 120
    %v388 = vld [vmem:[%s387] sm:%s284]
    %v389 = vpack.c.bf16 0.0, %v388
    %s390 = sshllo.u32 0, %s285
    %s391 = smul.addr 4, 15
    %s392 = scalar_lea.vmem %s1, %s391
    %393 = vst [vmem:[%s392] sm:%s390] %v389

// kernel: uvdocnet_forward.35
$region0: #{uvdocnet_forward.35}
  #allocation0 [shape = 'u32[]', space=smem, size = 0x4, offset = 0x4, fixed_abs, tag = 'smem constant byte address 0x4 - core index']
  #allocation1 [shape = 'u32[144,128]{1,0:T(1,128)}', space=vmem, size = 0x12000, scoped, tag = 'internal scratch']
  %s0 = inlined_call_operand.vmem [shape: bf16[1,112,512], index: 0, kind: input, shape index: {}]
  %s1 = inlined_call_operand.vmem [shape: bf16[1,4,112], index: 1, kind: input, shape index: {}]
  %s2 = inlined_call_operand.vmem [shape: f32[1,4,1], index: 2, kind: input, shape index: {}]
  %s3 = inlined_call_operand.vmem [shape: bf16[1,4,512], index: 3, kind: output, shape index: {}]
  %s4 = sld [smem:[#allocation0]]
  $region22: #{uvdocnet_forward.35} parent=0
    _
  %s6 = ssub.s32 1, %s4
  %s7 = scalar_select 0, %s6, %s4
  // Predicated region
  $region2: #{uvdocnet_forward.35} parent=0 // pred_check
    _
  $region3: #{uvdocnet_forward.35} parent=0 // pred_check_branch
    %9 = sbr.rel (0) target = $region5
  $region4: #{uvdocnet_forward.35} parent=0 // pred_region
    _
  $region5: #{uvdocnet_forward.35} parent=0 // pred_fallthru
    _
  // Predicated region
  $region6: #{uvdocnet_forward.35} parent=0 // pred_check
    _
  $region7: #{uvdocnet_forward.35} parent=0 // pred_check_branch
    %11 = sbr.rel (0) target = $region9
  $region8: #{uvdocnet_forward.35} parent=0 // pred_region
    _
  $region9: #{uvdocnet_forward.35} parent=0 // pred_fallthru
    _
  // Predicated region
  $region10: #{uvdocnet_forward.35} parent=0 // pred_check
    _
  $region11: #{uvdocnet_forward.35} parent=0 // pred_check_branch
    %13 = sbr.rel (0) target = $region13
  $region12: #{uvdocnet_forward.35} parent=0 // pred_region
    _
  $region13: #{uvdocnet_forward.35} parent=0 // pred_fallthru
    _
  %v15 = vld [vmem:[%s1] sm:$0x3]
  %v16 = vld [vmem:[%s0] sm:$0xff]
  %v17 = vld [vmem:[%s0 + $0x8] sm:$0xff]
  %v18 = vld [vmem:[%s0 + $0x10] sm:$0xff]
  %v19 = vld [vmem:[%s0 + $0x18] sm:$0xff]
  %v20 = vld [vmem:[%s0 + $0x20] sm:$0xff]
  %v21 = vld [vmem:[%s0 + $0x28] sm:$0xff]
  %v22 = vld [vmem:[%s0 + $0x30] sm:$0xff]
  %v23 = vld [vmem:[%s0 + $0x38] sm:$0xff]
  %v24 = vld [vmem:[%s0 + $0x40] sm:$0xff]
  %v25 = vld [vmem:[%s0 + $0x48] sm:$0xff]
  %v26 = vld [vmem:[%s0 + $0x50] sm:$0xff]
  %v27 = vld [vmem:[%s0 + $0x58] sm:$0xff]
  %v28 = vld [vmem:[%s0 + $0x60] sm:$0xff]
  %v29 = vld [vmem:[%s0 + $0x68] sm:$0xff]
  %v30 = vld [vmem:[%s0 + $0x70] sm:$0xff]
  %v31 = vld [vmem:[%s0 + $0x78] sm:$0xff]
  %v32 = vld [vmem:[%s0 + $0x80] sm:$0xff]
  %v33 = vld [vmem:[%s0 + $0x88] sm:$0xff]
  %v34 = vld [vmem:[%s0 + $0x90] sm:$0xff]
  %v35 = vld [vmem:[%s0 + $0x98] sm:$0xff]
  %v36 = vld [vmem:[%s0 + $0xa0] sm:$0xff]
  %v37 = vld [vmem:[%s0 + $0xa8] sm:$0xff]
  %v38 = vld [vmem:[%s0 + $0xb0] sm:$0xff]
  %v39 = vld [vmem:[%s0 + $0xb8] sm:$0xff]
  %v40 = vld [vmem:[%s0 + $0xc0] sm:$0xff]
  %v41 = vld [vmem:[%s0 + $0xc8] sm:$0xff]
  %v42 = vld [vmem:[%s0 + $0xd0] sm:$0xff]
  %v43 = vld [vmem:[%s0 + $0xd8] sm:$0xff]
  %v44 = vld [vmem:[%s2] sm:$0xf]
  %46 = vset.pattern.permute.xlu0 0
  %47 = vperm.xlu0 %46, %v44
  %v48 = vpop.permute.xlu0 %47
  %v78 = vunpack.c.l.b16 %v16
  %v79 = vunpack.c.h.b16 %v16
  %v80 = vunpack.c.l.b16 %v17
  %v81 = vunpack.c.h.b16 %v17
  %v82 = vunpack.c.l.b16 %v18
  %v83 = vunpack.c.h.b16 %v18
  %v84 = vunpack.c.l.b16 %v19
  %v85 = vunpack.c.h.b16 %v19
  %v86 = vunpack.c.l.b16 %v20
  %v87 = vunpack.c.h.b16 %v20
  %v88 = vunpack.c.l.b16 %v21
  %v89 = vunpack.c.h.b16 %v21
  %v90 = vunpack.c.l.b16 %v22
  %v91 = vunpack.c.h.b16 %v22
  %v92 = vunpack.c.l.b16 %v23
  %v93 = vunpack.c.h.b16 %v23
  %v94 = vunpack.c.l.b16 %v24
  %v95 = vunpack.c.h.b16 %v24
  %v96 = vunpack.c.l.b16 %v25
  %v97 = vunpack.c.h.b16 %v25
  %v98 = vunpack.c.l.b16 %v26
  %v99 = vunpack.c.h.b16 %v26
  %v100 = vunpack.c.l.b16 %v27
  %v101 = vunpack.c.h.b16 %v27
  %v102 = vunpack.c.l.b16 %v28
  %v103 = vunpack.c.h.b16 %v28
  %v104 = vunpack.c.l.b16 %v29
  %v105 = vunpack.c.h.b16 %v29
  %v106 = vunpack.c.l.b16 %v30
  %v107 = vunpack.c.h.b16 %v30
  %v108 = vunpack.c.l.b16 %v31
  %v109 = vunpack.c.h.b16 %v31
  %v110 = vunpack.c.l.b16 %v32
  %v111 = vunpack.c.h.b16 %v32
  %v112 = vunpack.c.l.b16 %v33
  %v113 = vunpack.c.h.b16 %v33
  %v114 = vunpack.c.l.b16 %v34
  %v115 = vunpack.c.h.b16 %v34
  %v116 = vunpack.c.l.b16 %v35
  %v117 = vunpack.c.h.b16 %v35
  %v118 = vunpack.c.l.b16 %v36
  %v119 = vunpack.c.h.b16 %v36
  %v120 = vunpack.c.l.b16 %v37
  %v121 = vunpack.c.h.b16 %v37
  %v122 = vunpack.c.l.b16 %v38
  %v123 = vunpack.c.h.b16 %v38
  %v124 = vunpack.c.l.b16 %v39
  %v125 = vunpack.c.h.b16 %v39
  %v126 = vunpack.c.l.b16 %v40
  %v127 = vunpack.c.h.b16 %v40
  %v128 = vunpack.c.l.b16 %v41
  %v129 = vunpack.c.h.b16 %v41
  %v130 = vunpack.c.l.b16 %v42
  %v131 = vunpack.c.h.b16 %v42
  %v132 = vunpack.c.l.b16 %v43
  %v133 = vunpack.c.h.b16 %v43
  %v134 = vpack.c.b16 %v82, %v78
  %v135 = vpack.c.b16 %v83, %v79
  %v136 = vpack.c.b16 %v84, %v80
  %v137 = vpack.c.b16 %v85, %v81
  %v138 = vpack.c.b16 %v90, %v86
  %v139 = vpack.c.b16 %v91, %v87
  %v140 = vpack.c.b16 %v92, %v88
  %v141 = vpack.c.b16 %v93, %v89
  %v142 = vpack.c.b16 %v98, %v94
  %v143 = vpack.c.b16 %v99, %v95
  %v144 = vpack.c.b16 %v100, %v96
  %v145 = vpack.c.b16 %v101, %v97
  %v146 = vpack.c.b16 %v106, %v102
  %v147 = vpack.c.b16 %v107, %v103
  %v148 = vpack.c.b16 %v108, %v104
  %v149 = vpack.c.b16 %v109, %v105
  %v150 = vpack.c.b16 %v114, %v110
  %v151 = vpack.c.b16 %v115, %v111
  %v152 = vpack.c.b16 %v116, %v112
  %v153 = vpack.c.b16 %v117, %v113
  %v154 = vpack.c.b16 %v122, %v118
  %v155 = vpack.c.b16 %v123, %v119
  %v156 = vpack.c.b16 %v124, %v120
  %v157 = vpack.c.b16 %v125, %v121
  %v158 = vpack.c.b16 %v130, %v126
  %v159 = vpack.c.b16 %v131, %v127
  %v160 = vpack.c.b16 %v132, %v128
  %v161 = vpack.c.b16 %v133, %v129
  %vm190 = vcmask 916480
  %v192 = vsel %vm190, %v15, 0
  %194 = vmatprep.subr.bf16.mxu0 %v135
  %195 = vmatpush1.bf16.msra.mxu0 %v134
  %196 = vmatprep.subr.bf16.mxu0 %v139
  %197 = vmatpush1.bf16.msra.mxu0 %v138
  %198 = vmatprep.subr.bf16.mxu0 %v143
  %199 = vmatpush1.bf16.msra.mxu0 %v142
  %200 = vmatprep.subr.bf16.mxu0 %v147
  %201 = vmatpush1.bf16.msra.mxu0 %v146
  %202 = vmatprep.subr.bf16.mxu0 %v151
  %203 = vmatpush1.bf16.msra.mxu0 %v150
  %204 = vmatprep.subr.bf16.mxu0 %v155
  %205 = vmatpush1.bf16.msra.mxu0 %v154
  %206 = vmatprep.subr.bf16.mxu0 %v159
  %207 = vmatpush1.bf16.msra.mxu0 %v158
  %208 = vmatprep.subr.bf16.mxu0 0
  %209 = vmatpush1.bf16.msra.mxu0 0
  %210 = vmatprep.subr.bf16.mxu0 0
  %211 = vmatpush1.bf16.msra.mxu0 0
  %212 = vmatprep.subr.bf16.mxu0 0
  %213 = vmatpush1.bf16.msra.mxu0 0
  %214 = vmatprep.subr.bf16.mxu0 0
  %215 = vmatpush1.bf16.msra.mxu0 0
  %216 = vmatprep.subr.bf16.mxu0 0
  %217 = vmatpush1.bf16.msra.mxu0 0
  %218 = vmatprep.subr.bf16.mxu0 0
  %219 = vmatpush1.bf16.msra.mxu0 0
  %220 = vmatprep.subr.bf16.mxu0 0
  %221 = vmatpush1.bf16.msra.mxu0 0
  %222 = vmatprep.subr.bf16.mxu0 0
  %223 = vmatpush1.bf16.msra.mxu0 0
  %224 = vmatprep.subr.bf16.mxu0 0
  %225 = vmatpush1.bf16.msra.mxu0 0
  %226 = vmatprep.mubr.bf16.mxu0 0
  %227 = vmatmul.mubr.bf16.gmra.mrb[0].mxu0 %v192
  %v228 = vpop.f32.mrb[0].mxu0
  %v229 = vadd.f32 %v48, %v228
  %v230 = vpop.f32.mrb[0].mxu0
  %v231 = vadd.f32 %v48, %v230
  %v232 = vpop.f32.mrb[0].mxu0
  %v233 = vpop.f32.mrb[0].mxu0
  %234 = vdwg.mxu0
  %235 = vmatprep.subr.bf16.mxu0 %v137
  %236 = vmatpush1.bf16.msra.mxu0 %v136
  %237 = vmatprep.subr.bf16.mxu0 %v141
  %238 = vmatpush1.bf16.msra.mxu0 %v140
  %239 = vmatprep.subr.bf16.mxu0 %v145
  %240 = vmatpush1.bf16.msra.mxu0 %v144
  %241 = vmatprep.subr.bf16.mxu0 %v149
  %242 = vmatpush1.bf16.msra.mxu0 %v148
  %243 = vmatprep.subr.bf16.mxu0 %v153
  %244 = vmatpush1.bf16.msra.mxu0 %v152
  %245 = vmatprep.subr.bf16.mxu0 %v157
  %246 = vmatpush1.bf16.msra.mxu0 %v156
  %247 = vmatprep.subr.bf16.mxu0 %v161
  %248 = vmatpush1.bf16.msra.mxu0 %v160
  %249 = vmatprep.subr.bf16.mxu0 0
  %250 = vmatpush1.bf16.msra.mxu0 0
  %251 = vmatprep.subr.bf16.mxu0 0
  %252 = vmatpush1.bf16.msra.mxu0 0
  %253 = vmatprep.subr.bf16.mxu0 0
  %254 = vmatpush1.bf16.msra.mxu0 0
  %255 = vmatprep.subr.bf16.mxu0 0
  %256 = vmatpush1.bf16.msra.mxu0 0
  %257 = vmatprep.subr.bf16.mxu0 0
  %258 = vmatpush1.bf16.msra.mxu0 0
  %259 = vmatprep.subr.bf16.mxu0 0
  %260 = vmatpush1.bf16.msra.mxu0 0
  %261 = vmatprep.subr.bf16.mxu0 0
  %262 = vmatpush1.bf16.msra.mxu0 0
  %263 = vmatprep.subr.bf16.mxu0 0
  %264 = vmatpush1.bf16.msra.mxu0 0
  %265 = vmatprep.subr.bf16.mxu0 0
  %266 = vmatpush1.bf16.msra.mxu0 0
  %267 = vmatprep.mubr.bf16.mxu0 0
  %268 = vmatmul.mubr.bf16.gmra.mrb[0].mxu0 %v192
  %v269 = vpop.f32.mrb[0].mxu0
  %v270 = vadd.f32 %v48, %v269
  %v271 = vpop.f32.mrb[0].mxu0
  %v272 = vadd.f32 %v48, %v271
  %v273 = vpop.f32.mrb[0].mxu0
  %v274 = vpop.f32.mrb[0].mxu0
  %275 = vdwg.mxu0
  %v276 = vmax.f32 %v229, 0.0
  %v277 = vmax.f32 %v231, 0.0
  %v278 = vmax.f32 %v270, 0.0
  %v279 = vmax.f32 %v272, 0.0
  %v280 = vpack.c.bf16 %v276, %v276
  %v281 = vpack.c.bf16 %v277, %v277
  %v282 = vpack.c.bf16 %v278, %v278
  %v283 = vpack.c.bf16 %v279, %v279
  %v288 = vcombine.low %v280, %v281
  %v289 = vcombine.low %v282, %v283
  %v291 = vunpack.c.l.s4 1983009808
  %v292 = vunpack.c.0.s8 %v291
  %v293 = vlaneseq
  %v294 = vshrl.u32 %v293, 7
  %v295 = vsub.s32 %v292, %v294
  %v296 = vrot.slane %v288, %v295
  %v298 = vunpack.c.l.s4 1983009808
  %v299 = vunpack.c.0.s8 %v298
  %v300 = vlaneseq
  %v301 = vshrl.u32 %v300, 7
  %v302 = vsub.s32 %v299, %v301
  %v303 = vrot.slane %v289, %v302
  %v304 = vcombine.low %v296, %v303
  %306 = vst [vmem:[%s3] sm:$0xff] %v304
  // Predicated region
  $region14: #{uvdocnet_forward.35} parent=0 // pred_check
    _
  $region15: #{uvdocnet_forward.35} parent=0 // pred_check_branch
    %308 = sbr.rel (0) target = $region17
  $region16: #{uvdocnet_forward.35} parent=0 // pred_region
    _
  $region17: #{uvdocnet_forward.35} parent=0 // pred_fallthru
    _
  // Predicated region
  $region18: #{uvdocnet_forward.35} parent=0 // pred_check
    _
  $region19: #{uvdocnet_forward.35} parent=0 // pred_check_branch
    %310 = sbr.rel (0) target = $region21
  $region20: #{uvdocnet_forward.35} parent=0 // pred_region
    _
  $region21: #{uvdocnet_forward.35} parent=0 // pred_fallthru
    _

// kernel: uvdocnet_forward.37
$region0: #{uvdocnet_forward.37}
  #allocation0 [shape = 'u32[]', space=smem, size = 0x4, offset = 0x4, fixed_abs, tag = 'smem constant byte address 0x4 - core index']
  #allocation1 [shape = 'u32[144,128]{1,0:T(1,128)}', space=vmem, size = 0x12000, scoped, tag = 'internal scratch']
  %s0 = inlined_call_operand.vmem [shape: bf16[1,112,512], index: 0, kind: input, shape index: {}]
  %s1 = inlined_call_operand.vmem [shape: bf16[1,4,112], index: 1, kind: input, shape index: {}]
  %s2 = inlined_call_operand.vmem [shape: f32[1,4,1], index: 2, kind: input, shape index: {}]
  %s3 = inlined_call_operand.vmem [shape: bf16[1,4,512], index: 3, kind: input, shape index: {}]
  %s4 = inlined_call_operand.vmem [shape: bf16[1,4,512], index: 4, kind: output, shape index: {}]
  %s5 = sld [smem:[#allocation0]]
  $region26: #{uvdocnet_forward.37} parent=0
    _
  %s7 = ssub.s32 1, %s5
  %s8 = scalar_select 0, %s7, %s5
  // Predicated region
  $region2: #{uvdocnet_forward.37} parent=0 // pred_check
    _
  $region3: #{uvdocnet_forward.37} parent=0 // pred_check_branch
    %10 = sbr.rel (0) target = $region5
  $region4: #{uvdocnet_forward.37} parent=0 // pred_region
    _
  $region5: #{uvdocnet_forward.37} parent=0 // pred_fallthru
    _
  // Predicated region
  $region6: #{uvdocnet_forward.37} parent=0 // pred_check
    _
  $region7: #{uvdocnet_forward.37} parent=0 // pred_check_branch
    %12 = sbr.rel (0) target = $region9
  $region8: #{uvdocnet_forward.37} parent=0 // pred_region
    _
  $region9: #{uvdocnet_forward.37} parent=0 // pred_fallthru
    _
  // Predicated region
  $region10: #{uvdocnet_forward.37} parent=0 // pred_check
    _
  $region11: #{uvdocnet_forward.37} parent=0 // pred_check_branch
    %14 = sbr.rel (0) target = $region13
  $region12: #{uvdocnet_forward.37} parent=0 // pred_region
    _
  $region13: #{uvdocnet_forward.37} parent=0 // pred_fallthru
    _
  // Predicated region
  $region14: #{uvdocnet_forward.37} parent=0 // pred_check
    _
  $region15: #{uvdocnet_forward.37} parent=0 // pred_check_branch
    %16 = sbr.rel (0) target = $region17
  $region16: #{uvdocnet_forward.37} parent=0 // pred_region
    _
  $region17: #{uvdocnet_forward.37} parent=0 // pred_fallthru
    _
  %v18 = vld [vmem:[%s1] sm:$0x3]
  %v19 = vld [vmem:[%s0] sm:$0xff]
  %v20 = vld [vmem:[%s0 + $0x8] sm:$0xff]
  %v21 = vld [vmem:[%s0 + $0x10] sm:$0xff]
  %v22 = vld [vmem:[%s0 + $0x18] sm:$0xff]
  %v23 = vld [vmem:[%s0 + $0x20] sm:$0xff]
  %v24 = vld [vmem:[%s0 + $0x28] sm:$0xff]
  %v25 = vld [vmem:[%s0 + $0x30] sm:$0xff]
  %v26 = vld [vmem:[%s0 + $0x38] sm:$0xff]
  %v27 = vld [vmem:[%s0 + $0x40] sm:$0xff]
  %v28 = vld [vmem:[%s0 + $0x48] sm:$0xff]
  %v29 = vld [vmem:[%s0 + $0x50] sm:$0xff]
  %v30 = vld [vmem:[%s0 + $0x58] sm:$0xff]
  %v31 = vld [vmem:[%s0 + $0x60] sm:$0xff]
  %v32 = vld [vmem:[%s0 + $0x68] sm:$0xff]
  %v33 = vld [vmem:[%s0 + $0x70] sm:$0xff]
  %v34 = vld [vmem:[%s0 + $0x78] sm:$0xff]
  %v35 = vld [vmem:[%s0 + $0x80] sm:$0xff]
  %v36 = vld [vmem:[%s0 + $0x88] sm:$0xff]
  %v37 = vld [vmem:[%s0 + $0x90] sm:$0xff]
  %v38 = vld [vmem:[%s0 + $0x98] sm:$0xff]
  %v39 = vld [vmem:[%s0 + $0xa0] sm:$0xff]
  %v40 = vld [vmem:[%s0 + $0xa8] sm:$0xff]
  %v41 = vld [vmem:[%s0 + $0xb0] sm:$0xff]
  %v42 = vld [vmem:[%s0 + $0xb8] sm:$0xff]
  %v43 = vld [vmem:[%s0 + $0xc0] sm:$0xff]
  %v44 = vld [vmem:[%s0 + $0xc8] sm:$0xff]
  %v45 = vld [vmem:[%s0 + $0xd0] sm:$0xff]
  %v46 = vld [vmem:[%s0 + $0xd8] sm:$0xff]
  %v47 = vld [vmem:[%s2] sm:$0xf]
  %49 = vset.pattern.permute.xlu0 0
  %50 = vperm.xlu0 %49, %v47
  %v51 = vpop.permute.xlu0 %50
  %v81 = vunpack.c.l.b16 %v19
  %v82 = vunpack.c.h.b16 %v19
  %v83 = vunpack.c.l.b16 %v20
  %v84 = vunpack.c.h.b16 %v20
  %v85 = vunpack.c.l.b16 %v21
  %v86 = vunpack.c.h.b16 %v21
  %v87 = vunpack.c.l.b16 %v22
  %v88 = vunpack.c.h.b16 %v22
  %v89 = vunpack.c.l.b16 %v23
  %v90 = vunpack.c.h.b16 %v23
  %v91 = vunpack.c.l.b16 %v24
  %v92 = vunpack.c.h.b16 %v24
  %v93 = vunpack.c.l.b16 %v25
  %v94 = vunpack.c.h.b16 %v25
  %v95 = vunpack.c.l.b16 %v26
  %v96 = vunpack.c.h.b16 %v26
  %v97 = vunpack.c.l.b16 %v27
  %v98 = vunpack.c.h.b16 %v27
  %v99 = vunpack.c.l.b16 %v28
  %v100 = vunpack.c.h.b16 %v28
  %v101 = vunpack.c.l.b16 %v29
  %v102 = vunpack.c.h.b16 %v29
  %v103 = vunpack.c.l.b16 %v30
  %v104 = vunpack.c.h.b16 %v30
  %v105 = vunpack.c.l.b16 %v31
  %v106 = vunpack.c.h.b16 %v31
  %v107 = vunpack.c.l.b16 %v32
  %v108 = vunpack.c.h.b16 %v32
  %v109 = vunpack.c.l.b16 %v33
  %v110 = vunpack.c.h.b16 %v33
  %v111 = vunpack.c.l.b16 %v34
  %v112 = vunpack.c.h.b16 %v34
  %v113 = vunpack.c.l.b16 %v35
  %v114 = vunpack.c.h.b16 %v35
  %v115 = vunpack.c.l.b16 %v36
  %v116 = vunpack.c.h.b16 %v36
  %v117 = vunpack.c.l.b16 %v37
  %v118 = vunpack.c.h.b16 %v37
  %v119 = vunpack.c.l.b16 %v38
  %v120 = vunpack.c.h.b16 %v38
  %v121 = vunpack.c.l.b16 %v39
  %v122 = vunpack.c.h.b16 %v39
  %v123 = vunpack.c.l.b16 %v40
  %v124 = vunpack.c.h.b16 %v40
  %v125 = vunpack.c.l.b16 %v41
  %v126 = vunpack.c.h.b16 %v41
  %v127 = vunpack.c.l.b16 %v42
  %v128 = vunpack.c.h.b16 %v42
  %v129 = vunpack.c.l.b16 %v43
  %v130 = vunpack.c.h.b16 %v43
  %v131 = vunpack.c.l.b16 %v44
  %v132 = vunpack.c.h.b16 %v44
  %v133 = vunpack.c.l.b16 %v45
  %v134 = vunpack.c.h.b16 %v45
  %v135 = vunpack.c.l.b16 %v46
  %v136 = vunpack.c.h.b16 %v46
  %v137 = vpack.c.b16 %v85, %v81
  %v138 = vpack.c.b16 %v86, %v82
  %v139 = vpack.c.b16 %v87, %v83
  %v140 = vpack.c.b16 %v88, %v84
  %v141 = vpack.c.b16 %v93, %v89
  %v142 = vpack.c.b16 %v94, %v90
  %v143 = vpack.c.b16 %v95, %v91
  %v144 = vpack.c.b16 %v96, %v92
  %v145 = vpack.c.b16 %v101, %v97
  %v146 = vpack.c.b16 %v102, %v98
  %v147 = vpack.c.b16 %v103, %v99
  %v148 = vpack.c.b16 %v104, %v100
  %v149 = vpack.c.b16 %v109, %v105
  %v150 = vpack.c.b16 %v110, %v106
  %v151 = vpack.c.b16 %v111, %v107
  %v152 = vpack.c.b16 %v112, %v108
  %v153 = vpack.c.b16 %v117, %v113
  %v154 = vpack.c.b16 %v118, %v114
  %v155 = vpack.c.b16 %v119, %v115
  %v156 = vpack.c.b16 %v120, %v116
  %v157 = vpack.c.b16 %v125, %v121
  %v158 = vpack.c.b16 %v126, %v122
  %v159 = vpack.c.b16 %v127, %v123
  %v160 = vpack.c.b16 %v128, %v124
  %v161 = vpack.c.b16 %v133, %v129
  %v162 = vpack.c.b16 %v134, %v130
  %v163 = vpack.c.b16 %v135, %v131
  %v164 = vpack.c.b16 %v136, %v132
  %vm193 = vcmask 916480
  %v195 = vsel %vm193, %v18, 0
  %197 = vmatprep.subr.bf16.mxu0 %v138
  %198 = vmatpush1.bf16.msra.mxu0 %v137
  %199 = vmatprep.subr.bf16.mxu0 %v142
  %200 = vmatpush1.bf16.msra.mxu0 %v141
  %201 = vmatprep.subr.bf16.mxu0 %v146
  %202 = vmatpush1.bf16.msra.mxu0 %v145
  %203 = vmatprep.subr.bf16.mxu0 %v150
  %204 = vmatpush1.bf16.msra.mxu0 %v149
  %205 = vmatprep.subr.bf16.mxu0 %v154
  %206 = vmatpush1.bf16.msra.mxu0 %v153
  %207 = vmatprep.subr.bf16.mxu0 %v158
  %208 = vmatpush1.bf16.msra.mxu0 %v157
  %209 = vmatprep.subr.bf16.mxu0 %v162
  %210 = vmatpush1.bf16.msra.mxu0 %v161
  %211 = vmatprep.subr.bf16.mxu0 0
  %212 = vmatpush1.bf16.msra.mxu0 0
  %213 = vmatprep.subr.bf16.mxu0 0
  %214 = vmatpush1.bf16.msra.mxu0 0
  %215 = vmatprep.subr.bf16.mxu0 0
  %216 = vmatpush1.bf16.msra.mxu0 0
  %217 = vmatprep.subr.bf16.mxu0 0
  %218 = vmatpush1.bf16.msra.mxu0 0
  %219 = vmatprep.subr.bf16.mxu0 0
  %220 = vmatpush1.bf16.msra.mxu0 0
  %221 = vmatprep.subr.bf16.mxu0 0
  %222 = vmatpush1.bf16.msra.mxu0 0
  %223 = vmatprep.subr.bf16.mxu0 0
  %224 = vmatpush1.bf16.msra.mxu0 0
  %225 = vmatprep.subr.bf16.mxu0 0
  %226 = vmatpush1.bf16.msra.mxu0 0
  %227 = vmatprep.subr.bf16.mxu0 0
  %228 = vmatpush1.bf16.msra.mxu0 0
  %229 = vmatprep.mubr.bf16.mxu0 0
  %230 = vmatmul.mubr.bf16.gmra.mrb[0].mxu0 %v195
  %v231 = vpop.f32.mrb[0].mxu0
  %v232 = vadd.f32 %v51, %v231
  %v233 = vpop.f32.mrb[0].mxu0
  %v234 = vadd.f32 %v51, %v233
  %v235 = vpop.f32.mrb[0].mxu0
  %v236 = vpop.f32.mrb[0].mxu0
  %237 = vdwg.mxu0
  %238 = vmatprep.subr.bf16.mxu0 %v140
  %239 = vmatpush1.bf16.msra.mxu0 %v139
  %240 = vmatprep.subr.bf16.mxu0 %v144
  %241 = vmatpush1.bf16.msra.mxu0 %v143
  %242 = vmatprep.subr.bf16.mxu0 %v148
  %243 = vmatpush1.bf16.msra.mxu0 %v147
  %244 = vmatprep.subr.bf16.mxu0 %v152
  %245 = vmatpush1.bf16.msra.mxu0 %v151
  %246 = vmatprep.subr.bf16.mxu0 %v156
  %247 = vmatpush1.bf16.msra.mxu0 %v155
  %248 = vmatprep.subr.bf16.mxu0 %v160
  %249 = vmatpush1.bf16.msra.mxu0 %v159
  %250 = vmatprep.subr.bf16.mxu0 %v164
  %251 = vmatpush1.bf16.msra.mxu0 %v163
  %252 = vmatprep.subr.bf16.mxu0 0
  %253 = vmatpush1.bf16.msra.mxu0 0
  %254 = vmatprep.subr.bf16.mxu0 0
  %255 = vmatpush1.bf16.msra.mxu0 0
  %256 = vmatprep.subr.bf16.mxu0 0
  %257 = vmatpush1.bf16.msra.mxu0 0
  %258 = vmatprep.subr.bf16.mxu0 0
  %259 = vmatpush1.bf16.msra.mxu0 0
  %260 = vmatprep.subr.bf16.mxu0 0
  %261 = vmatpush1.bf16.msra.mxu0 0
  %262 = vmatprep.subr.bf16.mxu0 0
  %263 = vmatpush1.bf16.msra.mxu0 0
  %264 = vmatprep.subr.bf16.mxu0 0
  %265 = vmatpush1.bf16.msra.mxu0 0
  %266 = vmatprep.subr.bf16.mxu0 0
  %267 = vmatpush1.bf16.msra.mxu0 0
  %268 = vmatprep.subr.bf16.mxu0 0
  %269 = vmatpush1.bf16.msra.mxu0 0
  %270 = vmatprep.mubr.bf16.mxu0 0
  %271 = vmatmul.mubr.bf16.gmra.mrb[0].mxu0 %v195
  %v272 = vpop.f32.mrb[0].mxu0
  %v273 = vadd.f32 %v51, %v272
  %v274 = vpop.f32.mrb[0].mxu0
  %v275 = vadd.f32 %v51, %v274
  %v276 = vpop.f32.mrb[0].mxu0
  %v277 = vpop.f32.mrb[0].mxu0
  %278 = vdwg.mxu0
  %v279 = vld [vmem:[%s3] sm:$0xff]
  %v280 = vunpack.c.l.bf16 %v279
  %v281 = vunpack.c.h.bf16 %v279
  %v284 = vcombine.high %v280, %v280
  %v285 = vcombine.high %v281, %v281
  %v288 = vadd.f32 %v232, %v280
  %v289 = vadd.f32 %v234, %v284
  %v290 = vadd.f32 %v273, %v281
  %v291 = vadd.f32 %v275, %v285
  %v292 = vmax.f32 %v288, 0.0
  %v293 = vmax.f32 %v289, 0.0
  %v294 = vmax.f32 %v290, 0.0
  %v295 = vmax.f32 %v291, 0.0
  %v296 = vpack.c.bf16 %v292, %v292
  %v297 = vpack.c.bf16 %v293, %v293
  %v298 = vpack.c.bf16 %v294, %v294
  %v299 = vpack.c.bf16 %v295, %v295
  %v304 = vcombine.low %v296, %v297
  %v305 = vcombine.low %v298, %v299
  %v307 = vunpack.c.l.s4 1983009808
  %v308 = vunpack.c.0.s8 %v307
  %v309 = vlaneseq
  %v310 = vshrl.u32 %v309, 7
  %v311 = vsub.s32 %v308, %v310
  %v312 = vrot.slane %v304, %v311
  %v314 = vunpack.c.l.s4 1983009808
  %v315 = vunpack.c.0.s8 %v314
  %v316 = vlaneseq
  %v317 = vshrl.u32 %v316, 7
  %v318 = vsub.s32 %v315, %v317
  %v319 = vrot.slane %v305, %v318
  %v320 = vcombine.low %v312, %v319
  %322 = vst [vmem:[%s4] sm:$0xff] %v320
  // Predicated region
  $region18: #{uvdocnet_forward.37} parent=0 // pred_check
    _
  $region19: #{uvdocnet_forward.37} parent=0 // pred_check_branch
    %324 = sbr.rel (0) target = $region21
  $region20: #{uvdocnet_forward.37} parent=0 // pred_region
    _
  $region21: #{uvdocnet_forward.37} parent=0 // pred_fallthru
    _
  // Predicated region
  $region22: #{uvdocnet_forward.37} parent=0 // pred_check
    _
  $region23: #{uvdocnet_forward.37} parent=0 // pred_check_branch
    %326 = sbr.rel (0) target = $region25
  $region24: #{uvdocnet_forward.37} parent=0 // pred_region
    _
  $region25: #{uvdocnet_forward.37} parent=0 // pred_fallthru
    _

// kernel: uvdocnet_forward.42
$region0: #{uvdocnet_forward.42}
  #allocation0 [shape = 'u32[]', space=smem, size = 0x4, offset = 0x4, fixed_abs, tag = 'smem constant byte address 0x4 - core index']
  #allocation1 [shape = 'u32[144,128]{1,0:T(1,128)}', space=vmem, size = 0x12000, scoped, tag = 'internal scratch']
  %s0 = inlined_call_operand.vmem [shape: bf16[1,112,128], index: 0, kind: input, shape index: {}]
  %s1 = inlined_call_operand.vmem [shape: bf16[1,16,112], index: 1, kind: input, shape index: {}]
  %s2 = inlined_call_operand.vmem [shape: f32[1,16,1], index: 2, kind: input, shape index: {}]
  %s3 = inlined_call_operand.vmem [shape: f32[1,16,1], index: 3, kind: input, shape index: {}]
  %s4 = inlined_call_operand.vmem [shape: bf16[1,16,128], index: 4, kind: output, shape index: {}]
  %s5 = sld [smem:[#allocation0]]
  $region26: #{uvdocnet_forward.42} parent=0
    _
  %s7 = ssub.s32 1, %s5
  %s8 = scalar_select 0, %s7, %s5
  // Predicated region
  $region2: #{uvdocnet_forward.42} parent=0 // pred_check
    _
  $region3: #{uvdocnet_forward.42} parent=0 // pred_check_branch
    %10 = sbr.rel (0) target = $region5
  $region4: #{uvdocnet_forward.42} parent=0 // pred_region
    _
  $region5: #{uvdocnet_forward.42} parent=0 // pred_fallthru
    _
  // Predicated region
  $region6: #{uvdocnet_forward.42} parent=0 // pred_check
    _
  $region7: #{uvdocnet_forward.42} parent=0 // pred_check_branch
    %12 = sbr.rel (0) target = $region9
  $region8: #{uvdocnet_forward.42} parent=0 // pred_region
    _
  $region9: #{uvdocnet_forward.42} parent=0 // pred_fallthru
    _
  // Predicated region
  $region10: #{uvdocnet_forward.42} parent=0 // pred_check
    _
  $region11: #{uvdocnet_forward.42} parent=0 // pred_check_branch
    %14 = sbr.rel (0) target = $region13
  $region12: #{uvdocnet_forward.42} parent=0 // pred_region
    _
  $region13: #{uvdocnet_forward.42} parent=0 // pred_fallthru
    _
  // Predicated region
  $region14: #{uvdocnet_forward.42} parent=0 // pred_check
    _
  $region15: #{uvdocnet_forward.42} parent=0 // pred_check_branch
    %16 = sbr.rel (0) target = $region17
  $region16: #{uvdocnet_forward.42} parent=0 // pred_region
    _
  $region17: #{uvdocnet_forward.42} parent=0 // pred_fallthru
    _
  %v18 = vld [vmem:[%s1] sm:$0xf]
  %v19 = vld [vmem:[%s1 + $0x4] sm:$0xf]
  %v20 = vld [vmem:[%s0] sm:$0xf]
  %v21 = vld [vmem:[%s0 + $0x4] sm:$0xf]
  %v22 = vld [vmem:[%s0 + $0x8] sm:$0xf]
  %v23 = vld [vmem:[%s0 + $0xc] sm:$0xf]
  %v24 = vld [vmem:[%s0 + $0x10] sm:$0xf]
  %v25 = vld [vmem:[%s0 + $0x14] sm:$0xf]
  %v26 = vld [vmem:[%s0 + $0x18] sm:$0xf]
  %v27 = vld [vmem:[%s0 + $0x1c] sm:$0xf]
  %v28 = vld [vmem:[%s0 + $0x20] sm:$0xf]
  %v29 = vld [vmem:[%s0 + $0x24] sm:$0xf]
  %v30 = vld [vmem:[%s0 + $0x28] sm:$0xf]
  %v31 = vld [vmem:[%s0 + $0x2c] sm:$0xf]
  %v32 = vld [vmem:[%s0 + $0x30] sm:$0xf]
  %v33 = vld [vmem:[%s0 + $0x34] sm:$0xf]
  %v34 = vld [vmem:[%s2] sm:$0xff]
  %v35 = vld [vmem:[%s2 + $0x8] sm:$0xff]
  %37 = vset.pattern.permute.xlu0 0
  %38 = vperm.xlu0 %37, %v34
  %v39 = vpop.permute.xlu0 %38
  %42 = vset.pattern.permute.xlu0 0
  %43 = vperm.xlu0 %42, %v35
  %v44 = vpop.permute.xlu0 %43
  %v48 = vunpack.c.l.b16 %v18
  %v49 = vunpack.c.l.b16 %v19
  %v50 = vpack.c.b16 %v49, %v48
  %v65 = vunpack.c.l.b16 %v20
  %v66 = vunpack.c.l.b16 %v21
  %v67 = vunpack.c.l.b16 %v22
  %v68 = vunpack.c.l.b16 %v23
  %v69 = vunpack.c.l.b16 %v24
  %v70 = vunpack.c.l.b16 %v25
  %v71 = vunpack.c.l.b16 %v26
  %v72 = vunpack.c.l.b16 %v27
  %v73 = vunpack.c.l.b16 %v28
  %v74 = vunpack.c.l.b16 %v29
  %v75 = vunpack.c.l.b16 %v30
  %v76 = vunpack.c.l.b16 %v31
  %v77 = vunpack.c.l.b16 %v32
  %v78 = vunpack.c.l.b16 %v33
  %v79 = vpack.c.b16 %v66, %v65
  %v80 = vpack.c.b16 %v68, %v67
  %v81 = vpack.c.b16 %v70, %v69
  %v82 = vpack.c.b16 %v72, %v71
  %v83 = vpack.c.b16 %v74, %v73
  %v84 = vpack.c.b16 %v76, %v75
  %v85 = vpack.c.b16 %v78, %v77
  %vm93 = vcmask 916480
  %v95 = vsel %vm93, %v50, 0
  %97 = vmatprep.subr.bf16.mxu0 0
  %98 = vmatpush1.bf16.msra.mxu0 %v79
  %99 = vmatprep.subr.bf16.mxu0 0
  %100 = vmatpush1.bf16.msra.mxu0 %v80
  %101 = vmatprep.subr.bf16.mxu0 0
  %102 = vmatpush1.bf16.msra.mxu0 %v81
  %103 = vmatprep.subr.bf16.mxu0 0
  %104 = vmatpush1.bf16.msra.mxu0 %v82
  %105 = vmatprep.subr.bf16.mxu0 0
  %106 = vmatpush1.bf16.msra.mxu0 %v83
  %107 = vmatprep.subr.bf16.mxu0 0
  %108 = vmatpush1.bf16.msra.mxu0 %v84
  %109 = vmatprep.subr.bf16.mxu0 0
  %110 = vmatpush1.bf16.msra.mxu0 %v85
  %111 = vmatprep.subr.bf16.mxu0 0
  %112 = vmatpush1.bf16.msra.mxu0 0
  %113 = vmatprep.subr.bf16.mxu0 0
  %114 = vmatpush1.bf16.msra.mxu0 0
  %115 = vmatprep.subr.bf16.mxu0 0
  %116 = vmatpush1.bf16.msra.mxu0 0
  %117 = vmatprep.subr.bf16.mxu0 0
  %118 = vmatpush1.bf16.msra.mxu0 0
  %119 = vmatprep.subr.bf16.mxu0 0
  %120 = vmatpush1.bf16.msra.mxu0 0
  %121 = vmatprep.subr.bf16.mxu0 0
  %122 = vmatpush1.bf16.msra.mxu0 0
  %123 = vmatprep.subr.bf16.mxu0 0
  %124 = vmatpush1.bf16.msra.mxu0 0
  %125 = vmatprep.subr.bf16.mxu0 0
  %126 = vmatpush1.bf16.msra.mxu0 0
  %127 = vmatprep.subr.bf16.mxu0 0
  %128 = vmatpush1.bf16.msra.mxu0 0
  %129 = vmatprep.mubr.bf16.mxu0 0
  %130 = vmatmul.mubr.bf16.gmra.mrb[0].mxu0 %v95
  %v131 = vpop.f32.mrb[0].mxu0
  %v132 = vadd.f32 %v39, %v131
  %v133 = vpop.f32.mrb[0].mxu0
  %v134 = vpop.f32.mrb[0].mxu0
  %v135 = vadd.f32 %v44, %v134
  %v136 = vpop.f32.mrb[0].mxu0
  %137 = vdwg.mxu0
  %vm138 = vcmp.ge.f32.partialorder %v132, 0.0
  %vm139 = vcmp.ge.f32.partialorder %v135, 0.0
  %v140 = vld [vmem:[%s3] sm:$0xff]
  %v141 = vld [vmem:[%s3 + $0x8] sm:$0xff]
  %143 = vset.pattern.permute.xlu0 0
  %144 = vperm.xlu0 %143, %v140
  %v145 = vpop.permute.xlu0 %144
  %148 = vset.pattern.permute.xlu0 0
  %149 = vperm.xlu0 %148, %v141
  %v150 = vpop.permute.xlu0 %149
  %v152 = vmul.f32 %v145, %v132
  %v153 = vmul.f32 %v150, %v135
  %v154 = vsel %vm138, %v132, %v152
  %v155 = vsel %vm139, %v135, %v153
  %v156 = vpack.c.bf16 %v155, %v154
  %v158 = vunpack.c.l.b16 %v156
  %v159 = vunpack.c.h.b16 %v156
  %v160 = vpack.c.b16 %v158, %v158
  %v161 = vpack.c.b16 %v159, %v159
  %164 = vst [vmem:[%s4] sm:$0xf] %v160
  %165 = vst [vmem:[%s4 + $0x4] sm:$0xf] %v161
  // Predicated region
  $region18: #{uvdocnet_forward.42} parent=0 // pred_check
    _
  $region19: #{uvdocnet_forward.42} parent=0 // pred_check_branch
    %167 = sbr.rel (0) target = $region21
  $region20: #{uvdocnet_forward.42} parent=0 // pred_region
    _
  $region21: #{uvdocnet_forward.42} parent=0 // pred_fallthru
    _
  // Predicated region
  $region22: #{uvdocnet_forward.42} parent=0 // pred_check
    _
  $region23: #{uvdocnet_forward.42} parent=0 // pred_check_branch
    %169 = sbr.rel (0) target = $region25
  $region24: #{uvdocnet_forward.42} parent=0 // pred_region
    _
  $region25: #{uvdocnet_forward.42} parent=0 // pred_fallthru
    _

// kernel: uvdocnet_forward.43
$region0: #{uvdocnet_forward.43}
  #allocation0 [shape = 'u32[]', space=smem, size = 0x4, offset = 0x4, fixed_abs, tag = 'smem constant byte address 0x4 - core index']
  #allocation1 [shape = 'u32[144,128]{1,0:T(1,128)}', space=vmem, size = 0x12000, scoped, tag = 'internal scratch']
  %s0 = inlined_call_operand.vmem [shape: bf16[1,208,128], index: 0, kind: input, shape index: {}]
  %s1 = inlined_call_operand.vmem [shape: bf16[1,8,208], index: 1, kind: input, shape index: {}]
  %s2 = inlined_call_operand.vmem [shape: f32[1,8,1], index: 2, kind: input, shape index: {}]
  %s3 = inlined_call_operand.vmem [shape: bf16[1,8,128], index: 3, kind: input, shape index: {}]
  %s4 = inlined_call_operand.vmem [shape: bf16[1,8,128], index: 4, kind: output, shape index: {}]
  %s5 = sld [smem:[#allocation0]]
  $region26: #{uvdocnet_forward.43} parent=0
    _
  %s7 = ssub.s32 1, %s5
  %s8 = scalar_select 0, %s7, %s5
  // Predicated region
  $region2: #{uvdocnet_forward.43} parent=0 // pred_check
    _
  $region3: #{uvdocnet_forward.43} parent=0 // pred_check_branch
    %10 = sbr.rel (0) target = $region5
  $region4: #{uvdocnet_forward.43} parent=0 // pred_region
    _
  $region5: #{uvdocnet_forward.43} parent=0 // pred_fallthru
    _
  // Predicated region
  $region6: #{uvdocnet_forward.43} parent=0 // pred_check
    _
  $region7: #{uvdocnet_forward.43} parent=0 // pred_check_branch
    %12 = sbr.rel (0) target = $region9
  $region8: #{uvdocnet_forward.43} parent=0 // pred_region
    _
  $region9: #{uvdocnet_forward.43} parent=0 // pred_fallthru
    _
  // Predicated region
  $region10: #{uvdocnet_forward.43} parent=0 // pred_check
    _
  $region11: #{uvdocnet_forward.43} parent=0 // pred_check_branch
    %14 = sbr.rel (0) target = $region13
  $region12: #{uvdocnet_forward.43} parent=0 // pred_region
    _
  $region13: #{uvdocnet_forward.43} parent=0 // pred_fallthru
    _
  // Predicated region
  $region14: #{uvdocnet_forward.43} parent=0 // pred_check
    _
  $region15: #{uvdocnet_forward.43} parent=0 // pred_check_branch
    %16 = sbr.rel (0) target = $region17
  $region16: #{uvdocnet_forward.43} parent=0 // pred_region
    _
  $region17: #{uvdocnet_forward.43} parent=0 // pred_fallthru
    _
  %v18 = vld [vmem:[%s1] sm:$0xff]
  %v19 = vld [vmem:[%s0] sm:$0xf]
  %v20 = vld [vmem:[%s0 + $0x4] sm:$0xf]
  %v21 = vld [vmem:[%s0 + $0x8] sm:$0xf]
  %v22 = vld [vmem:[%s0 + $0xc] sm:$0xf]
  %v23 = vld [vmem:[%s0 + $0x10] sm:$0xf]
  %v24 = vld [vmem:[%s0 + $0x14] sm:$0xf]
  %v25 = vld [vmem:[%s0 + $0x18] sm:$0xf]
  %v26 = vld [vmem:[%s0 + $0x1c] sm:$0xf]
  %v27 = vld [vmem:[%s0 + $0x20] sm:$0xf]
  %v28 = vld [vmem:[%s0 + $0x24] sm:$0xf]
  %v29 = vld [vmem:[%s0 + $0x28] sm:$0xf]
  %v30 = vld [vmem:[%s0 + $0x2c] sm:$0xf]
  %v31 = vld [vmem:[%s0 + $0x30] sm:$0xf]
  %v32 = vld [vmem:[%s0 + $0x34] sm:$0xf]
  %v33 = vld [vmem:[%s0 + $0x38] sm:$0xf]
  %v34 = vld [vmem:[%s0 + $0x3c] sm:$0xf]
  %v35 = vld [vmem:[%s0 + $0x40] sm:$0xf]
  %v36 = vld [vmem:[%s0 + $0x44] sm:$0xf]
  %v37 = vld [vmem:[%s0 + $0x48] sm:$0xf]
  %v38 = vld [vmem:[%s0 + $0x4c] sm:$0xf]
  %v39 = vld [vmem:[%s0 + $0x50] sm:$0xf]
  %v40 = vld [vmem:[%s0 + $0x54] sm:$0xf]
  %v41 = vld [vmem:[%s0 + $0x58] sm:$0xf]
  %v42 = vld [vmem:[%s0 + $0x5c] sm:$0xf]
  %v43 = vld [vmem:[%s0 + $0x60] sm:$0xf]
  %v44 = vld [vmem:[%s0 + $0x64] sm:$0xf]
  %v45 = vld [vmem:[%s2] sm:$0xff]
  %47 = vset.pattern.permute.xlu0 0
  %48 = vperm.xlu0 %47, %v45
  %v49 = vpop.permute.xlu0 %48
  %v52 = vunpack.c.l.b16 %v18
  %v53 = vunpack.c.h.b16 %v18
  %v54 = vpack.c.b16 %v52, %v52
  %v55 = vpack.c.b16 %v53, %v53
  %v83 = vunpack.c.l.b16 %v19
  %v84 = vunpack.c.l.b16 %v20
  %v85 = vunpack.c.l.b16 %v21
  %v86 = vunpack.c.l.b16 %v22
  %v87 = vunpack.c.l.b16 %v23
  %v88 = vunpack.c.l.b16 %v24
  %v89 = vunpack.c.l.b16 %v25
  %v90 = vunpack.c.l.b16 %v26
  %v91 = vunpack.c.l.b16 %v27
  %v92 = vunpack.c.l.b16 %v28
  %v93 = vunpack.c.l.b16 %v29
  %v94 = vunpack.c.l.b16 %v30
  %v95 = vunpack.c.l.b16 %v31
  %v96 = vunpack.c.l.b16 %v32
  %v97 = vunpack.c.l.b16 %v33
  %v98 = vunpack.c.l.b16 %v34
  %v99 = vunpack.c.l.b16 %v35
  %v100 = vunpack.c.l.b16 %v36
  %v101 = vunpack.c.l.b16 %v37
  %v102 = vunpack.c.l.b16 %v38
  %v103 = vunpack.c.l.b16 %v39
  %v104 = vunpack.c.l.b16 %v40
  %v105 = vunpack.c.l.b16 %v41
  %v106 = vunpack.c.l.b16 %v42
  %v107 = vunpack.c.l.b16 %v43
  %v108 = vunpack.c.l.b16 %v44
  %v109 = vpack.c.b16 %v84, %v83
  %v110 = vpack.c.b16 %v86, %v85
  %v111 = vpack.c.b16 %v88, %v87
  %v112 = vpack.c.b16 %v90, %v89
  %v113 = vpack.c.b16 %v92, %v91
  %v114 = vpack.c.b16 %v94, %v93
  %v115 = vpack.c.b16 %v96, %v95
  %v116 = vpack.c.b16 %v98, %v97
  %v117 = vpack.c.b16 %v100, %v99
  %v118 = vpack.c.b16 %v102, %v101
  %v119 = vpack.c.b16 %v104, %v103
  %v120 = vpack.c.b16 %v106, %v105
  %v121 = vpack.c.b16 %v108, %v107
  %vm135 = vcmask 654336
  %v137 = vsel %vm135, %v55, 0
  %139 = vmatprep.subr.bf16.mxu0 0
  %140 = vmatpush1.bf16.msra.mxu0 %v109
  %141 = vmatprep.subr.bf16.mxu0 0
  %142 = vmatpush1.bf16.msra.mxu0 %v110
  %143 = vmatprep.subr.bf16.mxu0 0
  %144 = vmatpush1.bf16.msra.mxu0 %v111
  %145 = vmatprep.subr.bf16.mxu0 0
  %146 = vmatpush1.bf16.msra.mxu0 %v112
  %147 = vmatprep.subr.bf16.mxu0 0
  %148 = vmatpush1.bf16.msra.mxu0 %v113
  %149 = vmatprep.subr.bf16.mxu0 0
  %150 = vmatpush1.bf16.msra.mxu0 %v114
  %151 = vmatprep.subr.bf16.mxu0 0
  %152 = vmatpush1.bf16.msra.mxu0 %v115
  %153 = vmatprep.subr.bf16.mxu0 0
  %154 = vmatpush1.bf16.msra.mxu0 %v116
  %155 = vmatprep.subr.bf16.mxu0 0
  %156 = vmatpush1.bf16.msra.mxu0 %v117
  %157 = vmatprep.subr.bf16.mxu0 0
  %158 = vmatpush1.bf16.msra.mxu0 %v118
  %159 = vmatprep.subr.bf16.mxu0 0
  %160 = vmatpush1.bf16.msra.mxu0 %v119
  %161 = vmatprep.subr.bf16.mxu0 0
  %162 = vmatpush1.bf16.msra.mxu0 %v120
  %163 = vmatprep.subr.bf16.mxu0 0
  %164 = vmatpush1.bf16.msra.mxu0 %v121
  %165 = vmatprep.subr.bf16.mxu0 0
  %166 = vmatpush1.bf16.msra.mxu0 0
  %167 = vmatprep.subr.bf16.mxu0 0
  %168 = vmatpush1.bf16.msra.mxu0 0
  %169 = vmatprep.subr.bf16.mxu0 0
  %170 = vmatpush1.bf16.msra.mxu0 0
  %171 = vmatprep.mubr.bf16.mxu0 %v137
  %172 = vmatmul.mubr.bf16.gmra.mrb[0].mxu0 %v54
  %v173 = vpop.f32.mrb[0].mxu0
  %v174 = vadd.f32 %v49, %v173
  %v175 = vpop.f32.mrb[0].mxu0
  %v176 = vpop.f32.mrb[0].mxu0
  %v177 = vpop.f32.mrb[0].mxu0
  %178 = vdwg.mxu0
  %v179 = vld [vmem:[%s3] sm:$0xf]
  %v180 = vunpack.c.l.bf16 %v179
  %v181 = vadd.f32 %v174, %v180
  %v182 = vmax.f32 %v181, 0.0
  %v183 = vpack.c.bf16 %v182, %v182
  %184 = vst [vmem:[%s4] sm:$0xf] %v183
  // Predicated region
  $region18: #{uvdocnet_forward.43} parent=0 // pred_check
    _
  $region19: #{uvdocnet_forward.43} parent=0 // pred_check_branch
    %186 = sbr.rel (0) target = $region21
  $region20: #{uvdocnet_forward.43} parent=0 // pred_region
    _
  $region21: #{uvdocnet_forward.43} parent=0 // pred_fallthru
    _
  // Predicated region
  $region22: #{uvdocnet_forward.43} parent=0 // pred_check
    _
  $region23: #{uvdocnet_forward.43} parent=0 // pred_check_branch
    %188 = sbr.rel (0) target = $region25
  $region24: #{uvdocnet_forward.43} parent=0 // pred_region
    _
  $region25: #{uvdocnet_forward.43} parent=0 // pred_fallthru
    _

// kernel: uvdocnet_forward.44
$region0: #{uvdocnet_forward.44}
  #allocation0 [shape = 'u32[]', space=smem, size = 0x4, offset = 0x4, fixed_abs, tag = 'smem constant byte address 0x4 - core index']
  #allocation1 [shape = 'u32[144,128]{1,0:T(1,128)}', space=vmem, size = 0x12000, scoped, tag = 'internal scratch']
  %s0 = inlined_call_operand.vmem [shape: bf16[1,208,128], index: 0, kind: input, shape index: {}]
  %s1 = inlined_call_operand.vmem [shape: bf16[1,8,208], index: 1, kind: input, shape index: {}]
  %s2 = inlined_call_operand.vmem [shape: f32[1,8,1], index: 2, kind: input, shape index: {}]
  %s3 = inlined_call_operand.vmem [shape: bf16[1,8,128], index: 3, kind: output, shape index: {}]
  %s4 = sld [smem:[#allocation0]]
  $region22: #{uvdocnet_forward.44} parent=0
    _
  %s6 = ssub.s32 1, %s4
  %s7 = scalar_select 0, %s6, %s4
  // Predicated region
  $region2: #{uvdocnet_forward.44} parent=0 // pred_check
    _
  $region3: #{uvdocnet_forward.44} parent=0 // pred_check_branch
    %9 = sbr.rel (0) target = $region5
  $region4: #{uvdocnet_forward.44} parent=0 // pred_region
    _
  $region5: #{uvdocnet_forward.44} parent=0 // pred_fallthru
    _
  // Predicated region
  $region6: #{uvdocnet_forward.44} parent=0 // pred_check
    _
  $region7: #{uvdocnet_forward.44} parent=0 // pred_check_branch
    %11 = sbr.rel (0) target = $region9
  $region8: #{uvdocnet_forward.44} parent=0 // pred_region
    _
  $region9: #{uvdocnet_forward.44} parent=0 // pred_fallthru
    _
  // Predicated region
  $region10: #{uvdocnet_forward.44} parent=0 // pred_check
    _
  $region11: #{uvdocnet_forward.44} parent=0 // pred_check_branch
    %13 = sbr.rel (0) target = $region13
  $region12: #{uvdocnet_forward.44} parent=0 // pred_region
    _
  $region13: #{uvdocnet_forward.44} parent=0 // pred_fallthru
    _
  %v15 = vld [vmem:[%s1] sm:$0xff]
  %v16 = vld [vmem:[%s0] sm:$0xf]
  %v17 = vld [vmem:[%s0 + $0x4] sm:$0xf]
  %v18 = vld [vmem:[%s0 + $0x8] sm:$0xf]
  %v19 = vld [vmem:[%s0 + $0xc] sm:$0xf]
  %v20 = vld [vmem:[%s0 + $0x10] sm:$0xf]
  %v21 = vld [vmem:[%s0 + $0x14] sm:$0xf]
  %v22 = vld [vmem:[%s0 + $0x18] sm:$0xf]
  %v23 = vld [vmem:[%s0 + $0x1c] sm:$0xf]
  %v24 = vld [vmem:[%s0 + $0x20] sm:$0xf]
  %v25 = vld [vmem:[%s0 + $0x24] sm:$0xf]
  %v26 = vld [vmem:[%s0 + $0x28] sm:$0xf]
  %v27 = vld [vmem:[%s0 + $0x2c] sm:$0xf]
  %v28 = vld [vmem:[%s0 + $0x30] sm:$0xf]
  %v29 = vld [vmem:[%s0 + $0x34] sm:$0xf]
  %v30 = vld [vmem:[%s0 + $0x38] sm:$0xf]
  %v31 = vld [vmem:[%s0 + $0x3c] sm:$0xf]
  %v32 = vld [vmem:[%s0 + $0x40] sm:$0xf]
  %v33 = vld [vmem:[%s0 + $0x44] sm:$0xf]
  %v34 = vld [vmem:[%s0 + $0x48] sm:$0xf]
  %v35 = vld [vmem:[%s0 + $0x4c] sm:$0xf]
  %v36 = vld [vmem:[%s0 + $0x50] sm:$0xf]
  %v37 = vld [vmem:[%s0 + $0x54] sm:$0xf]
  %v38 = vld [vmem:[%s0 + $0x58] sm:$0xf]
  %v39 = vld [vmem:[%s0 + $0x5c] sm:$0xf]
  %v40 = vld [vmem:[%s0 + $0x60] sm:$0xf]
  %v41 = vld [vmem:[%s0 + $0x64] sm:$0xf]
  %v42 = vld [vmem:[%s2] sm:$0xff]
  %44 = vset.pattern.permute.xlu0 0
  %45 = vperm.xlu0 %44, %v42
  %v46 = vpop.permute.xlu0 %45
  %v49 = vunpack.c.l.b16 %v15
  %v50 = vunpack.c.h.b16 %v15
  %v51 = vpack.c.b16 %v49, %v49
  %v52 = vpack.c.b16 %v50, %v50
  %v80 = vunpack.c.l.b16 %v16
  %v81 = vunpack.c.l.b16 %v17
  %v82 = vunpack.c.l.b16 %v18
  %v83 = vunpack.c.l.b16 %v19
  %v84 = vunpack.c.l.b16 %v20
  %v85 = vunpack.c.l.b16 %v21
  %v86 = vunpack.c.l.b16 %v22
  %v87 = vunpack.c.l.b16 %v23
  %v88 = vunpack.c.l.b16 %v24
  %v89 = vunpack.c.l.b16 %v25
  %v90 = vunpack.c.l.b16 %v26
  %v91 = vunpack.c.l.b16 %v27
  %v92 = vunpack.c.l.b16 %v28
  %v93 = vunpack.c.l.b16 %v29
  %v94 = vunpack.c.l.b16 %v30
  %v95 = vunpack.c.l.b16 %v31
  %v96 = vunpack.c.l.b16 %v32
  %v97 = vunpack.c.l.b16 %v33
  %v98 = vunpack.c.l.b16 %v34
  %v99 = vunpack.c.l.b16 %v35
  %v100 = vunpack.c.l.b16 %v36
  %v101 = vunpack.c.l.b16 %v37
  %v102 = vunpack.c.l.b16 %v38
  %v103 = vunpack.c.l.b16 %v39
  %v104 = vunpack.c.l.b16 %v40
  %v105 = vunpack.c.l.b16 %v41
  %v106 = vpack.c.b16 %v81, %v80
  %v107 = vpack.c.b16 %v83, %v82
  %v108 = vpack.c.b16 %v85, %v84
  %v109 = vpack.c.b16 %v87, %v86
  %v110 = vpack.c.b16 %v89, %v88
  %v111 = vpack.c.b16 %v91, %v90
  %v112 = vpack.c.b16 %v93, %v92
  %v113 = vpack.c.b16 %v95, %v94
  %v114 = vpack.c.b16 %v97, %v96
  %v115 = vpack.c.b16 %v99, %v98
  %v116 = vpack.c.b16 %v101, %v100
  %v117 = vpack.c.b16 %v103, %v102
  %v118 = vpack.c.b16 %v105, %v104
  %vm132 = vcmask 654336
  %v134 = vsel %vm132, %v52, 0
  %136 = vmatprep.subr.bf16.mxu0 0
  %137 = vmatpush1.bf16.msra.mxu0 %v106
  %138 = vmatprep.subr.bf16.mxu0 0
  %139 = vmatpush1.bf16.msra.mxu0 %v107
  %140 = vmatprep.subr.bf16.mxu0 0
  %141 = vmatpush1.bf16.msra.mxu0 %v108
  %142 = vmatprep.subr.bf16.mxu0 0
  %143 = vmatpush1.bf16.msra.mxu0 %v109
  %144 = vmatprep.subr.bf16.mxu0 0
  %145 = vmatpush1.bf16.msra.mxu0 %v110
  %146 = vmatprep.subr.bf16.mxu0 0
  %147 = vmatpush1.bf16.msra.mxu0 %v111
  %148 = vmatprep.subr.bf16.mxu0 0
  %149 = vmatpush1.bf16.msra.mxu0 %v112
  %150 = vmatprep.subr.bf16.mxu0 0
  %151 = vmatpush1.bf16.msra.mxu0 %v113
  %152 = vmatprep.subr.bf16.mxu0 0
  %153 = vmatpush1.bf16.msra.mxu0 %v114
  %154 = vmatprep.subr.bf16.mxu0 0
  %155 = vmatpush1.bf16.msra.mxu0 %v115
  %156 = vmatprep.subr.bf16.mxu0 0
  %157 = vmatpush1.bf16.msra.mxu0 %v116
  %158 = vmatprep.subr.bf16.mxu0 0
  %159 = vmatpush1.bf16.msra.mxu0 %v117
  %160 = vmatprep.subr.bf16.mxu0 0
  %161 = vmatpush1.bf16.msra.mxu0 %v118
  %162 = vmatprep.subr.bf16.mxu0 0
  %163 = vmatpush1.bf16.msra.mxu0 0
  %164 = vmatprep.subr.bf16.mxu0 0
  %165 = vmatpush1.bf16.msra.mxu0 0
  %166 = vmatprep.subr.bf16.mxu0 0
  %167 = vmatpush1.bf16.msra.mxu0 0
  %168 = vmatprep.mubr.bf16.mxu0 %v134
  %169 = vmatmul.mubr.bf16.gmra.mrb[0].mxu0 %v51
  %v170 = vpop.f32.mrb[0].mxu0
  %v171 = vadd.f32 %v46, %v170
  %v172 = vpop.f32.mrb[0].mxu0
  %v173 = vpop.f32.mrb[0].mxu0
  %v174 = vpop.f32.mrb[0].mxu0
  %175 = vdwg.mxu0
  %v176 = vmax.f32 %v171, 0.0
  %v177 = vpack.c.bf16 %v176, %v176
  %178 = vst [vmem:[%s3] sm:$0xf] %v177
  // Predicated region
  $region14: #{uvdocnet_forward.44} parent=0 // pred_check
    _
  $region15: #{uvdocnet_forward.44} parent=0 // pred_check_branch
    %180 = sbr.rel (0) target = $region17
  $region16: #{uvdocnet_forward.44} parent=0 // pred_region
    _
  $region17: #{uvdocnet_forward.44} parent=0 // pred_fallthru
    _
  // Predicated region
  $region18: #{uvdocnet_forward.44} parent=0 // pred_check
    _
  $region19: #{uvdocnet_forward.44} parent=0 // pred_check_branch
    %182 = sbr.rel (0) target = $region21
  $region20: #{uvdocnet_forward.44} parent=0 // pred_region
    _
  $region21: #{uvdocnet_forward.44} parent=0 // pred_fallthru
    _

// kernel: uvdocnet_forward.50
$region0: #{uvdocnet_forward.50}
  #allocation0 [shape = 'u32[]', space=smem, size = 0x4, offset = 0x4, fixed_abs, tag = 'smem constant byte address 0x4 - core index']
  #allocation1 [shape = 'u32[144,128]{1,0:T(1,128)}', space=vmem, size = 0x12000, scoped, tag = 'internal scratch']
  %s0 = inlined_call_operand.vmem [shape: bf16[1,208,32], index: 0, kind: input, shape index: {}]
  %s1 = inlined_call_operand.vmem [shape: bf16[1,32,208], index: 1, kind: input, shape index: {}]
  %s2 = inlined_call_operand.vmem [shape: f32[1,32,1], index: 2, kind: input, shape index: {}]
  %s3 = inlined_call_operand.vmem [shape: f32[1,32,1], index: 3, kind: input, shape index: {}]
  %s4 = inlined_call_operand.vmem [shape: bf16[1,32,32], index: 4, kind: output, shape index: {}]
  %s5 = sld [smem:[#allocation0]]
  $region26: #{uvdocnet_forward.50} parent=0
    _
  %s7 = ssub.s32 1, %s5
  %s8 = scalar_select 0, %s7, %s5
  // Predicated region
  $region2: #{uvdocnet_forward.50} parent=0 // pred_check
    _
  $region3: #{uvdocnet_forward.50} parent=0 // pred_check_branch
    %10 = sbr.rel (0) target = $region5
  $region4: #{uvdocnet_forward.50} parent=0 // pred_region
    _
  $region5: #{uvdocnet_forward.50} parent=0 // pred_fallthru
    _
  // Predicated region
  $region6: #{uvdocnet_forward.50} parent=0 // pred_check
    _
  $region7: #{uvdocnet_forward.50} parent=0 // pred_check_branch
    %12 = sbr.rel (0) target = $region9
  $region8: #{uvdocnet_forward.50} parent=0 // pred_region
    _
  $region9: #{uvdocnet_forward.50} parent=0 // pred_fallthru
    _
  // Predicated region
  $region10: #{uvdocnet_forward.50} parent=0 // pred_check
    _
  $region11: #{uvdocnet_forward.50} parent=0 // pred_check_branch
    %14 = sbr.rel (0) target = $region13
  $region12: #{uvdocnet_forward.50} parent=0 // pred_region
    _
  $region13: #{uvdocnet_forward.50} parent=0 // pred_fallthru
    _
  // Predicated region
  $region14: #{uvdocnet_forward.50} parent=0 // pred_check
    _
  $region15: #{uvdocnet_forward.50} parent=0 // pred_check_branch
    %16 = sbr.rel (0) target = $region17
  $region16: #{uvdocnet_forward.50} parent=0 // pred_region
    _
  $region17: #{uvdocnet_forward.50} parent=0 // pred_fallthru
    _
  %v18 = vld [vmem:[%s1] sm:$0xff]
  %v19 = vld [vmem:[%s1 + $0x8] sm:$0xff]
  %v20 = vld [vmem:[%s1 + $0x10] sm:$0xff]
  %v21 = vld [vmem:[%s1 + $0x18] sm:$0xff]
  %v22 = vld [vmem:[%s0] sm:$0xf]
  %v23 = vld [vmem:[%s0 + $0x4] sm:$0xf]
  %v24 = vld [vmem:[%s0 + $0x8] sm:$0xf]
  %v25 = vld [vmem:[%s0 + $0xc] sm:$0xf]
  %v26 = vld [vmem:[%s0 + $0x10] sm:$0xf]
  %v27 = vld [vmem:[%s0 + $0x14] sm:$0xf]
  %v28 = vld [vmem:[%s0 + $0x18] sm:$0xf]
  %v29 = vld [vmem:[%s0 + $0x1c] sm:$0xf]
  %v30 = vld [vmem:[%s0 + $0x20] sm:$0xf]
  %v31 = vld [vmem:[%s0 + $0x24] sm:$0xf]
  %v32 = vld [vmem:[%s0 + $0x28] sm:$0xf]
  %v33 = vld [vmem:[%s0 + $0x2c] sm:$0xf]
  %v34 = vld [vmem:[%s0 + $0x30] sm:$0xf]
  %v35 = vld [vmem:[%s0 + $0x34] sm:$0xf]
  %v36 = vld [vmem:[%s0 + $0x38] sm:$0xf]
  %v37 = vld [vmem:[%s0 + $0x3c] sm:$0xf]
  %v38 = vld [vmem:[%s0 + $0x40] sm:$0xf]
  %v39 = vld [vmem:[%s0 + $0x44] sm:$0xf]
  %v40 = vld [vmem:[%s0 + $0x48] sm:$0xf]
  %v41 = vld [vmem:[%s0 + $0x4c] sm:$0xf]
  %v42 = vld [vmem:[%s0 + $0x50] sm:$0xf]
  %v43 = vld [vmem:[%s0 + $0x54] sm:$0xf]
  %v44 = vld [vmem:[%s0 + $0x58] sm:$0xf]
  %v45 = vld [vmem:[%s0 + $0x5c] sm:$0xf]
  %v46 = vld [vmem:[%s0 + $0x60] sm:$0xf]
  %v47 = vld [vmem:[%s0 + $0x64] sm:$0xf]
  %v48 = vld [vmem:[%s2] sm:$0xff]
  %v49 = vld [vmem:[%s2 + $0x8] sm:$0xff]
  %v50 = vld [vmem:[%s2 + $0x10] sm:$0xff]
  %v51 = vld [vmem:[%s2 + $0x18] sm:$0xff]
  %53 = vset.pattern.permute.xlu0 0
  %54 = vperm.xlu0 %53, %v48
  %v55 = vpop.permute.xlu0 %54
  %58 = vset.pattern.permute.xlu0 0
  %59 = vperm.xlu0 %58, %v49
  %v60 = vpop.permute.xlu0 %59
  %63 = vset.pattern.permute.xlu0 0
  %64 = vperm.xlu0 %63, %v50
  %v65 = vpop.permute.xlu0 %64
  %68 = vset.pattern.permute.xlu0 0
  %69 = vperm.xlu0 %68, %v51
  %v70 = vpop.permute.xlu0 %69
  %v76 = vunpack.c.l.b16 %v18
  %v77 = vunpack.c.h.b16 %v18
  %v78 = vunpack.c.l.b16 %v19
  %v79 = vunpack.c.h.b16 %v19
  %v80 = vunpack.c.l.b16 %v20
  %v81 = vunpack.c.h.b16 %v20
  %v82 = vunpack.c.l.b16 %v21
  %v83 = vunpack.c.h.b16 %v21
  %v84 = vpack.c.b16 %v78, %v76
  %v85 = vpack.c.b16 %v79, %v77
  %v86 = vpack.c.b16 %v82, %v80
  %v87 = vpack.c.b16 %v83, %v81
  %v116 = vunpack.c.l.b16 %v22
  %v117 = vunpack.c.l.b16 %v23
  %v118 = vunpack.c.l.b16 %v24
  %v119 = vunpack.c.l.b16 %v25
  %v120 = vunpack.c.l.b16 %v26
  %v121 = vunpack.c.l.b16 %v27
  %v122 = vunpack.c.l.b16 %v28
  %v123 = vunpack.c.l.b16 %v29
  %v124 = vunpack.c.l.b16 %v30
  %v125 = vunpack.c.l.b16 %v31
  %v126 = vunpack.c.l.b16 %v32
  %v127 = vunpack.c.l.b16 %v33
  %v128 = vunpack.c.l.b16 %v34
  %v129 = vunpack.c.l.b16 %v35
  %v130 = vunpack.c.l.b16 %v36
  %v131 = vunpack.c.l.b16 %v37
  %v132 = vunpack.c.l.b16 %v38
  %v133 = vunpack.c.l.b16 %v39
  %v134 = vunpack.c.l.b16 %v40
  %v135 = vunpack.c.l.b16 %v41
  %v136 = vunpack.c.l.b16 %v42
  %v137 = vunpack.c.l.b16 %v43
  %v138 = vunpack.c.l.b16 %v44
  %v139 = vunpack.c.l.b16 %v45
  %v140 = vunpack.c.l.b16 %v46
  %v141 = vunpack.c.l.b16 %v47
  %v142 = vpack.c.b16 %v117, %v116
  %v143 = vpack.c.b16 %v119, %v118
  %v144 = vpack.c.b16 %v121, %v120
  %v145 = vpack.c.b16 %v123, %v122
  %v146 = vpack.c.b16 %v125, %v124
  %v147 = vpack.c.b16 %v127, %v126
  %v148 = vpack.c.b16 %v129, %v128
  %v149 = vpack.c.b16 %v131, %v130
  %v150 = vpack.c.b16 %v133, %v132
  %v151 = vpack.c.b16 %v135, %v134
  %v152 = vpack.c.b16 %v137, %v136
  %v153 = vpack.c.b16 %v139, %v138
  %v154 = vpack.c.b16 %v141, %v140
  %vm168 = vcmask 654336
  %v170 = vsel %vm168, %v85, 0
  %v173 = vsel %vm168, %v87, 0
  %175 = vmatprep.subr.bf16.mxu0 0
  %176 = vmatpush1.bf16.msra.mxu0 %v142
  %177 = vmatprep.subr.bf16.mxu0 0
  %178 = vmatpush1.bf16.msra.mxu0 %v143
  %179 = vmatprep.subr.bf16.mxu0 0
  %180 = vmatpush1.bf16.msra.mxu0 %v144
  %181 = vmatprep.subr.bf16.mxu0 0
  %182 = vmatpush1.bf16.msra.mxu0 %v145
  %183 = vmatprep.subr.bf16.mxu0 0
  %184 = vmatpush1.bf16.msra.mxu0 %v146
  %185 = vmatprep.subr.bf16.mxu0 0
  %186 = vmatpush1.bf16.msra.mxu0 %v147
  %187 = vmatprep.subr.bf16.mxu0 0
  %188 = vmatpush1.bf16.msra.mxu0 %v148
  %189 = vmatprep.subr.bf16.mxu0 0
  %190 = vmatpush1.bf16.msra.mxu0 %v149
  %191 = vmatprep.subr.bf16.mxu0 0
  %192 = vmatpush1.bf16.msra.mxu0 %v150
  %193 = vmatprep.subr.bf16.mxu0 0
  %194 = vmatpush1.bf16.msra.mxu0 %v151
  %195 = vmatprep.subr.bf16.mxu0 0
  %196 = vmatpush1.bf16.msra.mxu0 %v152
  %197 = vmatprep.subr.bf16.mxu0 0
  %198 = vmatpush1.bf16.msra.mxu0 %v153
  %199 = vmatprep.subr.bf16.mxu0 0
  %200 = vmatpush1.bf16.msra.mxu0 %v154
  %201 = vmatprep.subr.bf16.mxu0 0
  %202 = vmatpush1.bf16.msra.mxu0 0
  %203 = vmatprep.subr.bf16.mxu0 0
  %204 = vmatpush1.bf16.msra.mxu0 0
  %205 = vmatprep.subr.bf16.mxu0 0
  %206 = vmatpush1.bf16.msra.mxu0 0
  %207 = vmatprep.mubr.bf16.mxu0 %v170
  %208 = vmatmul.mubr.bf16.gmra.mrb[0].mxu0 %v84
  %v209 = vpop.f32.mrb[0].mxu0
  %v210 = vadd.f32 %v55, %v209
  %v211 = vpop.f32.mrb[0].mxu0
  %v212 = vpop.f32.mrb[0].mxu0
  %v213 = vadd.f32 %v60, %v212
  %v214 = vpop.f32.mrb[0].mxu0
  %215 = vmatprep.mubr.bf16.mxu0 %v173
  %216 = vmatmul.mubr.bf16.gmra.mrb[0].mxu0 %v86
  %v217 = vpop.f32.mrb[0].mxu0
  %v218 = vadd.f32 %v65, %v217
  %v219 = vpop.f32.mrb[0].mxu0
  %v220 = vpop.f32.mrb[0].mxu0
  %v221 = vadd.f32 %v70, %v220
  %v222 = vpop.f32.mrb[0].mxu0
  %223 = vdwg.mxu0
  %vm224 = vcmp.ge.f32.partialorder %v210, 0.0
  %vm225 = vcmp.ge.f32.partialorder %v213, 0.0
  %vm226 = vcmp.ge.f32.partialorder %v218, 0.0
  %vm227 = vcmp.ge.f32.partialorder %v221, 0.0
  %v228 = vld [vmem:[%s3] sm:$0xff]
  %v229 = vld [vmem:[%s3 + $0x8] sm:$0xff]
  %v230 = vld [vmem:[%s3 + $0x10] sm:$0xff]
  %v231 = vld [vmem:[%s3 + $0x18] sm:$0xff]
  %233 = vset.pattern.permute.xlu0 0
  %234 = vperm.xlu0 %233, %v228
  %v235 = vpop.permute.xlu0 %234
  %238 = vset.pattern.permute.xlu0 0
  %239 = vperm.xlu0 %238, %v229
  %v240 = vpop.permute.xlu0 %239
  %243 = vset.pattern.permute.xlu0 0
  %244 = vperm.xlu0 %243, %v230
  %v245 = vpop.permute.xlu0 %244
  %248 = vset.pattern.permute.xlu0 0
  %249 = vperm.xlu0 %248, %v231
  %v250 = vpop.permute.xlu0 %249
  %v252 = vmul.f32 %v235, %v210
  %v253 = vmul.f32 %v240, %v213
  %v254 = vmul.f32 %v245, %v218
  %v255 = vmul.f32 %v250, %v221
  %v256 = vsel %vm224, %v210, %v252
  %v257 = vsel %vm225, %v213, %v253
  %v258 = vsel %vm226, %v218, %v254
  %v259 = vsel %vm227, %v221, %v255
  %v260 = vpack.c.bf16 %v257, %v256
  %v261 = vpack.c.bf16 %v259, %v258
  %v264 = vunpack.c.l.b16 %v260
  %v265 = vunpack.c.h.b16 %v260
  %v266 = vunpack.c.l.b16 %v261
  %v267 = vunpack.c.h.b16 %v261
  %v268 = vpack.c.b16 %v264, %v264
  %v269 = vpack.c.b16 %v265, %v265
  %v270 = vpack.c.b16 %v266, %v266
  %v271 = vpack.c.b16 %v267, %v267
  %vm276 = vcmask 257024
  %277 = vst.msk [vmem:[%s4] sm:$0xf] %vm276, %v268
  %278 = vst.msk [vmem:[%s4 + $0x4] sm:$0xf] %vm276, %v269
  %279 = vst.msk [vmem:[%s4 + $0x8] sm:$0xf] %vm276, %v270
  %280 = vst.msk [vmem:[%s4 + $0xc] sm:$0xf] %vm276, %v271
  // Predicated region
  $region18: #{uvdocnet_forward.50} parent=0 // pred_check
    _
  $region19: #{uvdocnet_forward.50} parent=0 // pred_check_branch
    %282 = sbr.rel (0) target = $region21
  $region20: #{uvdocnet_forward.50} parent=0 // pred_region
    _
  $region21: #{uvdocnet_forward.50} parent=0 // pred_fallthru
    _
  // Predicated region
  $region22: #{uvdocnet_forward.50} parent=0 // pred_check
    _
  $region23: #{uvdocnet_forward.50} parent=0 // pred_check_branch
    %284 = sbr.rel (0) target = $region25
  $region24: #{uvdocnet_forward.50} parent=0 // pred_region
    _
  $region25: #{uvdocnet_forward.50} parent=0 // pred_fallthru
    _

// kernel: uvdocnet_forward.51
$region0: #{uvdocnet_forward.51}
  #allocation0 [shape = 'u32[]', space=smem, size = 0x4, offset = 0x4, fixed_abs, tag = 'smem constant byte address 0x4 - core index']
  #allocation1 [shape = 'u32[144,128]{1,0:T(1,128)}', space=vmem, size = 0x12000, scoped, tag = 'internal scratch']
  %s0 = inlined_call_operand.vmem [shape: bf16[1,400,32], index: 0, kind: input, shape index: {}]
  %s1 = inlined_call_operand.vmem [shape: bf16[1,16,400], index: 1, kind: input, shape index: {}]
  %s2 = inlined_call_operand.vmem [shape: f32[1,16,1], index: 2, kind: input, shape index: {}]
  %s3 = inlined_call_operand.vmem [shape: bf16[1,16,32], index: 3, kind: input, shape index: {}]
  %s4 = inlined_call_operand.vmem [shape: bf16[1,16,32], index: 4, kind: output, shape index: {}]
  %s5 = sld [smem:[#allocation0]]
  $region26: #{uvdocnet_forward.51} parent=0
    _
  %s7 = ssub.s32 1, %s5
  %s8 = scalar_select 0, %s7, %s5
  // Predicated region
  $region2: #{uvdocnet_forward.51} parent=0 // pred_check
    _
  $region3: #{uvdocnet_forward.51} parent=0 // pred_check_branch
    %10 = sbr.rel (0) target = $region5
  $region4: #{uvdocnet_forward.51} parent=0 // pred_region
    _
  $region5: #{uvdocnet_forward.51} parent=0 // pred_fallthru
    _
  // Predicated region
  $region6: #{uvdocnet_forward.51} parent=0 // pred_check
    _
  $region7: #{uvdocnet_forward.51} parent=0 // pred_check_branch
    %12 = sbr.rel (0) target = $region9
  $region8: #{uvdocnet_forward.51} parent=0 // pred_region
    _
  $region9: #{uvdocnet_forward.51} parent=0 // pred_fallthru
    _
  // Predicated region
  $region10: #{uvdocnet_forward.51} parent=0 // pred_check
    _
  $region11: #{uvdocnet_forward.51} parent=0 // pred_check_branch
    %14 = sbr.rel (0) target = $region13
  $region12: #{uvdocnet_forward.51} parent=0 // pred_region
    _
  $region13: #{uvdocnet_forward.51} parent=0 // pred_fallthru
    _
  // Predicated region
  $region14: #{uvdocnet_forward.51} parent=0 // pred_check
    _
  $region15: #{uvdocnet_forward.51} parent=0 // pred_check_branch
    %16 = sbr.rel (0) target = $region17
  $region16: #{uvdocnet_forward.51} parent=0 // pred_region
    _
  $region17: #{uvdocnet_forward.51} parent=0 // pred_fallthru
    _
  %v18 = vld [vmem:[%s1] sm:$0xff]
  %v19 = vld [vmem:[%s1 + $0x8] sm:$0xff]
  %v20 = vld [vmem:[%s1 + $0x10] sm:$0xff]
  %v21 = vld [vmem:[%s1 + $0x18] sm:$0xff]
  %v22 = vld [vmem:[%s0] sm:$0xf]
  %v23 = vld [vmem:[%s0 + $0x4] sm:$0xf]
  %v24 = vld [vmem:[%s0 + $0x8] sm:$0xf]
  %v25 = vld [vmem:[%s0 + $0xc] sm:$0xf]
  %v26 = vld [vmem:[%s0 + $0x10] sm:$0xf]
  %v27 = vld [vmem:[%s0 + $0x14] sm:$0xf]
  %v28 = vld [vmem:[%s0 + $0x18] sm:$0xf]
  %v29 = vld [vmem:[%s0 + $0x1c] sm:$0xf]
  %v30 = vld [vmem:[%s0 + $0x20] sm:$0xf]
  %v31 = vld [vmem:[%s0 + $0x24] sm:$0xf]
  %v32 = vld [vmem:[%s0 + $0x28] sm:$0xf]
  %v33 = vld [vmem:[%s0 + $0x2c] sm:$0xf]
  %v34 = vld [vmem:[%s0 + $0x30] sm:$0xf]
  %v35 = vld [vmem:[%s0 + $0x34] sm:$0xf]
  %v36 = vld [vmem:[%s0 + $0x38] sm:$0xf]
  %v37 = vld [vmem:[%s0 + $0x3c] sm:$0xf]
  %v38 = vld [vmem:[%s0 + $0x40] sm:$0xf]
  %v39 = vld [vmem:[%s0 + $0x44] sm:$0xf]
  %v40 = vld [vmem:[%s0 + $0x48] sm:$0xf]
  %v41 = vld [vmem:[%s0 + $0x4c] sm:$0xf]
  %v42 = vld [vmem:[%s0 + $0x50] sm:$0xf]
  %v43 = vld [vmem:[%s0 + $0x54] sm:$0xf]
  %v44 = vld [vmem:[%s0 + $0x58] sm:$0xf]
  %v45 = vld [vmem:[%s0 + $0x5c] sm:$0xf]
  %v46 = vld [vmem:[%s0 + $0x60] sm:$0xf]
  %v47 = vld [vmem:[%s0 + $0x64] sm:$0xf]
  %v48 = vld [vmem:[%s0 + $0x68] sm:$0xf]
  %v49 = vld [vmem:[%s0 + $0x6c] sm:$0xf]
  %v50 = vld [vmem:[%s0 + $0x70] sm:$0xf]
  %v51 = vld [vmem:[%s0 + $0x74] sm:$0xf]
  %v52 = vld [vmem:[%s0 + $0x78] sm:$0xf]
  %v53 = vld [vmem:[%s0 + $0x7c] sm:$0xf]
  %v54 = vld [vmem:[%s0 + $0x80] sm:$0xf]
  %v55 = vld [vmem:[%s0 + $0x84] sm:$0xf]
  %v56 = vld [vmem:[%s0 + $0x88] sm:$0xf]
  %v57 = vld [vmem:[%s0 + $0x8c] sm:$0xf]
  %v58 = vld [vmem:[%s0 + $0x90] sm:$0xf]
  %v59 = vld [vmem:[%s0 + $0x94] sm:$0xf]
  %v60 = vld [vmem:[%s0 + $0x98] sm:$0xf]
  %v61 = vld [vmem:[%s0 + $0x9c] sm:$0xf]
  %v62 = vld [vmem:[%s0 + $0xa0] sm:$0xf]
  %v63 = vld [vmem:[%s0 + $0xa4] sm:$0xf]
  %v64 = vld [vmem:[%s0 + $0xa8] sm:$0xf]
  %v65 = vld [vmem:[%s0 + $0xac] sm:$0xf]
  %v66 = vld [vmem:[%s0 + $0xb0] sm:$0xf]
  %v67 = vld [vmem:[%s0 + $0xb4] sm:$0xf]
  %v68 = vld [vmem:[%s0 + $0xb8] sm:$0xf]
  %v69 = vld [vmem:[%s0 + $0xbc] sm:$0xf]
  %v70 = vld [vmem:[%s0 + $0xc0] sm:$0xf]
  %v71 = vld [vmem:[%s0 + $0xc4] sm:$0xf]
  %v72 = vld [vmem:[%s2] sm:$0xff]
  %v73 = vld [vmem:[%s2 + $0x8] sm:$0xff]
  %75 = vset.pattern.permute.xlu0 0
  %76 = vperm.xlu0 %75, %v72
  %v77 = vpop.permute.xlu0 %76
  %80 = vset.pattern.permute.xlu0 0
  %81 = vperm.xlu0 %80, %v73
  %v82 = vpop.permute.xlu0 %81
  %v88 = vunpack.c.l.b16 %v18
  %v89 = vunpack.c.h.b16 %v18
  %v90 = vunpack.c.l.b16 %v19
  %v91 = vunpack.c.h.b16 %v19
  %v92 = vunpack.c.l.b16 %v20
  %v93 = vunpack.c.h.b16 %v20
  %v94 = vunpack.c.l.b16 %v21
  %v95 = vunpack.c.h.b16 %v21
  %v96 = vpack.c.b16 %v92, %v88
  %v97 = vpack.c.b16 %v93, %v89
  %v98 = vpack.c.b16 %v94, %v90
  %v99 = vpack.c.b16 %v95, %v91
  %v153 = vunpack.c.l.b16 %v22
  %v154 = vunpack.c.l.b16 %v23
  %v155 = vunpack.c.l.b16 %v24
  %v156 = vunpack.c.l.b16 %v25
  %v157 = vunpack.c.l.b16 %v26
  %v158 = vunpack.c.l.b16 %v27
  %v159 = vunpack.c.l.b16 %v28
  %v160 = vunpack.c.l.b16 %v29
  %v161 = vunpack.c.l.b16 %v30
  %v162 = vunpack.c.l.b16 %v31
  %v163 = vunpack.c.l.b16 %v32
  %v164 = vunpack.c.l.b16 %v33
  %v165 = vunpack.c.l.b16 %v34
  %v166 = vunpack.c.l.b16 %v35
  %v167 = vunpack.c.l.b16 %v36
  %v168 = vunpack.c.l.b16 %v37
  %v169 = vunpack.c.l.b16 %v38
  %v170 = vunpack.c.l.b16 %v39
  %v171 = vunpack.c.l.b16 %v40
  %v172 = vunpack.c.l.b16 %v41
  %v173 = vunpack.c.l.b16 %v42
  %v174 = vunpack.c.l.b16 %v43
  %v175 = vunpack.c.l.b16 %v44
  %v176 = vunpack.c.l.b16 %v45
  %v177 = vunpack.c.l.b16 %v46
  %v178 = vunpack.c.l.b16 %v47
  %v179 = vunpack.c.l.b16 %v48
  %v180 = vunpack.c.l.b16 %v49
  %v181 = vunpack.c.l.b16 %v50
  %v182 = vunpack.c.l.b16 %v51
  %v183 = vunpack.c.l.b16 %v52
  %v184 = vunpack.c.l.b16 %v53
  %v185 = vunpack.c.l.b16 %v54
  %v186 = vunpack.c.l.b16 %v55
  %v187 = vunpack.c.l.b16 %v56
  %v188 = vunpack.c.l.b16 %v57
  %v189 = vunpack.c.l.b16 %v58
  %v190 = vunpack.c.l.b16 %v59
  %v191 = vunpack.c.l.b16 %v60
  %v192 = vunpack.c.l.b16 %v61
  %v193 = vunpack.c.l.b16 %v62
  %v194 = vunpack.c.l.b16 %v63
  %v195 = vunpack.c.l.b16 %v64
  %v196 = vunpack.c.l.b16 %v65
  %v197 = vunpack.c.l.b16 %v66
  %v198 = vunpack.c.l.b16 %v67
  %v199 = vunpack.c.l.b16 %v68
  %v200 = vunpack.c.l.b16 %v69
  %v201 = vunpack.c.l.b16 %v70
  %v202 = vunpack.c.l.b16 %v71
  %v203 = vpack.c.b16 %v154, %v153
  %v204 = vpack.c.b16 %v156, %v155
  %v205 = vpack.c.b16 %v158, %v157
  %v206 = vpack.c.b16 %v160, %v159
  %v207 = vpack.c.b16 %v162, %v161
  %v208 = vpack.c.b16 %v164, %v163
  %v209 = vpack.c.b16 %v166, %v165
  %v210 = vpack.c.b16 %v168, %v167
  %v211 = vpack.c.b16 %v170, %v169
  %v212 = vpack.c.b16 %v172, %v171
  %v213 = vpack.c.b16 %v174, %v173
  %v214 = vpack.c.b16 %v176, %v175
  %v215 = vpack.c.b16 %v178, %v177
  %v216 = vpack.c.b16 %v180, %v179
  %v217 = vpack.c.b16 %v182, %v181
  %v218 = vpack.c.b16 %v184, %v183
  %v219 = vpack.c.b16 %v186, %v185
  %v220 = vpack.c.b16 %v188, %v187
  %v221 = vpack.c.b16 %v190, %v189
  %v222 = vpack.c.b16 %v192, %v191
  %v223 = vpack.c.b16 %v194, %v193
  %v224 = vpack.c.b16 %v196, %v195
  %v225 = vpack.c.b16 %v198, %v197
  %v226 = vpack.c.b16 %v200, %v199
  %v227 = vpack.c.b16 %v202, %v201
  %vm253 = vcmask 130048
  %v255 = vsel %vm253, %v99, 0
  %257 = vmatprep.subr.bf16.mxu0 0
  %258 = vmatpush1.bf16.msra.mxu0 %v203
  %259 = vmatprep.subr.bf16.mxu0 0
  %260 = vmatpush1.bf16.msra.mxu0 %v204
  %261 = vmatprep.subr.bf16.mxu0 0
  %262 = vmatpush1.bf16.msra.mxu0 %v205
  %263 = vmatprep.subr.bf16.mxu0 0
  %264 = vmatpush1.bf16.msra.mxu0 %v206
  %265 = vmatprep.subr.bf16.mxu0 0
  %266 = vmatpush1.bf16.msra.mxu0 %v207
  %267 = vmatprep.subr.bf16.mxu0 0
  %268 = vmatpush1.bf16.msra.mxu0 %v208
  %269 = vmatprep.subr.bf16.mxu0 0
  %270 = vmatpush1.bf16.msra.mxu0 %v209
  %271 = vmatprep.subr.bf16.mxu0 0
  %272 = vmatpush1.bf16.msra.mxu0 %v210
  %273 = vmatprep.subr.bf16.mxu0 0
  %274 = vmatpush1.bf16.msra.mxu0 %v211
  %275 = vmatprep.subr.bf16.mxu0 0
  %276 = vmatpush1.bf16.msra.mxu0 %v212
  %277 = vmatprep.subr.bf16.mxu0 0
  %278 = vmatpush1.bf16.msra.mxu0 %v213
  %279 = vmatprep.subr.bf16.mxu0 0
  %280 = vmatpush1.bf16.msra.mxu0 %v214
  %281 = vmatprep.subr.bf16.mxu0 0
  %282 = vmatpush1.bf16.msra.mxu0 %v215
  %283 = vmatprep.subr.bf16.mxu0 0
  %284 = vmatpush1.bf16.msra.mxu0 %v216
  %285 = vmatprep.subr.bf16.mxu0 0
  %286 = vmatpush1.bf16.msra.mxu0 %v217
  %287 = vmatprep.subr.bf16.mxu0 0
  %288 = vmatpush1.bf16.msra.mxu0 %v218
  %289 = vmatprep.mubr.bf16.mxu0 %v97
  %290 = vmatmul.mubr.bf16.gmra.mrb[0].mxu0 %v96
  %v291 = vpop.f32.mrb[0].mxu0
  %v292 = vadd.f32 %v77, %v291
  %v293 = vpop.f32.mrb[0].mxu0
  %v294 = vpop.f32.mrb[0].mxu0
  %v295 = vadd.f32 %v82, %v294
  %v296 = vpop.f32.mrb[0].mxu0
  %297 = vdwg.mxu0
  %298 = vmatprep.subr.bf16.mxu0 0
  %299 = vmatpush1.bf16.msra.mxu0 %v219
  %300 = vmatprep.subr.bf16.mxu0 0
  %301 = vmatpush1.bf16.msra.mxu0 %v220
  %302 = vmatprep.subr.bf16.mxu0 0
  %303 = vmatpush1.bf16.msra.mxu0 %v221
  %304 = vmatprep.subr.bf16.mxu0 0
  %305 = vmatpush1.bf16.msra.mxu0 %v222
  %306 = vmatprep.subr.bf16.mxu0 0
  %307 = vmatpush1.bf16.msra.mxu0 %v223
  %308 = vmatprep.subr.bf16.mxu0 0
  %309 = vmatpush1.bf16.msra.mxu0 %v224
  %310 = vmatprep.subr.bf16.mxu0 0
  %311 = vmatpush1.bf16.msra.mxu0 %v225
  %312 = vmatprep.subr.bf16.mxu0 0
  %313 = vmatpush1.bf16.msra.mxu0 %v226
  %314 = vmatprep.subr.bf16.mxu0 0
  %315 = vmatpush1.bf16.msra.mxu0 %v227
  %316 = vmatprep.subr.bf16.mxu0 0
  %317 = vmatpush1.bf16.msra.mxu0 0
  %318 = vmatprep.subr.bf16.mxu0 0
  %319 = vmatpush1.bf16.msra.mxu0 0
  %320 = vmatprep.subr.bf16.mxu0 0
  %321 = vmatpush1.bf16.msra.mxu0 0
  %322 = vmatprep.subr.bf16.mxu0 0
  %323 = vmatpush1.bf16.msra.mxu0 0
  %324 = vmatprep.subr.bf16.mxu0 0
  %325 = vmatpush1.bf16.msra.mxu0 0
  %326 = vmatprep.subr.bf16.mxu0 0
  %327 = vmatpush1.bf16.msra.mxu0 0
  %328 = vmatprep.subr.bf16.mxu0 0
  %329 = vmatpush1.bf16.msra.mxu0 0
  %330 = vmatprep.mubr.bf16.mxu0 %v255
  %331 = vmatmul.mubr.bf16.gmra.mrb[0].mxu0 %v98
  %v332 = vpop.f32.mrb[0].mxu0
  %v333 = vadd.f32 %v292, %v332
  %v334 = vpop.f32.mrb[0].mxu0
  %v335 = vpop.f32.mrb[0].mxu0
  %v336 = vadd.f32 %v295, %v335
  %v337 = vpop.f32.mrb[0].mxu0
  %338 = vdwg.mxu0
  %v339 = vld [vmem:[%s3] sm:$0xf]
  %v340 = vld [vmem:[%s3 + $0x4] sm:$0xf]
  %v341 = vunpack.c.l.bf16 %v339
  %v342 = vunpack.c.l.bf16 %v340
  %v343 = vadd.f32 %v333, %v341
  %v344 = vadd.f32 %v336, %v342
  %v345 = vmax.f32 %v343, 0.0
  %v346 = vmax.f32 %v344, 0.0
  %v347 = vpack.c.bf16 %v346, %v345
  %v349 = vunpack.c.l.b16 %v347
  %v350 = vunpack.c.h.b16 %v347
  %v351 = vpack.c.b16 %v349, %v349
  %v352 = vpack.c.b16 %v350, %v350
  %vm355 = vcmask 257024
  %356 = vst.msk [vmem:[%s4] sm:$0xf] %vm355, %v351
  %357 = vst.msk [vmem:[%s4 + $0x4] sm:$0xf] %vm355, %v352
  // Predicated region
  $region18: #{uvdocnet_forward.51} parent=0 // pred_check
    _
  $region19: #{uvdocnet_forward.51} parent=0 // pred_check_branch
    %359 = sbr.rel (0) target = $region21
  $region20: #{uvdocnet_forward.51} parent=0 // pred_region
    _
  $region21: #{uvdocnet_forward.51} parent=0 // pred_fallthru
    _
  // Predicated region
  $region22: #{uvdocnet_forward.51} parent=0 // pred_check
    _
  $region23: #{uvdocnet_forward.51} parent=0 // pred_check_branch
    %361 = sbr.rel (0) target = $region25
  $region24: #{uvdocnet_forward.51} parent=0 // pred_region
    _
  $region25: #{uvdocnet_forward.51} parent=0 // pred_fallthru
    _

// kernel: uvdocnet_forward.62
$region0: #{uvdocnet_forward.62}
  #allocation0 [shape = 'u32[]', space=smem, size = 0x4, offset = 0x4, fixed_abs, tag = 'smem constant byte address 0x4 - core index']
  #allocation1 [shape = 'u32[144,128]{1,0:T(1,128)}', space=vmem, size = 0x12000, scoped, tag = 'internal scratch']
  %s0 = inlined_call_operand.vmem [shape: bf16[6,144,32], index: 0, kind: input, shape index: {}]
  %s1 = inlined_call_operand.vmem [shape: bf16[6,16,144], index: 1, kind: input, shape index: {}]
  %s2 = inlined_call_operand.vmem [shape: f32[6,16,1], index: 2, kind: input, shape index: {}]
  %s3 = inlined_call_operand.vmem [shape: bf16[6,16,32], index: 3, kind: output, shape index: {}]
  %s4 = sld [smem:[#allocation0]]
  $region45: #{uvdocnet_forward.62} parent=0
    _
  %s6 = ssub.s32 1, %s4
  %s7 = scalar_select 0, %s6, %s4
  loop: start=0, step=1, limit=8
  $region2: #{uvdocnet_forward.62} parent=0 // loop_pre_header
    _
  $region3: #{uvdocnet_forward.62} parent=0 // loop_header
    %s9 = sphi 0, %s13
    %p10 = scmp.ge.s32.totalorder %s9, 8
    %s19 = sphi 0, %s21
    %s22 = sphi 0, %s19
    %s23 = sphi 0, %s22
    %s39 = sphi 0, %s23
    %s45 = sphi 0, %s47
    %s48 = sphi 0, %s45
    %s49 = sphi 0, %s48
    %s65 = sphi 0, %s49
    %s71 = sphi 0, %s73
    %s74 = sphi 0, %s71
    %s75 = sphi 0, %s74
    %s91 = sphi 0, %s75
    %s97 = sphi 0, %s99
    %s100 = sphi 0, %s97
    %s101 = sphi 0, %s100
    %s117 = sphi 0, %s101
  $region4: #{uvdocnet_forward.62} parent=0 // loop_header_branch
    %12 = sbr.rel (%p10) target = $region8
  $region5: #{uvdocnet_forward.62} parent=0 // loop_body
    %s14 = ssub.s32 %s9, 1
    %s15 = ssub.s32 %s9, 2
    %s16 = sadd.s32 %s9, 1
    %s17 = ssub.s32 %s9, %s16
    %p18 = scmp.eq.s32.totalorder %s17, 0
    %s20 = sadd.s32 %s19, 1
    %s21 = scalar_select %p18, %s19, %s20
    %p24 = pneg %p18
    %p25 = scmp.eq.s32.totalorder %s9, 5
    %p26 = por %p24, %p25
    %p27 = scmp.ne.s32.totalorder %s19, %s22
    %p28 = scmp.eq.s32.totalorder %s9, 0
    %p29 = por %p27, %p28
    %p30 = scmp.ne.s32.totalorder %s19, %s22
    %p31 = scmp.eq.s32.totalorder %s14, 5
    %p32 = por %p30, %p31
    %p33 = scmp.ne.s32.totalorder %s22, %s23
    %p34 = scmp.eq.s32.totalorder %s14, 0
    %p35 = por %p33, %p34
    %p36 = scmp.ne.s32.totalorder %s22, %s23
    %p37 = scmp.eq.s32.totalorder %s15, 5
    %p38 = por %p36, %p37
    %p40 = scmp.ne.s32.totalorder %s23, %s39
    %p41 = scmp.eq.s32.totalorder %s15, 0
    %p42 = por %p40, %p41
    %s43 = ssub.s32 %s9, %s16
    %p44 = scmp.eq.s32.totalorder %s43, 0
    %s46 = sadd.s32 %s45, 1
    %s47 = scalar_select %p44, %s45, %s46
    %p50 = pneg %p44
    %p51 = scmp.eq.s32.totalorder %s9, 5
    %p52 = por %p50, %p51
    %p53 = scmp.ne.s32.totalorder %s45, %s48
    %p54 = scmp.eq.s32.totalorder %s9, 0
    %p55 = por %p53, %p54
    %p56 = scmp.ne.s32.totalorder %s45, %s48
    %p57 = scmp.eq.s32.totalorder %s14, 5
    %p58 = por %p56, %p57
    %p59 = scmp.ne.s32.totalorder %s48, %s49
    %p60 = scmp.eq.s32.totalorder %s14, 0
    %p61 = por %p59, %p60
    %p62 = scmp.ne.s32.totalorder %s48, %s49
    %p63 = scmp.eq.s32.totalorder %s15, 5
    %p64 = por %p62, %p63
    %p66 = scmp.ne.s32.totalorder %s49, %s65
    %p67 = scmp.eq.s32.totalorder %s15, 0
    %p68 = por %p66, %p67
    %s69 = ssub.s32 %s9, %s16
    %p70 = scmp.eq.s32.totalorder %s69, 0
    %s72 = sadd.s32 %s71, 1
    %s73 = scalar_select %p70, %s71, %s72
    %p76 = pneg %p70
    %p77 = scmp.eq.s32.totalorder %s9, 5
    %p78 = por %p76, %p77
    %p79 = scmp.ne.s32.totalorder %s71, %s74
    %p80 = scmp.eq.s32.totalorder %s9, 0
    %p81 = por %p79, %p80
    %p82 = scmp.ne.s32.totalorder %s71, %s74
    %p83 = scmp.eq.s32.totalorder %s14, 5
    %p84 = por %p82, %p83
    %p85 = scmp.ne.s32.totalorder %s74, %s75
    %p86 = scmp.eq.s32.totalorder %s14, 0
    %p87 = por %p85, %p86
    %p88 = scmp.ne.s32.totalorder %s74, %s75
    %p89 = scmp.eq.s32.totalorder %s15, 5
    %p90 = por %p88, %p89
    %p92 = scmp.ne.s32.totalorder %s75, %s91
    %p93 = scmp.eq.s32.totalorder %s15, 0
    %p94 = por %p92, %p93
    %s95 = ssub.s32 %s9, %s16
    %p96 = scmp.eq.s32.totalorder %s95, 0
    %s98 = sadd.s32 %s97, 1
    %s99 = scalar_select %p96, %s97, %s98
    %p102 = pneg %p96
    %p103 = scmp.eq.s32.totalorder %s9, 5
    %p104 = por %p102, %p103
    %p105 = scmp.ne.s32.totalorder %s97, %s100
    %p106 = scmp.eq.s32.totalorder %s9, 0
    %p107 = por %p105, %p106
    %p108 = scmp.ne.s32.totalorder %s97, %s100
    %p109 = scmp.eq.s32.totalorder %s14, 5
    %p110 = por %p108, %p109
    %p111 = scmp.ne.s32.totalorder %s100, %s101
    %p112 = scmp.eq.s32.totalorder %s14, 0
    %p113 = por %p111, %p112
    %p114 = scmp.ne.s32.totalorder %s100, %s101
    %p115 = scmp.eq.s32.totalorder %s15, 5
    %p116 = por %p114, %p115
    %p118 = scmp.ne.s32.totalorder %s101, %s117
    %p119 = scmp.eq.s32.totalorder %s15, 0
    %p120 = por %p118, %p119
    %p121 = scmp.le.s32.totalorder 1, %s9
    %p122 = scmp.lt.s32.totalorder %s9, 7
    %p123 = pnand %p121, %p122
    %p124 = pneg %p123
    // Predicated region
    $region9: #{uvdocnet_forward.62} parent=5 // pred_check
      _
    $region10: #{uvdocnet_forward.62} parent=5 // pred_check_branch
      %126 = sbr.rel (%p123) target = $region12
    $region11: #{uvdocnet_forward.62} parent=5 // pred_region
      %s127 = ssub.s32 %s9, 1
    $region12: #{uvdocnet_forward.62} parent=5 // pred_fallthru
      _
    %p128 = scmp.lt.s32.totalorder %s9, 6
    // Predicated region
    $region13: #{uvdocnet_forward.62} parent=5 // pred_check
      %p129 = pneg %p128
    $region14: #{uvdocnet_forward.62} parent=5 // pred_check_branch
      %131 = sbr.rel (%p129) target = $region16
    $region15: #{uvdocnet_forward.62} parent=5 // pred_region
      // Predicated region
      $region17: #{uvdocnet_forward.62} parent=15 // pred_check
        %p132 = pneg %p29
      $region18: #{uvdocnet_forward.62} parent=15 // pred_check_branch
        %134 = sbr.rel (%p132) target = $region20
      $region19: #{uvdocnet_forward.62} parent=15 // pred_region
        %p135 = scmp.lt.s32.totalorder %s9, 5
        %s136 = scalar_select %p135, %s9, 5
        %s137 = smul.addr %s136, 18
        %s138 = smul.addr %s137, 4
        %s139 = scalar_lea.vmem %s0, %s138
      $region20: #{uvdocnet_forward.62} parent=15 // pred_fallthru
        _
      // Predicated region
      $region21: #{uvdocnet_forward.62} parent=15 // pred_check
        %p140 = pneg %p55
      $region22: #{uvdocnet_forward.62} parent=15 // pred_check_branch
        %142 = sbr.rel (%p140) target = $region24
      $region23: #{uvdocnet_forward.62} parent=15 // pred_region
        %p143 = scmp.lt.s32.totalorder %s9, 5
        %s144 = scalar_select %p143, %s9, 5
        %s145 = smul.addr %s144, 4
        %s146 = smul.addr %s145, 4
        %s147 = scalar_lea.vmem %s1, %s146
      $region24: #{uvdocnet_forward.62} parent=15 // pred_fallthru
        _
      // Predicated region
      $region25: #{uvdocnet_forward.62} parent=15 // pred_check
        %p148 = pneg %p81
      $region26: #{uvdocnet_forward.62} parent=15 // pred_check_branch
        %150 = sbr.rel (%p148) target = $region28
      $region27: #{uvdocnet_forward.62} parent=15 // pred_region
        %p151 = scmp.lt.s32.totalorder %s9, 5
        %s152 = scalar_select %p151, %s9, 5
        %s153 = smul.addr %s152, 2
        %s154 = smul.addr %s153, 8
        %s155 = scalar_lea.vmem %s2, %s154
      $region28: #{uvdocnet_forward.62} parent=15 // pred_fallthru
        _
    $region16: #{uvdocnet_forward.62} parent=5 // pred_fallthru
      _
    %p156 = scmp.le.s32.totalorder 1, %s9
    %p157 = scmp.lt.s32.totalorder %s9, 7
    %p158 = pnand %p156, %p157
    %p159 = pneg %p158
    // Predicated region
    $region29: #{uvdocnet_forward.62} parent=5 // pred_check
      _
    $region30: #{uvdocnet_forward.62} parent=5 // pred_check_branch
      %161 = sbr.rel (%p158) target = $region32
    $region31: #{uvdocnet_forward.62} parent=5 // pred_region
      %s162 = ssub.s32 %s9, 1
      %p163 = scmp.lt.s32.totalorder %s14, 5
      %s164 = scalar_select %p163, %s14, 5
      %s165 = smul.addr %s164, 18
      %s166 = smul.addr %s165, 4
      %s167 = scalar_lea.vmem %s0, %s166
      %p168 = pneg %p35
      %p169 = pneg %p32
      %p170 = scmp.lt.s32.totalorder %s14, 5
      %s171 = scalar_select %p170, %s14, 5
      %s172 = smul.addr %s171, 4
      %s173 = smul.addr %s172, 4
      %s174 = scalar_lea.vmem %s1, %s173
      %p175 = pneg %p61
      %p176 = pneg %p58
      %p177 = scmp.lt.s32.totalorder %s14, 5
      %s178 = scalar_select %p177, %s14, 5
      %s179 = smul.addr %s178, 2
      %s180 = smul.addr %s179, 8
      %s181 = scalar_lea.vmem %s2, %s180
      %p182 = pneg %p87
      %p183 = pneg %p84
      %p184 = pneg %p113
      %p185 = pneg %p110
      %p186 = scmp.lt.s32.totalorder %s14, 5
      %s187 = scalar_select %p186, %s14, 5
      %s188 = smul.addr %s187, 2
      %s189 = smul.addr %s188, 4
      %s190 = scalar_lea.vmem %s3, %s189
      %p191 = scmp.lt.s32.totalorder %s14, 5
      %s192 = scalar_select %p191, %s14, 5
      %s193 = smul.addr %s192, 18
      %s194 = smul.addr %s193, 4
      %s195 = scalar_lea.vmem %s0, %s194
      %p196 = scmp.lt.s32.totalorder %s14, 5
      %s197 = scalar_select %p196, %s14, 5
      %s198 = smul.addr %s197, 4
      %s199 = smul.addr %s198, 4
      %s200 = scalar_lea.vmem %s1, %s199
      %p201 = scmp.lt.s32.totalorder %s14, 5
      %s202 = scalar_select %p201, %s14, 5
      %s203 = smul.addr %s202, 2
      %s204 = smul.addr %s203, 8
      %s205 = scalar_lea.vmem %s2, %s204
      %p206 = scmp.lt.s32.totalorder %s14, 5
      %s207 = scalar_select %p206, %s14, 5
      %s208 = smul.addr %s207, 2
      %s209 = smul.addr %s208, 4
      %s210 = scalar_lea.vmem %s3, %s209
      %v212 = vld [vmem:[%s200] sm:$0xff]
      %v213 = vld [vmem:[%s200 + $0x8] sm:$0xff]
      %v214 = vld [vmem:[%s195] sm:$0xf]
      %v215 = vld [vmem:[%s195 + $0x4] sm:$0xf]
      %v216 = vld [vmem:[%s195 + $0x8] sm:$0xf]
      %v217 = vld [vmem:[%s195 + $0xc] sm:$0xf]
      %v218 = vld [vmem:[%s195 + $0x10] sm:$0xf]
      %v219 = vld [vmem:[%s195 + $0x14] sm:$0xf]
      %v220 = vld [vmem:[%s195 + $0x18] sm:$0xf]
      %v221 = vld [vmem:[%s195 + $0x1c] sm:$0xf]
      %v222 = vld [vmem:[%s195 + $0x20] sm:$0xf]
      %v223 = vld [vmem:[%s195 + $0x24] sm:$0xf]
      %v224 = vld [vmem:[%s195 + $0x28] sm:$0xf]
      %v225 = vld [vmem:[%s195 + $0x2c] sm:$0xf]
      %v226 = vld [vmem:[%s195 + $0x30] sm:$0xf]
      %v227 = vld [vmem:[%s195 + $0x34] sm:$0xf]
      %v228 = vld [vmem:[%s195 + $0x38] sm:$0xf]
      %v229 = vld [vmem:[%s195 + $0x3c] sm:$0xf]
      %v230 = vld [vmem:[%s195 + $0x40] sm:$0xf]
      %v231 = vld [vmem:[%s195 + $0x44] sm:$0xf]
      %v232 = vld [vmem:[%s205] sm:$0xff]
      %v233 = vld [vmem:[%s205 + $0x8] sm:$0xff]
      %235 = vset.pattern.permute.xlu0 0
      %236 = vperm.xlu0 %235, %v232
      %v237 = vpop.permute.xlu0 %236
      %240 = vset.pattern.permute.xlu0 0
      %241 = vperm.xlu0 %240, %v233
      %v242 = vpop.permute.xlu0 %241
      %v246 = vunpack.c.l.b16 %v212
      %v247 = vunpack.c.h.b16 %v212
      %v248 = vunpack.c.l.b16 %v213
      %v249 = vunpack.c.h.b16 %v213
      %v250 = vpack.c.b16 %v248, %v246
      %v251 = vpack.c.b16 %v249, %v247
      %v271 = vunpack.c.l.b16 %v214
      %v272 = vunpack.c.l.b16 %v215
      %v273 = vunpack.c.l.b16 %v216
      %v274 = vunpack.c.l.b16 %v217
      %v275 = vunpack.c.l.b16 %v218
      %v276 = vunpack.c.l.b16 %v219
      %v277 = vunpack.c.l.b16 %v220
      %v278 = vunpack.c.l.b16 %v221
      %v279 = vunpack.c.l.b16 %v222
      %v280 = vunpack.c.l.b16 %v223
      %v281 = vunpack.c.l.b16 %v224
      %v282 = vunpack.c.l.b16 %v225
      %v283 = vunpack.c.l.b16 %v226
      %v284 = vunpack.c.l.b16 %v227
      %v285 = vunpack.c.l.b16 %v228
      %v286 = vunpack.c.l.b16 %v229
      %v287 = vunpack.c.l.b16 %v230
      %v288 = vunpack.c.l.b16 %v231
      %v289 = vpack.c.b16 %v272, %v271
      %v290 = vpack.c.b16 %v274, %v273
      %v291 = vpack.c.b16 %v276, %v275
      %v292 = vpack.c.b16 %v278, %v277
      %v293 = vpack.c.b16 %v280, %v279
      %v294 = vpack.c.b16 %v282, %v281
      %v295 = vpack.c.b16 %v284, %v283
      %v296 = vpack.c.b16 %v286, %v285
      %v297 = vpack.c.b16 %v288, %v287
      %vm307 = vcmask 130048
      %v309 = vsel %vm307, %v251, 0
      %311 = vmatprep.subr.bf16.mxu0 0
      %312 = vmatpush1.bf16.msra.mxu0 %v289
      %313 = vmatprep.subr.bf16.mxu0 0
      %314 = vmatpush1.bf16.msra.mxu0 %v290
      %315 = vmatprep.subr.bf16.mxu0 0
      %316 = vmatpush1.bf16.msra.mxu0 %v291
      %317 = vmatprep.subr.bf16.mxu0 0
      %318 = vmatpush1.bf16.msra.mxu0 %v292
      %319 = vmatprep.subr.bf16.mxu0 0
      %320 = vmatpush1.bf16.msra.mxu0 %v293
      %321 = vmatprep.subr.bf16.mxu0 0
      %322 = vmatpush1.bf16.msra.mxu0 %v294
      %323 = vmatprep.subr.bf16.mxu0 0
      %324 = vmatpush1.bf16.msra.mxu0 %v295
      %325 = vmatprep.subr.bf16.mxu0 0
      %326 = vmatpush1.bf16.msra.mxu0 %v296
      %327 = vmatprep.subr.bf16.mxu0 0
      %328 = vmatpush1.bf16.msra.mxu0 %v297
      %329 = vmatprep.subr.bf16.mxu0 0
      %330 = vmatpush1.bf16.msra.mxu0 0
      %331 = vmatprep.subr.bf16.mxu0 0
      %332 = vmatpush1.bf16.msra.mxu0 0
      %333 = vmatprep.subr.bf16.mxu0 0
      %334 = vmatpush1.bf16.msra.mxu0 0
      %335 = vmatprep.subr.bf16.mxu0 0
      %336 = vmatpush1.bf16.msra.mxu0 0
      %337 = vmatprep.subr.bf16.mxu0 0
      %338 = vmatpush1.bf16.msra.mxu0 0
      %339 = vmatprep.subr.bf16.mxu0 0
      %340 = vmatpush1.bf16.msra.mxu0 0
      %341 = vmatprep.subr.bf16.mxu0 0
      %342 = vmatpush1.bf16.msra.mxu0 0
      %343 = vmatprep.mubr.bf16.mxu0 %v309
      %344 = vmatmul.mubr.bf16.gmra.mrb[0].mxu0 %v250
      %v345 = vpop.f32.mrb[0].mxu0
      %v346 = vadd.f32 %v237, %v345
      %v347 = vpop.f32.mrb[0].mxu0
      %v348 = vpop.f32.mrb[0].mxu0
      %v349 = vadd.f32 %v242, %v348
      %v350 = vpop.f32.mrb[0].mxu0
      %351 = vdwg.mxu0
      %v352 = vmax.f32 %v346, 0.0
      %v353 = vmax.f32 %v349, 0.0
      %v354 = vpack.c.bf16 %v353, %v352
      %v356 = vunpack.c.l.b16 %v354
      %v357 = vunpack.c.h.b16 %v354
      %v358 = vpack.c.b16 %v356, %v356
      %v359 = vpack.c.b16 %v357, %v357
      %vm362 = vcmask 257024
      %363 = vst.msk [vmem:[%s210] sm:$0xf] %vm362, %v358
      %364 = vst.msk [vmem:[%s210 + $0x4] sm:$0xf] %vm362, %v359
      %p365 = scmp.lt.s32.totalorder %s14, 5
      %s366 = scalar_select %p365, %s14, 5
      %s367 = smul.addr %s366, 2
      %s368 = smul.addr %s367, 4
      %s369 = scalar_lea.vmem %s3, %s368
      // Predicated region
      $region33: #{uvdocnet_forward.62} parent=31 // pred_check
        %p370 = pneg %p110
      $region34: #{uvdocnet_forward.62} parent=31 // pred_check_branch
        %372 = sbr.rel (%p370) target = $region36
      $region35: #{uvdocnet_forward.62} parent=31 // pred_region
        _
      $region36: #{uvdocnet_forward.62} parent=31 // pred_fallthru
        _
    $region32: #{uvdocnet_forward.62} parent=5 // pred_fallthru
      _
    %p373 = scmp.le.s32.totalorder 2, %s9
    // Predicated region
    $region37: #{uvdocnet_forward.62} parent=5 // pred_check
      %p374 = pneg %p373
    $region38: #{uvdocnet_forward.62} parent=5 // pred_check_branch
      %376 = sbr.rel (%p374) target = $region40
    $region39: #{uvdocnet_forward.62} parent=5 // pred_region
      %s377 = ssub.s32 %s9, 2
      // Predicated region
      $region41: #{uvdocnet_forward.62} parent=39 // pred_check
        %p378 = pneg %p116
      $region42: #{uvdocnet_forward.62} parent=39 // pred_check_branch
        %380 = sbr.rel (%p378) target = $region44
      $region43: #{uvdocnet_forward.62} parent=39 // pred_region
        %p381 = scmp.lt.s32.totalorder %s15, 5
        %s382 = scalar_select %p381, %s15, 5
        %s383 = smul.addr %s382, 2
        %s384 = smul.addr %s383, 4
        %s385 = scalar_lea.vmem %s3, %s384
      $region44: #{uvdocnet_forward.62} parent=39 // pred_fallthru
        _
    $region40: #{uvdocnet_forward.62} parent=5 // pred_fallthru
      _
  $region6: #{uvdocnet_forward.62} parent=0 // loop_footer
    %s13 = sadd.s32 1, %s9
  $region7: #{uvdocnet_forward.62} parent=0 // loop_footer_branch
    %8 = sbr.rel target = $region3
  $region8: #{uvdocnet_forward.62} parent=0 // loop_exit
    _

// kernel: uvdocnet_forward.52
$region0: #{uvdocnet_forward.52}
  #allocation0 [shape = 'u32[]', space=smem, size = 0x4, offset = 0x4, fixed_abs, tag = 'smem constant byte address 0x4 - core index']
  #allocation1 [shape = 'u32[144,128]{1,0:T(1,128)}', space=vmem, size = 0x12000, scoped, tag = 'internal scratch']
  %s0 = inlined_call_operand.vmem [shape: bf16[1,400,32], index: 0, kind: input, shape index: {}]
  %s1 = inlined_call_operand.vmem [shape: bf16[1,16,400], index: 1, kind: input, shape index: {}]
  %s2 = inlined_call_operand.vmem [shape: f32[1,16,1], index: 2, kind: input, shape index: {}]
  %s3 = inlined_call_operand.vmem [shape: bf16[1,16,32], index: 3, kind: output, shape index: {}]
  %s4 = sld [smem:[#allocation0]]
  $region22: #{uvdocnet_forward.52} parent=0
    _
  %s6 = ssub.s32 1, %s4
  %s7 = scalar_select 0, %s6, %s4
  // Predicated region
  $region2: #{uvdocnet_forward.52} parent=0 // pred_check
    _
  $region3: #{uvdocnet_forward.52} parent=0 // pred_check_branch
    %9 = sbr.rel (0) target = $region5
  $region4: #{uvdocnet_forward.52} parent=0 // pred_region
    _
  $region5: #{uvdocnet_forward.52} parent=0 // pred_fallthru
    _
  // Predicated region
  $region6: #{uvdocnet_forward.52} parent=0 // pred_check
    _
  $region7: #{uvdocnet_forward.52} parent=0 // pred_check_branch
    %11 = sbr.rel (0) target = $region9
  $region8: #{uvdocnet_forward.52} parent=0 // pred_region
    _
  $region9: #{uvdocnet_forward.52} parent=0 // pred_fallthru
    _
  // Predicated region
  $region10: #{uvdocnet_forward.52} parent=0 // pred_check
    _
  $region11: #{uvdocnet_forward.52} parent=0 // pred_check_branch
    %13 = sbr.rel (0) target = $region13
  $region12: #{uvdocnet_forward.52} parent=0 // pred_region
    _
  $region13: #{uvdocnet_forward.52} parent=0 // pred_fallthru
    _
  %v15 = vld [vmem:[%s1] sm:$0xff]
  %v16 = vld [vmem:[%s1 + $0x8] sm:$0xff]
  %v17 = vld [vmem:[%s1 + $0x10] sm:$0xff]
  %v18 = vld [vmem:[%s1 + $0x18] sm:$0xff]
  %v19 = vld [vmem:[%s0] sm:$0xf]
  %v20 = vld [vmem:[%s0 + $0x4] sm:$0xf]
  %v21 = vld [vmem:[%s0 + $0x8] sm:$0xf]
  %v22 = vld [vmem:[%s0 + $0xc] sm:$0xf]
  %v23 = vld [vmem:[%s0 + $0x10] sm:$0xf]
  %v24 = vld [vmem:[%s0 + $0x14] sm:$0xf]
  %v25 = vld [vmem:[%s0 + $0x18] sm:$0xf]
  %v26 = vld [vmem:[%s0 + $0x1c] sm:$0xf]
  %v27 = vld [vmem:[%s0 + $0x20] sm:$0xf]
  %v28 = vld [vmem:[%s0 + $0x24] sm:$0xf]
  %v29 = vld [vmem:[%s0 + $0x28] sm:$0xf]
  %v30 = vld [vmem:[%s0 + $0x2c] sm:$0xf]
  %v31 = vld [vmem:[%s0 + $0x30] sm:$0xf]
  %v32 = vld [vmem:[%s0 + $0x34] sm:$0xf]
  %v33 = vld [vmem:[%s0 + $0x38] sm:$0xf]
  %v34 = vld [vmem:[%s0 + $0x3c] sm:$0xf]
  %v35 = vld [vmem:[%s0 + $0x40] sm:$0xf]
  %v36 = vld [vmem:[%s0 + $0x44] sm:$0xf]
  %v37 = vld [vmem:[%s0 + $0x48] sm:$0xf]
  %v38 = vld [vmem:[%s0 + $0x4c] sm:$0xf]
  %v39 = vld [vmem:[%s0 + $0x50] sm:$0xf]
  %v40 = vld [vmem:[%s0 + $0x54] sm:$0xf]
  %v41 = vld [vmem:[%s0 + $0x58] sm:$0xf]
  %v42 = vld [vmem:[%s0 + $0x5c] sm:$0xf]
  %v43 = vld [vmem:[%s0 + $0x60] sm:$0xf]
  %v44 = vld [vmem:[%s0 + $0x64] sm:$0xf]
  %v45 = vld [vmem:[%s0 + $0x68] sm:$0xf]
  %v46 = vld [vmem:[%s0 + $0x6c] sm:$0xf]
  %v47 = vld [vmem:[%s0 + $0x70] sm:$0xf]
  %v48 = vld [vmem:[%s0 + $0x74] sm:$0xf]
  %v49 = vld [vmem:[%s0 + $0x78] sm:$0xf]
  %v50 = vld [vmem:[%s0 + $0x7c] sm:$0xf]
  %v51 = vld [vmem:[%s0 + $0x80] sm:$0xf]
  %v52 = vld [vmem:[%s0 + $0x84] sm:$0xf]
  %v53 = vld [vmem:[%s0 + $0x88] sm:$0xf]
  %v54 = vld [vmem:[%s0 + $0x8c] sm:$0xf]
  %v55 = vld [vmem:[%s0 + $0x90] sm:$0xf]
  %v56 = vld [vmem:[%s0 + $0x94] sm:$0xf]
  %v57 = vld [vmem:[%s0 + $0x98] sm:$0xf]
  %v58 = vld [vmem:[%s0 + $0x9c] sm:$0xf]
  %v59 = vld [vmem:[%s0 + $0xa0] sm:$0xf]
  %v60 = vld [vmem:[%s0 + $0xa4] sm:$0xf]
  %v61 = vld [vmem:[%s0 + $0xa8] sm:$0xf]
  %v62 = vld [vmem:[%s0 + $0xac] sm:$0xf]
  %v63 = vld [vmem:[%s0 + $0xb0] sm:$0xf]
  %v64 = vld [vmem:[%s0 + $0xb4] sm:$0xf]
  %v65 = vld [vmem:[%s0 + $0xb8] sm:$0xf]
  %v66 = vld [vmem:[%s0 + $0xbc] sm:$0xf]
  %v67 = vld [vmem:[%s0 + $0xc0] sm:$0xf]
  %v68 = vld [vmem:[%s0 + $0xc4] sm:$0xf]
  %v69 = vld [vmem:[%s2] sm:$0xff]
  %v70 = vld [vmem:[%s2 + $0x8] sm:$0xff]
  %72 = vset.pattern.permute.xlu0 0
  %73 = vperm.xlu0 %72, %v69
  %v74 = vpop.permute.xlu0 %73
  %77 = vset.pattern.permute.xlu0 0
  %78 = vperm.xlu0 %77, %v70
  %v79 = vpop.permute.xlu0 %78
  %v85 = vunpack.c.l.b16 %v15
  %v86 = vunpack.c.h.b16 %v15
  %v87 = vunpack.c.l.b16 %v16
  %v88 = vunpack.c.h.b16 %v16
  %v89 = vunpack.c.l.b16 %v17
  %v90 = vunpack.c.h.b16 %v17
  %v91 = vunpack.c.l.b16 %v18
  %v92 = vunpack.c.h.b16 %v18
  %v93 = vpack.c.b16 %v89, %v85
  %v94 = vpack.c.b16 %v90, %v86
  %v95 = vpack.c.b16 %v91, %v87
  %v96 = vpack.c.b16 %v92, %v88
  %v150 = vunpack.c.l.b16 %v19
  %v151 = vunpack.c.l.b16 %v20
  %v152 = vunpack.c.l.b16 %v21
  %v153 = vunpack.c.l.b16 %v22
  %v154 = vunpack.c.l.b16 %v23
  %v155 = vunpack.c.l.b16 %v24
  %v156 = vunpack.c.l.b16 %v25
  %v157 = vunpack.c.l.b16 %v26
  %v158 = vunpack.c.l.b16 %v27
  %v159 = vunpack.c.l.b16 %v28
  %v160 = vunpack.c.l.b16 %v29
  %v161 = vunpack.c.l.b16 %v30
  %v162 = vunpack.c.l.b16 %v31
  %v163 = vunpack.c.l.b16 %v32
  %v164 = vunpack.c.l.b16 %v33
  %v165 = vunpack.c.l.b16 %v34
  %v166 = vunpack.c.l.b16 %v35
  %v167 = vunpack.c.l.b16 %v36
  %v168 = vunpack.c.l.b16 %v37
  %v169 = vunpack.c.l.b16 %v38
  %v170 = vunpack.c.l.b16 %v39
  %v171 = vunpack.c.l.b16 %v40
  %v172 = vunpack.c.l.b16 %v41
  %v173 = vunpack.c.l.b16 %v42
  %v174 = vunpack.c.l.b16 %v43
  %v175 = vunpack.c.l.b16 %v44
  %v176 = vunpack.c.l.b16 %v45
  %v177 = vunpack.c.l.b16 %v46
  %v178 = vunpack.c.l.b16 %v47
  %v179 = vunpack.c.l.b16 %v48
  %v180 = vunpack.c.l.b16 %v49
  %v181 = vunpack.c.l.b16 %v50
  %v182 = vunpack.c.l.b16 %v51
  %v183 = vunpack.c.l.b16 %v52
  %v184 = vunpack.c.l.b16 %v53
  %v185 = vunpack.c.l.b16 %v54
  %v186 = vunpack.c.l.b16 %v55
  %v187 = vunpack.c.l.b16 %v56
  %v188 = vunpack.c.l.b16 %v57
  %v189 = vunpack.c.l.b16 %v58
  %v190 = vunpack.c.l.b16 %v59
  %v191 = vunpack.c.l.b16 %v60
  %v192 = vunpack.c.l.b16 %v61
  %v193 = vunpack.c.l.b16 %v62
  %v194 = vunpack.c.l.b16 %v63
  %v195 = vunpack.c.l.b16 %v64
  %v196 = vunpack.c.l.b16 %v65
  %v197 = vunpack.c.l.b16 %v66
  %v198 = vunpack.c.l.b16 %v67
  %v199 = vunpack.c.l.b16 %v68
  %v200 = vpack.c.b16 %v151, %v150
  %v201 = vpack.c.b16 %v153, %v152
  %v202 = vpack.c.b16 %v155, %v154
  %v203 = vpack.c.b16 %v157, %v156
  %v204 = vpack.c.b16 %v159, %v158
  %v205 = vpack.c.b16 %v161, %v160
  %v206 = vpack.c.b16 %v163, %v162
  %v207 = vpack.c.b16 %v165, %v164
  %v208 = vpack.c.b16 %v167, %v166
  %v209 = vpack.c.b16 %v169, %v168
  %v210 = vpack.c.b16 %v171, %v170
  %v211 = vpack.c.b16 %v173, %v172
  %v212 = vpack.c.b16 %v175, %v174
  %v213 = vpack.c.b16 %v177, %v176
  %v214 = vpack.c.b16 %v179, %v178
  %v215 = vpack.c.b16 %v181, %v180
  %v216 = vpack.c.b16 %v183, %v182
  %v217 = vpack.c.b16 %v185, %v184
  %v218 = vpack.c.b16 %v187, %v186
  %v219 = vpack.c.b16 %v189, %v188
  %v220 = vpack.c.b16 %v191, %v190
  %v221 = vpack.c.b16 %v193, %v192
  %v222 = vpack.c.b16 %v195, %v194
  %v223 = vpack.c.b16 %v197, %v196
  %v224 = vpack.c.b16 %v199, %v198
  %vm250 = vcmask 130048
  %v252 = vsel %vm250, %v96, 0
  %254 = vmatprep.subr.bf16.mxu0 0
  %255 = vmatpush1.bf16.msra.mxu0 %v200
  %256 = vmatprep.subr.bf16.mxu0 0
  %257 = vmatpush1.bf16.msra.mxu0 %v201
  %258 = vmatprep.subr.bf16.mxu0 0
  %259 = vmatpush1.bf16.msra.mxu0 %v202
  %260 = vmatprep.subr.bf16.mxu0 0
  %261 = vmatpush1.bf16.msra.mxu0 %v203
  %262 = vmatprep.subr.bf16.mxu0 0
  %263 = vmatpush1.bf16.msra.mxu0 %v204
  %264 = vmatprep.subr.bf16.mxu0 0
  %265 = vmatpush1.bf16.msra.mxu0 %v205
  %266 = vmatprep.subr.bf16.mxu0 0
  %267 = vmatpush1.bf16.msra.mxu0 %v206
  %268 = vmatprep.subr.bf16.mxu0 0
  %269 = vmatpush1.bf16.msra.mxu0 %v207
  %270 = vmatprep.subr.bf16.mxu0 0
  %271 = vmatpush1.bf16.msra.mxu0 %v208
  %272 = vmatprep.subr.bf16.mxu0 0
  %273 = vmatpush1.bf16.msra.mxu0 %v209
  %274 = vmatprep.subr.bf16.mxu0 0
  %275 = vmatpush1.bf16.msra.mxu0 %v210
  %276 = vmatprep.subr.bf16.mxu0 0
  %277 = vmatpush1.bf16.msra.mxu0 %v211
  %278 = vmatprep.subr.bf16.mxu0 0
  %279 = vmatpush1.bf16.msra.mxu0 %v212
  %280 = vmatprep.subr.bf16.mxu0 0
  %281 = vmatpush1.bf16.msra.mxu0 %v213
  %282 = vmatprep.subr.bf16.mxu0 0
  %283 = vmatpush1.bf16.msra.mxu0 %v214
  %284 = vmatprep.subr.bf16.mxu0 0
  %285 = vmatpush1.bf16.msra.mxu0 %v215
  %286 = vmatprep.mubr.bf16.mxu0 %v94
  %287 = vmatmul.mubr.bf16.gmra.mrb[0].mxu0 %v93
  %v288 = vpop.f32.mrb[0].mxu0
  %v289 = vadd.f32 %v74, %v288
  %v290 = vpop.f32.mrb[0].mxu0
  %v291 = vpop.f32.mrb[0].mxu0
  %v292 = vadd.f32 %v79, %v291
  %v293 = vpop.f32.mrb[0].mxu0
  %294 = vdwg.mxu0
  %295 = vmatprep.subr.bf16.mxu0 0
  %296 = vmatpush1.bf16.msra.mxu0 %v216
  %297 = vmatprep.subr.bf16.mxu0 0
  %298 = vmatpush1.bf16.msra.mxu0 %v217
  %299 = vmatprep.subr.bf16.mxu0 0
  %300 = vmatpush1.bf16.msra.mxu0 %v218
  %301 = vmatprep.subr.bf16.mxu0 0
  %302 = vmatpush1.bf16.msra.mxu0 %v219
  %303 = vmatprep.subr.bf16.mxu0 0
  %304 = vmatpush1.bf16.msra.mxu0 %v220
  %305 = vmatprep.subr.bf16.mxu0 0
  %306 = vmatpush1.bf16.msra.mxu0 %v221
  %307 = vmatprep.subr.bf16.mxu0 0
  %308 = vmatpush1.bf16.msra.mxu0 %v222
  %309 = vmatprep.subr.bf16.mxu0 0
  %310 = vmatpush1.bf16.msra.mxu0 %v223
  %311 = vmatprep.subr.bf16.mxu0 0
  %312 = vmatpush1.bf16.msra.mxu0 %v224
  %313 = vmatprep.subr.bf16.mxu0 0
  %314 = vmatpush1.bf16.msra.mxu0 0
  %315 = vmatprep.subr.bf16.mxu0 0
  %316 = vmatpush1.bf16.msra.mxu0 0
  %317 = vmatprep.subr.bf16.mxu0 0
  %318 = vmatpush1.bf16.msra.mxu0 0
  %319 = vmatprep.subr.bf16.mxu0 0
  %320 = vmatpush1.bf16.msra.mxu0 0
  %321 = vmatprep.subr.bf16.mxu0 0
  %322 = vmatpush1.bf16.msra.mxu0 0
  %323 = vmatprep.subr.bf16.mxu0 0
  %324 = vmatpush1.bf16.msra.mxu0 0
  %325 = vmatprep.subr.bf16.mxu0 0
  %326 = vmatpush1.bf16.msra.mxu0 0
  %327 = vmatprep.mubr.bf16.mxu0 %v252
  %328 = vmatmul.mubr.bf16.gmra.mrb[0].mxu0 %v95
  %v329 = vpop.f32.mrb[0].mxu0
  %v330 = vadd.f32 %v289, %v329
  %v331 = vpop.f32.mrb[0].mxu0
  %v332 = vpop.f32.mrb[0].mxu0
  %v333 = vadd.f32 %v292, %v332
  %v334 = vpop.f32.mrb[0].mxu0
  %335 = vdwg.mxu0
  %v336 = vmax.f32 %v330, 0.0
  %v337 = vmax.f32 %v333, 0.0
  %v338 = vpack.c.bf16 %v337, %v336
  %v340 = vunpack.c.l.b16 %v338
  %v341 = vunpack.c.h.b16 %v338
  %v342 = vpack.c.b16 %v340, %v340
  %v343 = vpack.c.b16 %v341, %v341
  %vm346 = vcmask 257024
  %347 = vst.msk [vmem:[%s3] sm:$0xf] %vm346, %v342
  %348 = vst.msk [vmem:[%s3 + $0x4] sm:$0xf] %vm346, %v343
  // Predicated region
  $region14: #{uvdocnet_forward.52} parent=0 // pred_check
    _
  $region15: #{uvdocnet_forward.52} parent=0 // pred_check_branch
    %350 = sbr.rel (0) target = $region17
  $region16: #{uvdocnet_forward.52} parent=0 // pred_region
    _
  $region17: #{uvdocnet_forward.52} parent=0 // pred_fallthru
    _
  // Predicated region
  $region18: #{uvdocnet_forward.52} parent=0 // pred_check
    _
  $region19: #{uvdocnet_forward.52} parent=0 // pred_check_branch
    %352 = sbr.rel (0) target = $region21
  $region20: #{uvdocnet_forward.52} parent=0 // pred_region
    _
  $region21: #{uvdocnet_forward.52} parent=0 // pred_fallthru
    _

// kernel: uvdocnet_forward.63
$region0: #{uvdocnet_forward.63}
  #allocation0 [shape = 'u32[]', space=smem, size = 0x4, offset = 0x4, fixed_abs, tag = 'smem constant byte address 0x4 - core index']
  #allocation1 [shape = 'u32[144,128]{1,0:T(1,128)}', space=vmem, size = 0x12000, scoped, tag = 'internal scratch']
  %s0 = inlined_call_operand.vmem [shape: bf16[3,144,32], index: 0, kind: input, shape index: {}]
  %s1 = inlined_call_operand.vmem [shape: bf16[3,16,144], index: 1, kind: input, shape index: {}]
  %s2 = inlined_call_operand.vmem [shape: f32[3,16,1], index: 2, kind: input, shape index: {}]
  %s3 = inlined_call_operand.vmem [shape: bf16[3,16,32], index: 3, kind: output, shape index: {}]
  %s4 = sld [smem:[#allocation0]]
  $region45: #{uvdocnet_forward.63} parent=0
    _
  %s6 = ssub.s32 1, %s4
  %s7 = scalar_select 0, %s6, %s4
  loop: start=0, step=1, limit=5
  $region2: #{uvdocnet_forward.63} parent=0 // loop_pre_header
    _
  $region3: #{uvdocnet_forward.63} parent=0 // loop_header
    %s9 = sphi 0, %s13
    %p10 = scmp.ge.s32.totalorder %s9, 5
    %s19 = sphi 0, %s21
    %s22 = sphi 0, %s19
    %s23 = sphi 0, %s22
    %s39 = sphi 0, %s23
    %s45 = sphi 0, %s47
    %s48 = sphi 0, %s45
    %s49 = sphi 0, %s48
    %s65 = sphi 0, %s49
    %s71 = sphi 0, %s73
    %s74 = sphi 0, %s71
    %s75 = sphi 0, %s74
    %s91 = sphi 0, %s75
    %s97 = sphi 0, %s99
    %s100 = sphi 0, %s97
    %s101 = sphi 0, %s100
    %s117 = sphi 0, %s101
  $region4: #{uvdocnet_forward.63} parent=0 // loop_header_branch
    %12 = sbr.rel (%p10) target = $region8
  $region5: #{uvdocnet_forward.63} parent=0 // loop_body
    %s14 = ssub.s32 %s9, 1
    %s15 = ssub.s32 %s9, 2
    %s16 = sadd.s32 %s9, 1
    %s17 = ssub.s32 %s9, %s16
    %p18 = scmp.eq.s32.totalorder %s17, 0
    %s20 = sadd.s32 %s19, 1
    %s21 = scalar_select %p18, %s19, %s20
    %p24 = pneg %p18
    %p25 = scmp.eq.s32.totalorder %s9, 2
    %p26 = por %p24, %p25
    %p27 = scmp.ne.s32.totalorder %s19, %s22
    %p28 = scmp.eq.s32.totalorder %s9, 0
    %p29 = por %p27, %p28
    %p30 = scmp.ne.s32.totalorder %s19, %s22
    %p31 = scmp.eq.s32.totalorder %s14, 2
    %p32 = por %p30, %p31
    %p33 = scmp.ne.s32.totalorder %s22, %s23
    %p34 = scmp.eq.s32.totalorder %s14, 0
    %p35 = por %p33, %p34
    %p36 = scmp.ne.s32.totalorder %s22, %s23
    %p37 = scmp.eq.s32.totalorder %s15, 2
    %p38 = por %p36, %p37
    %p40 = scmp.ne.s32.totalorder %s23, %s39
    %p41 = scmp.eq.s32.totalorder %s15, 0
    %p42 = por %p40, %p41
    %s43 = ssub.s32 %s9, %s16
    %p44 = scmp.eq.s32.totalorder %s43, 0
    %s46 = sadd.s32 %s45, 1
    %s47 = scalar_select %p44, %s45, %s46
    %p50 = pneg %p44
    %p51 = scmp.eq.s32.totalorder %s9, 2
    %p52 = por %p50, %p51
    %p53 = scmp.ne.s32.totalorder %s45, %s48
    %p54 = scmp.eq.s32.totalorder %s9, 0
    %p55 = por %p53, %p54
    %p56 = scmp.ne.s32.totalorder %s45, %s48
    %p57 = scmp.eq.s32.totalorder %s14, 2
    %p58 = por %p56, %p57
    %p59 = scmp.ne.s32.totalorder %s48, %s49
    %p60 = scmp.eq.s32.totalorder %s14, 0
    %p61 = por %p59, %p60
    %p62 = scmp.ne.s32.totalorder %s48, %s49
    %p63 = scmp.eq.s32.totalorder %s15, 2
    %p64 = por %p62, %p63
    %p66 = scmp.ne.s32.totalorder %s49, %s65
    %p67 = scmp.eq.s32.totalorder %s15, 0
    %p68 = por %p66, %p67
    %s69 = ssub.s32 %s9, %s16
    %p70 = scmp.eq.s32.totalorder %s69, 0
    %s72 = sadd.s32 %s71, 1
    %s73 = scalar_select %p70, %s71, %s72
    %p76 = pneg %p70
    %p77 = scmp.eq.s32.totalorder %s9, 2
    %p78 = por %p76, %p77
    %p79 = scmp.ne.s32.totalorder %s71, %s74
    %p80 = scmp.eq.s32.totalorder %s9, 0
    %p81 = por %p79, %p80
    %p82 = scmp.ne.s32.totalorder %s71, %s74
    %p83 = scmp.eq.s32.totalorder %s14, 2
    %p84 = por %p82, %p83
    %p85 = scmp.ne.s32.totalorder %s74, %s75
    %p86 = scmp.eq.s32.totalorder %s14, 0
    %p87 = por %p85, %p86
    %p88 = scmp.ne.s32.totalorder %s74, %s75
    %p89 = scmp.eq.s32.totalorder %s15, 2
    %p90 = por %p88, %p89
    %p92 = scmp.ne.s32.totalorder %s75, %s91
    %p93 = scmp.eq.s32.totalorder %s15, 0
    %p94 = por %p92, %p93
    %s95 = ssub.s32 %s9, %s16
    %p96 = scmp.eq.s32.totalorder %s95, 0
    %s98 = sadd.s32 %s97, 1
    %s99 = scalar_select %p96, %s97, %s98
    %p102 = pneg %p96
    %p103 = scmp.eq.s32.totalorder %s9, 2
    %p104 = por %p102, %p103
    %p105 = scmp.ne.s32.totalorder %s97, %s100
    %p106 = scmp.eq.s32.totalorder %s9, 0
    %p107 = por %p105, %p106
    %p108 = scmp.ne.s32.totalorder %s97, %s100
    %p109 = scmp.eq.s32.totalorder %s14, 2
    %p110 = por %p108, %p109
    %p111 = scmp.ne.s32.totalorder %s100, %s101
    %p112 = scmp.eq.s32.totalorder %s14, 0
    %p113 = por %p111, %p112
    %p114 = scmp.ne.s32.totalorder %s100, %s101
    %p115 = scmp.eq.s32.totalorder %s15, 2
    %p116 = por %p114, %p115
    %p118 = scmp.ne.s32.totalorder %s101, %s117
    %p119 = scmp.eq.s32.totalorder %s15, 0
    %p120 = por %p118, %p119
    %p121 = scmp.le.s32.totalorder 1, %s9
    %p122 = scmp.lt.s32.totalorder %s9, 4
    %p123 = pnand %p121, %p122
    %p124 = pneg %p123
    // Predicated region
    $region9: #{uvdocnet_forward.63} parent=5 // pred_check
      _
    $region10: #{uvdocnet_forward.63} parent=5 // pred_check_branch
      %126 = sbr.rel (%p123) target = $region12
    $region11: #{uvdocnet_forward.63} parent=5 // pred_region
      %s127 = ssub.s32 %s9, 1
    $region12: #{uvdocnet_forward.63} parent=5 // pred_fallthru
      _
    %p128 = scmp.lt.s32.totalorder %s9, 3
    // Predicated region
    $region13: #{uvdocnet_forward.63} parent=5 // pred_check
      %p129 = pneg %p128
    $region14: #{uvdocnet_forward.63} parent=5 // pred_check_branch
      %131 = sbr.rel (%p129) target = $region16
    $region15: #{uvdocnet_forward.63} parent=5 // pred_region
      // Predicated region
      $region17: #{uvdocnet_forward.63} parent=15 // pred_check
        %p132 = pneg %p29
      $region18: #{uvdocnet_forward.63} parent=15 // pred_check_branch
        %134 = sbr.rel (%p132) target = $region20
      $region19: #{uvdocnet_forward.63} parent=15 // pred_region
        %p135 = scmp.lt.s32.totalorder %s9, 2
        %s136 = scalar_select %p135, %s9, 2
        %s137 = smul.addr %s136, 18
        %s138 = smul.addr %s137, 4
        %s139 = scalar_lea.vmem %s0, %s138
      $region20: #{uvdocnet_forward.63} parent=15 // pred_fallthru
        _
      // Predicated region
      $region21: #{uvdocnet_forward.63} parent=15 // pred_check
        %p140 = pneg %p55
      $region22: #{uvdocnet_forward.63} parent=15 // pred_check_branch
        %142 = sbr.rel (%p140) target = $region24
      $region23: #{uvdocnet_forward.63} parent=15 // pred_region
        %p143 = scmp.lt.s32.totalorder %s9, 2
        %s144 = scalar_select %p143, %s9, 2
        %s145 = smul.addr %s144, 4
        %s146 = smul.addr %s145, 4
        %s147 = scalar_lea.vmem %s1, %s146
      $region24: #{uvdocnet_forward.63} parent=15 // pred_fallthru
        _
      // Predicated region
      $region25: #{uvdocnet_forward.63} parent=15 // pred_check
        %p148 = pneg %p81
      $region26: #{uvdocnet_forward.63} parent=15 // pred_check_branch
        %150 = sbr.rel (%p148) target = $region28
      $region27: #{uvdocnet_forward.63} parent=15 // pred_region
        %p151 = scmp.lt.s32.totalorder %s9, 2
        %s152 = scalar_select %p151, %s9, 2
        %s153 = smul.addr %s152, 2
        %s154 = smul.addr %s153, 8
        %s155 = scalar_lea.vmem %s2, %s154
      $region28: #{uvdocnet_forward.63} parent=15 // pred_fallthru
        _
    $region16: #{uvdocnet_forward.63} parent=5 // pred_fallthru
      _
    %p156 = scmp.le.s32.totalorder 1, %s9
    %p157 = scmp.lt.s32.totalorder %s9, 4
    %p158 = pnand %p156, %p157
    %p159 = pneg %p158
    // Predicated region
    $region29: #{uvdocnet_forward.63} parent=5 // pred_check
      _
    $region30: #{uvdocnet_forward.63} parent=5 // pred_check_branch
      %161 = sbr.rel (%p158) target = $region32
    $region31: #{uvdocnet_forward.63} parent=5 // pred_region
      %s162 = ssub.s32 %s9, 1
      %p163 = scmp.lt.s32.totalorder %s14, 2
      %s164 = scalar_select %p163, %s14, 2
      %s165 = smul.addr %s164, 18
      %s166 = smul.addr %s165, 4
      %s167 = scalar_lea.vmem %s0, %s166
      %p168 = pneg %p35
      %p169 = pneg %p32
      %p170 = scmp.lt.s32.totalorder %s14, 2
      %s171 = scalar_select %p170, %s14, 2
      %s172 = smul.addr %s171, 4
      %s173 = smul.addr %s172, 4
      %s174 = scalar_lea.vmem %s1, %s173
      %p175 = pneg %p61
      %p176 = pneg %p58
      %p177 = scmp.lt.s32.totalorder %s14, 2
      %s178 = scalar_select %p177, %s14, 2
      %s179 = smul.addr %s178, 2
      %s180 = smul.addr %s179, 8
      %s181 = scalar_lea.vmem %s2, %s180
      %p182 = pneg %p87
      %p183 = pneg %p84
      %p184 = pneg %p113
      %p185 = pneg %p110
      %p186 = scmp.lt.s32.totalorder %s14, 2
      %s187 = scalar_select %p186, %s14, 2
      %s188 = smul.addr %s187, 2
      %s189 = smul.addr %s188, 4
      %s190 = scalar_lea.vmem %s3, %s189
      %p191 = scmp.lt.s32.totalorder %s14, 2
      %s192 = scalar_select %p191, %s14, 2
      %s193 = smul.addr %s192, 18
      %s194 = smul.addr %s193, 4
      %s195 = scalar_lea.vmem %s0, %s194
      %p196 = scmp.lt.s32.totalorder %s14, 2
      %s197 = scalar_select %p196, %s14, 2
      %s198 = smul.addr %s197, 4
      %s199 = smul.addr %s198, 4
      %s200 = scalar_lea.vmem %s1, %s199
      %p201 = scmp.lt.s32.totalorder %s14, 2
      %s202 = scalar_select %p201, %s14, 2
      %s203 = smul.addr %s202, 2
      %s204 = smul.addr %s203, 8
      %s205 = scalar_lea.vmem %s2, %s204
      %p206 = scmp.lt.s32.totalorder %s14, 2
      %s207 = scalar_select %p206, %s14, 2
      %s208 = smul.addr %s207, 2
      %s209 = smul.addr %s208, 4
      %s210 = scalar_lea.vmem %s3, %s209
      %v212 = vld [vmem:[%s200] sm:$0xff]
      %v213 = vld [vmem:[%s200 + $0x8] sm:$0xff]
      %v214 = vld [vmem:[%s195] sm:$0xf]
      %v215 = vld [vmem:[%s195 + $0x4] sm:$0xf]
      %v216 = vld [vmem:[%s195 + $0x8] sm:$0xf]
      %v217 = vld [vmem:[%s195 + $0xc] sm:$0xf]
      %v218 = vld [vmem:[%s195 + $0x10] sm:$0xf]
      %v219 = vld [vmem:[%s195 + $0x14] sm:$0xf]
      %v220 = vld [vmem:[%s195 + $0x18] sm:$0xf]
      %v221 = vld [vmem:[%s195 + $0x1c] sm:$0xf]
      %v222 = vld [vmem:[%s195 + $0x20] sm:$0xf]
      %v223 = vld [vmem:[%s195 + $0x24] sm:$0xf]
      %v224 = vld [vmem:[%s195 + $0x28] sm:$0xf]
      %v225 = vld [vmem:[%s195 + $0x2c] sm:$0xf]
      %v226 = vld [vmem:[%s195 + $0x30] sm:$0xf]
      %v227 = vld [vmem:[%s195 + $0x34] sm:$0xf]
      %v228 = vld [vmem:[%s195 + $0x38] sm:$0xf]
      %v229 = vld [vmem:[%s195 + $0x3c] sm:$0xf]
      %v230 = vld [vmem:[%s195 + $0x40] sm:$0xf]
      %v231 = vld [vmem:[%s195 + $0x44] sm:$0xf]
      %v232 = vld [vmem:[%s205] sm:$0xff]
      %v233 = vld [vmem:[%s205 + $0x8] sm:$0xff]
      %235 = vset.pattern.permute.xlu0 0
      %236 = vperm.xlu0 %235, %v232
      %v237 = vpop.permute.xlu0 %236
      %240 = vset.pattern.permute.xlu0 0
      %241 = vperm.xlu0 %240, %v233
      %v242 = vpop.permute.xlu0 %241
      %v246 = vunpack.c.l.b16 %v212
      %v247 = vunpack.c.h.b16 %v212
      %v248 = vunpack.c.l.b16 %v213
      %v249 = vunpack.c.h.b16 %v213
      %v250 = vpack.c.b16 %v248, %v246
      %v251 = vpack.c.b16 %v249, %v247
      %v271 = vunpack.c.l.b16 %v214
      %v272 = vunpack.c.l.b16 %v215
      %v273 = vunpack.c.l.b16 %v216
      %v274 = vunpack.c.l.b16 %v217
      %v275 = vunpack.c.l.b16 %v218
      %v276 = vunpack.c.l.b16 %v219
      %v277 = vunpack.c.l.b16 %v220
      %v278 = vunpack.c.l.b16 %v221
      %v279 = vunpack.c.l.b16 %v222
      %v280 = vunpack.c.l.b16 %v223
      %v281 = vunpack.c.l.b16 %v224
      %v282 = vunpack.c.l.b16 %v225
      %v283 = vunpack.c.l.b16 %v226
      %v284 = vunpack.c.l.b16 %v227
      %v285 = vunpack.c.l.b16 %v228
      %v286 = vunpack.c.l.b16 %v229
      %v287 = vunpack.c.l.b16 %v230
      %v288 = vunpack.c.l.b16 %v231
      %v289 = vpack.c.b16 %v272, %v271
      %v290 = vpack.c.b16 %v274, %v273
      %v291 = vpack.c.b16 %v276, %v275
      %v292 = vpack.c.b16 %v278, %v277
      %v293 = vpack.c.b16 %v280, %v279
      %v294 = vpack.c.b16 %v282, %v281
      %v295 = vpack.c.b16 %v284, %v283
      %v296 = vpack.c.b16 %v286, %v285
      %v297 = vpack.c.b16 %v288, %v287
      %vm307 = vcmask 130048
      %v309 = vsel %vm307, %v251, 0
      %311 = vmatprep.subr.bf16.mxu0 0
      %312 = vmatpush1.bf16.msra.mxu0 %v289
      %313 = vmatprep.subr.bf16.mxu0 0
      %314 = vmatpush1.bf16.msra.mxu0 %v290
      %315 = vmatprep.subr.bf16.mxu0 0
      %316 = vmatpush1.bf16.msra.mxu0 %v291
      %317 = vmatprep.subr.bf16.mxu0 0
      %318 = vmatpush1.bf16.msra.mxu0 %v292
      %319 = vmatprep.subr.bf16.mxu0 0
      %320 = vmatpush1.bf16.msra.mxu0 %v293
      %321 = vmatprep.subr.bf16.mxu0 0
      %322 = vmatpush1.bf16.msra.mxu0 %v294
      %323 = vmatprep.subr.bf16.mxu0 0
      %324 = vmatpush1.bf16.msra.mxu0 %v295
      %325 = vmatprep.subr.bf16.mxu0 0
      %326 = vmatpush1.bf16.msra.mxu0 %v296
      %327 = vmatprep.subr.bf16.mxu0 0
      %328 = vmatpush1.bf16.msra.mxu0 %v297
      %329 = vmatprep.subr.bf16.mxu0 0
      %330 = vmatpush1.bf16.msra.mxu0 0
      %331 = vmatprep.subr.bf16.mxu0 0
      %332 = vmatpush1.bf16.msra.mxu0 0
      %333 = vmatprep.subr.bf16.mxu0 0
      %334 = vmatpush1.bf16.msra.mxu0 0
      %335 = vmatprep.subr.bf16.mxu0 0
      %336 = vmatpush1.bf16.msra.mxu0 0
      %337 = vmatprep.subr.bf16.mxu0 0
      %338 = vmatpush1.bf16.msra.mxu0 0
      %339 = vmatprep.subr.bf16.mxu0 0
      %340 = vmatpush1.bf16.msra.mxu0 0
      %341 = vmatprep.subr.bf16.mxu0 0
      %342 = vmatpush1.bf16.msra.mxu0 0
      %343 = vmatprep.mubr.bf16.mxu0 %v309
      %344 = vmatmul.mubr.bf16.gmra.mrb[0].mxu0 %v250
      %v345 = vpop.f32.mrb[0].mxu0
      %v346 = vadd.f32 %v237, %v345
      %v347 = vpop.f32.mrb[0].mxu0
      %v348 = vpop.f32.mrb[0].mxu0
      %v349 = vadd.f32 %v242, %v348
      %v350 = vpop.f32.mrb[0].mxu0
      %351 = vdwg.mxu0
      %v352 = vmax.f32 %v346, 0.0
      %v353 = vmax.f32 %v349, 0.0
      %v354 = vpack.c.bf16 %v353, %v352
      %v356 = vunpack.c.l.b16 %v354
      %v357 = vunpack.c.h.b16 %v354
      %v358 = vpack.c.b16 %v356, %v356
      %v359 = vpack.c.b16 %v357, %v357
      %vm362 = vcmask 257024
      %363 = vst.msk [vmem:[%s210] sm:$0xf] %vm362, %v358
      %364 = vst.msk [vmem:[%s210 + $0x4] sm:$0xf] %vm362, %v359
      %p365 = scmp.lt.s32.totalorder %s14, 2
      %s366 = scalar_select %p365, %s14, 2
      %s367 = smul.addr %s366, 2
      %s368 = smul.addr %s367, 4
      %s369 = scalar_lea.vmem %s3, %s368
      // Predicated region
      $region33: #{uvdocnet_forward.63} parent=31 // pred_check
        %p370 = pneg %p110
      $region34: #{uvdocnet_forward.63} parent=31 // pred_check_branch
        %372 = sbr.rel (%p370) target = $region36
      $region35: #{uvdocnet_forward.63} parent=31 // pred_region
        _
      $region36: #{uvdocnet_forward.63} parent=31 // pred_fallthru
        _
    $region32: #{uvdocnet_forward.63} parent=5 // pred_fallthru
      _
    %p373 = scmp.le.s32.totalorder 2, %s9
    // Predicated region
    $region37: #{uvdocnet_forward.63} parent=5 // pred_check
      %p374 = pneg %p373
    $region38: #{uvdocnet_forward.63} parent=5 // pred_check_branch
      %376 = sbr.rel (%p374) target = $region40
    $region39: #{uvdocnet_forward.63} parent=5 // pred_region
      %s377 = ssub.s32 %s9, 2
      // Predicated region
      $region41: #{uvdocnet_forward.63} parent=39 // pred_check
        %p378 = pneg %p116
      $region42: #{uvdocnet_forward.63} parent=39 // pred_check_branch
        %380 = sbr.rel (%p378) target = $region44
      $region43: #{uvdocnet_forward.63} parent=39 // pred_region
        %p381 = scmp.lt.s32.totalorder %s15, 2
        %s382 = scalar_select %p381, %s15, 2
        %s383 = smul.addr %s382, 2
        %s384 = smul.addr %s383, 4
        %s385 = scalar_lea.vmem %s3, %s384
      $region44: #{uvdocnet_forward.63} parent=39 // pred_fallthru
        _
    $region40: #{uvdocnet_forward.63} parent=5 // pred_fallthru
      _
  $region6: #{uvdocnet_forward.63} parent=0 // loop_footer
    %s13 = sadd.s32 1, %s9
  $region7: #{uvdocnet_forward.63} parent=0 // loop_footer_branch
    %8 = sbr.rel target = $region3
  $region8: #{uvdocnet_forward.63} parent=0 // loop_exit
    _

// kernel: uvdocnet_forward.65
$region0: #{uvdocnet_forward.65}
  #allocation0 [shape = 'u32[]', space=smem, size = 0x4, offset = 0x4, fixed_abs, tag = 'smem constant byte address 0x4 - core index']
  #allocation1 [shape = 'u32[144,128]{1,0:T(1,128)}', space=vmem, size = 0x12000, scoped, tag = 'internal scratch']
  %s0 = inlined_call_operand.vmem [shape: bf16[1,96,32], index: 0, kind: input, shape index: {}]
  %s1 = inlined_call_operand.vmem [shape: bf16[1,16,96], index: 1, kind: input, shape index: {}]
  %s2 = inlined_call_operand.vmem [shape: f32[1,16,1], index: 2, kind: input, shape index: {}]
  %s3 = inlined_call_operand.vmem [shape: bf16[1,16,32], index: 3, kind: output, shape index: {}]
  %s4 = sld [smem:[#allocation0]]
  $region22: #{uvdocnet_forward.65} parent=0
    _
  %s6 = ssub.s32 1, %s4
  %s7 = scalar_select 0, %s6, %s4
  // Predicated region
  $region2: #{uvdocnet_forward.65} parent=0 // pred_check
    _
  $region3: #{uvdocnet_forward.65} parent=0 // pred_check_branch
    %9 = sbr.rel (0) target = $region5
  $region4: #{uvdocnet_forward.65} parent=0 // pred_region
    _
  $region5: #{uvdocnet_forward.65} parent=0 // pred_fallthru
    _
  // Predicated region
  $region6: #{uvdocnet_forward.65} parent=0 // pred_check
    _
  $region7: #{uvdocnet_forward.65} parent=0 // pred_check_branch
    %11 = sbr.rel (0) target = $region9
  $region8: #{uvdocnet_forward.65} parent=0 // pred_region
    _
  $region9: #{uvdocnet_forward.65} parent=0 // pred_fallthru
    _
  // Predicated region
  $region10: #{uvdocnet_forward.65} parent=0 // pred_check
    _
  $region11: #{uvdocnet_forward.65} parent=0 // pred_check_branch
    %13 = sbr.rel (0) target = $region13
  $region12: #{uvdocnet_forward.65} parent=0 // pred_region
    _
  $region13: #{uvdocnet_forward.65} parent=0 // pred_fallthru
    _
  %v15 = vld [vmem:[%s1] sm:$0xf]
  %v16 = vld [vmem:[%s1 + $0x4] sm:$0xf]
  %v17 = vld [vmem:[%s0] sm:$0xf]
  %v18 = vld [vmem:[%s0 + $0x4] sm:$0xf]
  %v19 = vld [vmem:[%s0 + $0x8] sm:$0xf]
  %v20 = vld [vmem:[%s0 + $0xc] sm:$0xf]
  %v21 = vld [vmem:[%s0 + $0x10] sm:$0xf]
  %v22 = vld [vmem:[%s0 + $0x14] sm:$0xf]
  %v23 = vld [vmem:[%s0 + $0x18] sm:$0xf]
  %v24 = vld [vmem:[%s0 + $0x1c] sm:$0xf]
  %v25 = vld [vmem:[%s0 + $0x20] sm:$0xf]
  %v26 = vld [vmem:[%s0 + $0x24] sm:$0xf]
  %v27 = vld [vmem:[%s0 + $0x28] sm:$0xf]
  %v28 = vld [vmem:[%s0 + $0x2c] sm:$0xf]
  %v29 = vld [vmem:[%s2] sm:$0xff]
  %v30 = vld [vmem:[%s2 + $0x8] sm:$0xff]
  %32 = vset.pattern.permute.xlu0 0
  %33 = vperm.xlu0 %32, %v29
  %v34 = vpop.permute.xlu0 %33
  %37 = vset.pattern.permute.xlu0 0
  %38 = vperm.xlu0 %37, %v30
  %v39 = vpop.permute.xlu0 %38
  %v43 = vunpack.c.l.b16 %v15
  %v44 = vunpack.c.l.b16 %v16
  %v45 = vpack.c.b16 %v44, %v43
  %v58 = vunpack.c.l.b16 %v17
  %v59 = vunpack.c.l.b16 %v18
  %v60 = vunpack.c.l.b16 %v19
  %v61 = vunpack.c.l.b16 %v20
  %v62 = vunpack.c.l.b16 %v21
  %v63 = vunpack.c.l.b16 %v22
  %v64 = vunpack.c.l.b16 %v23
  %v65 = vunpack.c.l.b16 %v24
  %v66 = vunpack.c.l.b16 %v25
  %v67 = vunpack.c.l.b16 %v26
  %v68 = vunpack.c.l.b16 %v27
  %v69 = vunpack.c.l.b16 %v28
  %v70 = vpack.c.b16 %v59, %v58
  %v71 = vpack.c.b16 %v61, %v60
  %v72 = vpack.c.b16 %v63, %v62
  %v73 = vpack.c.b16 %v65, %v64
  %v74 = vpack.c.b16 %v67, %v66
  %v75 = vpack.c.b16 %v69, %v68
  %vm82 = vcmask 785408
  %v84 = vsel %vm82, %v45, 0
  %86 = vmatprep.subr.bf16.mxu0 0
  %87 = vmatpush1.bf16.msra.mxu0 %v70
  %88 = vmatprep.subr.bf16.mxu0 0
  %89 = vmatpush1.bf16.msra.mxu0 %v71
  %90 = vmatprep.subr.bf16.mxu0 0
  %91 = vmatpush1.bf16.msra.mxu0 %v72
  %92 = vmatprep.subr.bf16.mxu0 0
  %93 = vmatpush1.bf16.msra.mxu0 %v73
  %94 = vmatprep.subr.bf16.mxu0 0
  %95 = vmatpush1.bf16.msra.mxu0 %v74
  %96 = vmatprep.subr.bf16.mxu0 0
  %97 = vmatpush1.bf16.msra.mxu0 %v75
  %98 = vmatprep.subr.bf16.mxu0 0
  %99 = vmatpush1.bf16.msra.mxu0 0
  %100 = vmatprep.subr.bf16.mxu0 0
  %101 = vmatpush1.bf16.msra.mxu0 0
  %102 = vmatprep.subr.bf16.mxu0 0
  %103 = vmatpush1.bf16.msra.mxu0 0
  %104 = vmatprep.subr.bf16.mxu0 0
  %105 = vmatpush1.bf16.msra.mxu0 0
  %106 = vmatprep.subr.bf16.mxu0 0
  %107 = vmatpush1.bf16.msra.mxu0 0
  %108 = vmatprep.subr.bf16.mxu0 0
  %109 = vmatpush1.bf16.msra.mxu0 0
  %110 = vmatprep.subr.bf16.mxu0 0
  %111 = vmatpush1.bf16.msra.mxu0 0
  %112 = vmatprep.subr.bf16.mxu0 0
  %113 = vmatpush1.bf16.msra.mxu0 0
  %114 = vmatprep.subr.bf16.mxu0 0
  %115 = vmatpush1.bf16.msra.mxu0 0
  %116 = vmatprep.subr.bf16.mxu0 0
  %117 = vmatpush1.bf16.msra.mxu0 0
  %118 = vmatprep.mubr.bf16.mxu0 0
  %119 = vmatmul.mubr.bf16.gmra.mrb[0].mxu0 %v84
  %v120 = vpop.f32.mrb[0].mxu0
  %v121 = vadd.f32 %v34, %v120
  %v122 = vpop.f32.mrb[0].mxu0
  %v123 = vpop.f32.mrb[0].mxu0
  %v124 = vadd.f32 %v39, %v123
  %v125 = vpop.f32.mrb[0].mxu0
  %126 = vdwg.mxu0
  %v127 = vmax.f32 %v121, 0.0
  %v128 = vmax.f32 %v124, 0.0
  %v129 = vpack.c.bf16 %v128, %v127
  %v131 = vunpack.c.l.b16 %v129
  %v132 = vunpack.c.h.b16 %v129
  %v133 = vpack.c.b16 %v131, %v131
  %v134 = vpack.c.b16 %v132, %v132
  %vm137 = vcmask 257024
  %138 = vst.msk [vmem:[%s3] sm:$0xf] %vm137, %v133
  %139 = vst.msk [vmem:[%s3 + $0x4] sm:$0xf] %vm137, %v134
  // Predicated region
  $region14: #{uvdocnet_forward.65} parent=0 // pred_check
    _
  $region15: #{uvdocnet_forward.65} parent=0 // pred_check_branch
    %141 = sbr.rel (0) target = $region17
  $region16: #{uvdocnet_forward.65} parent=0 // pred_region
    _
  $region17: #{uvdocnet_forward.65} parent=0 // pred_fallthru
    _
  // Predicated region
  $region18: #{uvdocnet_forward.65} parent=0 // pred_check
    _
  $region19: #{uvdocnet_forward.65} parent=0 // pred_check_branch
    %143 = sbr.rel (0) target = $region21
  $region20: #{uvdocnet_forward.65} parent=0 // pred_region
    _
  $region21: #{uvdocnet_forward.65} parent=0 // pred_fallthru
    _

// kernel: uvdocnet_forward.66
$region0: #{uvdocnet_forward.66}
  #allocation0 [shape = 'u32[]', space=smem, size = 0x4, offset = 0x4, fixed_abs, tag = 'smem constant byte address 0x4 - core index']
  #allocation1 [shape = 'u32[144,128]{1,0:T(1,128)}', space=vmem, size = 0x12000, scoped, tag = 'internal scratch']
  %s0 = inlined_call_operand.vmem [shape: bf16[1,400,32], index: 0, kind: input, shape index: {}]
  %s1 = inlined_call_operand.vmem [shape: bf16[1,8,400], index: 1, kind: input, shape index: {}]
  %s2 = inlined_call_operand.vmem [shape: f32[1,8,1], index: 2, kind: input, shape index: {}]
  %s3 = inlined_call_operand.vmem [shape: f32[1,8,1], index: 3, kind: input, shape index: {}]
  %s4 = inlined_call_operand.vmem [shape: bf16[1,8,32], index: 4, kind: output, shape index: {}]
  %s5 = sld [smem:[#allocation0]]
  $region26: #{uvdocnet_forward.66} parent=0
    _
  %s7 = ssub.s32 1, %s5
  %s8 = scalar_select 0, %s7, %s5
  // Predicated region
  $region2: #{uvdocnet_forward.66} parent=0 // pred_check
    _
  $region3: #{uvdocnet_forward.66} parent=0 // pred_check_branch
    %10 = sbr.rel (0) target = $region5
  $region4: #{uvdocnet_forward.66} parent=0 // pred_region
    _
  $region5: #{uvdocnet_forward.66} parent=0 // pred_fallthru
    _
  // Predicated region
  $region6: #{uvdocnet_forward.66} parent=0 // pred_check
    _
  $region7: #{uvdocnet_forward.66} parent=0 // pred_check_branch
    %12 = sbr.rel (0) target = $region9
  $region8: #{uvdocnet_forward.66} parent=0 // pred_region
    _
  $region9: #{uvdocnet_forward.66} parent=0 // pred_fallthru
    _
  // Predicated region
  $region10: #{uvdocnet_forward.66} parent=0 // pred_check
    _
  $region11: #{uvdocnet_forward.66} parent=0 // pred_check_branch
    %14 = sbr.rel (0) target = $region13
  $region12: #{uvdocnet_forward.66} parent=0 // pred_region
    _
  $region13: #{uvdocnet_forward.66} parent=0 // pred_fallthru
    _
  // Predicated region
  $region14: #{uvdocnet_forward.66} parent=0 // pred_check
    _
  $region15: #{uvdocnet_forward.66} parent=0 // pred_check_branch
    %16 = sbr.rel (0) target = $region17
  $region16: #{uvdocnet_forward.66} parent=0 // pred_region
    _
  $region17: #{uvdocnet_forward.66} parent=0 // pred_fallthru
    _
  %v18 = vld [vmem:[%s1] sm:$0xff]
  %v19 = vld [vmem:[%s1 + $0x8] sm:$0xff]
  %v20 = vld [vmem:[%s0] sm:$0xf]
  %v21 = vld [vmem:[%s0 + $0x4] sm:$0xf]
  %v22 = vld [vmem:[%s0 + $0x8] sm:$0xf]
  %v23 = vld [vmem:[%s0 + $0xc] sm:$0xf]
  %v24 = vld [vmem:[%s0 + $0x10] sm:$0xf]
  %v25 = vld [vmem:[%s0 + $0x14] sm:$0xf]
  %v26 = vld [vmem:[%s0 + $0x18] sm:$0xf]
  %v27 = vld [vmem:[%s0 + $0x1c] sm:$0xf]
  %v28 = vld [vmem:[%s0 + $0x20] sm:$0xf]
  %v29 = vld [vmem:[%s0 + $0x24] sm:$0xf]
  %v30 = vld [vmem:[%s0 + $0x28] sm:$0xf]
  %v31 = vld [vmem:[%s0 + $0x2c] sm:$0xf]
  %v32 = vld [vmem:[%s0 + $0x30] sm:$0xf]
  %v33 = vld [vmem:[%s0 + $0x34] sm:$0xf]
  %v34 = vld [vmem:[%s0 + $0x38] sm:$0xf]
  %v35 = vld [vmem:[%s0 + $0x3c] sm:$0xf]
  %v36 = vld [vmem:[%s0 + $0x40] sm:$0xf]
  %v37 = vld [vmem:[%s0 + $0x44] sm:$0xf]
  %v38 = vld [vmem:[%s0 + $0x48] sm:$0xf]
  %v39 = vld [vmem:[%s0 + $0x4c] sm:$0xf]
  %v40 = vld [vmem:[%s0 + $0x50] sm:$0xf]
  %v41 = vld [vmem:[%s0 + $0x54] sm:$0xf]
  %v42 = vld [vmem:[%s0 + $0x58] sm:$0xf]
  %v43 = vld [vmem:[%s0 + $0x5c] sm:$0xf]
  %v44 = vld [vmem:[%s0 + $0x60] sm:$0xf]
  %v45 = vld [vmem:[%s0 + $0x64] sm:$0xf]
  %v46 = vld [vmem:[%s0 + $0x68] sm:$0xf]
  %v47 = vld [vmem:[%s0 + $0x6c] sm:$0xf]
  %v48 = vld [vmem:[%s0 + $0x70] sm:$0xf]
  %v49 = vld [vmem:[%s0 + $0x74] sm:$0xf]
  %v50 = vld [vmem:[%s0 + $0x78] sm:$0xf]
  %v51 = vld [vmem:[%s0 + $0x7c] sm:$0xf]
  %v52 = vld [vmem:[%s0 + $0x80] sm:$0xf]
  %v53 = vld [vmem:[%s0 + $0x84] sm:$0xf]
  %v54 = vld [vmem:[%s0 + $0x88] sm:$0xf]
  %v55 = vld [vmem:[%s0 + $0x8c] sm:$0xf]
  %v56 = vld [vmem:[%s0 + $0x90] sm:$0xf]
  %v57 = vld [vmem:[%s0 + $0x94] sm:$0xf]
  %v58 = vld [vmem:[%s0 + $0x98] sm:$0xf]
  %v59 = vld [vmem:[%s0 + $0x9c] sm:$0xf]
  %v60 = vld [vmem:[%s0 + $0xa0] sm:$0xf]
  %v61 = vld [vmem:[%s0 + $0xa4] sm:$0xf]
  %v62 = vld [vmem:[%s0 + $0xa8] sm:$0xf]
  %v63 = vld [vmem:[%s0 + $0xac] sm:$0xf]
  %v64 = vld [vmem:[%s0 + $0xb0] sm:$0xf]
  %v65 = vld [vmem:[%s0 + $0xb4] sm:$0xf]
  %v66 = vld [vmem:[%s0 + $0xb8] sm:$0xf]
  %v67 = vld [vmem:[%s0 + $0xbc] sm:$0xf]
  %v68 = vld [vmem:[%s0 + $0xc0] sm:$0xf]
  %v69 = vld [vmem:[%s0 + $0xc4] sm:$0xf]
  %v70 = vld [vmem:[%s2] sm:$0xff]
  %72 = vset.pattern.permute.xlu0 0
  %73 = vperm.xlu0 %72, %v70
  %v74 = vpop.permute.xlu0 %73
  %v78 = vunpack.c.l.b16 %v18
  %v79 = vunpack.c.h.b16 %v18
  %v80 = vunpack.c.l.b16 %v19
  %v81 = vunpack.c.h.b16 %v19
  %v82 = vpack.c.b16 %v78, %v78
  %v83 = vpack.c.b16 %v79, %v79
  %v84 = vpack.c.b16 %v80, %v80
  %v85 = vpack.c.b16 %v81, %v81
  %v139 = vunpack.c.l.b16 %v20
  %v140 = vunpack.c.l.b16 %v21
  %v141 = vunpack.c.l.b16 %v22
  %v142 = vunpack.c.l.b16 %v23
  %v143 = vunpack.c.l.b16 %v24
  %v144 = vunpack.c.l.b16 %v25
  %v145 = vunpack.c.l.b16 %v26
  %v146 = vunpack.c.l.b16 %v27
  %v147 = vunpack.c.l.b16 %v28
  %v148 = vunpack.c.l.b16 %v29
  %v149 = vunpack.c.l.b16 %v30
  %v150 = vunpack.c.l.b16 %v31
  %v151 = vunpack.c.l.b16 %v32
  %v152 = vunpack.c.l.b16 %v33
  %v153 = vunpack.c.l.b16 %v34
  %v154 = vunpack.c.l.b16 %v35
  %v155 = vunpack.c.l.b16 %v36
  %v156 = vunpack.c.l.b16 %v37
  %v157 = vunpack.c.l.b16 %v38
  %v158 = vunpack.c.l.b16 %v39
  %v159 = vunpack.c.l.b16 %v40
  %v160 = vunpack.c.l.b16 %v41
  %v161 = vunpack.c.l.b16 %v42
  %v162 = vunpack.c.l.b16 %v43
  %v163 = vunpack.c.l.b16 %v44
  %v164 = vunpack.c.l.b16 %v45
  %v165 = vunpack.c.l.b16 %v46
  %v166 = vunpack.c.l.b16 %v47
  %v167 = vunpack.c.l.b16 %v48
  %v168 = vunpack.c.l.b16 %v49
  %v169 = vunpack.c.l.b16 %v50
  %v170 = vunpack.c.l.b16 %v51
  %v171 = vunpack.c.l.b16 %v52
  %v172 = vunpack.c.l.b16 %v53
  %v173 = vunpack.c.l.b16 %v54
  %v174 = vunpack.c.l.b16 %v55
  %v175 = vunpack.c.l.b16 %v56
  %v176 = vunpack.c.l.b16 %v57
  %v177 = vunpack.c.l.b16 %v58
  %v178 = vunpack.c.l.b16 %v59
  %v179 = vunpack.c.l.b16 %v60
  %v180 = vunpack.c.l.b16 %v61
  %v181 = vunpack.c.l.b16 %v62
  %v182 = vunpack.c.l.b16 %v63
  %v183 = vunpack.c.l.b16 %v64
  %v184 = vunpack.c.l.b16 %v65
  %v185 = vunpack.c.l.b16 %v66
  %v186 = vunpack.c.l.b16 %v67
  %v187 = vunpack.c.l.b16 %v68
  %v188 = vunpack.c.l.b16 %v69
  %v189 = vpack.c.b16 %v140, %v139
  %v190 = vpack.c.b16 %v142, %v141
  %v191 = vpack.c.b16 %v144, %v143
  %v192 = vpack.c.b16 %v146, %v145
  %v193 = vpack.c.b16 %v148, %v147
  %v194 = vpack.c.b16 %v150, %v149
  %v195 = vpack.c.b16 %v152, %v151
  %v196 = vpack.c.b16 %v154, %v153
  %v197 = vpack.c.b16 %v156, %v155
  %v198 = vpack.c.b16 %v158, %v157
  %v199 = vpack.c.b16 %v160, %v159
  %v200 = vpack.c.b16 %v162, %v161
  %v201 = vpack.c.b16 %v164, %v163
  %v202 = vpack.c.b16 %v166, %v165
  %v203 = vpack.c.b16 %v168, %v167
  %v204 = vpack.c.b16 %v170, %v169
  %v205 = vpack.c.b16 %v172, %v171
  %v206 = vpack.c.b16 %v174, %v173
  %v207 = vpack.c.b16 %v176, %v175
  %v208 = vpack.c.b16 %v178, %v177
  %v209 = vpack.c.b16 %v180, %v179
  %v210 = vpack.c.b16 %v182, %v181
  %v211 = vpack.c.b16 %v184, %v183
  %v212 = vpack.c.b16 %v186, %v185
  %v213 = vpack.c.b16 %v188, %v187
  %vm239 = vcmask 130048
  %v241 = vsel %vm239, %v85, 0
  %243 = vmatprep.subr.bf16.mxu0 0
  %244 = vmatpush1.bf16.msra.mxu0 %v189
  %245 = vmatprep.subr.bf16.mxu0 0
  %246 = vmatpush1.bf16.msra.mxu0 %v190
  %247 = vmatprep.subr.bf16.mxu0 0
  %248 = vmatpush1.bf16.msra.mxu0 %v191
  %249 = vmatprep.subr.bf16.mxu0 0
  %250 = vmatpush1.bf16.msra.mxu0 %v192
  %251 = vmatprep.subr.bf16.mxu0 0
  %252 = vmatpush1.bf16.msra.mxu0 %v193
  %253 = vmatprep.subr.bf16.mxu0 0
  %254 = vmatpush1.bf16.msra.mxu0 %v194
  %255 = vmatprep.subr.bf16.mxu0 0
  %256 = vmatpush1.bf16.msra.mxu0 %v195
  %257 = vmatprep.subr.bf16.mxu0 0
  %258 = vmatpush1.bf16.msra.mxu0 %v196
  %259 = vmatprep.subr.bf16.mxu0 0
  %260 = vmatpush1.bf16.msra.mxu0 %v197
  %261 = vmatprep.subr.bf16.mxu0 0
  %262 = vmatpush1.bf16.msra.mxu0 %v198
  %263 = vmatprep.subr.bf16.mxu0 0
  %264 = vmatpush1.bf16.msra.mxu0 %v199
  %265 = vmatprep.subr.bf16.mxu0 0
  %266 = vmatpush1.bf16.msra.mxu0 %v200
  %267 = vmatprep.subr.bf16.mxu0 0
  %268 = vmatpush1.bf16.msra.mxu0 %v201
  %269 = vmatprep.subr.bf16.mxu0 0
  %270 = vmatpush1.bf16.msra.mxu0 %v202
  %271 = vmatprep.subr.bf16.mxu0 0
  %272 = vmatpush1.bf16.msra.mxu0 %v203
  %273 = vmatprep.subr.bf16.mxu0 0
  %274 = vmatpush1.bf16.msra.mxu0 %v204
  %275 = vmatprep.mubr.bf16.mxu0 %v83
  %276 = vmatmul.mubr.bf16.gmra.mrb[0].mxu0 %v82
  %v277 = vpop.f32.mrb[0].mxu0
  %v278 = vadd.f32 %v74, %v277
  %v279 = vpop.f32.mrb[0].mxu0
  %v280 = vpop.f32.mrb[0].mxu0
  %v281 = vpop.f32.mrb[0].mxu0
  %282 = vdwg.mxu0
  %283 = vmatprep.subr.bf16.mxu0 0
  %284 = vmatpush1.bf16.msra.mxu0 %v205
  %285 = vmatprep.subr.bf16.mxu0 0
  %286 = vmatpush1.bf16.msra.mxu0 %v206
  %287 = vmatprep.subr.bf16.mxu0 0
  %288 = vmatpush1.bf16.msra.mxu0 %v207
  %289 = vmatprep.subr.bf16.mxu0 0
  %290 = vmatpush1.bf16.msra.mxu0 %v208
  %291 = vmatprep.subr.bf16.mxu0 0
  %292 = vmatpush1.bf16.msra.mxu0 %v209
  %293 = vmatprep.subr.bf16.mxu0 0
  %294 = vmatpush1.bf16.msra.mxu0 %v210
  %295 = vmatprep.subr.bf16.mxu0 0
  %296 = vmatpush1.bf16.msra.mxu0 %v211
  %297 = vmatprep.subr.bf16.mxu0 0
  %298 = vmatpush1.bf16.msra.mxu0 %v212
  %299 = vmatprep.subr.bf16.mxu0 0
  %300 = vmatpush1.bf16.msra.mxu0 %v213
  %301 = vmatprep.subr.bf16.mxu0 0
  %302 = vmatpush1.bf16.msra.mxu0 0
  %303 = vmatprep.subr.bf16.mxu0 0
  %304 = vmatpush1.bf16.msra.mxu0 0
  %305 = vmatprep.subr.bf16.mxu0 0
  %306 = vmatpush1.bf16.msra.mxu0 0
  %307 = vmatprep.subr.bf16.mxu0 0
  %308 = vmatpush1.bf16.msra.mxu0 0
  %309 = vmatprep.subr.bf16.mxu0 0
  %310 = vmatpush1.bf16.msra.mxu0 0
  %311 = vmatprep.subr.bf16.mxu0 0
  %312 = vmatpush1.bf16.msra.mxu0 0
  %313 = vmatprep.subr.bf16.mxu0 0
  %314 = vmatpush1.bf16.msra.mxu0 0
  %315 = vmatprep.mubr.bf16.mxu0 %v241
  %316 = vmatmul.mubr.bf16.gmra.mrb[0].mxu0 %v84
  %v317 = vpop.f32.mrb[0].mxu0
  %v318 = vadd.f32 %v278, %v317
  %v319 = vpop.f32.mrb[0].mxu0
  %v320 = vpop.f32.mrb[0].mxu0
  %v321 = vpop.f32.mrb[0].mxu0
  %322 = vdwg.mxu0
  %vm323 = vcmp.ge.f32.partialorder %v318, 0.0
  %v324 = vld [vmem:[%s3] sm:$0xff]
  %326 = vset.pattern.permute.xlu0 0
  %327 = vperm.xlu0 %326, %v324
  %v328 = vpop.permute.xlu0 %327
  %v330 = vmul.f32 %v328, %v318
  %v331 = vsel %vm323, %v318, %v330
  %v332 = vpack.c.bf16 %v331, %v331
  %vm333 = vcmask 257024
  %334 = vst.msk [vmem:[%s4] sm:$0xf] %vm333, %v332
  // Predicated region
  $region18: #{uvdocnet_forward.66} parent=0 // pred_check
    _
  $region19: #{uvdocnet_forward.66} parent=0 // pred_check_branch
    %336 = sbr.rel (0) target = $region21
  $region20: #{uvdocnet_forward.66} parent=0 // pred_region
    _
  $region21: #{uvdocnet_forward.66} parent=0 // pred_fallthru
    _
  // Predicated region
  $region22: #{uvdocnet_forward.66} parent=0 // pred_check
    _
  $region23: #{uvdocnet_forward.66} parent=0 // pred_check_branch
    %338 = sbr.rel (0) target = $region25
  $region24: #{uvdocnet_forward.66} parent=0 // pred_region
    _
  $region25: #{uvdocnet_forward.66} parent=0 // pred_fallthru
    _

// kernel: squeeze.87
$region0: #{squeeze.87}
  %s0 = inlined_call_operand.vmem [shape: f32[1,3,32], index: 0, kind: input, shape index: {}]
  %s1 = inlined_call_operand.vmem [shape: f32[3,2,4,4], index: 1, kind: output, shape index: {}]
  $region1: #{squeeze.87} parent=0
    #allocation0 [shape = 'u8[24576]{0}', space=vmem, size = 0x6000, scoped, tag = 'scoped mem for output reshape']
    #allocation1 [shape = 'u8[4096]{0}', space=vmem, size = 0x1000, scoped, tag = 'scoped mem for input reshape']
    %s3 = sshllo.u32 0, 4
    %v4 = vld [vmem:[%s0] sm:%s3]
    %5 = vst [vmem:[#allocation1] sm:%s3] %v4
    %v6 = vld [vmem:[#allocation1] sm:$0x7]
    %vm7 = vcmask 31744
    %8 = vst.msk [vmem:[#allocation0] ss:$16 sm:$0x3] %vm7, %v6
    %s9 = scalar_lea.vmem [#allocation0], 30
    %10 = vst.msk [vmem:[%s9] sm:$0x4] %vm7, %v6
    %v11 = vld [vmem:[#allocation1] sm:$0x7]
    %12 = vrot.lane.b32.xlu0 %v11, 124
    %v13 = vpop.permute.xlu0 %12
    %vm14 = vcmask 31744
    %s15 = scalar_lea.vmem [#allocation0], 1
    %16 = vst.msk [vmem:[%s15] ss:$16 sm:$0x3] %vm14, %v13
    %s17 = scalar_lea.vmem [#allocation0], 31
    %18 = vst.msk [vmem:[%s17] sm:$0x4] %vm14, %v13
    %v19 = vld [vmem:[#allocation1] sm:$0x7]
    %20 = vrot.lane.b32.xlu0 %v19, 120
    %v21 = vpop.permute.xlu0 %20
    %vm22 = vcmask 31744
    %s23 = scalar_lea.vmem [#allocation0], 2
    %24 = vst.msk [vmem:[%s23] ss:$16 sm:$0x3] %vm22, %v21
    %s25 = scalar_lea.vmem [#allocation0], 32
    %26 = vst.msk [vmem:[%s25] sm:$0x4] %vm22, %v21
    %v27 = vld [vmem:[#allocation1] sm:$0x7]
    %28 = vrot.lane.b32.xlu0 %v27, 116
    %v29 = vpop.permute.xlu0 %28
    %vm30 = vcmask 31744
    %s31 = scalar_lea.vmem [#allocation0], 3
    %32 = vst.msk [vmem:[%s31] ss:$16 sm:$0x3] %vm30, %v29
    %s33 = scalar_lea.vmem [#allocation0], 33
    %34 = vst.msk [vmem:[%s33] sm:$0x4] %vm30, %v29
    %v35 = vld [vmem:[#allocation1] sm:$0x7]
    %36 = vrot.lane.b32.xlu0 %v35, 112
    %v37 = vpop.permute.xlu0 %36
    %vm38 = vcmask 31744
    %s39 = scalar_lea.vmem [#allocation0], 8
    %40 = vst.msk [vmem:[%s39] ss:$16 sm:$0x3] %vm38, %v37
    %s41 = scalar_lea.vmem [#allocation0], 38
    %42 = vst.msk [vmem:[%s41] sm:$0x4] %vm38, %v37
    %v43 = vld [vmem:[#allocation1] sm:$0x7]
    %44 = vrot.lane.b32.xlu0 %v43, 108
    %v45 = vpop.permute.xlu0 %44
    %vm46 = vcmask 31744
    %s47 = scalar_lea.vmem [#allocation0], 9
    %48 = vst.msk [vmem:[%s47] ss:$16 sm:$0x3] %vm46, %v45
    %s49 = scalar_lea.vmem [#allocation0], 39
    %50 = vst.msk [vmem:[%s49] sm:$0x4] %vm46, %v45
    %v51 = vld [vmem:[#allocation1] sm:$0x7]
    %52 = vrot.lane.b32.xlu0 %v51, 104
    %v53 = vpop.permute.xlu0 %52
    %vm54 = vcmask 31744
    %s55 = scalar_lea.vmem [#allocation0], 10
    %56 = vst.msk [vmem:[%s55] ss:$16 sm:$0x3] %vm54, %v53
    %s57 = scalar_lea.vmem [#allocation0], 40
    %58 = vst.msk [vmem:[%s57] sm:$0x4] %vm54, %v53
    %v59 = vld [vmem:[#allocation1] sm:$0x7]
    %60 = vrot.lane.b32.xlu0 %v59, 100
    %v61 = vpop.permute.xlu0 %60
    %vm62 = vcmask 31744
    %s63 = scalar_lea.vmem [#allocation0], 11
    %64 = vst.msk [vmem:[%s63] ss:$16 sm:$0x3] %vm62, %v61
    %s65 = scalar_lea.vmem [#allocation0], 41
    %66 = vst.msk [vmem:[%s65] sm:$0x4] %vm62, %v61
    %s68 = sshllo.u32 0, 4
    %v70 = vld [vmem:[#allocation0] sm:%s68]
    %s71 = sshllo.u32 0, 4
    %72 = vst [vmem:[%s1] sm:%s71] %v70
    %s73 = scalar_lea.vmem [#allocation0], 8
    %v74 = vld [vmem:[%s73] sm:%s68]
    %s75 = sshllo.u32 0, 4
    %s76 = scalar_lea.vmem %s1, 4
    %77 = vst [vmem:[%s76] sm:%s75] %v74
    %s78 = scalar_lea.vmem [#allocation0], 16
    %v79 = vld [vmem:[%s78] sm:%s68]
    %s80 = sshllo.u32 0, 4
    %s81 = smul.addr 4, 2
    %s82 = scalar_lea.vmem %s1, %s81
    %83 = vst [vmem:[%s82] sm:%s80] %v79
    %s84 = scalar_lea.vmem [#allocation0], 24
    %v85 = vld [vmem:[%s84] sm:%s68]
    %s86 = sshllo.u32 0, 4
    %s87 = smul.addr 4, 3
    %s88 = scalar_lea.vmem %s1, %s87
    %89 = vst [vmem:[%s88] sm:%s86] %v85
    %s90 = scalar_lea.vmem [#allocation0], 32
    %v91 = vld [vmem:[%s90] sm:%s68]
    %s92 = sshllo.u32 0, 4
    %s93 = smul.addr 4, 4
    %s94 = scalar_lea.vmem %s1, %s93
    %95 = vst [vmem:[%s94] sm:%s92] %v91
    %s96 = scalar_lea.vmem [#allocation0], 40
    %v97 = vld [vmem:[%s96] sm:%s68]
    %s98 = sshllo.u32 0, 4
    %s99 = smul.addr 4, 5
    %s100 = scalar_lea.vmem %s1, %s99
    %101 = vst [vmem:[%s100] sm:%s98] %v97

// kernel: squeeze.86
$region0: #{squeeze.86}
  %s0 = inlined_call_operand.vmem [shape: f32[1,2,32], index: 0, kind: input, shape index: {}]
  %s1 = inlined_call_operand.vmem [shape: f32[2,2,4,4], index: 1, kind: output, shape index: {}]
  $region1: #{squeeze.86} parent=0
    #allocation0 [shape = 'u8[16384]{0}', space=vmem, size = 0x4000, scoped, tag = 'scoped mem for output reshape']
    #allocation1 [shape = 'u8[4096]{0}', space=vmem, size = 0x1000, scoped, tag = 'scoped mem for input reshape']
    %s3 = sshllo.u32 0, 2
    %v4 = vld [vmem:[%s0] sm:%s3]
    %5 = vst [vmem:[#allocation1] sm:%s3] %v4
    %v6 = vld [vmem:[#allocation1] sm:$0x3]
    %vm7 = vcmask 31744
    %8 = vst.msk [vmem:[#allocation0] ss:$16 sm:$0x3] %vm7, %v6
    %v9 = vld [vmem:[#allocation1] sm:$0x3]
    %10 = vrot.lane.b32.xlu0 %v9, 124
    %v11 = vpop.permute.xlu0 %10
    %vm12 = vcmask 31744
    %s13 = scalar_lea.vmem [#allocation0], 1
    %14 = vst.msk [vmem:[%s13] ss:$16 sm:$0x3] %vm12, %v11
    %v15 = vld [vmem:[#allocation1] sm:$0x3]
    %16 = vrot.lane.b32.xlu0 %v15, 120
    %v17 = vpop.permute.xlu0 %16
    %vm18 = vcmask 31744
    %s19 = scalar_lea.vmem [#allocation0], 2
    %20 = vst.msk [vmem:[%s19] ss:$16 sm:$0x3] %vm18, %v17
    %v21 = vld [vmem:[#allocation1] sm:$0x3]
    %22 = vrot.lane.b32.xlu0 %v21, 116
    %v23 = vpop.permute.xlu0 %22
    %vm24 = vcmask 31744
    %s25 = scalar_lea.vmem [#allocation0], 3
    %26 = vst.msk [vmem:[%s25] ss:$16 sm:$0x3] %vm24, %v23
    %v27 = vld [vmem:[#allocation1] sm:$0x3]
    %28 = vrot.lane.b32.xlu0 %v27, 112
    %v29 = vpop.permute.xlu0 %28
    %vm30 = vcmask 31744
    %s31 = scalar_lea.vmem [#allocation0], 8
    %32 = vst.msk [vmem:[%s31] ss:$16 sm:$0x3] %vm30, %v29
    %v33 = vld [vmem:[#allocation1] sm:$0x3]
    %34 = vrot.lane.b32.xlu0 %v33, 108
    %v35 = vpop.permute.xlu0 %34
    %vm36 = vcmask 31744
    %s37 = scalar_lea.vmem [#allocation0], 9
    %38 = vst.msk [vmem:[%s37] ss:$16 sm:$0x3] %vm36, %v35
    %v39 = vld [vmem:[#allocation1] sm:$0x3]
    %40 = vrot.lane.b32.xlu0 %v39, 104
    %v41 = vpop.permute.xlu0 %40
    %vm42 = vcmask 31744
    %s43 = scalar_lea.vmem [#allocation0], 10
    %44 = vst.msk [vmem:[%s43] ss:$16 sm:$0x3] %vm42, %v41
    %v45 = vld [vmem:[#allocation1] sm:$0x3]
    %46 = vrot.lane.b32.xlu0 %v45, 100
    %v47 = vpop.permute.xlu0 %46
    %vm48 = vcmask 31744
    %s49 = scalar_lea.vmem [#allocation0], 11
    %50 = vst.msk [vmem:[%s49] ss:$16 sm:$0x3] %vm48, %v47
    %s52 = sshllo.u32 0, 4
    %v54 = vld [vmem:[#allocation0] sm:%s52]
    %s55 = sshllo.u32 0, 4
    %56 = vst [vmem:[%s1] sm:%s55] %v54
    %s57 = scalar_lea.vmem [#allocation0], 8
    %v58 = vld [vmem:[%s57] sm:%s52]
    %s59 = sshllo.u32 0, 4
    %s60 = scalar_lea.vmem %s1, 4
    %61 = vst [vmem:[%s60] sm:%s59] %v58
    %s62 = scalar_lea.vmem [#allocation0], 16
    %v63 = vld [vmem:[%s62] sm:%s52]
    %s64 = sshllo.u32 0, 4
    %s65 = smul.addr 4, 2
    %s66 = scalar_lea.vmem %s1, %s65
    %67 = vst [vmem:[%s66] sm:%s64] %v63
    %s68 = scalar_lea.vmem [#allocation0], 24
    %v69 = vld [vmem:[%s68] sm:%s52]
    %s70 = sshllo.u32 0, 4
    %s71 = smul.addr 4, 3
    %s72 = scalar_lea.vmem %s1, %s71
    %73 = vst [vmem:[%s72] sm:%s70] %v69

// kernel: uvdocnet_forward.67
$region0: #{uvdocnet_forward.67}
  #allocation0 [shape = 'u32[]', space=smem, size = 0x4, offset = 0x4, fixed_abs, tag = 'smem constant byte address 0x4 - core index']
  #allocation1 [shape = 'u32[144,128]{1,0:T(1,128)}', space=vmem, size = 0x12000, scoped, tag = 'internal scratch']
  %s0 = inlined_call_operand.vmem [shape: bf16[2,112,32], index: 0, kind: input, shape index: {}]
  %s1 = inlined_call_operand.vmem [shape: bf16[2,3,112], index: 1, kind: input, shape index: {}]
  %s2 = inlined_call_operand.vmem [shape: f32[2,3,1], index: 2, kind: input, shape index: {}]
  %s3 = inlined_call_operand.vmem [shape: f32[2,3,32], index: 3, kind: output, shape index: {}]
  %s4 = sld [smem:[#allocation0]]
  $region45: #{uvdocnet_forward.67} parent=0
    _
  %s6 = ssub.s32 1, %s4
  %s7 = scalar_select 0, %s6, %s4
  loop: start=0, step=1, limit=4
  $region2: #{uvdocnet_forward.67} parent=0 // loop_pre_header
    _
  $region3: #{uvdocnet_forward.67} parent=0 // loop_header
    %s9 = sphi 0, %s13
    %p10 = scmp.ge.s32.totalorder %s9, 4
    %s19 = sphi 0, %s21
    %s22 = sphi 0, %s19
    %s23 = sphi 0, %s22
    %s39 = sphi 0, %s23
    %s45 = sphi 0, %s47
    %s48 = sphi 0, %s45
    %s49 = sphi 0, %s48
    %s65 = sphi 0, %s49
    %s71 = sphi 0, %s73
    %s74 = sphi 0, %s71
    %s75 = sphi 0, %s74
    %s91 = sphi 0, %s75
    %s97 = sphi 0, %s99
    %s100 = sphi 0, %s97
    %s101 = sphi 0, %s100
    %s117 = sphi 0, %s101
  $region4: #{uvdocnet_forward.67} parent=0 // loop_header_branch
    %12 = sbr.rel (%p10) target = $region8
  $region5: #{uvdocnet_forward.67} parent=0 // loop_body
    %s14 = ssub.s32 %s9, 1
    %s15 = ssub.s32 %s9, 2
    %s16 = sadd.s32 %s9, 1
    %s17 = ssub.s32 %s9, %s16
    %p18 = scmp.eq.s32.totalorder %s17, 0
    %s20 = sadd.s32 %s19, 1
    %s21 = scalar_select %p18, %s19, %s20
    %p24 = pneg %p18
    %p25 = scmp.eq.s32.totalorder %s9, 1
    %p26 = por %p24, %p25
    %p27 = scmp.ne.s32.totalorder %s19, %s22
    %p28 = scmp.eq.s32.totalorder %s9, 0
    %p29 = por %p27, %p28
    %p30 = scmp.ne.s32.totalorder %s19, %s22
    %p31 = scmp.eq.s32.totalorder %s14, 1
    %p32 = por %p30, %p31
    %p33 = scmp.ne.s32.totalorder %s22, %s23
    %p34 = scmp.eq.s32.totalorder %s14, 0
    %p35 = por %p33, %p34
    %p36 = scmp.ne.s32.totalorder %s22, %s23
    %p37 = scmp.eq.s32.totalorder %s15, 1
    %p38 = por %p36, %p37
    %p40 = scmp.ne.s32.totalorder %s23, %s39
    %p41 = scmp.eq.s32.totalorder %s15, 0
    %p42 = por %p40, %p41
    %s43 = ssub.s32 %s9, %s16
    %p44 = scmp.eq.s32.totalorder %s43, 0
    %s46 = sadd.s32 %s45, 1
    %s47 = scalar_select %p44, %s45, %s46
    %p50 = pneg %p44
    %p51 = scmp.eq.s32.totalorder %s9, 1
    %p52 = por %p50, %p51
    %p53 = scmp.ne.s32.totalorder %s45, %s48
    %p54 = scmp.eq.s32.totalorder %s9, 0
    %p55 = por %p53, %p54
    %p56 = scmp.ne.s32.totalorder %s45, %s48
    %p57 = scmp.eq.s32.totalorder %s14, 1
    %p58 = por %p56, %p57
    %p59 = scmp.ne.s32.totalorder %s48, %s49
    %p60 = scmp.eq.s32.totalorder %s14, 0
    %p61 = por %p59, %p60
    %p62 = scmp.ne.s32.totalorder %s48, %s49
    %p63 = scmp.eq.s32.totalorder %s15, 1
    %p64 = por %p62, %p63
    %p66 = scmp.ne.s32.totalorder %s49, %s65
    %p67 = scmp.eq.s32.totalorder %s15, 0
    %p68 = por %p66, %p67
    %s69 = ssub.s32 %s9, %s16
    %p70 = scmp.eq.s32.totalorder %s69, 0
    %s72 = sadd.s32 %s71, 1
    %s73 = scalar_select %p70, %s71, %s72
    %p76 = pneg %p70
    %p77 = scmp.eq.s32.totalorder %s9, 1
    %p78 = por %p76, %p77
    %p79 = scmp.ne.s32.totalorder %s71, %s74
    %p80 = scmp.eq.s32.totalorder %s9, 0
    %p81 = por %p79, %p80
    %p82 = scmp.ne.s32.totalorder %s71, %s74
    %p83 = scmp.eq.s32.totalorder %s14, 1
    %p84 = por %p82, %p83
    %p85 = scmp.ne.s32.totalorder %s74, %s75
    %p86 = scmp.eq.s32.totalorder %s14, 0
    %p87 = por %p85, %p86
    %p88 = scmp.ne.s32.totalorder %s74, %s75
    %p89 = scmp.eq.s32.totalorder %s15, 1
    %p90 = por %p88, %p89
    %p92 = scmp.ne.s32.totalorder %s75, %s91
    %p93 = scmp.eq.s32.totalorder %s15, 0
    %p94 = por %p92, %p93
    %s95 = ssub.s32 %s9, %s16
    %p96 = scmp.eq.s32.totalorder %s95, 0
    %s98 = sadd.s32 %s97, 1
    %s99 = scalar_select %p96, %s97, %s98
    %p102 = pneg %p96
    %p103 = scmp.eq.s32.totalorder %s9, 1
    %p104 = por %p102, %p103
    %p105 = scmp.ne.s32.totalorder %s97, %s100
    %p106 = scmp.eq.s32.totalorder %s9, 0
    %p107 = por %p105, %p106
    %p108 = scmp.ne.s32.totalorder %s97, %s100
    %p109 = scmp.eq.s32.totalorder %s14, 1
    %p110 = por %p108, %p109
    %p111 = scmp.ne.s32.totalorder %s100, %s101
    %p112 = scmp.eq.s32.totalorder %s14, 0
    %p113 = por %p111, %p112
    %p114 = scmp.ne.s32.totalorder %s100, %s101
    %p115 = scmp.eq.s32.totalorder %s15, 1
    %p116 = por %p114, %p115
    %p118 = scmp.ne.s32.totalorder %s101, %s117
    %p119 = scmp.eq.s32.totalorder %s15, 0
    %p120 = por %p118, %p119
    %p121 = scmp.le.s32.totalorder 1, %s9
    %p122 = scmp.lt.s32.totalorder %s9, 3
    %p123 = pnand %p121, %p122
    %p124 = pneg %p123
    // Predicated region
    $region9: #{uvdocnet_forward.67} parent=5 // pred_check
      _
    $region10: #{uvdocnet_forward.67} parent=5 // pred_check_branch
      %126 = sbr.rel (%p123) target = $region12
    $region11: #{uvdocnet_forward.67} parent=5 // pred_region
      %s127 = ssub.s32 %s9, 1
    $region12: #{uvdocnet_forward.67} parent=5 // pred_fallthru
      _
    %p128 = scmp.lt.s32.totalorder %s9, 2
    // Predicated region
    $region13: #{uvdocnet_forward.67} parent=5 // pred_check
      %p129 = pneg %p128
    $region14: #{uvdocnet_forward.67} parent=5 // pred_check_branch
      %131 = sbr.rel (%p129) target = $region16
    $region15: #{uvdocnet_forward.67} parent=5 // pred_region
      // Predicated region
      $region17: #{uvdocnet_forward.67} parent=15 // pred_check
        %p132 = pneg %p29
      $region18: #{uvdocnet_forward.67} parent=15 // pred_check_branch
        %134 = sbr.rel (%p132) target = $region20
      $region19: #{uvdocnet_forward.67} parent=15 // pred_region
        %p135 = scmp.lt.s32.totalorder %s9, 1
        %s136 = scalar_select %p135, %s9, 1
        %s137 = smul.addr %s136, 14
        %s138 = smul.addr %s137, 4
        %s139 = scalar_lea.vmem %s0, %s138
      $region20: #{uvdocnet_forward.67} parent=15 // pred_fallthru
        _
      // Predicated region
      $region21: #{uvdocnet_forward.67} parent=15 // pred_check
        %p140 = pneg %p55
      $region22: #{uvdocnet_forward.67} parent=15 // pred_check_branch
        %142 = sbr.rel (%p140) target = $region24
      $region23: #{uvdocnet_forward.67} parent=15 // pred_region
        %p143 = scmp.lt.s32.totalorder %s9, 1
        %s144 = scalar_select %p143, %s9, 1
        %s145 = smul.addr %s144, 2
        %s146 = scalar_lea.vmem %s1, %s145
      $region24: #{uvdocnet_forward.67} parent=15 // pred_fallthru
        _
      // Predicated region
      $region25: #{uvdocnet_forward.67} parent=15 // pred_check
        %p147 = pneg %p81
      $region26: #{uvdocnet_forward.67} parent=15 // pred_check_branch
        %149 = sbr.rel (%p147) target = $region28
      $region27: #{uvdocnet_forward.67} parent=15 // pred_region
        %p150 = scmp.lt.s32.totalorder %s9, 1
        %s151 = scalar_select %p150, %s9, 1
        %s152 = smul.addr %s151, 4
        %s153 = scalar_lea.vmem %s2, %s152
      $region28: #{uvdocnet_forward.67} parent=15 // pred_fallthru
        _
    $region16: #{uvdocnet_forward.67} parent=5 // pred_fallthru
      _
    %p154 = scmp.le.s32.totalorder 1, %s9
    %p155 = scmp.lt.s32.totalorder %s9, 3
    %p156 = pnand %p154, %p155
    %p157 = pneg %p156
    // Predicated region
    $region29: #{uvdocnet_forward.67} parent=5 // pred_check
      _
    $region30: #{uvdocnet_forward.67} parent=5 // pred_check_branch
      %159 = sbr.rel (%p156) target = $region32
    $region31: #{uvdocnet_forward.67} parent=5 // pred_region
      %s160 = ssub.s32 %s9, 1
      %p161 = scmp.lt.s32.totalorder %s14, 1
      %s162 = scalar_select %p161, %s14, 1
      %s163 = smul.addr %s162, 14
      %s164 = smul.addr %s163, 4
      %s165 = scalar_lea.vmem %s0, %s164
      %p166 = pneg %p35
      %p167 = pneg %p32
      %p168 = scmp.lt.s32.totalorder %s14, 1
      %s169 = scalar_select %p168, %s14, 1
      %s170 = smul.addr %s169, 2
      %s171 = scalar_lea.vmem %s1, %s170
      %p172 = pneg %p61
      %p173 = pneg %p58
      %p174 = scmp.lt.s32.totalorder %s14, 1
      %s175 = scalar_select %p174, %s14, 1
      %s176 = smul.addr %s175, 4
      %s177 = scalar_lea.vmem %s2, %s176
      %p178 = pneg %p87
      %p179 = pneg %p84
      %p180 = pneg %p113
      %p181 = pneg %p110
      %p182 = scmp.lt.s32.totalorder %s14, 1
      %s183 = scalar_select %p182, %s14, 1
      %s184 = smul.addr %s183, 4
      %s185 = scalar_lea.vmem %s3, %s184
      %p186 = scmp.lt.s32.totalorder %s14, 1
      %s187 = scalar_select %p186, %s14, 1
      %s188 = smul.addr %s187, 14
      %s189 = smul.addr %s188, 4
      %s190 = scalar_lea.vmem %s0, %s189
      %p191 = scmp.lt.s32.totalorder %s14, 1
      %s192 = scalar_select %p191, %s14, 1
      %s193 = smul.addr %s192, 2
      %s194 = scalar_lea.vmem %s1, %s193
      %p195 = scmp.lt.s32.totalorder %s14, 1
      %s196 = scalar_select %p195, %s14, 1
      %s197 = smul.addr %s196, 4
      %s198 = scalar_lea.vmem %s2, %s197
      %p199 = scmp.lt.s32.totalorder %s14, 1
      %s200 = scalar_select %p199, %s14, 1
      %s201 = smul.addr %s200, 4
      %s202 = scalar_lea.vmem %s3, %s201
      %v204 = vld [vmem:[%s194] sm:$0x3]
      %v205 = vld [vmem:[%s190] sm:$0xf]
      %v206 = vld [vmem:[%s190 + $0x4] sm:$0xf]
      %v207 = vld [vmem:[%s190 + $0x8] sm:$0xf]
      %v208 = vld [vmem:[%s190 + $0xc] sm:$0xf]
      %v209 = vld [vmem:[%s190 + $0x10] sm:$0xf]
      %v210 = vld [vmem:[%s190 + $0x14] sm:$0xf]
      %v211 = vld [vmem:[%s190 + $0x18] sm:$0xf]
      %v212 = vld [vmem:[%s190 + $0x1c] sm:$0xf]
      %v213 = vld [vmem:[%s190 + $0x20] sm:$0xf]
      %v214 = vld [vmem:[%s190 + $0x24] sm:$0xf]
      %v215 = vld [vmem:[%s190 + $0x28] sm:$0xf]
      %v216 = vld [vmem:[%s190 + $0x2c] sm:$0xf]
      %v217 = vld [vmem:[%s190 + $0x30] sm:$0xf]
      %v218 = vld [vmem:[%s190 + $0x34] sm:$0xf]
      %v219 = vld [vmem:[%s198] sm:$0x7]
      %221 = vset.pattern.permute.xlu0 0
      %222 = vperm.xlu0 %221, %v219
      %v223 = vpop.permute.xlu0 %222
      %v239 = vunpack.c.l.b16 %v205
      %v240 = vunpack.c.l.b16 %v206
      %v241 = vunpack.c.l.b16 %v207
      %v242 = vunpack.c.l.b16 %v208
      %v243 = vunpack.c.l.b16 %v209
      %v244 = vunpack.c.l.b16 %v210
      %v245 = vunpack.c.l.b16 %v211
      %v246 = vunpack.c.l.b16 %v212
      %v247 = vunpack.c.l.b16 %v213
      %v248 = vunpack.c.l.b16 %v214
      %v249 = vunpack.c.l.b16 %v215
      %v250 = vunpack.c.l.b16 %v216
      %v251 = vunpack.c.l.b16 %v217
      %v252 = vunpack.c.l.b16 %v218
      %v253 = vpack.c.b16 %v240, %v239
      %v254 = vpack.c.b16 %v242, %v241
      %v255 = vpack.c.b16 %v244, %v243
      %v256 = vpack.c.b16 %v246, %v245
      %v257 = vpack.c.b16 %v248, %v247
      %v258 = vpack.c.b16 %v250, %v249
      %v259 = vpack.c.b16 %v252, %v251
      %vm267 = vcmask 916480
      %v269 = vsel %vm267, %v204, 0
      %271 = vmatprep.subr.bf16.mxu0 0
      %272 = vmatpush1.bf16.msra.mxu0 %v253
      %273 = vmatprep.subr.bf16.mxu0 0
      %274 = vmatpush1.bf16.msra.mxu0 %v254
      %275 = vmatprep.subr.bf16.mxu0 0
      %276 = vmatpush1.bf16.msra.mxu0 %v255
      %277 = vmatprep.subr.bf16.mxu0 0
      %278 = vmatpush1.bf16.msra.mxu0 %v256
      %279 = vmatprep.subr.bf16.mxu0 0
      %280 = vmatpush1.bf16.msra.mxu0 %v257
      %281 = vmatprep.subr.bf16.mxu0 0
      %282 = vmatpush1.bf16.msra.mxu0 %v258
      %283 = vmatprep.subr.bf16.mxu0 0
      %284 = vmatpush1.bf16.msra.mxu0 %v259
      %285 = vmatprep.subr.bf16.mxu0 0
      %286 = vmatpush1.bf16.msra.mxu0 0
      %287 = vmatprep.subr.bf16.mxu0 0
      %288 = vmatpush1.bf16.msra.mxu0 0
      %289 = vmatprep.subr.bf16.mxu0 0
      %290 = vmatpush1.bf16.msra.mxu0 0
      %291 = vmatprep.subr.bf16.mxu0 0
      %292 = vmatpush1.bf16.msra.mxu0 0
      %293 = vmatprep.subr.bf16.mxu0 0
      %294 = vmatpush1.bf16.msra.mxu0 0
      %295 = vmatprep.subr.bf16.mxu0 0
      %296 = vmatpush1.bf16.msra.mxu0 0
      %297 = vmatprep.subr.bf16.mxu0 0
      %298 = vmatpush1.bf16.msra.mxu0 0
      %299 = vmatprep.subr.bf16.mxu0 0
      %300 = vmatpush1.bf16.msra.mxu0 0
      %301 = vmatprep.subr.bf16.mxu0 0
      %302 = vmatpush1.bf16.msra.mxu0 0
      %303 = vmatprep.mubr.bf16.mxu0 0
      %304 = vmatmul.mubr.bf16.gmra.mrb[0].mxu0 %v269
      %v305 = vpop.f32.mrb[0].mxu0
      %v306 = vadd.f32 %v223, %v305
      %v307 = vpop.f32.mrb[0].mxu0
      %v308 = vpop.f32.mrb[0].mxu0
      %v309 = vpop.f32.mrb[0].mxu0
      %310 = vdwg.mxu0
      %vm311 = vcmask 256000
      %312 = vst.msk [vmem:[%s202] sm:$0x7] %vm311, %v306
      %p313 = scmp.lt.s32.totalorder %s14, 1
      %s314 = scalar_select %p313, %s14, 1
      %s315 = smul.addr %s314, 4
      %s316 = scalar_lea.vmem %s3, %s315
      // Predicated region
      $region33: #{uvdocnet_forward.67} parent=31 // pred_check
        %p317 = pneg %p110
      $region34: #{uvdocnet_forward.67} parent=31 // pred_check_branch
        %319 = sbr.rel (%p317) target = $region36
      $region35: #{uvdocnet_forward.67} parent=31 // pred_region
        _
      $region36: #{uvdocnet_forward.67} parent=31 // pred_fallthru
        _
    $region32: #{uvdocnet_forward.67} parent=5 // pred_fallthru
      _
    %p320 = scmp.le.s32.totalorder 2, %s9
    // Predicated region
    $region37: #{uvdocnet_forward.67} parent=5 // pred_check
      %p321 = pneg %p320
    $region38: #{uvdocnet_forward.67} parent=5 // pred_check_branch
      %323 = sbr.rel (%p321) target = $region40
    $region39: #{uvdocnet_forward.67} parent=5 // pred_region
      %s324 = ssub.s32 %s9, 2
      // Predicated region
      $region41: #{uvdocnet_forward.67} parent=39 // pred_check
        %p325 = pneg %p116
      $region42: #{uvdocnet_forward.67} parent=39 // pred_check_branch
        %327 = sbr.rel (%p325) target = $region44
      $region43: #{uvdocnet_forward.67} parent=39 // pred_region
        %p328 = scmp.lt.s32.totalorder %s15, 1
        %s329 = scalar_select %p328, %s15, 1
        %s330 = smul.addr %s329, 4
        %s331 = scalar_lea.vmem %s3, %s330
      $region44: #{uvdocnet_forward.67} parent=39 // pred_fallthru
        _
    $region40: #{uvdocnet_forward.67} parent=5 // pred_fallthru
      _
  $region6: #{uvdocnet_forward.67} parent=0 // loop_footer
    %s13 = sadd.s32 1, %s9
  $region7: #{uvdocnet_forward.67} parent=0 // loop_footer_branch
    %8 = sbr.rel target = $region3
  $region8: #{uvdocnet_forward.67} parent=0 // loop_exit
    _

</llo_original>
